<compile_context>
chip_gen: v6e
topology: v6e:2x2x1
jax: 0.10.0
libtpu: 0.0.40
codegen_flags: <defaults>
</compile_context>

<pallas_src>
import functools

import jax
import jax.numpy as jnp
import numpy as np
from jax import lax
from jax.experimental import pallas as pl
from jax.experimental.pallas import tpu as pltpu


def _basic_block_kernel(dilation, eps,
                        xpad_ref, w1_ref, w2_ref, wp_ref,
                        g1_ref, b1_ref, g2_ref, b2_ref,
                        out_ref, mid_ref):
    d = dilation
    B, Hp, Wp, Cin = xpad_ref.shape
    H = Hp - 2 * d
    W = Wp - 2 * d
    P = out_ref.shape[-1]            # lane-padded plane count (multiple of 128)
    N = B * H * W
    inv_n = 1.0 / N                  # static python float

    x = xpad_ref[...]                # activation dtype (f32 / bf16), zero padded

    # ---- conv1: 3x3 dilated conv as 9 tap-shifted matmuls (f32 MXU accum) ----
    # H-slices are free (leading dim); the W-slice + flatten is the only
    # relayout and it is the shift the algorithm needs anyway.
    acc = None
    xc = None
    for t in range(9):
        ky, kx = divmod(t, 3)
        patch = x[:, ky * d:ky * d + H, kx * d:kx * d + W, :].reshape(N, Cin)
        if t == 4:
            xc = patch               # center tap == un-padded input; reused for residual
        contrib = jnp.dot(patch, w1_ref[t], preferred_element_type=jnp.float32)
        acc = contrib if acc is None else acc + contrib

    # ---- bn1: single-pass batch stats folded into scale/shift, then relu ----
    m1 = jnp.sum(acc, axis=0, keepdims=True) * inv_n
    ss1 = jnp.sum(acc * acc, axis=0, keepdims=True) * inv_n
    var1 = ss1 - m1 * m1
    scale1 = g1_ref[...] * lax.rsqrt(var1 + eps)        # (1, P), broadcast over rows
    shift1 = b1_ref[...] - m1 * scale1
    y1 = jnp.maximum(acc * scale1 + shift1, 0.0)

    # ---- stage y1 into the padded scratch; zero only the halo border ----
    mid_ref[:, 0:d, :, :] = jnp.zeros((B, d, Wp, P), mid_ref.dtype)
    mid_ref[:, d + H:Hp, :, :] = jnp.zeros((B, d, Wp, P), mid_ref.dtype)
    mid_ref[:, d:d + H, 0:d, :] = jnp.zeros((B, H, d, P), mid_ref.dtype)
    mid_ref[:, d:d + H, d + W:Wp, :] = jnp.zeros((B, H, d, P), mid_ref.dtype)
    mid_ref[:, d:d + H, d:d + W, :] = y1.reshape(B, H, W, P).astype(mid_ref.dtype)
    y1p = mid_ref[...]

    # ---- conv2: 3x3 dilated conv, stride 1 ----
    acc2 = None
    for t in range(9):
        ky, kx = divmod(t, 3)
        patch = y1p[:, ky * d:ky * d + H, kx * d:kx * d + W, :].reshape(N, P)
        contrib = jnp.dot(patch, w2_ref[t], preferred_element_type=jnp.float32)
        acc2 = contrib if acc2 is None else acc2 + contrib

    # ---- bn2 + residual (1x1 conv, computed late) + relu ----
    m2 = jnp.sum(acc2, axis=0, keepdims=True) * inv_n
    ss2 = jnp.sum(acc2 * acc2, axis=0, keepdims=True) * inv_n
    var2 = ss2 - m2 * m2
    scale2 = g2_ref[...] * lax.rsqrt(var2 + eps)
    shift2 = b2_ref[...] - m2 * scale2
    residual = jnp.dot(xc, wp_ref[...], preferred_element_type=jnp.float32)
    out = jnp.maximum(acc2 * scale2 + (shift2 + residual), 0.0)

    out_ref[...] = out.reshape(B, H, W, P).astype(out_ref.dtype)


def basic_block_forward(x_nchw, w1, w2, wp, g1, b1, g2, b2,
                        dilation=1, stride=1, eps=1e-5):
    """x_nchw: (B, Cin, H, W). Conv weights in PyTorch OIHW layout."""
    assert stride == 1  # TODO(synk): stride>1 (strided downsampling) path not implemented
    B, Cin, H, W = x_nchw.shape
    P = w1.shape[0]
    d = dilation
    P_pad = ((P + 127) // 128) * 128           # lane-dense plane count
    dt = x_nchw.dtype
    itemsize = jnp.dtype(dt).itemsize

    # glue: NCHW -> NHWC, zero-pad spatially
    x_nhwc = jnp.transpose(x_nchw, (0, 2, 3, 1))
    xpad = jnp.pad(x_nhwc, ((0, 0), (d, d), (d, d), (0, 0)))

    # weights: OIHW -> (tap, Cin, P), zero-pad the output-channel (lane) axis
    w1_t = jnp.pad(jnp.transpose(w1, (2, 3, 1, 0)).reshape(9, Cin, P),
                   ((0, 0), (0, 0), (0, P_pad - P))).astype(dt)
    w2_t = jnp.pad(jnp.transpose(w2, (2, 3, 1, 0)).reshape(9, P, P),
                   ((0, 0), (0, P_pad - P), (0, P_pad - P))).astype(dt)
    wp_t = jnp.pad(jnp.transpose(wp[:, :, 0, 0], (1, 0)),
                   ((0, 0), (0, P_pad - P))).astype(dt)            # (Cin, P_pad)

    def pad_vec(v):
        return jnp.pad(v.astype(jnp.float32).reshape(1, P), ((0, 0), (0, P_pad - P)))

    g1p, b1p, g2p, b2p = pad_vec(g1), pad_vec(b1), pad_vec(g2), pad_vec(b2)

    # VMEM budget: inputs + output + padded-intermediate scratch + f32 temporaries
    est = ((xpad.size + w1_t.size + w2_t.size + wp_t.size + 4 * P_pad) * itemsize
           + B * H * W * P_pad * itemsize                          # output
           + B * (H + 2 * d) * (W + 2 * d) * P_pad * itemsize      # mid scratch
           + 4 * B * H * W * P_pad * 4)                            # f32 accumulators
    if est > (40 << 20):
        # TODO(synk): tiled two-pass-BN path for large activations (see header note).
        raise NotImplementedError("activation too large for single-call VMEM-resident path")
    vmem_limit = min(3 * int(est) + (4 << 20), 64 << 20)

    kernel = functools.partial(_basic_block_kernel, d, eps)
    out_nhwc = pl.pallas_call(
        kernel,
        out_shape=jax.ShapeDtypeStruct((B, H, W, P_pad), dt),
        in_specs=[pl.BlockSpec(memory_space=pltpu.MemorySpace.VMEM)] * 8,
        out_specs=pl.BlockSpec(memory_space=pltpu.MemorySpace.VMEM),
        scratch_shapes=[pltpu.VMEM((B, H + 2 * d, W + 2 * d, P_pad), dt)],
        compiler_params=pltpu.CompilerParams(vmem_limit_bytes=vmem_limit),
    )(xpad, w1_t, w2_t, wp_t, g1p, b1p, g2p, b2p)

    # drop the lane padding, back to NCHW
    return jnp.transpose(out_nhwc[..., :P], (0, 3, 1, 2))


def ref_forward(x, w1, w2, wp, g1, b1, g2, b2, dilation=1, eps=1e-5):
    """Pure-JAX reference mirroring the PyTorch forward (train-mode BN)."""
    dn = ('NCHW', 'OIHW', 'NCHW')
    d = dilation

    def conv(x_, w_, pad, dil):
        return lax.conv_general_dilated(
            x_, w_, window_strides=(1, 1), padding=[(pad, pad), (pad, pad)],
            rhs_dilation=(dil, dil), dimension_numbers=dn)

    def bn(y, g, b):
        m = jnp.mean(y, axis=(0, 2, 3), keepdims=True)
        v = jnp.mean((y - m) ** 2, axis=(0, 2, 3), keepdims=True)
        return (y - m) * lax.rsqrt(v + eps) * g.reshape(1, -1, 1, 1) + b.reshape(1, -1, 1, 1)

    residual = conv(x, wp, 0, 1)
    out = jnp.maximum(bn(conv(x, w1, d, d), g1, b1), 0.0)
    out = bn(conv(out, w2, d, d), g2, b2)
    return jnp.maximum(out + residual, 0.0)


if __name__ == "__main__":
    B, Cin, H, W = 2, 4, 16, 16
    planes = 8

    key = jax.random.PRNGKey(0)
    ks = jax.random.split(key, 8)
    x = jax.random.normal(ks[0], (B, Cin, H, W), jnp.float32)
    w1 = jax.random.normal(ks[1], (planes, Cin, 3, 3), jnp.float32) * 0.1
    w2 = jax.random.normal(ks[2], (planes, planes, 3, 3), jnp.float32) * 0.1
    wp = jax.random.normal(ks[3], (planes, Cin, 1, 1), jnp.float32) * 0.1
    g1 = 1.0 + 0.1 * jax.random.normal(ks[4], (planes,), jnp.float32)
    b1 = 0.1 * jax.random.normal(ks[5], (planes,), jnp.float32)
    g2 = 1.0 + 0.1 * jax.random.normal(ks[6], (planes,), jnp.float32)
    b2 = 0.1 * jax.random.normal(ks[7], (planes,), jnp.float32)

    for dil in (1, 2):
        out = jax.block_until_ready(
            basic_block_forward(x, w1, w2, wp, g1, b1, g2, b2, dilation=dil))
        ref = jax.block_until_ready(
            ref_forward(x, w1, w2, wp, g1, b1, g2, b2, dilation=dil))
        np.testing.assert_allclose(np.asarray(out), np.asarray(ref),
                                   atol=2e-3, rtol=2e-3)

    print("KERNEL_OK")
</pallas_src>

<mosaic_0001>
module attributes {stable_mosaic.version = 11 : i64} {
  func.func @_basic_block_kernel(%arg0: memref<2x18x18x4xf32, #tpu.memory_space<vmem>>, %arg1: memref<9x4x128xf32, #tpu.memory_space<vmem>>, %arg2: memref<9x128x128xf32, #tpu.memory_space<vmem>>, %arg3: memref<4x128xf32, #tpu.memory_space<vmem>>, %arg4: memref<1x128xf32, #tpu.memory_space<vmem>>, %arg5: memref<1x128xf32, #tpu.memory_space<vmem>>, %arg6: memref<1x128xf32, #tpu.memory_space<vmem>>, %arg7: memref<1x128xf32, #tpu.memory_space<vmem>>, %arg8: memref<2x16x16x128xf32, #tpu.memory_space<vmem>>, %arg9: memref<2x18x18x128xf32, #tpu.memory_space<vmem>>) attributes {dimension_semantics = [], scalar_prefetch = 0 : i64, scratch_operands = 1 : i64, tpu.core_type = #tpu.core_type<tc>} {
    %c0 = arith.constant 0 : index
    %c0_0 = arith.constant 0 : index
    %c0_1 = arith.constant 0 : index
    %c0_2 = arith.constant 0 : index
    %0 = vector.load %arg0[%c0, %c0_0, %c0_1, %c0_2] : memref<2x18x18x4xf32, #tpu.memory_space<vmem>>, vector<2x18x18x4xf32>
    %1 = vector.extract_strided_slice %0 {offsets = [0, 0, 0, 0], sizes = [2, 16, 16, 4], strides = [1, 1, 1, 1]} : vector<2x18x18x4xf32> to vector<2x16x16x4xf32>
    %2 = vector.shape_cast %1 : vector<2x16x16x4xf32> to vector<512x4xf32>
    %c0_3 = arith.constant 0 : index
    %c0_4 = arith.constant 0 : index
    %c0_5 = arith.constant 0 : index
    %3 = vector.load %arg1[%c0_3, %c0_4, %c0_5] : memref<9x4x128xf32, #tpu.memory_space<vmem>>, vector<1x4x128xf32>
    %4 = vector.shape_cast %3 : vector<1x4x128xf32> to vector<4x128xf32>
    %cst = arith.constant dense<0.000000e+00> : vector<512x128xf32>
    %5 = tpu.matmul %2, %4, %cst {dimension_numbers = #tpu.dot_dimension_numbers<[1], [0], [0], [1], [0, 0, 1, 1], [], []>} : vector<512x4xf32>, vector<4x128xf32>, vector<512x128xf32> -> vector<512x128xf32>
    %6 = vector.extract_strided_slice %0 {offsets = [0, 0, 1, 0], sizes = [2, 16, 16, 4], strides = [1, 1, 1, 1]} : vector<2x18x18x4xf32> to vector<2x16x16x4xf32>
    %7 = vector.shape_cast %6 : vector<2x16x16x4xf32> to vector<512x4xf32>
    %c1 = arith.constant 1 : index
    %c0_6 = arith.constant 0 : index
    %c0_7 = arith.constant 0 : index
    %8 = vector.load %arg1[%c1, %c0_6, %c0_7] : memref<9x4x128xf32, #tpu.memory_space<vmem>>, vector<1x4x128xf32>
    %9 = vector.shape_cast %8 : vector<1x4x128xf32> to vector<4x128xf32>
    %cst_8 = arith.constant dense<0.000000e+00> : vector<512x128xf32>
    %10 = tpu.matmul %7, %9, %cst_8 {dimension_numbers = #tpu.dot_dimension_numbers<[1], [0], [0], [1], [0, 0, 1, 1], [], []>} : vector<512x4xf32>, vector<4x128xf32>, vector<512x128xf32> -> vector<512x128xf32>
    %11 = arith.addf %5, %10 : vector<512x128xf32>
    %12 = vector.extract_strided_slice %0 {offsets = [0, 0, 2, 0], sizes = [2, 16, 16, 4], strides = [1, 1, 1, 1]} : vector<2x18x18x4xf32> to vector<2x16x16x4xf32>
    %13 = vector.shape_cast %12 : vector<2x16x16x4xf32> to vector<512x4xf32>
    %c2 = arith.constant 2 : index
    %c0_9 = arith.constant 0 : index
    %c0_10 = arith.constant 0 : index
    %14 = vector.load %arg1[%c2, %c0_9, %c0_10] : memref<9x4x128xf32, #tpu.memory_space<vmem>>, vector<1x4x128xf32>
    %15 = vector.shape_cast %14 : vector<1x4x128xf32> to vector<4x128xf32>
    %cst_11 = arith.constant dense<0.000000e+00> : vector<512x128xf32>
    %16 = tpu.matmul %13, %15, %cst_11 {dimension_numbers = #tpu.dot_dimension_numbers<[1], [0], [0], [1], [0, 0, 1, 1], [], []>} : vector<512x4xf32>, vector<4x128xf32>, vector<512x128xf32> -> vector<512x128xf32>
    %17 = arith.addf %11, %16 : vector<512x128xf32>
    %18 = vector.extract_strided_slice %0 {offsets = [0, 1, 0, 0], sizes = [2, 16, 16, 4], strides = [1, 1, 1, 1]} : vector<2x18x18x4xf32> to vector<2x16x16x4xf32>
    %19 = vector.shape_cast %18 : vector<2x16x16x4xf32> to vector<512x4xf32>
    %c3 = arith.constant 3 : index
    %c0_12 = arith.constant 0 : index
    %c0_13 = arith.constant 0 : index
    %20 = vector.load %arg1[%c3, %c0_12, %c0_13] : memref<9x4x128xf32, #tpu.memory_space<vmem>>, vector<1x4x128xf32>
    %21 = vector.shape_cast %20 : vector<1x4x128xf32> to vector<4x128xf32>
    %cst_14 = arith.constant dense<0.000000e+00> : vector<512x128xf32>
    %22 = tpu.matmul %19, %21, %cst_14 {dimension_numbers = #tpu.dot_dimension_numbers<[1], [0], [0], [1], [0, 0, 1, 1], [], []>} : vector<512x4xf32>, vector<4x128xf32>, vector<512x128xf32> -> vector<512x128xf32>
    %23 = arith.addf %17, %22 : vector<512x128xf32>
    %24 = vector.extract_strided_slice %0 {offsets = [0, 1, 1, 0], sizes = [2, 16, 16, 4], strides = [1, 1, 1, 1]} : vector<2x18x18x4xf32> to vector<2x16x16x4xf32>
    %25 = vector.shape_cast %24 : vector<2x16x16x4xf32> to vector<512x4xf32>
    %c4 = arith.constant 4 : index
    %c0_15 = arith.constant 0 : index
    %c0_16 = arith.constant 0 : index
    %26 = vector.load %arg1[%c4, %c0_15, %c0_16] : memref<9x4x128xf32, #tpu.memory_space<vmem>>, vector<1x4x128xf32>
    %27 = vector.shape_cast %26 : vector<1x4x128xf32> to vector<4x128xf32>
    %cst_17 = arith.constant dense<0.000000e+00> : vector<512x128xf32>
    %28 = tpu.matmul %25, %27, %cst_17 {dimension_numbers = #tpu.dot_dimension_numbers<[1], [0], [0], [1], [0, 0, 1, 1], [], []>} : vector<512x4xf32>, vector<4x128xf32>, vector<512x128xf32> -> vector<512x128xf32>
    %29 = arith.addf %23, %28 : vector<512x128xf32>
    %30 = vector.extract_strided_slice %0 {offsets = [0, 1, 2, 0], sizes = [2, 16, 16, 4], strides = [1, 1, 1, 1]} : vector<2x18x18x4xf32> to vector<2x16x16x4xf32>
    %31 = vector.shape_cast %30 : vector<2x16x16x4xf32> to vector<512x4xf32>
    %c5 = arith.constant 5 : index
    %c0_18 = arith.constant 0 : index
    %c0_19 = arith.constant 0 : index
    %32 = vector.load %arg1[%c5, %c0_18, %c0_19] : memref<9x4x128xf32, #tpu.memory_space<vmem>>, vector<1x4x128xf32>
    %33 = vector.shape_cast %32 : vector<1x4x128xf32> to vector<4x128xf32>
    %cst_20 = arith.constant dense<0.000000e+00> : vector<512x128xf32>
    %34 = tpu.matmul %31, %33, %cst_20 {dimension_numbers = #tpu.dot_dimension_numbers<[1], [0], [0], [1], [0, 0, 1, 1], [], []>} : vector<512x4xf32>, vector<4x128xf32>, vector<512x128xf32> -> vector<512x128xf32>
    %35 = arith.addf %29, %34 : vector<512x128xf32>
    %36 = vector.extract_strided_slice %0 {offsets = [0, 2, 0, 0], sizes = [2, 16, 16, 4], strides = [1, 1, 1, 1]} : vector<2x18x18x4xf32> to vector<2x16x16x4xf32>
    %37 = vector.shape_cast %36 : vector<2x16x16x4xf32> to vector<512x4xf32>
    %c6 = arith.constant 6 : index
    %c0_21 = arith.constant 0 : index
    %c0_22 = arith.constant 0 : index
    %38 = vector.load %arg1[%c6, %c0_21, %c0_22] : memref<9x4x128xf32, #tpu.memory_space<vmem>>, vector<1x4x128xf32>
    %39 = vector.shape_cast %38 : vector<1x4x128xf32> to vector<4x128xf32>
    %cst_23 = arith.constant dense<0.000000e+00> : vector<512x128xf32>
    %40 = tpu.matmul %37, %39, %cst_23 {dimension_numbers = #tpu.dot_dimension_numbers<[1], [0], [0], [1], [0, 0, 1, 1], [], []>} : vector<512x4xf32>, vector<4x128xf32>, vector<512x128xf32> -> vector<512x128xf32>
    %41 = arith.addf %35, %40 : vector<512x128xf32>
    %42 = vector.extract_strided_slice %0 {offsets = [0, 2, 1, 0], sizes = [2, 16, 16, 4], strides = [1, 1, 1, 1]} : vector<2x18x18x4xf32> to vector<2x16x16x4xf32>
    %43 = vector.shape_cast %42 : vector<2x16x16x4xf32> to vector<512x4xf32>
    %c7 = arith.constant 7 : index
    %c0_24 = arith.constant 0 : index
    %c0_25 = arith.constant 0 : index
    %44 = vector.load %arg1[%c7, %c0_24, %c0_25] : memref<9x4x128xf32, #tpu.memory_space<vmem>>, vector<1x4x128xf32>
    %45 = vector.shape_cast %44 : vector<1x4x128xf32> to vector<4x128xf32>
    %cst_26 = arith.constant dense<0.000000e+00> : vector<512x128xf32>
    %46 = tpu.matmul %43, %45, %cst_26 {dimension_numbers = #tpu.dot_dimension_numbers<[1], [0], [0], [1], [0, 0, 1, 1], [], []>} : vector<512x4xf32>, vector<4x128xf32>, vector<512x128xf32> -> vector<512x128xf32>
    %47 = arith.addf %41, %46 : vector<512x128xf32>
    %48 = vector.extract_strided_slice %0 {offsets = [0, 2, 2, 0], sizes = [2, 16, 16, 4], strides = [1, 1, 1, 1]} : vector<2x18x18x4xf32> to vector<2x16x16x4xf32>
    %49 = vector.shape_cast %48 : vector<2x16x16x4xf32> to vector<512x4xf32>
    %c8 = arith.constant 8 : index
    %c0_27 = arith.constant 0 : index
    %c0_28 = arith.constant 0 : index
    %50 = vector.load %arg1[%c8, %c0_27, %c0_28] : memref<9x4x128xf32, #tpu.memory_space<vmem>>, vector<1x4x128xf32>
    %51 = vector.shape_cast %50 : vector<1x4x128xf32> to vector<4x128xf32>
    %cst_29 = arith.constant dense<0.000000e+00> : vector<512x128xf32>
    %52 = tpu.matmul %49, %51, %cst_29 {dimension_numbers = #tpu.dot_dimension_numbers<[1], [0], [0], [1], [0, 0, 1, 1], [], []>} : vector<512x4xf32>, vector<4x128xf32>, vector<512x128xf32> -> vector<512x128xf32>
    %53 = arith.addf %47, %52 : vector<512x128xf32>
    %cst_30 = arith.constant dense<0.000000e+00> : vector<128xf32>
    %54 = vector.multi_reduction <add>, %53, %cst_30 [0] : vector<512x128xf32> to vector<128xf32>
    %55 = vector.shape_cast %54 : vector<128xf32> to vector<1x128xf32>
    %cst_31 = arith.constant 0.001953125 : f32
    %56 = vector.broadcast %cst_31 : f32 to vector<1x128xf32>
    %57 = arith.mulf %55, %56 : vector<1x128xf32>
    %58 = arith.mulf %53, %53 : vector<512x128xf32>
    %cst_32 = arith.constant dense<0.000000e+00> : vector<128xf32>
    %59 = vector.multi_reduction <add>, %58, %cst_32 [0] : vector<512x128xf32> to vector<128xf32>
    %60 = vector.shape_cast %59 : vector<128xf32> to vector<1x128xf32>
    %cst_33 = arith.constant 0.001953125 : f32
    %61 = vector.broadcast %cst_33 : f32 to vector<1x128xf32>
    %62 = arith.mulf %60, %61 : vector<1x128xf32>
    %63 = arith.mulf %57, %57 : vector<1x128xf32>
    %64 = arith.subf %62, %63 : vector<1x128xf32>
    %c0_34 = arith.constant 0 : index
    %c0_35 = arith.constant 0 : index
    %65 = vector.load %arg4[%c0_34, %c0_35] : memref<1x128xf32, #tpu.memory_space<vmem>>, vector<1x128xf32>
    %cst_36 = arith.constant 9.99999974E-6 : f32
    %66 = vector.broadcast %cst_36 : f32 to vector<1x128xf32>
    %67 = arith.addf %64, %66 : vector<1x128xf32>
    %68 = math.rsqrt %67 : vector<1x128xf32>
    %69 = arith.mulf %65, %68 : vector<1x128xf32>
    %c0_37 = arith.constant 0 : index
    %c0_38 = arith.constant 0 : index
    %70 = vector.load %arg5[%c0_37, %c0_38] : memref<1x128xf32, #tpu.memory_space<vmem>>, vector<1x128xf32>
    %71 = arith.mulf %57, %69 : vector<1x128xf32>
    %72 = arith.subf %70, %71 : vector<1x128xf32>
    %73 = vector.broadcast %69 : vector<1x128xf32> to vector<512x128xf32>
    %74 = arith.mulf %53, %73 : vector<512x128xf32>
    %75 = vector.broadcast %72 : vector<1x128xf32> to vector<512x128xf32>
    %76 = arith.addf %74, %75 : vector<512x128xf32>
    %cst_39 = arith.constant 0.000000e+00 : f32
    %77 = vector.broadcast %cst_39 : f32 to vector<512x128xf32>
    %78 = arith.maximumf %76, %77 : vector<512x128xf32>
    %cst_40 = arith.constant 0.000000e+00 : f32
    %79 = vector.broadcast %cst_40 : f32 to vector<2x1x18x128xf32>
    %c0_41 = arith.constant 0 : index
    %c0_42 = arith.constant 0 : index
    %c0_43 = arith.constant 0 : index
    %c0_44 = arith.constant 0 : index
    %80 = vector.load %arg9[%c0_41, %c0_42, %c0_43, %c0_44] : memref<2x18x18x128xf32, #tpu.memory_space<vmem>>, vector<2x1x18x128xf32>
    tpu.vector_store %arg9[%c0_41, %c0_42, %c0_43, %c0_44], %79 {strides = array<i32>} : memref<2x18x18x128xf32, #tpu.memory_space<vmem>>, vector<2x1x18x128xf32>,
    %cst_45 = arith.constant 0.000000e+00 : f32
    %81 = vector.broadcast %cst_45 : f32 to vector<2x1x18x128xf32>
    %c0_46 = arith.constant 0 : index
    %c17 = arith.constant 17 : index
    %c0_47 = arith.constant 0 : index
    %c0_48 = arith.constant 0 : index
    %82 = vector.load %arg9[%c0_46, %c17, %c0_47, %c0_48] : memref<2x18x18x128xf32, #tpu.memory_space<vmem>>, vector<2x1x18x128xf32>
    tpu.vector_store %arg9[%c0_46, %c17, %c0_47, %c0_48], %81 {strides = array<i32>} : memref<2x18x18x128xf32, #tpu.memory_space<vmem>>, vector<2x1x18x128xf32>,
    %cst_49 = arith.constant 0.000000e+00 : f32
    %83 = vector.broadcast %cst_49 : f32 to vector<2x16x1x128xf32>
    %c0_50 = arith.constant 0 : index
    %c1_51 = arith.constant 1 : index
    %c0_52 = arith.constant 0 : index
    %c0_53 = arith.constant 0 : index
    %84 = vector.load %arg9[%c0_50, %c1_51, %c0_52, %c0_53] : memref<2x18x18x128xf32, #tpu.memory_space<vmem>>, vector<2x16x1x128xf32>
    tpu.vector_store %arg9[%c0_50, %c1_51, %c0_52, %c0_53], %83 {strides = array<i32>} : memref<2x18x18x128xf32, #tpu.memory_space<vmem>>, vector<2x16x1x128xf32>,
    %cst_54 = arith.constant 0.000000e+00 : f32
    %85 = vector.broadcast %cst_54 : f32 to vector<2x16x1x128xf32>
    %c0_55 = arith.constant 0 : index
    %c1_56 = arith.constant 1 : index
    %c17_57 = arith.constant 17 : index
    %c0_58 = arith.constant 0 : index
    %86 = vector.load %arg9[%c0_55, %c1_56, %c17_57, %c0_58] : memref<2x18x18x128xf32, #tpu.memory_space<vmem>>, vector<2x16x1x128xf32>
    tpu.vector_store %arg9[%c0_55, %c1_56, %c17_57, %c0_58], %85 {strides = array<i32>} : memref<2x18x18x128xf32, #tpu.memory_space<vmem>>, vector<2x16x1x128xf32>,
    %87 = vector.shape_cast %78 : vector<512x128xf32> to vector<2x16x16x128xf32>
    %c0_59 = arith.constant 0 : index
    %c1_60 = arith.constant 1 : index
    %c1_61 = arith.constant 1 : index
    %c0_62 = arith.constant 0 : index
    %88 = vector.load %arg9[%c0_59, %c1_60, %c1_61, %c0_62] : memref<2x18x18x128xf32, #tpu.memory_space<vmem>>, vector<2x16x16x128xf32>
    tpu.vector_store %arg9[%c0_59, %c1_60, %c1_61, %c0_62], %87 {strides = array<i32>} : memref<2x18x18x128xf32, #tpu.memory_space<vmem>>, vector<2x16x16x128xf32>,
    %c0_63 = arith.constant 0 : index
    %c0_64 = arith.constant 0 : index
    %c0_65 = arith.constant 0 : index
    %c0_66 = arith.constant 0 : index
    %89 = vector.load %arg9[%c0_63, %c0_64, %c0_65, %c0_66] : memref<2x18x18x128xf32, #tpu.memory_space<vmem>>, vector<2x18x18x128xf32>
    %90 = vector.extract_strided_slice %89 {offsets = [0, 0, 0, 0], sizes = [2, 16, 16, 128], strides = [1, 1, 1, 1]} : vector<2x18x18x128xf32> to vector<2x16x16x128xf32>
    %91 = vector.shape_cast %90 : vector<2x16x16x128xf32> to vector<512x128xf32>
    %c0_67 = arith.constant 0 : index
    %c0_68 = arith.constant 0 : index
    %c0_69 = arith.constant 0 : index
    %92 = vector.load %arg2[%c0_67, %c0_68, %c0_69] : memref<9x128x128xf32, #tpu.memory_space<vmem>>, vector<1x128x128xf32>
    %93 = vector.shape_cast %92 : vector<1x128x128xf32> to vector<128x128xf32>
    %cst_70 = arith.constant dense<0.000000e+00> : vector<512x128xf32>
    %94 = tpu.matmul %91, %93, %cst_70 {dimension_numbers = #tpu.dot_dimension_numbers<[1], [0], [0], [1], [0, 0, 1, 1], [], []>} : vector<512x128xf32>, vector<128x128xf32>, vector<512x128xf32> -> vector<512x128xf32>
    %95 = vector.extract_strided_slice %89 {offsets = [0, 0, 1, 0], sizes = [2, 16, 16, 128], strides = [1, 1, 1, 1]} : vector<2x18x18x128xf32> to vector<2x16x16x128xf32>
    %96 = vector.shape_cast %95 : vector<2x16x16x128xf32> to vector<512x128xf32>
    %c1_71 = arith.constant 1 : index
    %c0_72 = arith.constant 0 : index
    %c0_73 = arith.constant 0 : index
    %97 = vector.load %arg2[%c1_71, %c0_72, %c0_73] : memref<9x128x128xf32, #tpu.memory_space<vmem>>, vector<1x128x128xf32>
    %98 = vector.shape_cast %97 : vector<1x128x128xf32> to vector<128x128xf32>
    %cst_74 = arith.constant dense<0.000000e+00> : vector<512x128xf32>
    %99 = tpu.matmul %96, %98, %cst_74 {dimension_numbers = #tpu.dot_dimension_numbers<[1], [0], [0], [1], [0, 0, 1, 1], [], []>} : vector<512x128xf32>, vector<128x128xf32>, vector<512x128xf32> -> vector<512x128xf32>
    %100 = arith.addf %94, %99 : vector<512x128xf32>
    %101 = vector.extract_strided_slice %89 {offsets = [0, 0, 2, 0], sizes = [2, 16, 16, 128], strides = [1, 1, 1, 1]} : vector<2x18x18x128xf32> to vector<2x16x16x128xf32>
    %102 = vector.shape_cast %101 : vector<2x16x16x128xf32> to vector<512x128xf32>
    %c2_75 = arith.constant 2 : index
    %c0_76 = arith.constant 0 : index
    %c0_77 = arith.constant 0 : index
    %103 = vector.load %arg2[%c2_75, %c0_76, %c0_77] : memref<9x128x128xf32, #tpu.memory_space<vmem>>, vector<1x128x128xf32>
    %104 = vector.shape_cast %103 : vector<1x128x128xf32> to vector<128x128xf32>
    %cst_78 = arith.constant dense<0.000000e+00> : vector<512x128xf32>
    %105 = tpu.matmul %102, %104, %cst_78 {dimension_numbers = #tpu.dot_dimension_numbers<[1], [0], [0], [1], [0, 0, 1, 1], [], []>} : vector<512x128xf32>, vector<128x128xf32>, vector<512x128xf32> -> vector<512x128xf32>
    %106 = arith.addf %100, %105 : vector<512x128xf32>
    %107 = vector.extract_strided_slice %89 {offsets = [0, 1, 0, 0], sizes = [2, 16, 16, 128], strides = [1, 1, 1, 1]} : vector<2x18x18x128xf32> to vector<2x16x16x128xf32>
    %108 = vector.shape_cast %107 : vector<2x16x16x128xf32> to vector<512x128xf32>
    %c3_79 = arith.constant 3 : index
    %c0_80 = arith.constant 0 : index
    %c0_81 = arith.constant 0 : index
    %109 = vector.load %arg2[%c3_79, %c0_80, %c0_81] : memref<9x128x128xf32, #tpu.memory_space<vmem>>, vector<1x128x128xf32>
    %110 = vector.shape_cast %109 : vector<1x128x128xf32> to vector<128x128xf32>
    %cst_82 = arith.constant dense<0.000000e+00> : vector<512x128xf32>
    %111 = tpu.matmul %108, %110, %cst_82 {dimension_numbers = #tpu.dot_dimension_numbers<[1], [0], [0], [1], [0, 0, 1, 1], [], []>} : vector<512x128xf32>, vector<128x128xf32>, vector<512x128xf32> -> vector<512x128xf32>
    %112 = arith.addf %106, %111 : vector<512x128xf32>
    %113 = vector.extract_strided_slice %89 {offsets = [0, 1, 1, 0], sizes = [2, 16, 16, 128], strides = [1, 1, 1, 1]} : vector<2x18x18x128xf32> to vector<2x16x16x128xf32>
    %114 = vector.shape_cast %113 : vector<2x16x16x128xf32> to vector<512x128xf32>
    %c4_83 = arith.constant 4 : index
    %c0_84 = arith.constant 0 : index
    %c0_85 = arith.constant 0 : index
    %115 = vector.load %arg2[%c4_83, %c0_84, %c0_85] : memref<9x128x128xf32, #tpu.memory_space<vmem>>, vector<1x128x128xf32>
    %116 = vector.shape_cast %115 : vector<1x128x128xf32> to vector<128x128xf32>
    %cst_86 = arith.constant dense<0.000000e+00> : vector<512x128xf32>
    %117 = tpu.matmul %114, %116, %cst_86 {dimension_numbers = #tpu.dot_dimension_numbers<[1], [0], [0], [1], [0, 0, 1, 1], [], []>} : vector<512x128xf32>, vector<128x128xf32>, vector<512x128xf32> -> vector<512x128xf32>
    %118 = arith.addf %112, %117 : vector<512x128xf32>
    %119 = vector.extract_strided_slice %89 {offsets = [0, 1, 2, 0], sizes = [2, 16, 16, 128], strides = [1, 1, 1, 1]} : vector<2x18x18x128xf32> to vector<2x16x16x128xf32>
    %120 = vector.shape_cast %119 : vector<2x16x16x128xf32> to vector<512x128xf32>
    %c5_87 = arith.constant 5 : index
    %c0_88 = arith.constant 0 : index
    %c0_89 = arith.constant 0 : index
    %121 = vector.load %arg2[%c5_87, %c0_88, %c0_89] : memref<9x128x128xf32, #tpu.memory_space<vmem>>, vector<1x128x128xf32>
    %122 = vector.shape_cast %121 : vector<1x128x128xf32> to vector<128x128xf32>
    %cst_90 = arith.constant dense<0.000000e+00> : vector<512x128xf32>
    %123 = tpu.matmul %120, %122, %cst_90 {dimension_numbers = #tpu.dot_dimension_numbers<[1], [0], [0], [1], [0, 0, 1, 1], [], []>} : vector<512x128xf32>, vector<128x128xf32>, vector<512x128xf32> -> vector<512x128xf32>
    %124 = arith.addf %118, %123 : vector<512x128xf32>
    %125 = vector.extract_strided_slice %89 {offsets = [0, 2, 0, 0], sizes = [2, 16, 16, 128], strides = [1, 1, 1, 1]} : vector<2x18x18x128xf32> to vector<2x16x16x128xf32>
    %126 = vector.shape_cast %125 : vector<2x16x16x128xf32> to vector<512x128xf32>
    %c6_91 = arith.constant 6 : index
    %c0_92 = arith.constant 0 : index
    %c0_93 = arith.constant 0 : index
    %127 = vector.load %arg2[%c6_91, %c0_92, %c0_93] : memref<9x128x128xf32, #tpu.memory_space<vmem>>, vector<1x128x128xf32>
    %128 = vector.shape_cast %127 : vector<1x128x128xf32> to vector<128x128xf32>
    %cst_94 = arith.constant dense<0.000000e+00> : vector<512x128xf32>
    %129 = tpu.matmul %126, %128, %cst_94 {dimension_numbers = #tpu.dot_dimension_numbers<[1], [0], [0], [1], [0, 0, 1, 1], [], []>} : vector<512x128xf32>, vector<128x128xf32>, vector<512x128xf32> -> vector<512x128xf32>
    %130 = arith.addf %124, %129 : vector<512x128xf32>
    %131 = vector.extract_strided_slice %89 {offsets = [0, 2, 1, 0], sizes = [2, 16, 16, 128], strides = [1, 1, 1, 1]} : vector<2x18x18x128xf32> to vector<2x16x16x128xf32>
    %132 = vector.shape_cast %131 : vector<2x16x16x128xf32> to vector<512x128xf32>
    %c7_95 = arith.constant 7 : index
    %c0_96 = arith.constant 0 : index
    %c0_97 = arith.constant 0 : index
    %133 = vector.load %arg2[%c7_95, %c0_96, %c0_97] : memref<9x128x128xf32, #tpu.memory_space<vmem>>, vector<1x128x128xf32>
    %134 = vector.shape_cast %133 : vector<1x128x128xf32> to vector<128x128xf32>
    %cst_98 = arith.constant dense<0.000000e+00> : vector<512x128xf32>
    %135 = tpu.matmul %132, %134, %cst_98 {dimension_numbers = #tpu.dot_dimension_numbers<[1], [0], [0], [1], [0, 0, 1, 1], [], []>} : vector<512x128xf32>, vector<128x128xf32>, vector<512x128xf32> -> vector<512x128xf32>
    %136 = arith.addf %130, %135 : vector<512x128xf32>
    %137 = vector.extract_strided_slice %89 {offsets = [0, 2, 2, 0], sizes = [2, 16, 16, 128], strides = [1, 1, 1, 1]} : vector<2x18x18x128xf32> to vector<2x16x16x128xf32>
    %138 = vector.shape_cast %137 : vector<2x16x16x128xf32> to vector<512x128xf32>
    %c8_99 = arith.constant 8 : index
    %c0_100 = arith.constant 0 : index
    %c0_101 = arith.constant 0 : index
    %139 = vector.load %arg2[%c8_99, %c0_100, %c0_101] : memref<9x128x128xf32, #tpu.memory_space<vmem>>, vector<1x128x128xf32>
    %140 = vector.shape_cast %139 : vector<1x128x128xf32> to vector<128x128xf32>
    %cst_102 = arith.constant dense<0.000000e+00> : vector<512x128xf32>
    %141 = tpu.matmul %138, %140, %cst_102 {dimension_numbers = #tpu.dot_dimension_numbers<[1], [0], [0], [1], [0, 0, 1, 1], [], []>} : vector<512x128xf32>, vector<128x128xf32>, vector<512x128xf32> -> vector<512x128xf32>
    %142 = arith.addf %136, %141 : vector<512x128xf32>
    %cst_103 = arith.constant dense<0.000000e+00> : vector<128xf32>
    %143 = vector.multi_reduction <add>, %142, %cst_103 [0] : vector<512x128xf32> to vector<128xf32>
    %144 = vector.shape_cast %143 : vector<128xf32> to vector<1x128xf32>
    %cst_104 = arith.constant 0.001953125 : f32
    %145 = vector.broadcast %cst_104 : f32 to vector<1x128xf32>
    %146 = arith.mulf %144, %145 : vector<1x128xf32>
    %147 = arith.mulf %142, %142 : vector<512x128xf32>
    %cst_105 = arith.constant dense<0.000000e+00> : vector<128xf32>
    %148 = vector.multi_reduction <add>, %147, %cst_105 [0] : vector<512x128xf32> to vector<128xf32>
    %149 = vector.shape_cast %148 : vector<128xf32> to vector<1x128xf32>
    %cst_106 = arith.constant 0.001953125 : f32
    %150 = vector.broadcast %cst_106 : f32 to vector<1x128xf32>
    %151 = arith.mulf %149, %150 : vector<1x128xf32>
    %152 = arith.mulf %146, %146 : vector<1x128xf32>
    %153 = arith.subf %151, %152 : vector<1x128xf32>
    %c0_107 = arith.constant 0 : index
    %c0_108 = arith.constant 0 : index
    %154 = vector.load %arg6[%c0_107, %c0_108] : memref<1x128xf32, #tpu.memory_space<vmem>>, vector<1x128xf32>
    %cst_109 = arith.constant 9.99999974E-6 : f32
    %155 = vector.broadcast %cst_109 : f32 to vector<1x128xf32>
    %156 = arith.addf %153, %155 : vector<1x128xf32>
    %157 = math.rsqrt %156 : vector<1x128xf32>
    %158 = arith.mulf %154, %157 : vector<1x128xf32>
    %c0_110 = arith.constant 0 : index
    %c0_111 = arith.constant 0 : index
    %159 = vector.load %arg7[%c0_110, %c0_111] : memref<1x128xf32, #tpu.memory_space<vmem>>, vector<1x128xf32>
    %160 = arith.mulf %146, %158 : vector<1x128xf32>
    %161 = arith.subf %159, %160 : vector<1x128xf32>
    %c0_112 = arith.constant 0 : index
    %c0_113 = arith.constant 0 : index
    %162 = vector.load %arg3[%c0_112, %c0_113] : memref<4x128xf32, #tpu.memory_space<vmem>>, vector<4x128xf32>
    %cst_114 = arith.constant dense<0.000000e+00> : vector<512x128xf32>
    %163 = tpu.matmul %25, %162, %cst_114 {dimension_numbers = #tpu.dot_dimension_numbers<[1], [0], [0], [1], [0, 0, 1, 1], [], []>} : vector<512x4xf32>, vector<4x128xf32>, vector<512x128xf32> -> vector<512x128xf32>
    %164 = vector.broadcast %158 : vector<1x128xf32> to vector<512x128xf32>
    %165 = arith.mulf %142, %164 : vector<512x128xf32>
    %166 = vector.broadcast %161 : vector<1x128xf32> to vector<512x128xf32>
    %167 = arith.addf %166, %163 : vector<512x128xf32>
    %168 = arith.addf %165, %167 : vector<512x128xf32>
    %cst_115 = arith.constant 0.000000e+00 : f32
    %169 = vector.broadcast %cst_115 : f32 to vector<512x128xf32>
    %170 = arith.maximumf %168, %169 : vector<512x128xf32>
    %171 = vector.shape_cast %170 : vector<512x128xf32> to vector<2x16x16x128xf32>
    %c0_116 = arith.constant 0 : index
    %c0_117 = arith.constant 0 : index
    %c0_118 = arith.constant 0 : index
    %c0_119 = arith.constant 0 : index
    %172 = vector.load %arg8[%c0_116, %c0_117, %c0_118, %c0_119] : memref<2x16x16x128xf32, #tpu.memory_space<vmem>>, vector<2x16x16x128xf32>
    tpu.vector_store %arg8[%c0_116, %c0_117, %c0_118, %c0_119], %171 {strides = array<i32>} : memref<2x16x16x128xf32, #tpu.memory_space<vmem>>, vector<2x16x16x128xf32>,
    return
  }
}

</mosaic_0001>

<llo_original>
// kernel: tpu_custom_call.1
$region0: #{tpu_custom_call.1}
  #allocation0 [shape = 'u32[]', space=smem, size = 0x4, offset = 0x4, fixed_abs, tag = 'smem constant byte address 0x4 - core index']
  #allocation1 [shape = 'u32[144,128]{1,0:T(1,128)}', space=vmem, size = 0x12000, scoped, tag = 'internal scratch']
  #allocation2 [shape = 'f32[2,18,18,128]{3,2,1,0:T(8,128)}', space=vmem, size = 0x6c000, scoped, tag = 'scratch operand']
  %s0 = inlined_call_operand.vmem [shape: f32[2,18,18,4], index: 0, kind: input, shape index: {}]
  %s1 = inlined_call_operand.vmem [shape: f32[9,4,128], index: 1, kind: input, shape index: {}]
  %s2 = inlined_call_operand.hbm [shape: f32[9,128,128], index: 2, kind: input, shape index: {}]
  %s3 = inlined_call_operand.vmem [shape: f32[4,128], index: 3, kind: input, shape index: {}]
  %s4 = inlined_call_operand.vmem [shape: f32[1,128], index: 4, kind: input, shape index: {}]
  %s5 = inlined_call_operand.vmem [shape: f32[1,128], index: 5, kind: input, shape index: {}]
  %s6 = inlined_call_operand.vmem [shape: f32[1,128], index: 6, kind: input, shape index: {}]
  %s7 = inlined_call_operand.vmem [shape: f32[1,128], index: 7, kind: input, shape index: {}]
  %s8 = inlined_call_operand.hbm [shape: f32[2,16,16,128], index: 8, kind: output, shape index: {}]
  %s9 = sld [smem:[#allocation0]]
  $region46: #{tpu_custom_call.1} parent=0
    _
  %s11 = ssub.s32 1, %s9
  %s12 = scalar_select 0, %s11, %s9
  $region1: #{tpu_custom_call.1} parent=0
    #allocation3 [shape = 'u8[589824]{0}', space=vmem, size = 0x90000, scoped, tag = 'input window, operand 2, single buffered']
    #allocation4 [shape = 's32[1]{0}', space=sflag, size = 0x4, scoped, tag = 'scoped memory for tpu_custom_call.1']
    #allocation5 [shape = 's32[1]{0}', space=sflag, size = 0x4, scoped, tag = 'scoped memory for tpu_custom_call.1']
    #allocation6 [shape = 'u8[262144]{0}', space=vmem, size = 0x40000, scoped, tag = 'output window, operand 0, single buffered']
    %13 = vsyncpa [#allocation4], 0
    %14 = vsyncpa [#allocation5], 0
    // Predicated region
    $region2: #{tpu_custom_call.1} parent=1 // pred_check
      _
    $region3: #{tpu_custom_call.1} parent=1 // pred_check_branch
      %16 = sbr.rel (0) target = $region5
    $region4: #{tpu_custom_call.1} parent=1 // pred_region
      _
    $region5: #{tpu_custom_call.1} parent=1 // pred_fallthru
      _
    // Predicated region
    $region6: #{tpu_custom_call.1} parent=1 // pred_check
      _
    $region7: #{tpu_custom_call.1} parent=1 // pred_check_branch
      %18 = sbr.rel (0) target = $region9
    $region8: #{tpu_custom_call.1} parent=1 // pred_region
      _
    $region9: #{tpu_custom_call.1} parent=1 // pred_fallthru
      _
    // Predicated region
    $region10: #{tpu_custom_call.1} parent=1 // pred_check
      _
    $region11: #{tpu_custom_call.1} parent=1 // pred_check_branch
      %20 = sbr.rel (0) target = $region13
    $region12: #{tpu_custom_call.1} parent=1 // pred_region
      %s22 = ssub.s32 18432, 18432
      %23 = vsyncadd [#allocation4], %s22
      %s24 = sshll.u32 [#allocation3], 4
      %s25 = int_to_ptr.vmem [resolvable:$true] %s24
      %30 = dma.hbm_to_vmem [thread:$0]  %s2, 18432, %s25, [#allocation4], 128, 128, 8
    $region13: #{tpu_custom_call.1} parent=1 // pred_fallthru
      _
    // Predicated region
    $region14: #{tpu_custom_call.1} parent=1 // pred_check
      _
    $region15: #{tpu_custom_call.1} parent=1 // pred_check_branch
      %32 = sbr.rel (0) target = $region17
    $region16: #{tpu_custom_call.1} parent=1 // pred_region
      _
    $region17: #{tpu_custom_call.1} parent=1 // pred_fallthru
      _
    // Predicated region
    $region18: #{tpu_custom_call.1} parent=1 // pred_check
      _
    $region19: #{tpu_custom_call.1} parent=1 // pred_check_branch
      %34 = sbr.rel (0) target = $region21
    $region20: #{tpu_custom_call.1} parent=1 // pred_region
      _
    $region21: #{tpu_custom_call.1} parent=1 // pred_fallthru
      _
    // Predicated region
    $region22: #{tpu_custom_call.1} parent=1 // pred_check
      _
    $region23: #{tpu_custom_call.1} parent=1 // pred_check_branch
      %36 = sbr.rel (0) target = $region25
    $region24: #{tpu_custom_call.1} parent=1 // pred_region
      _
    $region25: #{tpu_custom_call.1} parent=1 // pred_fallthru
      _
    // Predicated region
    $region26: #{tpu_custom_call.1} parent=1 // pred_check
      _
    $region27: #{tpu_custom_call.1} parent=1 // pred_check_branch
      %38 = sbr.rel (0) target = $region29
    $region28: #{tpu_custom_call.1} parent=1 // pred_region
      _
    $region29: #{tpu_custom_call.1} parent=1 // pred_fallthru
      _
    // Predicated region
    $region30: #{tpu_custom_call.1} parent=1 // pred_check
      _
    $region31: #{tpu_custom_call.1} parent=1 // pred_check_branch
      %40 = sbr.rel (0) target = $region33
    $region32: #{tpu_custom_call.1} parent=1 // pred_region
      _
    $region33: #{tpu_custom_call.1} parent=1 // pred_fallthru
      _
    // Predicated region
    $region34: #{tpu_custom_call.1} parent=1 // pred_check
      _
    $region35: #{tpu_custom_call.1} parent=1 // pred_check_branch
      %42 = sbr.rel (0) target = $region37
    $region36: #{tpu_custom_call.1} parent=1 // pred_region
      %43 = dma.done [#allocation4], 18432
    $region37: #{tpu_custom_call.1} parent=1 // pred_fallthru
      _
    %v44 = vld [vmem:[%s0] sm:$0xff]
    %v45 = vld [vmem:[%s0 + $0x8] sm:$0xff]
    %v46 = vld [vmem:[%s0 + $0x10] sm:$0x3]
    %v47 = vld [vmem:[%s0 + $0x18] sm:$0xff]
    %v48 = vld [vmem:[%s0 + $0x20] sm:$0xff]
    %v49 = vld [vmem:[%s0 + $0x28] sm:$0x3]
    %v50 = vld [vmem:[%s0 + $0x30] sm:$0xff]
    %v51 = vld [vmem:[%s0 + $0x38] sm:$0xff]
    %v52 = vld [vmem:[%s0 + $0x40] sm:$0x3]
    %v53 = vld [vmem:[%s0 + $0x48] sm:$0xff]
    %v54 = vld [vmem:[%s0 + $0x50] sm:$0xff]
    %v55 = vld [vmem:[%s0 + $0x58] sm:$0x3]
    %v56 = vld [vmem:[%s0 + $0x60] sm:$0xff]
    %v57 = vld [vmem:[%s0 + $0x68] sm:$0xff]
    %v58 = vld [vmem:[%s0 + $0x70] sm:$0x3]
    %v59 = vld [vmem:[%s0 + $0x78] sm:$0xff]
    %v60 = vld [vmem:[%s0 + $0x80] sm:$0xff]
    %v61 = vld [vmem:[%s0 + $0x88] sm:$0x3]
    %v62 = vld [vmem:[%s0 + $0x90] sm:$0xff]
    %v63 = vld [vmem:[%s0 + $0x98] sm:$0xff]
    %v64 = vld [vmem:[%s0 + $0xa0] sm:$0x3]
    %v65 = vld [vmem:[%s0 + $0xa8] sm:$0xff]
    %v66 = vld [vmem:[%s0 + $0xb0] sm:$0xff]
    %v67 = vld [vmem:[%s0 + $0xb8] sm:$0x3]
    %v68 = vld [vmem:[%s0 + $0xc0] sm:$0xff]
    %v69 = vld [vmem:[%s0 + $0xc8] sm:$0xff]
    %v70 = vld [vmem:[%s0 + $0xd0] sm:$0x3]
    %v71 = vld [vmem:[%s0 + $0xd8] sm:$0xff]
    %v72 = vld [vmem:[%s0 + $0xe0] sm:$0xff]
    %v73 = vld [vmem:[%s0 + $0xe8] sm:$0x3]
    %v74 = vld [vmem:[%s0 + $0xf0] sm:$0xff]
    %v75 = vld [vmem:[%s0 + $0xf8] sm:$0xff]
    %v76 = vld [vmem:[%s0 + $0x100] sm:$0x3]
    %v77 = vld [vmem:[%s0 + $0x108] sm:$0xff]
    %v78 = vld [vmem:[%s0 + $0x110] sm:$0xff]
    %v79 = vld [vmem:[%s0 + $0x118] sm:$0x3]
    %v80 = vld [vmem:[%s0 + $0x120] sm:$0xff]
    %v81 = vld [vmem:[%s0 + $0x128] sm:$0xff]
    %v82 = vld [vmem:[%s0 + $0x130] sm:$0x3]
    %v83 = vld [vmem:[%s0 + $0x138] sm:$0xff]
    %v84 = vld [vmem:[%s0 + $0x140] sm:$0xff]
    %v85 = vld [vmem:[%s0 + $0x148] sm:$0x3]
    %v86 = vld [vmem:[%s0 + $0x150] sm:$0xff]
    %v87 = vld [vmem:[%s0 + $0x158] sm:$0xff]
    %v88 = vld [vmem:[%s0 + $0x160] sm:$0x3]
    %v89 = vld [vmem:[%s0 + $0x168] sm:$0xff]
    %v90 = vld [vmem:[%s0 + $0x170] sm:$0xff]
    %v91 = vld [vmem:[%s0 + $0x178] sm:$0x3]
    %v92 = vld [vmem:[%s0 + $0x180] sm:$0xff]
    %v93 = vld [vmem:[%s0 + $0x188] sm:$0xff]
    %v94 = vld [vmem:[%s0 + $0x190] sm:$0x3]
    %v95 = vld [vmem:[%s0 + $0x198] sm:$0xff]
    %v96 = vld [vmem:[%s0 + $0x1a0] sm:$0xff]
    %v97 = vld [vmem:[%s0 + $0x1a8] sm:$0x3]
    %v98 = vld [vmem:[%s0 + $0x1b0] sm:$0xff]
    %v99 = vld [vmem:[%s0 + $0x1b8] sm:$0xff]
    %v100 = vld [vmem:[%s0 + $0x1c0] sm:$0x3]
    %v101 = vld [vmem:[%s0 + $0x1c8] sm:$0xff]
    %v102 = vld [vmem:[%s0 + $0x1d0] sm:$0xff]
    %v103 = vld [vmem:[%s0 + $0x1d8] sm:$0x3]
    %v104 = vld [vmem:[%s0 + $0x1e0] sm:$0xff]
    %v105 = vld [vmem:[%s0 + $0x1e8] sm:$0xff]
    %v106 = vld [vmem:[%s0 + $0x1f0] sm:$0x3]
    %v107 = vld [vmem:[%s0 + $0x1f8] sm:$0xff]
    %v108 = vld [vmem:[%s0 + $0x200] sm:$0xff]
    %v109 = vld [vmem:[%s0 + $0x208] sm:$0x3]
    %v110 = vld [vmem:[%s0 + $0x210] sm:$0xff]
    %v111 = vld [vmem:[%s0 + $0x218] sm:$0xff]
    %v112 = vld [vmem:[%s0 + $0x220] sm:$0x3]
    %v113 = vld [vmem:[%s0 + $0x228] sm:$0xff]
    %v114 = vld [vmem:[%s0 + $0x230] sm:$0xff]
    %v115 = vld [vmem:[%s0 + $0x238] sm:$0x3]
    %v116 = vld [vmem:[%s0 + $0x240] sm:$0xff]
    %v117 = vld [vmem:[%s0 + $0x248] sm:$0xff]
    %v118 = vld [vmem:[%s0 + $0x250] sm:$0x3]
    %v119 = vld [vmem:[%s0 + $0x258] sm:$0xff]
    %v120 = vld [vmem:[%s0 + $0x260] sm:$0xff]
    %v121 = vld [vmem:[%s0 + $0x268] sm:$0x3]
    %v122 = vld [vmem:[%s0 + $0x270] sm:$0xff]
    %v123 = vld [vmem:[%s0 + $0x278] sm:$0xff]
    %v124 = vld [vmem:[%s0 + $0x280] sm:$0x3]
    %v125 = vld [vmem:[%s0 + $0x288] sm:$0xff]
    %v126 = vld [vmem:[%s0 + $0x290] sm:$0xff]
    %v127 = vld [vmem:[%s0 + $0x298] sm:$0x3]
    %v128 = vld [vmem:[%s0 + $0x2a0] sm:$0xff]
    %v129 = vld [vmem:[%s0 + $0x2a8] sm:$0xff]
    %v130 = vld [vmem:[%s0 + $0x2b0] sm:$0x3]
    %v131 = vld [vmem:[%s0 + $0x2b8] sm:$0xff]
    %v132 = vld [vmem:[%s0 + $0x2c0] sm:$0xff]
    %v133 = vld [vmem:[%s0 + $0x2c8] sm:$0x3]
    %v134 = vld [vmem:[%s0 + $0x2d0] sm:$0xff]
    %v135 = vld [vmem:[%s0 + $0x2d8] sm:$0xff]
    %v136 = vld [vmem:[%s0 + $0x2e0] sm:$0x3]
    %v137 = vld [vmem:[%s0 + $0x2e8] sm:$0xff]
    %v138 = vld [vmem:[%s0 + $0x2f0] sm:$0xff]
    %v139 = vld [vmem:[%s0 + $0x2f8] sm:$0x3]
    %v140 = vld [vmem:[%s0 + $0x300] sm:$0xff]
    %v141 = vld [vmem:[%s0 + $0x308] sm:$0xff]
    %v142 = vld [vmem:[%s0 + $0x310] sm:$0x3]
    %v143 = vld [vmem:[%s0 + $0x318] sm:$0xff]
    %v144 = vld [vmem:[%s0 + $0x320] sm:$0xff]
    %v145 = vld [vmem:[%s0 + $0x328] sm:$0x3]
    %v146 = vld [vmem:[%s0 + $0x330] sm:$0xff]
    %v147 = vld [vmem:[%s0 + $0x338] sm:$0xff]
    %v148 = vld [vmem:[%s0 + $0x340] sm:$0x3]
    %v149 = vld [vmem:[%s0 + $0x348] sm:$0xff]
    %v150 = vld [vmem:[%s0 + $0x350] sm:$0xff]
    %v151 = vld [vmem:[%s0 + $0x358] sm:$0x3]
    %v152 = vld [vmem:[%s1] sm:$0xf]
    %vm249 = vcmask 1046528
    %v250 = vrot.slane %v44, 1
    %v251 = vrot.slane %v45, 1
    %v252 = vsel %vm249, %v250, %v251
    %v253 = vrot.slane %v46, 1
    %v254 = vsel %vm249, %v251, %v253
    %v255 = vrot.slane %v47, 1
    %v256 = vrot.slane %v48, 1
    %v257 = vsel %vm249, %v255, %v256
    %v258 = vrot.slane %v49, 1
    %v259 = vsel %vm249, %v256, %v258
    %v260 = vrot.slane %v50, 1
    %v261 = vrot.slane %v51, 1
    %v262 = vsel %vm249, %v260, %v261
    %v263 = vrot.slane %v52, 1
    %v264 = vsel %vm249, %v261, %v263
    %v265 = vrot.slane %v53, 1
    %v266 = vrot.slane %v54, 1
    %v267 = vsel %vm249, %v265, %v266
    %v268 = vrot.slane %v55, 1
    %v269 = vsel %vm249, %v266, %v268
    %v270 = vrot.slane %v56, 1
    %v271 = vrot.slane %v57, 1
    %v272 = vsel %vm249, %v270, %v271
    %v273 = vrot.slane %v58, 1
    %v274 = vsel %vm249, %v271, %v273
    %v275 = vrot.slane %v59, 1
    %v276 = vrot.slane %v60, 1
    %v277 = vsel %vm249, %v275, %v276
    %v278 = vrot.slane %v61, 1
    %v279 = vsel %vm249, %v276, %v278
    %v280 = vrot.slane %v62, 1
    %v281 = vrot.slane %v63, 1
    %v282 = vsel %vm249, %v280, %v281
    %v283 = vrot.slane %v64, 1
    %v284 = vsel %vm249, %v281, %v283
    %v285 = vrot.slane %v65, 1
    %v286 = vrot.slane %v66, 1
    %v287 = vsel %vm249, %v285, %v286
    %v288 = vrot.slane %v67, 1
    %v289 = vsel %vm249, %v286, %v288
    %v290 = vrot.slane %v68, 1
    %v291 = vrot.slane %v69, 1
    %v292 = vsel %vm249, %v290, %v291
    %v293 = vrot.slane %v70, 1
    %v294 = vsel %vm249, %v291, %v293
    %v295 = vrot.slane %v71, 1
    %v296 = vrot.slane %v72, 1
    %v297 = vsel %vm249, %v295, %v296
    %v298 = vrot.slane %v73, 1
    %v299 = vsel %vm249, %v296, %v298
    %v300 = vrot.slane %v74, 1
    %v301 = vrot.slane %v75, 1
    %v302 = vsel %vm249, %v300, %v301
    %v303 = vrot.slane %v76, 1
    %v304 = vsel %vm249, %v301, %v303
    %v305 = vrot.slane %v77, 1
    %v306 = vrot.slane %v78, 1
    %v307 = vsel %vm249, %v305, %v306
    %v308 = vrot.slane %v79, 1
    %v309 = vsel %vm249, %v306, %v308
    %v310 = vrot.slane %v80, 1
    %v311 = vrot.slane %v81, 1
    %v312 = vsel %vm249, %v310, %v311
    %v313 = vrot.slane %v82, 1
    %v314 = vsel %vm249, %v311, %v313
    %v315 = vrot.slane %v83, 1
    %v316 = vrot.slane %v84, 1
    %v317 = vsel %vm249, %v315, %v316
    %v318 = vrot.slane %v85, 1
    %v319 = vsel %vm249, %v316, %v318
    %v320 = vrot.slane %v86, 1
    %v321 = vrot.slane %v87, 1
    %v322 = vsel %vm249, %v320, %v321
    %v323 = vrot.slane %v88, 1
    %v324 = vsel %vm249, %v321, %v323
    %v325 = vrot.slane %v89, 1
    %v326 = vrot.slane %v90, 1
    %v327 = vsel %vm249, %v325, %v326
    %v328 = vrot.slane %v91, 1
    %v329 = vsel %vm249, %v326, %v328
    %v330 = vrot.slane %v98, 1
    %v331 = vrot.slane %v99, 1
    %v332 = vsel %vm249, %v330, %v331
    %v333 = vrot.slane %v100, 1
    %v334 = vsel %vm249, %v331, %v333
    %v335 = vrot.slane %v101, 1
    %v336 = vrot.slane %v102, 1
    %v337 = vsel %vm249, %v335, %v336
    %v338 = vrot.slane %v103, 1
    %v339 = vsel %vm249, %v336, %v338
    %v340 = vrot.slane %v104, 1
    %v341 = vrot.slane %v105, 1
    %v342 = vsel %vm249, %v340, %v341
    %v343 = vrot.slane %v106, 1
    %v344 = vsel %vm249, %v341, %v343
    %v345 = vrot.slane %v107, 1
    %v346 = vrot.slane %v108, 1
    %v347 = vsel %vm249, %v345, %v346
    %v348 = vrot.slane %v109, 1
    %v349 = vsel %vm249, %v346, %v348
    %v350 = vrot.slane %v110, 1
    %v351 = vrot.slane %v111, 1
    %v352 = vsel %vm249, %v350, %v351
    %v353 = vrot.slane %v112, 1
    %v354 = vsel %vm249, %v351, %v353
    %v355 = vrot.slane %v113, 1
    %v356 = vrot.slane %v114, 1
    %v357 = vsel %vm249, %v355, %v356
    %v358 = vrot.slane %v115, 1
    %v359 = vsel %vm249, %v356, %v358
    %v360 = vrot.slane %v116, 1
    %v361 = vrot.slane %v117, 1
    %v362 = vsel %vm249, %v360, %v361
    %v363 = vrot.slane %v118, 1
    %v364 = vsel %vm249, %v361, %v363
    %v365 = vrot.slane %v119, 1
    %v366 = vrot.slane %v120, 1
    %v367 = vsel %vm249, %v365, %v366
    %v368 = vrot.slane %v121, 1
    %v369 = vsel %vm249, %v366, %v368
    %v370 = vrot.slane %v122, 1
    %v371 = vrot.slane %v123, 1
    %v372 = vsel %vm249, %v370, %v371
    %v373 = vrot.slane %v124, 1
    %v374 = vsel %vm249, %v371, %v373
    %v375 = vrot.slane %v125, 1
    %v376 = vrot.slane %v126, 1
    %v377 = vsel %vm249, %v375, %v376
    %v378 = vrot.slane %v127, 1
    %v379 = vsel %vm249, %v376, %v378
    %v380 = vrot.slane %v128, 1
    %v381 = vrot.slane %v129, 1
    %v382 = vsel %vm249, %v380, %v381
    %v383 = vrot.slane %v130, 1
    %v384 = vsel %vm249, %v381, %v383
    %v385 = vrot.slane %v131, 1
    %v386 = vrot.slane %v132, 1
    %v387 = vsel %vm249, %v385, %v386
    %v388 = vrot.slane %v133, 1
    %v389 = vsel %vm249, %v386, %v388
    %v390 = vrot.slane %v134, 1
    %v391 = vrot.slane %v135, 1
    %v392 = vsel %vm249, %v390, %v391
    %v393 = vrot.slane %v136, 1
    %v394 = vsel %vm249, %v391, %v393
    %v395 = vrot.slane %v137, 1
    %v396 = vrot.slane %v138, 1
    %v397 = vsel %vm249, %v395, %v396
    %v398 = vrot.slane %v139, 1
    %v399 = vsel %vm249, %v396, %v398
    %v400 = vrot.slane %v140, 1
    %v401 = vrot.slane %v141, 1
    %v402 = vsel %vm249, %v400, %v401
    %v403 = vrot.slane %v142, 1
    %v404 = vsel %vm249, %v401, %v403
    %v405 = vrot.slane %v143, 1
    %v406 = vrot.slane %v144, 1
    %v407 = vsel %vm249, %v405, %v406
    %v408 = vrot.slane %v145, 1
    %v409 = vsel %vm249, %v406, %v408
    %s410 = scalar_lea.vmem %s1, 4
    %v411 = vld [vmem:[%s410] sm:$0xf]
    %vm412 = vcmask 31744
    %v413 = vsel %vm412, %v252, 0
    %v415 = vsel %vm412, %v254, 0
    %v417 = vsel %vm412, %v257, 0
    %v419 = vsel %vm412, %v259, 0
    %v421 = vsel %vm412, %v262, 0
    %v423 = vsel %vm412, %v264, 0
    %v425 = vsel %vm412, %v267, 0
    %v427 = vsel %vm412, %v269, 0
    %v429 = vsel %vm412, %v272, 0
    %v431 = vsel %vm412, %v274, 0
    %v433 = vsel %vm412, %v277, 0
    %v435 = vsel %vm412, %v279, 0
    %v437 = vsel %vm412, %v282, 0
    %v439 = vsel %vm412, %v284, 0
    %v441 = vsel %vm412, %v287, 0
    %v443 = vsel %vm412, %v289, 0
    %v445 = vsel %vm412, %v292, 0
    %v447 = vsel %vm412, %v294, 0
    %v449 = vsel %vm412, %v297, 0
    %v451 = vsel %vm412, %v299, 0
    %v453 = vsel %vm412, %v302, 0
    %v455 = vsel %vm412, %v304, 0
    %v457 = vsel %vm412, %v307, 0
    %v459 = vsel %vm412, %v309, 0
    %v461 = vsel %vm412, %v312, 0
    %v463 = vsel %vm412, %v314, 0
    %v465 = vsel %vm412, %v317, 0
    %v467 = vsel %vm412, %v319, 0
    %v469 = vsel %vm412, %v322, 0
    %v471 = vsel %vm412, %v324, 0
    %v473 = vsel %vm412, %v327, 0
    %v475 = vsel %vm412, %v329, 0
    %v477 = vsel %vm412, %v332, 0
    %v479 = vsel %vm412, %v334, 0
    %v481 = vsel %vm412, %v337, 0
    %v483 = vsel %vm412, %v339, 0
    %v485 = vsel %vm412, %v342, 0
    %v487 = vsel %vm412, %v344, 0
    %v489 = vsel %vm412, %v347, 0
    %v491 = vsel %vm412, %v349, 0
    %v493 = vsel %vm412, %v352, 0
    %v495 = vsel %vm412, %v354, 0
    %v497 = vsel %vm412, %v357, 0
    %v499 = vsel %vm412, %v359, 0
    %v501 = vsel %vm412, %v362, 0
    %v503 = vsel %vm412, %v364, 0
    %v505 = vsel %vm412, %v367, 0
    %v507 = vsel %vm412, %v369, 0
    %v509 = vsel %vm412, %v372, 0
    %v511 = vsel %vm412, %v374, 0
    %v513 = vsel %vm412, %v377, 0
    %v515 = vsel %vm412, %v379, 0
    %v517 = vsel %vm412, %v382, 0
    %v519 = vsel %vm412, %v384, 0
    %v521 = vsel %vm412, %v387, 0
    %v523 = vsel %vm412, %v389, 0
    %v525 = vsel %vm412, %v392, 0
    %v527 = vsel %vm412, %v394, 0
    %v529 = vsel %vm412, %v397, 0
    %v531 = vsel %vm412, %v399, 0
    %v533 = vsel %vm412, %v402, 0
    %v535 = vsel %vm412, %v404, 0
    %v537 = vsel %vm412, %v407, 0
    %v539 = vsel %vm412, %v409, 0
    %vm541 = vcmask 1043456
    %v543 = vsel %vm541, %v411, 0
    %545 = vmatprep.subr.mxu0 0.0
    %546 = vmatpush1.msra.mxu0 0.0
    %547 = vmatprep.subr.mxu0 0.0
    %548 = vmatpush1.msra.mxu0 0.0
    %549 = vmatprep.subr.mxu0 0.0
    %550 = vmatpush1.msra.mxu0 0.0
    %551 = vmatprep.subr.mxu0 0.0
    %552 = vmatpush1.msra.mxu0 0.0
    %553 = vmatprep.subr.mxu0 0.0
    %554 = vmatpush1.msra.mxu0 0.0
    %555 = vmatprep.subr.mxu0 0.0
    %556 = vmatpush1.msra.mxu0 0.0
    %557 = vmatprep.subr.mxu0 0.0
    %558 = vmatpush1.msra.mxu0 0.0
    %559 = vmatprep.subr.mxu0 0.0
    %560 = vmatpush1.msra.mxu0 0.0
    %561 = vmatprep.subr.mxu0 0.0
    %562 = vmatpush1.msra.mxu0 0.0
    %563 = vmatprep.subr.mxu0 0.0
    %564 = vmatpush1.msra.mxu0 0.0
    %565 = vmatprep.subr.mxu0 0.0
    %566 = vmatpush1.msra.mxu0 0.0
    %567 = vmatprep.subr.mxu0 0.0
    %568 = vmatpush1.msra.mxu0 0.0
    %569 = vmatprep.subr.mxu0 0.0
    %570 = vmatpush1.msra.mxu0 0.0
    %571 = vmatprep.subr.mxu0 0.0
    %572 = vmatpush1.msra.mxu0 0.0
    %573 = vmatprep.subr.mxu0 0.0
    %574 = vmatpush1.msra.mxu0 0.0
    %575 = vmatprep.subr.mxu0 0.0
    %576 = vmatpush1.msra.mxu0 %v543
    %577 = vmatprep.subr.mxu0 0.0
    %578 = vmatpush2.msra.mxu0 0.0
    %579 = vmatprep.subr.mxu0 0.0
    %580 = vmatpush2.msra.mxu0 0.0
    %581 = vmatprep.subr.mxu0 0.0
    %582 = vmatpush2.msra.mxu0 0.0
    %583 = vmatprep.subr.mxu0 0.0
    %584 = vmatpush2.msra.mxu0 0.0
    %585 = vmatprep.subr.mxu0 0.0
    %586 = vmatpush2.msra.mxu0 0.0
    %587 = vmatprep.subr.mxu0 0.0
    %588 = vmatpush2.msra.mxu0 0.0
    %589 = vmatprep.subr.mxu0 0.0
    %590 = vmatpush2.msra.mxu0 0.0
    %591 = vmatprep.subr.mxu0 0.0
    %592 = vmatpush2.msra.mxu0 0.0
    %593 = vmatprep.subr.mxu0 0.0
    %594 = vmatpush2.msra.mxu0 0.0
    %595 = vmatprep.subr.mxu0 0.0
    %596 = vmatpush2.msra.mxu0 0.0
    %597 = vmatprep.subr.mxu0 0.0
    %598 = vmatpush2.msra.mxu0 0.0
    %599 = vmatprep.subr.mxu0 0.0
    %600 = vmatpush2.msra.mxu0 0.0
    %601 = vmatprep.subr.mxu0 0.0
    %602 = vmatpush2.msra.mxu0 0.0
    %603 = vmatprep.subr.mxu0 0.0
    %604 = vmatpush2.msra.mxu0 0.0
    %605 = vmatprep.subr.mxu0 0.0
    %606 = vmatpush2.msra.mxu0 0.0
    %607 = vmatprep.subr.mxu0 0.0
    %608 = vmatpush2.msra.mxu0 0.0
    %609 = vmatprep.mubr.f32.mxu0 0.0
    %610 = vmatmul.mubr.f32.gmra.mxu0 %v413
    %v611 = vpop.f32.mrf.mxu0
    %v612 = vadd.f32 0.0, %v611
    %v613 = vpop.f32.mrf.mxu0
    %614 = vmatprep.mubr.f32.mxu0 0.0
    %615 = vmatmul.mubr.f32.gmra.mxu0 %v415
    %v616 = vpop.f32.mrf.mxu0
    %v617 = vadd.f32 0.0, %v616
    %v618 = vpop.f32.mrf.mxu0
    %619 = vmatprep.mubr.f32.mxu0 0.0
    %620 = vmatmul.mubr.f32.gmra.mxu0 %v417
    %v621 = vpop.f32.mrf.mxu0
    %v622 = vadd.f32 0.0, %v621
    %v623 = vpop.f32.mrf.mxu0
    %624 = vmatprep.mubr.f32.mxu0 0.0
    %625 = vmatmul.mubr.f32.gmra.mxu0 %v419
    %v626 = vpop.f32.mrf.mxu0
    %v627 = vadd.f32 0.0, %v626
    %v628 = vpop.f32.mrf.mxu0
    %629 = vmatprep.mubr.f32.mxu0 0.0
    %630 = vmatmul.mubr.f32.gmra.mxu0 %v421
    %v631 = vpop.f32.mrf.mxu0
    %v632 = vadd.f32 0.0, %v631
    %v633 = vpop.f32.mrf.mxu0
    %634 = vmatprep.mubr.f32.mxu0 0.0
    %635 = vmatmul.mubr.f32.gmra.mxu0 %v423
    %v636 = vpop.f32.mrf.mxu0
    %v637 = vadd.f32 0.0, %v636
    %v638 = vpop.f32.mrf.mxu0
    %639 = vmatprep.mubr.f32.mxu0 0.0
    %640 = vmatmul.mubr.f32.gmra.mxu0 %v425
    %v641 = vpop.f32.mrf.mxu0
    %v642 = vadd.f32 0.0, %v641
    %v643 = vpop.f32.mrf.mxu0
    %644 = vmatprep.mubr.f32.mxu0 0.0
    %645 = vmatmul.mubr.f32.gmra.mxu0 %v427
    %v646 = vpop.f32.mrf.mxu0
    %v647 = vadd.f32 0.0, %v646
    %v648 = vpop.f32.mrf.mxu0
    %649 = vmatprep.mubr.f32.mxu0 0.0
    %650 = vmatmul.mubr.f32.gmra.mxu0 %v429
    %v651 = vpop.f32.mrf.mxu0
    %v652 = vadd.f32 0.0, %v651
    %v653 = vpop.f32.mrf.mxu0
    %654 = vmatprep.mubr.f32.mxu0 0.0
    %655 = vmatmul.mubr.f32.gmra.mxu0 %v431
    %v656 = vpop.f32.mrf.mxu0
    %v657 = vadd.f32 0.0, %v656
    %v658 = vpop.f32.mrf.mxu0
    %659 = vmatprep.mubr.f32.mxu0 0.0
    %660 = vmatmul.mubr.f32.gmra.mxu0 %v433
    %v661 = vpop.f32.mrf.mxu0
    %v662 = vadd.f32 0.0, %v661
    %v663 = vpop.f32.mrf.mxu0
    %664 = vmatprep.mubr.f32.mxu0 0.0
    %665 = vmatmul.mubr.f32.gmra.mxu0 %v435
    %v666 = vpop.f32.mrf.mxu0
    %v667 = vadd.f32 0.0, %v666
    %v668 = vpop.f32.mrf.mxu0
    %669 = vmatprep.mubr.f32.mxu0 0.0
    %670 = vmatmul.mubr.f32.gmra.mxu0 %v437
    %v671 = vpop.f32.mrf.mxu0
    %v672 = vadd.f32 0.0, %v671
    %v673 = vpop.f32.mrf.mxu0
    %674 = vmatprep.mubr.f32.mxu0 0.0
    %675 = vmatmul.mubr.f32.gmra.mxu0 %v439
    %v676 = vpop.f32.mrf.mxu0
    %v677 = vadd.f32 0.0, %v676
    %v678 = vpop.f32.mrf.mxu0
    %679 = vmatprep.mubr.f32.mxu0 0.0
    %680 = vmatmul.mubr.f32.gmra.mxu0 %v441
    %v681 = vpop.f32.mrf.mxu0
    %v682 = vadd.f32 0.0, %v681
    %v683 = vpop.f32.mrf.mxu0
    %684 = vmatprep.mubr.f32.mxu0 0.0
    %685 = vmatmul.mubr.f32.gmra.mxu0 %v443
    %v686 = vpop.f32.mrf.mxu0
    %v687 = vadd.f32 0.0, %v686
    %v688 = vpop.f32.mrf.mxu0
    %689 = vmatprep.mubr.f32.mxu0 0.0
    %690 = vmatmul.mubr.f32.gmra.mxu0 %v445
    %v691 = vpop.f32.mrf.mxu0
    %v692 = vadd.f32 0.0, %v691
    %v693 = vpop.f32.mrf.mxu0
    %694 = vmatprep.mubr.f32.mxu0 0.0
    %695 = vmatmul.mubr.f32.gmra.mxu0 %v447
    %v696 = vpop.f32.mrf.mxu0
    %v697 = vadd.f32 0.0, %v696
    %v698 = vpop.f32.mrf.mxu0
    %699 = vmatprep.mubr.f32.mxu0 0.0
    %700 = vmatmul.mubr.f32.gmra.mxu0 %v449
    %v701 = vpop.f32.mrf.mxu0
    %v702 = vadd.f32 0.0, %v701
    %v703 = vpop.f32.mrf.mxu0
    %704 = vmatprep.mubr.f32.mxu0 0.0
    %705 = vmatmul.mubr.f32.gmra.mxu0 %v451
    %v706 = vpop.f32.mrf.mxu0
    %v707 = vadd.f32 0.0, %v706
    %v708 = vpop.f32.mrf.mxu0
    %709 = vmatprep.mubr.f32.mxu0 0.0
    %710 = vmatmul.mubr.f32.gmra.mxu0 %v453
    %v711 = vpop.f32.mrf.mxu0
    %v712 = vadd.f32 0.0, %v711
    %v713 = vpop.f32.mrf.mxu0
    %714 = vmatprep.mubr.f32.mxu0 0.0
    %715 = vmatmul.mubr.f32.gmra.mxu0 %v455
    %v716 = vpop.f32.mrf.mxu0
    %v717 = vadd.f32 0.0, %v716
    %v718 = vpop.f32.mrf.mxu0
    %719 = vmatprep.mubr.f32.mxu0 0.0
    %720 = vmatmul.mubr.f32.gmra.mxu0 %v457
    %v721 = vpop.f32.mrf.mxu0
    %v722 = vadd.f32 0.0, %v721
    %v723 = vpop.f32.mrf.mxu0
    %724 = vmatprep.mubr.f32.mxu0 0.0
    %725 = vmatmul.mubr.f32.gmra.mxu0 %v459
    %v726 = vpop.f32.mrf.mxu0
    %v727 = vadd.f32 0.0, %v726
    %v728 = vpop.f32.mrf.mxu0
    %729 = vmatprep.mubr.f32.mxu0 0.0
    %730 = vmatmul.mubr.f32.gmra.mxu0 %v461
    %v731 = vpop.f32.mrf.mxu0
    %v732 = vadd.f32 0.0, %v731
    %v733 = vpop.f32.mrf.mxu0
    %734 = vmatprep.mubr.f32.mxu0 0.0
    %735 = vmatmul.mubr.f32.gmra.mxu0 %v463
    %v736 = vpop.f32.mrf.mxu0
    %v737 = vadd.f32 0.0, %v736
    %v738 = vpop.f32.mrf.mxu0
    %739 = vmatprep.mubr.f32.mxu0 0.0
    %740 = vmatmul.mubr.f32.gmra.mxu0 %v465
    %v741 = vpop.f32.mrf.mxu0
    %v742 = vadd.f32 0.0, %v741
    %v743 = vpop.f32.mrf.mxu0
    %744 = vmatprep.mubr.f32.mxu0 0.0
    %745 = vmatmul.mubr.f32.gmra.mxu0 %v467
    %v746 = vpop.f32.mrf.mxu0
    %v747 = vadd.f32 0.0, %v746
    %v748 = vpop.f32.mrf.mxu0
    %749 = vmatprep.mubr.f32.mxu0 0.0
    %750 = vmatmul.mubr.f32.gmra.mxu0 %v469
    %v751 = vpop.f32.mrf.mxu0
    %v752 = vadd.f32 0.0, %v751
    %v753 = vpop.f32.mrf.mxu0
    %754 = vmatprep.mubr.f32.mxu0 0.0
    %755 = vmatmul.mubr.f32.gmra.mxu0 %v471
    %v756 = vpop.f32.mrf.mxu0
    %v757 = vadd.f32 0.0, %v756
    %v758 = vpop.f32.mrf.mxu0
    %759 = vmatprep.mubr.f32.mxu0 0.0
    %760 = vmatmul.mubr.f32.gmra.mxu0 %v473
    %v761 = vpop.f32.mrf.mxu0
    %v762 = vadd.f32 0.0, %v761
    %v763 = vpop.f32.mrf.mxu0
    %764 = vmatprep.mubr.f32.mxu0 0.0
    %765 = vmatmul.mubr.f32.gmra.mxu0 %v475
    %v766 = vpop.f32.mrf.mxu0
    %v767 = vadd.f32 0.0, %v766
    %v768 = vpop.f32.mrf.mxu0
    %769 = vmatprep.mubr.f32.mxu0 0.0
    %770 = vmatmul.mubr.f32.gmra.mxu0 %v477
    %v771 = vpop.f32.mrf.mxu0
    %v772 = vadd.f32 0.0, %v771
    %v773 = vpop.f32.mrf.mxu0
    %774 = vmatprep.mubr.f32.mxu0 0.0
    %775 = vmatmul.mubr.f32.gmra.mxu0 %v479
    %v776 = vpop.f32.mrf.mxu0
    %v777 = vadd.f32 0.0, %v776
    %v778 = vpop.f32.mrf.mxu0
    %779 = vmatprep.mubr.f32.mxu0 0.0
    %780 = vmatmul.mubr.f32.gmra.mxu0 %v481
    %v781 = vpop.f32.mrf.mxu0
    %v782 = vadd.f32 0.0, %v781
    %v783 = vpop.f32.mrf.mxu0
    %784 = vmatprep.mubr.f32.mxu0 0.0
    %785 = vmatmul.mubr.f32.gmra.mxu0 %v483
    %v786 = vpop.f32.mrf.mxu0
    %v787 = vadd.f32 0.0, %v786
    %v788 = vpop.f32.mrf.mxu0
    %789 = vmatprep.mubr.f32.mxu0 0.0
    %790 = vmatmul.mubr.f32.gmra.mxu0 %v485
    %v791 = vpop.f32.mrf.mxu0
    %v792 = vadd.f32 0.0, %v791
    %v793 = vpop.f32.mrf.mxu0
    %794 = vmatprep.mubr.f32.mxu0 0.0
    %795 = vmatmul.mubr.f32.gmra.mxu0 %v487
    %v796 = vpop.f32.mrf.mxu0
    %v797 = vadd.f32 0.0, %v796
    %v798 = vpop.f32.mrf.mxu0
    %799 = vmatprep.mubr.f32.mxu0 0.0
    %800 = vmatmul.mubr.f32.gmra.mxu0 %v489
    %v801 = vpop.f32.mrf.mxu0
    %v802 = vadd.f32 0.0, %v801
    %v803 = vpop.f32.mrf.mxu0
    %804 = vmatprep.mubr.f32.mxu0 0.0
    %805 = vmatmul.mubr.f32.gmra.mxu0 %v491
    %v806 = vpop.f32.mrf.mxu0
    %v807 = vadd.f32 0.0, %v806
    %v808 = vpop.f32.mrf.mxu0
    %809 = vmatprep.mubr.f32.mxu0 0.0
    %810 = vmatmul.mubr.f32.gmra.mxu0 %v493
    %v811 = vpop.f32.mrf.mxu0
    %v812 = vadd.f32 0.0, %v811
    %v813 = vpop.f32.mrf.mxu0
    %814 = vmatprep.mubr.f32.mxu0 0.0
    %815 = vmatmul.mubr.f32.gmra.mxu0 %v495
    %v816 = vpop.f32.mrf.mxu0
    %v817 = vadd.f32 0.0, %v816
    %v818 = vpop.f32.mrf.mxu0
    %819 = vmatprep.mubr.f32.mxu0 0.0
    %820 = vmatmul.mubr.f32.gmra.mxu0 %v497
    %v821 = vpop.f32.mrf.mxu0
    %v822 = vadd.f32 0.0, %v821
    %v823 = vpop.f32.mrf.mxu0
    %824 = vmatprep.mubr.f32.mxu0 0.0
    %825 = vmatmul.mubr.f32.gmra.mxu0 %v499
    %v826 = vpop.f32.mrf.mxu0
    %v827 = vadd.f32 0.0, %v826
    %v828 = vpop.f32.mrf.mxu0
    %829 = vmatprep.mubr.f32.mxu0 0.0
    %830 = vmatmul.mubr.f32.gmra.mxu0 %v501
    %v831 = vpop.f32.mrf.mxu0
    %v832 = vadd.f32 0.0, %v831
    %v833 = vpop.f32.mrf.mxu0
    %834 = vmatprep.mubr.f32.mxu0 0.0
    %835 = vmatmul.mubr.f32.gmra.mxu0 %v503
    %v836 = vpop.f32.mrf.mxu0
    %v837 = vadd.f32 0.0, %v836
    %v838 = vpop.f32.mrf.mxu0
    %839 = vmatprep.mubr.f32.mxu0 0.0
    %840 = vmatmul.mubr.f32.gmra.mxu0 %v505
    %v841 = vpop.f32.mrf.mxu0
    %v842 = vadd.f32 0.0, %v841
    %v843 = vpop.f32.mrf.mxu0
    %844 = vmatprep.mubr.f32.mxu0 0.0
    %845 = vmatmul.mubr.f32.gmra.mxu0 %v507
    %v846 = vpop.f32.mrf.mxu0
    %v847 = vadd.f32 0.0, %v846
    %v848 = vpop.f32.mrf.mxu0
    %849 = vmatprep.mubr.f32.mxu0 0.0
    %850 = vmatmul.mubr.f32.gmra.mxu0 %v509
    %v851 = vpop.f32.mrf.mxu0
    %v852 = vadd.f32 0.0, %v851
    %v853 = vpop.f32.mrf.mxu0
    %854 = vmatprep.mubr.f32.mxu0 0.0
    %855 = vmatmul.mubr.f32.gmra.mxu0 %v511
    %v856 = vpop.f32.mrf.mxu0
    %v857 = vadd.f32 0.0, %v856
    %v858 = vpop.f32.mrf.mxu0
    %859 = vmatprep.mubr.f32.mxu0 0.0
    %860 = vmatmul.mubr.f32.gmra.mxu0 %v513
    %v861 = vpop.f32.mrf.mxu0
    %v862 = vadd.f32 0.0, %v861
    %v863 = vpop.f32.mrf.mxu0
    %864 = vmatprep.mubr.f32.mxu0 0.0
    %865 = vmatmul.mubr.f32.gmra.mxu0 %v515
    %v866 = vpop.f32.mrf.mxu0
    %v867 = vadd.f32 0.0, %v866
    %v868 = vpop.f32.mrf.mxu0
    %869 = vmatprep.mubr.f32.mxu0 0.0
    %870 = vmatmul.mubr.f32.gmra.mxu0 %v517
    %v871 = vpop.f32.mrf.mxu0
    %v872 = vadd.f32 0.0, %v871
    %v873 = vpop.f32.mrf.mxu0
    %874 = vmatprep.mubr.f32.mxu0 0.0
    %875 = vmatmul.mubr.f32.gmra.mxu0 %v519
    %v876 = vpop.f32.mrf.mxu0
    %v877 = vadd.f32 0.0, %v876
    %v878 = vpop.f32.mrf.mxu0
    %879 = vmatprep.mubr.f32.mxu0 0.0
    %880 = vmatmul.mubr.f32.gmra.mxu0 %v521
    %v881 = vpop.f32.mrf.mxu0
    %v882 = vadd.f32 0.0, %v881
    %v883 = vpop.f32.mrf.mxu0
    %884 = vmatprep.mubr.f32.mxu0 0.0
    %885 = vmatmul.mubr.f32.gmra.mxu0 %v523
    %v886 = vpop.f32.mrf.mxu0
    %v887 = vadd.f32 0.0, %v886
    %v888 = vpop.f32.mrf.mxu0
    %889 = vmatprep.mubr.f32.mxu0 0.0
    %890 = vmatmul.mubr.f32.gmra.mxu0 %v525
    %v891 = vpop.f32.mrf.mxu0
    %v892 = vadd.f32 0.0, %v891
    %v893 = vpop.f32.mrf.mxu0
    %894 = vmatprep.mubr.f32.mxu0 0.0
    %895 = vmatmul.mubr.f32.gmra.mxu0 %v527
    %v896 = vpop.f32.mrf.mxu0
    %v897 = vadd.f32 0.0, %v896
    %v898 = vpop.f32.mrf.mxu0
    %899 = vmatprep.mubr.f32.mxu0 0.0
    %900 = vmatmul.mubr.f32.gmra.mxu0 %v529
    %v901 = vpop.f32.mrf.mxu0
    %v902 = vadd.f32 0.0, %v901
    %v903 = vpop.f32.mrf.mxu0
    %904 = vmatprep.mubr.f32.mxu0 0.0
    %905 = vmatmul.mubr.f32.gmra.mxu0 %v531
    %v906 = vpop.f32.mrf.mxu0
    %v907 = vadd.f32 0.0, %v906
    %v908 = vpop.f32.mrf.mxu0
    %909 = vmatprep.mubr.f32.mxu0 0.0
    %910 = vmatmul.mubr.f32.gmra.mxu0 %v533
    %v911 = vpop.f32.mrf.mxu0
    %v912 = vadd.f32 0.0, %v911
    %v913 = vpop.f32.mrf.mxu0
    %914 = vmatprep.mubr.f32.mxu0 0.0
    %915 = vmatmul.mubr.f32.gmra.mxu0 %v535
    %v916 = vpop.f32.mrf.mxu0
    %v917 = vadd.f32 0.0, %v916
    %v918 = vpop.f32.mrf.mxu0
    %919 = vmatprep.mubr.f32.mxu0 0.0
    %920 = vmatmul.mubr.f32.gmra.mxu0 %v537
    %v921 = vpop.f32.mrf.mxu0
    %v922 = vadd.f32 0.0, %v921
    %v923 = vpop.f32.mrf.mxu0
    %924 = vmatprep.mubr.f32.mxu0 0.0
    %925 = vmatmul.mubr.f32.gmra.mxu0 %v539
    %v926 = vpop.f32.mrf.mxu0
    %v927 = vadd.f32 0.0, %v926
    %v928 = vpop.f32.mrf.mxu0
    %929 = vdwg.mxu0
    %v930 = vsel %vm412, %v44, 0
    %v932 = vsel %vm412, %v45, 0
    %v934 = vsel %vm412, %v47, 0
    %v936 = vsel %vm412, %v48, 0
    %v938 = vsel %vm412, %v50, 0
    %v940 = vsel %vm412, %v51, 0
    %v942 = vsel %vm412, %v53, 0
    %v944 = vsel %vm412, %v54, 0
    %v946 = vsel %vm412, %v56, 0
    %v948 = vsel %vm412, %v57, 0
    %v950 = vsel %vm412, %v59, 0
    %v952 = vsel %vm412, %v60, 0
    %v954 = vsel %vm412, %v62, 0
    %v956 = vsel %vm412, %v63, 0
    %v958 = vsel %vm412, %v65, 0
    %v960 = vsel %vm412, %v66, 0
    %v962 = vsel %vm412, %v68, 0
    %v964 = vsel %vm412, %v69, 0
    %v966 = vsel %vm412, %v71, 0
    %v968 = vsel %vm412, %v72, 0
    %v970 = vsel %vm412, %v74, 0
    %v972 = vsel %vm412, %v75, 0
    %v974 = vsel %vm412, %v77, 0
    %v976 = vsel %vm412, %v78, 0
    %v978 = vsel %vm412, %v80, 0
    %v980 = vsel %vm412, %v81, 0
    %v982 = vsel %vm412, %v83, 0
    %v984 = vsel %vm412, %v84, 0
    %v986 = vsel %vm412, %v86, 0
    %v988 = vsel %vm412, %v87, 0
    %v990 = vsel %vm412, %v89, 0
    %v992 = vsel %vm412, %v90, 0
    %v994 = vsel %vm412, %v98, 0
    %v996 = vsel %vm412, %v99, 0
    %v998 = vsel %vm412, %v101, 0
    %v1000 = vsel %vm412, %v102, 0
    %v1002 = vsel %vm412, %v104, 0
    %v1004 = vsel %vm412, %v105, 0
    %v1006 = vsel %vm412, %v107, 0
    %v1008 = vsel %vm412, %v108, 0
    %v1010 = vsel %vm412, %v110, 0
    %v1012 = vsel %vm412, %v111, 0
    %v1014 = vsel %vm412, %v113, 0
    %v1016 = vsel %vm412, %v114, 0
    %v1018 = vsel %vm412, %v116, 0
    %v1020 = vsel %vm412, %v117, 0
    %v1022 = vsel %vm412, %v119, 0
    %v1024 = vsel %vm412, %v120, 0
    %v1026 = vsel %vm412, %v122, 0
    %v1028 = vsel %vm412, %v123, 0
    %v1030 = vsel %vm412, %v125, 0
    %v1032 = vsel %vm412, %v126, 0
    %v1034 = vsel %vm412, %v128, 0
    %v1036 = vsel %vm412, %v129, 0
    %v1038 = vsel %vm412, %v131, 0
    %v1040 = vsel %vm412, %v132, 0
    %v1042 = vsel %vm412, %v134, 0
    %v1044 = vsel %vm412, %v135, 0
    %v1046 = vsel %vm412, %v137, 0
    %v1048 = vsel %vm412, %v138, 0
    %v1050 = vsel %vm412, %v140, 0
    %v1052 = vsel %vm412, %v141, 0
    %v1054 = vsel %vm412, %v143, 0
    %v1056 = vsel %vm412, %v144, 0
    %v1059 = vsel %vm541, %v152, 0
    %1061 = vmatprep.subr.mxu0 0.0
    %1062 = vmatpush1.msra.mxu0 0.0
    %1063 = vmatprep.subr.mxu0 0.0
    %1064 = vmatpush1.msra.mxu0 0.0
    %1065 = vmatprep.subr.mxu0 0.0
    %1066 = vmatpush1.msra.mxu0 0.0
    %1067 = vmatprep.subr.mxu0 0.0
    %1068 = vmatpush1.msra.mxu0 0.0
    %1069 = vmatprep.subr.mxu0 0.0
    %1070 = vmatpush1.msra.mxu0 0.0
    %1071 = vmatprep.subr.mxu0 0.0
    %1072 = vmatpush1.msra.mxu0 0.0
    %1073 = vmatprep.subr.mxu0 0.0
    %1074 = vmatpush1.msra.mxu0 0.0
    %1075 = vmatprep.subr.mxu0 0.0
    %1076 = vmatpush1.msra.mxu0 0.0
    %1077 = vmatprep.subr.mxu0 0.0
    %1078 = vmatpush1.msra.mxu0 0.0
    %1079 = vmatprep.subr.mxu0 0.0
    %1080 = vmatpush1.msra.mxu0 0.0
    %1081 = vmatprep.subr.mxu0 0.0
    %1082 = vmatpush1.msra.mxu0 0.0
    %1083 = vmatprep.subr.mxu0 0.0
    %1084 = vmatpush1.msra.mxu0 0.0
    %1085 = vmatprep.subr.mxu0 0.0
    %1086 = vmatpush1.msra.mxu0 0.0
    %1087 = vmatprep.subr.mxu0 0.0
    %1088 = vmatpush1.msra.mxu0 0.0
    %1089 = vmatprep.subr.mxu0 0.0
    %1090 = vmatpush1.msra.mxu0 0.0
    %1091 = vmatprep.subr.mxu0 0.0
    %1092 = vmatpush1.msra.mxu0 %v1059
    %1093 = vmatprep.subr.mxu0 0.0
    %1094 = vmatpush2.msra.mxu0 0.0
    %1095 = vmatprep.subr.mxu0 0.0
    %1096 = vmatpush2.msra.mxu0 0.0
    %1097 = vmatprep.subr.mxu0 0.0
    %1098 = vmatpush2.msra.mxu0 0.0
    %1099 = vmatprep.subr.mxu0 0.0
    %1100 = vmatpush2.msra.mxu0 0.0
    %1101 = vmatprep.subr.mxu0 0.0
    %1102 = vmatpush2.msra.mxu0 0.0
    %1103 = vmatprep.subr.mxu0 0.0
    %1104 = vmatpush2.msra.mxu0 0.0
    %1105 = vmatprep.subr.mxu0 0.0
    %1106 = vmatpush2.msra.mxu0 0.0
    %1107 = vmatprep.subr.mxu0 0.0
    %1108 = vmatpush2.msra.mxu0 0.0
    %1109 = vmatprep.subr.mxu0 0.0
    %1110 = vmatpush2.msra.mxu0 0.0
    %1111 = vmatprep.subr.mxu0 0.0
    %1112 = vmatpush2.msra.mxu0 0.0
    %1113 = vmatprep.subr.mxu0 0.0
    %1114 = vmatpush2.msra.mxu0 0.0
    %1115 = vmatprep.subr.mxu0 0.0
    %1116 = vmatpush2.msra.mxu0 0.0
    %1117 = vmatprep.subr.mxu0 0.0
    %1118 = vmatpush2.msra.mxu0 0.0
    %1119 = vmatprep.subr.mxu0 0.0
    %1120 = vmatpush2.msra.mxu0 0.0
    %1121 = vmatprep.subr.mxu0 0.0
    %1122 = vmatpush2.msra.mxu0 0.0
    %1123 = vmatprep.subr.mxu0 0.0
    %1124 = vmatpush2.msra.mxu0 0.0
    %1125 = vmatprep.mubr.f32.mxu0 0.0
    %1126 = vmatmul.mubr.f32.gmra.mxu0 %v930
    %v1127 = vpop.f32.mrf.mxu0
    %v1128 = vadd.f32 %v612, %v1127
    %v1129 = vpop.f32.mrf.mxu0
    %1130 = vmatprep.mubr.f32.mxu0 0.0
    %1131 = vmatmul.mubr.f32.gmra.mxu0 %v932
    %v1132 = vpop.f32.mrf.mxu0
    %v1133 = vadd.f32 %v617, %v1132
    %v1134 = vpop.f32.mrf.mxu0
    %1135 = vmatprep.mubr.f32.mxu0 0.0
    %1136 = vmatmul.mubr.f32.gmra.mxu0 %v934
    %v1137 = vpop.f32.mrf.mxu0
    %v1138 = vadd.f32 %v622, %v1137
    %v1139 = vpop.f32.mrf.mxu0
    %1140 = vmatprep.mubr.f32.mxu0 0.0
    %1141 = vmatmul.mubr.f32.gmra.mxu0 %v936
    %v1142 = vpop.f32.mrf.mxu0
    %v1143 = vadd.f32 %v627, %v1142
    %v1144 = vpop.f32.mrf.mxu0
    %1145 = vmatprep.mubr.f32.mxu0 0.0
    %1146 = vmatmul.mubr.f32.gmra.mxu0 %v938
    %v1147 = vpop.f32.mrf.mxu0
    %v1148 = vadd.f32 %v632, %v1147
    %v1149 = vpop.f32.mrf.mxu0
    %1150 = vmatprep.mubr.f32.mxu0 0.0
    %1151 = vmatmul.mubr.f32.gmra.mxu0 %v940
    %v1152 = vpop.f32.mrf.mxu0
    %v1153 = vadd.f32 %v637, %v1152
    %v1154 = vpop.f32.mrf.mxu0
    %1155 = vmatprep.mubr.f32.mxu0 0.0
    %1156 = vmatmul.mubr.f32.gmra.mxu0 %v942
    %v1157 = vpop.f32.mrf.mxu0
    %v1158 = vadd.f32 %v642, %v1157
    %v1159 = vpop.f32.mrf.mxu0
    %1160 = vmatprep.mubr.f32.mxu0 0.0
    %1161 = vmatmul.mubr.f32.gmra.mxu0 %v944
    %v1162 = vpop.f32.mrf.mxu0
    %v1163 = vadd.f32 %v647, %v1162
    %v1164 = vpop.f32.mrf.mxu0
    %1165 = vmatprep.mubr.f32.mxu0 0.0
    %1166 = vmatmul.mubr.f32.gmra.mxu0 %v946
    %v1167 = vpop.f32.mrf.mxu0
    %v1168 = vadd.f32 %v652, %v1167
    %v1169 = vpop.f32.mrf.mxu0
    %1170 = vmatprep.mubr.f32.mxu0 0.0
    %1171 = vmatmul.mubr.f32.gmra.mxu0 %v948
    %v1172 = vpop.f32.mrf.mxu0
    %v1173 = vadd.f32 %v657, %v1172
    %v1174 = vpop.f32.mrf.mxu0
    %1175 = vmatprep.mubr.f32.mxu0 0.0
    %1176 = vmatmul.mubr.f32.gmra.mxu0 %v950
    %v1177 = vpop.f32.mrf.mxu0
    %v1178 = vadd.f32 %v662, %v1177
    %v1179 = vpop.f32.mrf.mxu0
    %1180 = vmatprep.mubr.f32.mxu0 0.0
    %1181 = vmatmul.mubr.f32.gmra.mxu0 %v952
    %v1182 = vpop.f32.mrf.mxu0
    %v1183 = vadd.f32 %v667, %v1182
    %v1184 = vpop.f32.mrf.mxu0
    %1185 = vmatprep.mubr.f32.mxu0 0.0
    %1186 = vmatmul.mubr.f32.gmra.mxu0 %v954
    %v1187 = vpop.f32.mrf.mxu0
    %v1188 = vadd.f32 %v672, %v1187
    %v1189 = vpop.f32.mrf.mxu0
    %1190 = vmatprep.mubr.f32.mxu0 0.0
    %1191 = vmatmul.mubr.f32.gmra.mxu0 %v956
    %v1192 = vpop.f32.mrf.mxu0
    %v1193 = vadd.f32 %v677, %v1192
    %v1194 = vpop.f32.mrf.mxu0
    %1195 = vmatprep.mubr.f32.mxu0 0.0
    %1196 = vmatmul.mubr.f32.gmra.mxu0 %v958
    %v1197 = vpop.f32.mrf.mxu0
    %v1198 = vadd.f32 %v682, %v1197
    %v1199 = vpop.f32.mrf.mxu0
    %1200 = vmatprep.mubr.f32.mxu0 0.0
    %1201 = vmatmul.mubr.f32.gmra.mxu0 %v960
    %v1202 = vpop.f32.mrf.mxu0
    %v1203 = vadd.f32 %v687, %v1202
    %v1204 = vpop.f32.mrf.mxu0
    %1205 = vmatprep.mubr.f32.mxu0 0.0
    %1206 = vmatmul.mubr.f32.gmra.mxu0 %v962
    %v1207 = vpop.f32.mrf.mxu0
    %v1208 = vadd.f32 %v692, %v1207
    %v1209 = vpop.f32.mrf.mxu0
    %1210 = vmatprep.mubr.f32.mxu0 0.0
    %1211 = vmatmul.mubr.f32.gmra.mxu0 %v964
    %v1212 = vpop.f32.mrf.mxu0
    %v1213 = vadd.f32 %v697, %v1212
    %v1214 = vpop.f32.mrf.mxu0
    %1215 = vmatprep.mubr.f32.mxu0 0.0
    %1216 = vmatmul.mubr.f32.gmra.mxu0 %v966
    %v1217 = vpop.f32.mrf.mxu0
    %v1218 = vadd.f32 %v702, %v1217
    %v1219 = vpop.f32.mrf.mxu0
    %1220 = vmatprep.mubr.f32.mxu0 0.0
    %1221 = vmatmul.mubr.f32.gmra.mxu0 %v968
    %v1222 = vpop.f32.mrf.mxu0
    %v1223 = vadd.f32 %v707, %v1222
    %v1224 = vpop.f32.mrf.mxu0
    %1225 = vmatprep.mubr.f32.mxu0 0.0
    %1226 = vmatmul.mubr.f32.gmra.mxu0 %v970
    %v1227 = vpop.f32.mrf.mxu0
    %v1228 = vadd.f32 %v712, %v1227
    %v1229 = vpop.f32.mrf.mxu0
    %1230 = vmatprep.mubr.f32.mxu0 0.0
    %1231 = vmatmul.mubr.f32.gmra.mxu0 %v972
    %v1232 = vpop.f32.mrf.mxu0
    %v1233 = vadd.f32 %v717, %v1232
    %v1234 = vpop.f32.mrf.mxu0
    %1235 = vmatprep.mubr.f32.mxu0 0.0
    %1236 = vmatmul.mubr.f32.gmra.mxu0 %v974
    %v1237 = vpop.f32.mrf.mxu0
    %v1238 = vadd.f32 %v722, %v1237
    %v1239 = vpop.f32.mrf.mxu0
    %1240 = vmatprep.mubr.f32.mxu0 0.0
    %1241 = vmatmul.mubr.f32.gmra.mxu0 %v976
    %v1242 = vpop.f32.mrf.mxu0
    %v1243 = vadd.f32 %v727, %v1242
    %v1244 = vpop.f32.mrf.mxu0
    %1245 = vmatprep.mubr.f32.mxu0 0.0
    %1246 = vmatmul.mubr.f32.gmra.mxu0 %v978
    %v1247 = vpop.f32.mrf.mxu0
    %v1248 = vadd.f32 %v732, %v1247
    %v1249 = vpop.f32.mrf.mxu0
    %1250 = vmatprep.mubr.f32.mxu0 0.0
    %1251 = vmatmul.mubr.f32.gmra.mxu0 %v980
    %v1252 = vpop.f32.mrf.mxu0
    %v1253 = vadd.f32 %v737, %v1252
    %v1254 = vpop.f32.mrf.mxu0
    %1255 = vmatprep.mubr.f32.mxu0 0.0
    %1256 = vmatmul.mubr.f32.gmra.mxu0 %v982
    %v1257 = vpop.f32.mrf.mxu0
    %v1258 = vadd.f32 %v742, %v1257
    %v1259 = vpop.f32.mrf.mxu0
    %1260 = vmatprep.mubr.f32.mxu0 0.0
    %1261 = vmatmul.mubr.f32.gmra.mxu0 %v984
    %v1262 = vpop.f32.mrf.mxu0
    %v1263 = vadd.f32 %v747, %v1262
    %v1264 = vpop.f32.mrf.mxu0
    %1265 = vmatprep.mubr.f32.mxu0 0.0
    %1266 = vmatmul.mubr.f32.gmra.mxu0 %v986
    %v1267 = vpop.f32.mrf.mxu0
    %v1268 = vadd.f32 %v752, %v1267
    %v1269 = vpop.f32.mrf.mxu0
    %1270 = vmatprep.mubr.f32.mxu0 0.0
    %1271 = vmatmul.mubr.f32.gmra.mxu0 %v988
    %v1272 = vpop.f32.mrf.mxu0
    %v1273 = vadd.f32 %v757, %v1272
    %v1274 = vpop.f32.mrf.mxu0
    %1275 = vmatprep.mubr.f32.mxu0 0.0
    %1276 = vmatmul.mubr.f32.gmra.mxu0 %v990
    %v1277 = vpop.f32.mrf.mxu0
    %v1278 = vadd.f32 %v762, %v1277
    %v1279 = vpop.f32.mrf.mxu0
    %1280 = vmatprep.mubr.f32.mxu0 0.0
    %1281 = vmatmul.mubr.f32.gmra.mxu0 %v992
    %v1282 = vpop.f32.mrf.mxu0
    %v1283 = vadd.f32 %v767, %v1282
    %v1284 = vpop.f32.mrf.mxu0
    %1285 = vmatprep.mubr.f32.mxu0 0.0
    %1286 = vmatmul.mubr.f32.gmra.mxu0 %v994
    %v1287 = vpop.f32.mrf.mxu0
    %v1288 = vadd.f32 %v772, %v1287
    %v1289 = vpop.f32.mrf.mxu0
    %1290 = vmatprep.mubr.f32.mxu0 0.0
    %1291 = vmatmul.mubr.f32.gmra.mxu0 %v996
    %v1292 = vpop.f32.mrf.mxu0
    %v1293 = vadd.f32 %v777, %v1292
    %v1294 = vpop.f32.mrf.mxu0
    %1295 = vmatprep.mubr.f32.mxu0 0.0
    %1296 = vmatmul.mubr.f32.gmra.mxu0 %v998
    %v1297 = vpop.f32.mrf.mxu0
    %v1298 = vadd.f32 %v782, %v1297
    %v1299 = vpop.f32.mrf.mxu0
    %1300 = vmatprep.mubr.f32.mxu0 0.0
    %1301 = vmatmul.mubr.f32.gmra.mxu0 %v1000
    %v1302 = vpop.f32.mrf.mxu0
    %v1303 = vadd.f32 %v787, %v1302
    %v1304 = vpop.f32.mrf.mxu0
    %1305 = vmatprep.mubr.f32.mxu0 0.0
    %1306 = vmatmul.mubr.f32.gmra.mxu0 %v1002
    %v1307 = vpop.f32.mrf.mxu0
    %v1308 = vadd.f32 %v792, %v1307
    %v1309 = vpop.f32.mrf.mxu0
    %1310 = vmatprep.mubr.f32.mxu0 0.0
    %1311 = vmatmul.mubr.f32.gmra.mxu0 %v1004
    %v1312 = vpop.f32.mrf.mxu0
    %v1313 = vadd.f32 %v797, %v1312
    %v1314 = vpop.f32.mrf.mxu0
    %1315 = vmatprep.mubr.f32.mxu0 0.0
    %1316 = vmatmul.mubr.f32.gmra.mxu0 %v1006
    %v1317 = vpop.f32.mrf.mxu0
    %v1318 = vadd.f32 %v802, %v1317
    %v1319 = vpop.f32.mrf.mxu0
    %1320 = vmatprep.mubr.f32.mxu0 0.0
    %1321 = vmatmul.mubr.f32.gmra.mxu0 %v1008
    %v1322 = vpop.f32.mrf.mxu0
    %v1323 = vadd.f32 %v807, %v1322
    %v1324 = vpop.f32.mrf.mxu0
    %1325 = vmatprep.mubr.f32.mxu0 0.0
    %1326 = vmatmul.mubr.f32.gmra.mxu0 %v1010
    %v1327 = vpop.f32.mrf.mxu0
    %v1328 = vadd.f32 %v812, %v1327
    %v1329 = vpop.f32.mrf.mxu0
    %1330 = vmatprep.mubr.f32.mxu0 0.0
    %1331 = vmatmul.mubr.f32.gmra.mxu0 %v1012
    %v1332 = vpop.f32.mrf.mxu0
    %v1333 = vadd.f32 %v817, %v1332
    %v1334 = vpop.f32.mrf.mxu0
    %1335 = vmatprep.mubr.f32.mxu0 0.0
    %1336 = vmatmul.mubr.f32.gmra.mxu0 %v1014
    %v1337 = vpop.f32.mrf.mxu0
    %v1338 = vadd.f32 %v822, %v1337
    %v1339 = vpop.f32.mrf.mxu0
    %1340 = vmatprep.mubr.f32.mxu0 0.0
    %1341 = vmatmul.mubr.f32.gmra.mxu0 %v1016
    %v1342 = vpop.f32.mrf.mxu0
    %v1343 = vadd.f32 %v827, %v1342
    %v1344 = vpop.f32.mrf.mxu0
    %1345 = vmatprep.mubr.f32.mxu0 0.0
    %1346 = vmatmul.mubr.f32.gmra.mxu0 %v1018
    %v1347 = vpop.f32.mrf.mxu0
    %v1348 = vadd.f32 %v832, %v1347
    %v1349 = vpop.f32.mrf.mxu0
    %1350 = vmatprep.mubr.f32.mxu0 0.0
    %1351 = vmatmul.mubr.f32.gmra.mxu0 %v1020
    %v1352 = vpop.f32.mrf.mxu0
    %v1353 = vadd.f32 %v837, %v1352
    %v1354 = vpop.f32.mrf.mxu0
    %1355 = vmatprep.mubr.f32.mxu0 0.0
    %1356 = vmatmul.mubr.f32.gmra.mxu0 %v1022
    %v1357 = vpop.f32.mrf.mxu0
    %v1358 = vadd.f32 %v842, %v1357
    %v1359 = vpop.f32.mrf.mxu0
    %1360 = vmatprep.mubr.f32.mxu0 0.0
    %1361 = vmatmul.mubr.f32.gmra.mxu0 %v1024
    %v1362 = vpop.f32.mrf.mxu0
    %v1363 = vadd.f32 %v847, %v1362
    %v1364 = vpop.f32.mrf.mxu0
    %1365 = vmatprep.mubr.f32.mxu0 0.0
    %1366 = vmatmul.mubr.f32.gmra.mxu0 %v1026
    %v1367 = vpop.f32.mrf.mxu0
    %v1368 = vadd.f32 %v852, %v1367
    %v1369 = vpop.f32.mrf.mxu0
    %1370 = vmatprep.mubr.f32.mxu0 0.0
    %1371 = vmatmul.mubr.f32.gmra.mxu0 %v1028
    %v1372 = vpop.f32.mrf.mxu0
    %v1373 = vadd.f32 %v857, %v1372
    %v1374 = vpop.f32.mrf.mxu0
    %1375 = vmatprep.mubr.f32.mxu0 0.0
    %1376 = vmatmul.mubr.f32.gmra.mxu0 %v1030
    %v1377 = vpop.f32.mrf.mxu0
    %v1378 = vadd.f32 %v862, %v1377
    %v1379 = vpop.f32.mrf.mxu0
    %1380 = vmatprep.mubr.f32.mxu0 0.0
    %1381 = vmatmul.mubr.f32.gmra.mxu0 %v1032
    %v1382 = vpop.f32.mrf.mxu0
    %v1383 = vadd.f32 %v867, %v1382
    %v1384 = vpop.f32.mrf.mxu0
    %1385 = vmatprep.mubr.f32.mxu0 0.0
    %1386 = vmatmul.mubr.f32.gmra.mxu0 %v1034
    %v1387 = vpop.f32.mrf.mxu0
    %v1388 = vadd.f32 %v872, %v1387
    %v1389 = vpop.f32.mrf.mxu0
    %1390 = vmatprep.mubr.f32.mxu0 0.0
    %1391 = vmatmul.mubr.f32.gmra.mxu0 %v1036
    %v1392 = vpop.f32.mrf.mxu0
    %v1393 = vadd.f32 %v877, %v1392
    %v1394 = vpop.f32.mrf.mxu0
    %1395 = vmatprep.mubr.f32.mxu0 0.0
    %1396 = vmatmul.mubr.f32.gmra.mxu0 %v1038
    %v1397 = vpop.f32.mrf.mxu0
    %v1398 = vadd.f32 %v882, %v1397
    %v1399 = vpop.f32.mrf.mxu0
    %1400 = vmatprep.mubr.f32.mxu0 0.0
    %1401 = vmatmul.mubr.f32.gmra.mxu0 %v1040
    %v1402 = vpop.f32.mrf.mxu0
    %v1403 = vadd.f32 %v887, %v1402
    %v1404 = vpop.f32.mrf.mxu0
    %1405 = vmatprep.mubr.f32.mxu0 0.0
    %1406 = vmatmul.mubr.f32.gmra.mxu0 %v1042
    %v1407 = vpop.f32.mrf.mxu0
    %v1408 = vadd.f32 %v892, %v1407
    %v1409 = vpop.f32.mrf.mxu0
    %1410 = vmatprep.mubr.f32.mxu0 0.0
    %1411 = vmatmul.mubr.f32.gmra.mxu0 %v1044
    %v1412 = vpop.f32.mrf.mxu0
    %v1413 = vadd.f32 %v897, %v1412
    %v1414 = vpop.f32.mrf.mxu0
    %1415 = vmatprep.mubr.f32.mxu0 0.0
    %1416 = vmatmul.mubr.f32.gmra.mxu0 %v1046
    %v1417 = vpop.f32.mrf.mxu0
    %v1418 = vadd.f32 %v902, %v1417
    %v1419 = vpop.f32.mrf.mxu0
    %1420 = vmatprep.mubr.f32.mxu0 0.0
    %1421 = vmatmul.mubr.f32.gmra.mxu0 %v1048
    %v1422 = vpop.f32.mrf.mxu0
    %v1423 = vadd.f32 %v907, %v1422
    %v1424 = vpop.f32.mrf.mxu0
    %1425 = vmatprep.mubr.f32.mxu0 0.0
    %1426 = vmatmul.mubr.f32.gmra.mxu0 %v1050
    %v1427 = vpop.f32.mrf.mxu0
    %v1428 = vadd.f32 %v912, %v1427
    %v1429 = vpop.f32.mrf.mxu0
    %1430 = vmatprep.mubr.f32.mxu0 0.0
    %1431 = vmatmul.mubr.f32.gmra.mxu0 %v1052
    %v1432 = vpop.f32.mrf.mxu0
    %v1433 = vadd.f32 %v917, %v1432
    %v1434 = vpop.f32.mrf.mxu0
    %1435 = vmatprep.mubr.f32.mxu0 0.0
    %1436 = vmatmul.mubr.f32.gmra.mxu0 %v1054
    %v1437 = vpop.f32.mrf.mxu0
    %v1438 = vadd.f32 %v922, %v1437
    %v1439 = vpop.f32.mrf.mxu0
    %1440 = vmatprep.mubr.f32.mxu0 0.0
    %1441 = vmatmul.mubr.f32.gmra.mxu0 %v1056
    %v1442 = vpop.f32.mrf.mxu0
    %v1443 = vadd.f32 %v927, %v1442
    %v1444 = vpop.f32.mrf.mxu0
    %1445 = vdwg.mxu0
    %vm1446 = vcmask 1045504
    %v1447 = vrot.slane %v44, 2
    %v1448 = vrot.slane %v45, 2
    %v1449 = vsel %vm1446, %v1447, %v1448
    %v1450 = vrot.slane %v46, 2
    %v1451 = vsel %vm1446, %v1448, %v1450
    %v1452 = vrot.slane %v47, 2
    %v1453 = vrot.slane %v48, 2
    %v1454 = vsel %vm1446, %v1452, %v1453
    %v1455 = vrot.slane %v49, 2
    %v1456 = vsel %vm1446, %v1453, %v1455
    %v1457 = vrot.slane %v50, 2
    %v1458 = vrot.slane %v51, 2
    %v1459 = vsel %vm1446, %v1457, %v1458
    %v1460 = vrot.slane %v52, 2
    %v1461 = vsel %vm1446, %v1458, %v1460
    %v1462 = vrot.slane %v53, 2
    %v1463 = vrot.slane %v54, 2
    %v1464 = vsel %vm1446, %v1462, %v1463
    %v1465 = vrot.slane %v55, 2
    %v1466 = vsel %vm1446, %v1463, %v1465
    %v1467 = vrot.slane %v56, 2
    %v1468 = vrot.slane %v57, 2
    %v1469 = vsel %vm1446, %v1467, %v1468
    %v1470 = vrot.slane %v58, 2
    %v1471 = vsel %vm1446, %v1468, %v1470
    %v1472 = vrot.slane %v59, 2
    %v1473 = vrot.slane %v60, 2
    %v1474 = vsel %vm1446, %v1472, %v1473
    %v1475 = vrot.slane %v61, 2
    %v1476 = vsel %vm1446, %v1473, %v1475
    %v1477 = vrot.slane %v62, 2
    %v1478 = vrot.slane %v63, 2
    %v1479 = vsel %vm1446, %v1477, %v1478
    %v1480 = vrot.slane %v64, 2
    %v1481 = vsel %vm1446, %v1478, %v1480
    %v1482 = vrot.slane %v65, 2
    %v1483 = vrot.slane %v66, 2
    %v1484 = vsel %vm1446, %v1482, %v1483
    %v1485 = vrot.slane %v67, 2
    %v1486 = vsel %vm1446, %v1483, %v1485
    %v1487 = vrot.slane %v68, 2
    %v1488 = vrot.slane %v69, 2
    %v1489 = vsel %vm1446, %v1487, %v1488
    %v1490 = vrot.slane %v70, 2
    %v1491 = vsel %vm1446, %v1488, %v1490
    %v1492 = vrot.slane %v71, 2
    %v1493 = vrot.slane %v72, 2
    %v1494 = vsel %vm1446, %v1492, %v1493
    %v1495 = vrot.slane %v73, 2
    %v1496 = vsel %vm1446, %v1493, %v1495
    %v1497 = vrot.slane %v74, 2
    %v1498 = vrot.slane %v75, 2
    %v1499 = vsel %vm1446, %v1497, %v1498
    %v1500 = vrot.slane %v76, 2
    %v1501 = vsel %vm1446, %v1498, %v1500
    %v1502 = vrot.slane %v77, 2
    %v1503 = vrot.slane %v78, 2
    %v1504 = vsel %vm1446, %v1502, %v1503
    %v1505 = vrot.slane %v79, 2
    %v1506 = vsel %vm1446, %v1503, %v1505
    %v1507 = vrot.slane %v80, 2
    %v1508 = vrot.slane %v81, 2
    %v1509 = vsel %vm1446, %v1507, %v1508
    %v1510 = vrot.slane %v82, 2
    %v1511 = vsel %vm1446, %v1508, %v1510
    %v1512 = vrot.slane %v83, 2
    %v1513 = vrot.slane %v84, 2
    %v1514 = vsel %vm1446, %v1512, %v1513
    %v1515 = vrot.slane %v85, 2
    %v1516 = vsel %vm1446, %v1513, %v1515
    %v1517 = vrot.slane %v86, 2
    %v1518 = vrot.slane %v87, 2
    %v1519 = vsel %vm1446, %v1517, %v1518
    %v1520 = vrot.slane %v88, 2
    %v1521 = vsel %vm1446, %v1518, %v1520
    %v1522 = vrot.slane %v89, 2
    %v1523 = vrot.slane %v90, 2
    %v1524 = vsel %vm1446, %v1522, %v1523
    %v1525 = vrot.slane %v91, 2
    %v1526 = vsel %vm1446, %v1523, %v1525
    %v1527 = vrot.slane %v98, 2
    %v1528 = vrot.slane %v99, 2
    %v1529 = vsel %vm1446, %v1527, %v1528
    %v1530 = vrot.slane %v100, 2
    %v1531 = vsel %vm1446, %v1528, %v1530
    %v1532 = vrot.slane %v101, 2
    %v1533 = vrot.slane %v102, 2
    %v1534 = vsel %vm1446, %v1532, %v1533
    %v1535 = vrot.slane %v103, 2
    %v1536 = vsel %vm1446, %v1533, %v1535
    %v1537 = vrot.slane %v104, 2
    %v1538 = vrot.slane %v105, 2
    %v1539 = vsel %vm1446, %v1537, %v1538
    %v1540 = vrot.slane %v106, 2
    %v1541 = vsel %vm1446, %v1538, %v1540
    %v1542 = vrot.slane %v107, 2
    %v1543 = vrot.slane %v108, 2
    %v1544 = vsel %vm1446, %v1542, %v1543
    %v1545 = vrot.slane %v109, 2
    %v1546 = vsel %vm1446, %v1543, %v1545
    %v1547 = vrot.slane %v110, 2
    %v1548 = vrot.slane %v111, 2
    %v1549 = vsel %vm1446, %v1547, %v1548
    %v1550 = vrot.slane %v112, 2
    %v1551 = vsel %vm1446, %v1548, %v1550
    %v1552 = vrot.slane %v113, 2
    %v1553 = vrot.slane %v114, 2
    %v1554 = vsel %vm1446, %v1552, %v1553
    %v1555 = vrot.slane %v115, 2
    %v1556 = vsel %vm1446, %v1553, %v1555
    %v1557 = vrot.slane %v116, 2
    %v1558 = vrot.slane %v117, 2
    %v1559 = vsel %vm1446, %v1557, %v1558
    %v1560 = vrot.slane %v118, 2
    %v1561 = vsel %vm1446, %v1558, %v1560
    %v1562 = vrot.slane %v119, 2
    %v1563 = vrot.slane %v120, 2
    %v1564 = vsel %vm1446, %v1562, %v1563
    %v1565 = vrot.slane %v121, 2
    %v1566 = vsel %vm1446, %v1563, %v1565
    %v1567 = vrot.slane %v122, 2
    %v1568 = vrot.slane %v123, 2
    %v1569 = vsel %vm1446, %v1567, %v1568
    %v1570 = vrot.slane %v124, 2
    %v1571 = vsel %vm1446, %v1568, %v1570
    %v1572 = vrot.slane %v125, 2
    %v1573 = vrot.slane %v126, 2
    %v1574 = vsel %vm1446, %v1572, %v1573
    %v1575 = vrot.slane %v127, 2
    %v1576 = vsel %vm1446, %v1573, %v1575
    %v1577 = vrot.slane %v128, 2
    %v1578 = vrot.slane %v129, 2
    %v1579 = vsel %vm1446, %v1577, %v1578
    %v1580 = vrot.slane %v130, 2
    %v1581 = vsel %vm1446, %v1578, %v1580
    %v1582 = vrot.slane %v131, 2
    %v1583 = vrot.slane %v132, 2
    %v1584 = vsel %vm1446, %v1582, %v1583
    %v1585 = vrot.slane %v133, 2
    %v1586 = vsel %vm1446, %v1583, %v1585
    %v1587 = vrot.slane %v134, 2
    %v1588 = vrot.slane %v135, 2
    %v1589 = vsel %vm1446, %v1587, %v1588
    %v1590 = vrot.slane %v136, 2
    %v1591 = vsel %vm1446, %v1588, %v1590
    %v1592 = vrot.slane %v137, 2
    %v1593 = vrot.slane %v138, 2
    %v1594 = vsel %vm1446, %v1592, %v1593
    %v1595 = vrot.slane %v139, 2
    %v1596 = vsel %vm1446, %v1593, %v1595
    %v1597 = vrot.slane %v140, 2
    %v1598 = vrot.slane %v141, 2
    %v1599 = vsel %vm1446, %v1597, %v1598
    %v1600 = vrot.slane %v142, 2
    %v1601 = vsel %vm1446, %v1598, %v1600
    %v1602 = vrot.slane %v143, 2
    %v1603 = vrot.slane %v144, 2
    %v1604 = vsel %vm1446, %v1602, %v1603
    %v1605 = vrot.slane %v145, 2
    %v1606 = vsel %vm1446, %v1603, %v1605
    %s1607 = scalar_lea.vmem %s1, 8
    %v1608 = vld [vmem:[%s1607] sm:$0xf]
    %v1609 = vsel %vm412, %v1449, 0
    %v1611 = vsel %vm412, %v1451, 0
    %v1613 = vsel %vm412, %v1454, 0
    %v1615 = vsel %vm412, %v1456, 0
    %v1617 = vsel %vm412, %v1459, 0
    %v1619 = vsel %vm412, %v1461, 0
    %v1621 = vsel %vm412, %v1464, 0
    %v1623 = vsel %vm412, %v1466, 0
    %v1625 = vsel %vm412, %v1469, 0
    %v1627 = vsel %vm412, %v1471, 0
    %v1629 = vsel %vm412, %v1474, 0
    %v1631 = vsel %vm412, %v1476, 0
    %v1633 = vsel %vm412, %v1479, 0
    %v1635 = vsel %vm412, %v1481, 0
    %v1637 = vsel %vm412, %v1484, 0
    %v1639 = vsel %vm412, %v1486, 0
    %v1641 = vsel %vm412, %v1489, 0
    %v1643 = vsel %vm412, %v1491, 0
    %v1645 = vsel %vm412, %v1494, 0
    %v1647 = vsel %vm412, %v1496, 0
    %v1649 = vsel %vm412, %v1499, 0
    %v1651 = vsel %vm412, %v1501, 0
    %v1653 = vsel %vm412, %v1504, 0
    %v1655 = vsel %vm412, %v1506, 0
    %v1657 = vsel %vm412, %v1509, 0
    %v1659 = vsel %vm412, %v1511, 0
    %v1661 = vsel %vm412, %v1514, 0
    %v1663 = vsel %vm412, %v1516, 0
    %v1665 = vsel %vm412, %v1519, 0
    %v1667 = vsel %vm412, %v1521, 0
    %v1669 = vsel %vm412, %v1524, 0
    %v1671 = vsel %vm412, %v1526, 0
    %v1673 = vsel %vm412, %v1529, 0
    %v1675 = vsel %vm412, %v1531, 0
    %v1677 = vsel %vm412, %v1534, 0
    %v1679 = vsel %vm412, %v1536, 0
    %v1681 = vsel %vm412, %v1539, 0
    %v1683 = vsel %vm412, %v1541, 0
    %v1685 = vsel %vm412, %v1544, 0
    %v1687 = vsel %vm412, %v1546, 0
    %v1689 = vsel %vm412, %v1549, 0
    %v1691 = vsel %vm412, %v1551, 0
    %v1693 = vsel %vm412, %v1554, 0
    %v1695 = vsel %vm412, %v1556, 0
    %v1697 = vsel %vm412, %v1559, 0
    %v1699 = vsel %vm412, %v1561, 0
    %v1701 = vsel %vm412, %v1564, 0
    %v1703 = vsel %vm412, %v1566, 0
    %v1705 = vsel %vm412, %v1569, 0
    %v1707 = vsel %vm412, %v1571, 0
    %v1709 = vsel %vm412, %v1574, 0
    %v1711 = vsel %vm412, %v1576, 0
    %v1713 = vsel %vm412, %v1579, 0
    %v1715 = vsel %vm412, %v1581, 0
    %v1717 = vsel %vm412, %v1584, 0
    %v1719 = vsel %vm412, %v1586, 0
    %v1721 = vsel %vm412, %v1589, 0
    %v1723 = vsel %vm412, %v1591, 0
    %v1725 = vsel %vm412, %v1594, 0
    %v1727 = vsel %vm412, %v1596, 0
    %v1729 = vsel %vm412, %v1599, 0
    %v1731 = vsel %vm412, %v1601, 0
    %v1733 = vsel %vm412, %v1604, 0
    %v1735 = vsel %vm412, %v1606, 0
    %v1738 = vsel %vm541, %v1608, 0
    %1740 = vmatprep.subr.mxu0 0.0
    %1741 = vmatpush1.msra.mxu0 0.0
    %1742 = vmatprep.subr.mxu0 0.0
    %1743 = vmatpush1.msra.mxu0 0.0
    %1744 = vmatprep.subr.mxu0 0.0
    %1745 = vmatpush1.msra.mxu0 0.0
    %1746 = vmatprep.subr.mxu0 0.0
    %1747 = vmatpush1.msra.mxu0 0.0
    %1748 = vmatprep.subr.mxu0 0.0
    %1749 = vmatpush1.msra.mxu0 0.0
    %1750 = vmatprep.subr.mxu0 0.0
    %1751 = vmatpush1.msra.mxu0 0.0
    %1752 = vmatprep.subr.mxu0 0.0
    %1753 = vmatpush1.msra.mxu0 0.0
    %1754 = vmatprep.subr.mxu0 0.0
    %1755 = vmatpush1.msra.mxu0 0.0
    %1756 = vmatprep.subr.mxu0 0.0
    %1757 = vmatpush1.msra.mxu0 0.0
    %1758 = vmatprep.subr.mxu0 0.0
    %1759 = vmatpush1.msra.mxu0 0.0
    %1760 = vmatprep.subr.mxu0 0.0
    %1761 = vmatpush1.msra.mxu0 0.0
    %1762 = vmatprep.subr.mxu0 0.0
    %1763 = vmatpush1.msra.mxu0 0.0
    %1764 = vmatprep.subr.mxu0 0.0
    %1765 = vmatpush1.msra.mxu0 0.0
    %1766 = vmatprep.subr.mxu0 0.0
    %1767 = vmatpush1.msra.mxu0 0.0
    %1768 = vmatprep.subr.mxu0 0.0
    %1769 = vmatpush1.msra.mxu0 0.0
    %1770 = vmatprep.subr.mxu0 0.0
    %1771 = vmatpush1.msra.mxu0 %v1738
    %1772 = vmatprep.subr.mxu0 0.0
    %1773 = vmatpush2.msra.mxu0 0.0
    %1774 = vmatprep.subr.mxu0 0.0
    %1775 = vmatpush2.msra.mxu0 0.0
    %1776 = vmatprep.subr.mxu0 0.0
    %1777 = vmatpush2.msra.mxu0 0.0
    %1778 = vmatprep.subr.mxu0 0.0
    %1779 = vmatpush2.msra.mxu0 0.0
    %1780 = vmatprep.subr.mxu0 0.0
    %1781 = vmatpush2.msra.mxu0 0.0
    %1782 = vmatprep.subr.mxu0 0.0
    %1783 = vmatpush2.msra.mxu0 0.0
    %1784 = vmatprep.subr.mxu0 0.0
    %1785 = vmatpush2.msra.mxu0 0.0
    %1786 = vmatprep.subr.mxu0 0.0
    %1787 = vmatpush2.msra.mxu0 0.0
    %1788 = vmatprep.subr.mxu0 0.0
    %1789 = vmatpush2.msra.mxu0 0.0
    %1790 = vmatprep.subr.mxu0 0.0
    %1791 = vmatpush2.msra.mxu0 0.0
    %1792 = vmatprep.subr.mxu0 0.0
    %1793 = vmatpush2.msra.mxu0 0.0
    %1794 = vmatprep.subr.mxu0 0.0
    %1795 = vmatpush2.msra.mxu0 0.0
    %1796 = vmatprep.subr.mxu0 0.0
    %1797 = vmatpush2.msra.mxu0 0.0
    %1798 = vmatprep.subr.mxu0 0.0
    %1799 = vmatpush2.msra.mxu0 0.0
    %1800 = vmatprep.subr.mxu0 0.0
    %1801 = vmatpush2.msra.mxu0 0.0
    %1802 = vmatprep.subr.mxu0 0.0
    %1803 = vmatpush2.msra.mxu0 0.0
    %1804 = vmatprep.mubr.f32.mxu0 0.0
    %1805 = vmatmul.mubr.f32.gmra.mxu0 %v1609
    %v1806 = vpop.f32.mrf.mxu0
    %v1807 = vadd.f32 0.0, %v1806
    %v1808 = vpop.f32.mrf.mxu0
    %1809 = vmatprep.mubr.f32.mxu0 0.0
    %1810 = vmatmul.mubr.f32.gmra.mxu0 %v1611
    %v1811 = vpop.f32.mrf.mxu0
    %v1812 = vadd.f32 0.0, %v1811
    %v1813 = vpop.f32.mrf.mxu0
    %1814 = vmatprep.mubr.f32.mxu0 0.0
    %1815 = vmatmul.mubr.f32.gmra.mxu0 %v1613
    %v1816 = vpop.f32.mrf.mxu0
    %v1817 = vadd.f32 0.0, %v1816
    %v1818 = vpop.f32.mrf.mxu0
    %1819 = vmatprep.mubr.f32.mxu0 0.0
    %1820 = vmatmul.mubr.f32.gmra.mxu0 %v1615
    %v1821 = vpop.f32.mrf.mxu0
    %v1822 = vadd.f32 0.0, %v1821
    %v1823 = vpop.f32.mrf.mxu0
    %1824 = vmatprep.mubr.f32.mxu0 0.0
    %1825 = vmatmul.mubr.f32.gmra.mxu0 %v1617
    %v1826 = vpop.f32.mrf.mxu0
    %v1827 = vadd.f32 0.0, %v1826
    %v1828 = vpop.f32.mrf.mxu0
    %1829 = vmatprep.mubr.f32.mxu0 0.0
    %1830 = vmatmul.mubr.f32.gmra.mxu0 %v1619
    %v1831 = vpop.f32.mrf.mxu0
    %v1832 = vadd.f32 0.0, %v1831
    %v1833 = vpop.f32.mrf.mxu0
    %1834 = vmatprep.mubr.f32.mxu0 0.0
    %1835 = vmatmul.mubr.f32.gmra.mxu0 %v1621
    %v1836 = vpop.f32.mrf.mxu0
    %v1837 = vadd.f32 0.0, %v1836
    %v1838 = vpop.f32.mrf.mxu0
    %1839 = vmatprep.mubr.f32.mxu0 0.0
    %1840 = vmatmul.mubr.f32.gmra.mxu0 %v1623
    %v1841 = vpop.f32.mrf.mxu0
    %v1842 = vadd.f32 0.0, %v1841
    %v1843 = vpop.f32.mrf.mxu0
    %1844 = vmatprep.mubr.f32.mxu0 0.0
    %1845 = vmatmul.mubr.f32.gmra.mxu0 %v1625
    %v1846 = vpop.f32.mrf.mxu0
    %v1847 = vadd.f32 0.0, %v1846
    %v1848 = vpop.f32.mrf.mxu0
    %1849 = vmatprep.mubr.f32.mxu0 0.0
    %1850 = vmatmul.mubr.f32.gmra.mxu0 %v1627
    %v1851 = vpop.f32.mrf.mxu0
    %v1852 = vadd.f32 0.0, %v1851
    %v1853 = vpop.f32.mrf.mxu0
    %1854 = vmatprep.mubr.f32.mxu0 0.0
    %1855 = vmatmul.mubr.f32.gmra.mxu0 %v1629
    %v1856 = vpop.f32.mrf.mxu0
    %v1857 = vadd.f32 0.0, %v1856
    %v1858 = vpop.f32.mrf.mxu0
    %1859 = vmatprep.mubr.f32.mxu0 0.0
    %1860 = vmatmul.mubr.f32.gmra.mxu0 %v1631
    %v1861 = vpop.f32.mrf.mxu0
    %v1862 = vadd.f32 0.0, %v1861
    %v1863 = vpop.f32.mrf.mxu0
    %1864 = vmatprep.mubr.f32.mxu0 0.0
    %1865 = vmatmul.mubr.f32.gmra.mxu0 %v1633
    %v1866 = vpop.f32.mrf.mxu0
    %v1867 = vadd.f32 0.0, %v1866
    %v1868 = vpop.f32.mrf.mxu0
    %1869 = vmatprep.mubr.f32.mxu0 0.0
    %1870 = vmatmul.mubr.f32.gmra.mxu0 %v1635
    %v1871 = vpop.f32.mrf.mxu0
    %v1872 = vadd.f32 0.0, %v1871
    %v1873 = vpop.f32.mrf.mxu0
    %1874 = vmatprep.mubr.f32.mxu0 0.0
    %1875 = vmatmul.mubr.f32.gmra.mxu0 %v1637
    %v1876 = vpop.f32.mrf.mxu0
    %v1877 = vadd.f32 0.0, %v1876
    %v1878 = vpop.f32.mrf.mxu0
    %1879 = vmatprep.mubr.f32.mxu0 0.0
    %1880 = vmatmul.mubr.f32.gmra.mxu0 %v1639
    %v1881 = vpop.f32.mrf.mxu0
    %v1882 = vadd.f32 0.0, %v1881
    %v1883 = vpop.f32.mrf.mxu0
    %1884 = vmatprep.mubr.f32.mxu0 0.0
    %1885 = vmatmul.mubr.f32.gmra.mxu0 %v1641
    %v1886 = vpop.f32.mrf.mxu0
    %v1887 = vadd.f32 0.0, %v1886
    %v1888 = vpop.f32.mrf.mxu0
    %1889 = vmatprep.mubr.f32.mxu0 0.0
    %1890 = vmatmul.mubr.f32.gmra.mxu0 %v1643
    %v1891 = vpop.f32.mrf.mxu0
    %v1892 = vadd.f32 0.0, %v1891
    %v1893 = vpop.f32.mrf.mxu0
    %1894 = vmatprep.mubr.f32.mxu0 0.0
    %1895 = vmatmul.mubr.f32.gmra.mxu0 %v1645
    %v1896 = vpop.f32.mrf.mxu0
    %v1897 = vadd.f32 0.0, %v1896
    %v1898 = vpop.f32.mrf.mxu0
    %1899 = vmatprep.mubr.f32.mxu0 0.0
    %1900 = vmatmul.mubr.f32.gmra.mxu0 %v1647
    %v1901 = vpop.f32.mrf.mxu0
    %v1902 = vadd.f32 0.0, %v1901
    %v1903 = vpop.f32.mrf.mxu0
    %1904 = vmatprep.mubr.f32.mxu0 0.0
    %1905 = vmatmul.mubr.f32.gmra.mxu0 %v1649
    %v1906 = vpop.f32.mrf.mxu0
    %v1907 = vadd.f32 0.0, %v1906
    %v1908 = vpop.f32.mrf.mxu0
    %1909 = vmatprep.mubr.f32.mxu0 0.0
    %1910 = vmatmul.mubr.f32.gmra.mxu0 %v1651
    %v1911 = vpop.f32.mrf.mxu0
    %v1912 = vadd.f32 0.0, %v1911
    %v1913 = vpop.f32.mrf.mxu0
    %1914 = vmatprep.mubr.f32.mxu0 0.0
    %1915 = vmatmul.mubr.f32.gmra.mxu0 %v1653
    %v1916 = vpop.f32.mrf.mxu0
    %v1917 = vadd.f32 0.0, %v1916
    %v1918 = vpop.f32.mrf.mxu0
    %1919 = vmatprep.mubr.f32.mxu0 0.0
    %1920 = vmatmul.mubr.f32.gmra.mxu0 %v1655
    %v1921 = vpop.f32.mrf.mxu0
    %v1922 = vadd.f32 0.0, %v1921
    %v1923 = vpop.f32.mrf.mxu0
    %1924 = vmatprep.mubr.f32.mxu0 0.0
    %1925 = vmatmul.mubr.f32.gmra.mxu0 %v1657
    %v1926 = vpop.f32.mrf.mxu0
    %v1927 = vadd.f32 0.0, %v1926
    %v1928 = vpop.f32.mrf.mxu0
    %1929 = vmatprep.mubr.f32.mxu0 0.0
    %1930 = vmatmul.mubr.f32.gmra.mxu0 %v1659
    %v1931 = vpop.f32.mrf.mxu0
    %v1932 = vadd.f32 0.0, %v1931
    %v1933 = vpop.f32.mrf.mxu0
    %1934 = vmatprep.mubr.f32.mxu0 0.0
    %1935 = vmatmul.mubr.f32.gmra.mxu0 %v1661
    %v1936 = vpop.f32.mrf.mxu0
    %v1937 = vadd.f32 0.0, %v1936
    %v1938 = vpop.f32.mrf.mxu0
    %1939 = vmatprep.mubr.f32.mxu0 0.0
    %1940 = vmatmul.mubr.f32.gmra.mxu0 %v1663
    %v1941 = vpop.f32.mrf.mxu0
    %v1942 = vadd.f32 0.0, %v1941
    %v1943 = vpop.f32.mrf.mxu0
    %1944 = vmatprep.mubr.f32.mxu0 0.0
    %1945 = vmatmul.mubr.f32.gmra.mxu0 %v1665
    %v1946 = vpop.f32.mrf.mxu0
    %v1947 = vadd.f32 0.0, %v1946
    %v1948 = vpop.f32.mrf.mxu0
    %1949 = vmatprep.mubr.f32.mxu0 0.0
    %1950 = vmatmul.mubr.f32.gmra.mxu0 %v1667
    %v1951 = vpop.f32.mrf.mxu0
    %v1952 = vadd.f32 0.0, %v1951
    %v1953 = vpop.f32.mrf.mxu0
    %1954 = vmatprep.mubr.f32.mxu0 0.0
    %1955 = vmatmul.mubr.f32.gmra.mxu0 %v1669
    %v1956 = vpop.f32.mrf.mxu0
    %v1957 = vadd.f32 0.0, %v1956
    %v1958 = vpop.f32.mrf.mxu0
    %1959 = vmatprep.mubr.f32.mxu0 0.0
    %1960 = vmatmul.mubr.f32.gmra.mxu0 %v1671
    %v1961 = vpop.f32.mrf.mxu0
    %v1962 = vadd.f32 0.0, %v1961
    %v1963 = vpop.f32.mrf.mxu0
    %1964 = vmatprep.mubr.f32.mxu0 0.0
    %1965 = vmatmul.mubr.f32.gmra.mxu0 %v1673
    %v1966 = vpop.f32.mrf.mxu0
    %v1967 = vadd.f32 0.0, %v1966
    %v1968 = vpop.f32.mrf.mxu0
    %1969 = vmatprep.mubr.f32.mxu0 0.0
    %1970 = vmatmul.mubr.f32.gmra.mxu0 %v1675
    %v1971 = vpop.f32.mrf.mxu0
    %v1972 = vadd.f32 0.0, %v1971
    %v1973 = vpop.f32.mrf.mxu0
    %1974 = vmatprep.mubr.f32.mxu0 0.0
    %1975 = vmatmul.mubr.f32.gmra.mxu0 %v1677
    %v1976 = vpop.f32.mrf.mxu0
    %v1977 = vadd.f32 0.0, %v1976
    %v1978 = vpop.f32.mrf.mxu0
    %1979 = vmatprep.mubr.f32.mxu0 0.0
    %1980 = vmatmul.mubr.f32.gmra.mxu0 %v1679
    %v1981 = vpop.f32.mrf.mxu0
    %v1982 = vadd.f32 0.0, %v1981
    %v1983 = vpop.f32.mrf.mxu0
    %1984 = vmatprep.mubr.f32.mxu0 0.0
    %1985 = vmatmul.mubr.f32.gmra.mxu0 %v1681
    %v1986 = vpop.f32.mrf.mxu0
    %v1987 = vadd.f32 0.0, %v1986
    %v1988 = vpop.f32.mrf.mxu0
    %1989 = vmatprep.mubr.f32.mxu0 0.0
    %1990 = vmatmul.mubr.f32.gmra.mxu0 %v1683
    %v1991 = vpop.f32.mrf.mxu0
    %v1992 = vadd.f32 0.0, %v1991
    %v1993 = vpop.f32.mrf.mxu0
    %1994 = vmatprep.mubr.f32.mxu0 0.0
    %1995 = vmatmul.mubr.f32.gmra.mxu0 %v1685
    %v1996 = vpop.f32.mrf.mxu0
    %v1997 = vadd.f32 0.0, %v1996
    %v1998 = vpop.f32.mrf.mxu0
    %1999 = vmatprep.mubr.f32.mxu0 0.0
    %2000 = vmatmul.mubr.f32.gmra.mxu0 %v1687
    %v2001 = vpop.f32.mrf.mxu0
    %v2002 = vadd.f32 0.0, %v2001
    %v2003 = vpop.f32.mrf.mxu0
    %2004 = vmatprep.mubr.f32.mxu0 0.0
    %2005 = vmatmul.mubr.f32.gmra.mxu0 %v1689
    %v2006 = vpop.f32.mrf.mxu0
    %v2007 = vadd.f32 0.0, %v2006
    %v2008 = vpop.f32.mrf.mxu0
    %2009 = vmatprep.mubr.f32.mxu0 0.0
    %2010 = vmatmul.mubr.f32.gmra.mxu0 %v1691
    %v2011 = vpop.f32.mrf.mxu0
    %v2012 = vadd.f32 0.0, %v2011
    %v2013 = vpop.f32.mrf.mxu0
    %2014 = vmatprep.mubr.f32.mxu0 0.0
    %2015 = vmatmul.mubr.f32.gmra.mxu0 %v1693
    %v2016 = vpop.f32.mrf.mxu0
    %v2017 = vadd.f32 0.0, %v2016
    %v2018 = vpop.f32.mrf.mxu0
    %2019 = vmatprep.mubr.f32.mxu0 0.0
    %2020 = vmatmul.mubr.f32.gmra.mxu0 %v1695
    %v2021 = vpop.f32.mrf.mxu0
    %v2022 = vadd.f32 0.0, %v2021
    %v2023 = vpop.f32.mrf.mxu0
    %2024 = vmatprep.mubr.f32.mxu0 0.0
    %2025 = vmatmul.mubr.f32.gmra.mxu0 %v1697
    %v2026 = vpop.f32.mrf.mxu0
    %v2027 = vadd.f32 0.0, %v2026
    %v2028 = vpop.f32.mrf.mxu0
    %2029 = vmatprep.mubr.f32.mxu0 0.0
    %2030 = vmatmul.mubr.f32.gmra.mxu0 %v1699
    %v2031 = vpop.f32.mrf.mxu0
    %v2032 = vadd.f32 0.0, %v2031
    %v2033 = vpop.f32.mrf.mxu0
    %2034 = vmatprep.mubr.f32.mxu0 0.0
    %2035 = vmatmul.mubr.f32.gmra.mxu0 %v1701
    %v2036 = vpop.f32.mrf.mxu0
    %v2037 = vadd.f32 0.0, %v2036
    %v2038 = vpop.f32.mrf.mxu0
    %2039 = vmatprep.mubr.f32.mxu0 0.0
    %2040 = vmatmul.mubr.f32.gmra.mxu0 %v1703
    %v2041 = vpop.f32.mrf.mxu0
    %v2042 = vadd.f32 0.0, %v2041
    %v2043 = vpop.f32.mrf.mxu0
    %2044 = vmatprep.mubr.f32.mxu0 0.0
    %2045 = vmatmul.mubr.f32.gmra.mxu0 %v1705
    %v2046 = vpop.f32.mrf.mxu0
    %v2047 = vadd.f32 0.0, %v2046
    %v2048 = vpop.f32.mrf.mxu0
    %2049 = vmatprep.mubr.f32.mxu0 0.0
    %2050 = vmatmul.mubr.f32.gmra.mxu0 %v1707
    %v2051 = vpop.f32.mrf.mxu0
    %v2052 = vadd.f32 0.0, %v2051
    %v2053 = vpop.f32.mrf.mxu0
    %2054 = vmatprep.mubr.f32.mxu0 0.0
    %2055 = vmatmul.mubr.f32.gmra.mxu0 %v1709
    %v2056 = vpop.f32.mrf.mxu0
    %v2057 = vadd.f32 0.0, %v2056
    %v2058 = vpop.f32.mrf.mxu0
    %2059 = vmatprep.mubr.f32.mxu0 0.0
    %2060 = vmatmul.mubr.f32.gmra.mxu0 %v1711
    %v2061 = vpop.f32.mrf.mxu0
    %v2062 = vadd.f32 0.0, %v2061
    %v2063 = vpop.f32.mrf.mxu0
    %2064 = vmatprep.mubr.f32.mxu0 0.0
    %2065 = vmatmul.mubr.f32.gmra.mxu0 %v1713
    %v2066 = vpop.f32.mrf.mxu0
    %v2067 = vadd.f32 0.0, %v2066
    %v2068 = vpop.f32.mrf.mxu0
    %2069 = vmatprep.mubr.f32.mxu0 0.0
    %2070 = vmatmul.mubr.f32.gmra.mxu0 %v1715
    %v2071 = vpop.f32.mrf.mxu0
    %v2072 = vadd.f32 0.0, %v2071
    %v2073 = vpop.f32.mrf.mxu0
    %2074 = vmatprep.mubr.f32.mxu0 0.0
    %2075 = vmatmul.mubr.f32.gmra.mxu0 %v1717
    %v2076 = vpop.f32.mrf.mxu0
    %v2077 = vadd.f32 0.0, %v2076
    %v2078 = vpop.f32.mrf.mxu0
    %2079 = vmatprep.mubr.f32.mxu0 0.0
    %2080 = vmatmul.mubr.f32.gmra.mxu0 %v1719
    %v2081 = vpop.f32.mrf.mxu0
    %v2082 = vadd.f32 0.0, %v2081
    %v2083 = vpop.f32.mrf.mxu0
    %2084 = vmatprep.mubr.f32.mxu0 0.0
    %2085 = vmatmul.mubr.f32.gmra.mxu0 %v1721
    %v2086 = vpop.f32.mrf.mxu0
    %v2087 = vadd.f32 0.0, %v2086
    %v2088 = vpop.f32.mrf.mxu0
    %2089 = vmatprep.mubr.f32.mxu0 0.0
    %2090 = vmatmul.mubr.f32.gmra.mxu0 %v1723
    %v2091 = vpop.f32.mrf.mxu0
    %v2092 = vadd.f32 0.0, %v2091
    %v2093 = vpop.f32.mrf.mxu0
    %2094 = vmatprep.mubr.f32.mxu0 0.0
    %2095 = vmatmul.mubr.f32.gmra.mxu0 %v1725
    %v2096 = vpop.f32.mrf.mxu0
    %v2097 = vadd.f32 0.0, %v2096
    %v2098 = vpop.f32.mrf.mxu0
    %2099 = vmatprep.mubr.f32.mxu0 0.0
    %2100 = vmatmul.mubr.f32.gmra.mxu0 %v1727
    %v2101 = vpop.f32.mrf.mxu0
    %v2102 = vadd.f32 0.0, %v2101
    %v2103 = vpop.f32.mrf.mxu0
    %2104 = vmatprep.mubr.f32.mxu0 0.0
    %2105 = vmatmul.mubr.f32.gmra.mxu0 %v1729
    %v2106 = vpop.f32.mrf.mxu0
    %v2107 = vadd.f32 0.0, %v2106
    %v2108 = vpop.f32.mrf.mxu0
    %2109 = vmatprep.mubr.f32.mxu0 0.0
    %2110 = vmatmul.mubr.f32.gmra.mxu0 %v1731
    %v2111 = vpop.f32.mrf.mxu0
    %v2112 = vadd.f32 0.0, %v2111
    %v2113 = vpop.f32.mrf.mxu0
    %2114 = vmatprep.mubr.f32.mxu0 0.0
    %2115 = vmatmul.mubr.f32.gmra.mxu0 %v1733
    %v2116 = vpop.f32.mrf.mxu0
    %v2117 = vadd.f32 0.0, %v2116
    %v2118 = vpop.f32.mrf.mxu0
    %2119 = vmatprep.mubr.f32.mxu0 0.0
    %2120 = vmatmul.mubr.f32.gmra.mxu0 %v1735
    %v2121 = vpop.f32.mrf.mxu0
    %v2122 = vadd.f32 0.0, %v2121
    %v2123 = vpop.f32.mrf.mxu0
    %2124 = vdwg.mxu0
    %v2125 = vadd.f32 %v1128, %v1807
    %v2126 = vadd.f32 %v1133, %v1812
    %v2127 = vadd.f32 %v1138, %v1817
    %v2128 = vadd.f32 %v1143, %v1822
    %v2129 = vadd.f32 %v1148, %v1827
    %v2130 = vadd.f32 %v1153, %v1832
    %v2131 = vadd.f32 %v1158, %v1837
    %v2132 = vadd.f32 %v1163, %v1842
    %v2133 = vadd.f32 %v1168, %v1847
    %v2134 = vadd.f32 %v1173, %v1852
    %v2135 = vadd.f32 %v1178, %v1857
    %v2136 = vadd.f32 %v1183, %v1862
    %v2137 = vadd.f32 %v1188, %v1867
    %v2138 = vadd.f32 %v1193, %v1872
    %v2139 = vadd.f32 %v1198, %v1877
    %v2140 = vadd.f32 %v1203, %v1882
    %v2141 = vadd.f32 %v1208, %v1887
    %v2142 = vadd.f32 %v1213, %v1892
    %v2143 = vadd.f32 %v1218, %v1897
    %v2144 = vadd.f32 %v1223, %v1902
    %v2145 = vadd.f32 %v1228, %v1907
    %v2146 = vadd.f32 %v1233, %v1912
    %v2147 = vadd.f32 %v1238, %v1917
    %v2148 = vadd.f32 %v1243, %v1922
    %v2149 = vadd.f32 %v1248, %v1927
    %v2150 = vadd.f32 %v1253, %v1932
    %v2151 = vadd.f32 %v1258, %v1937
    %v2152 = vadd.f32 %v1263, %v1942
    %v2153 = vadd.f32 %v1268, %v1947
    %v2154 = vadd.f32 %v1273, %v1952
    %v2155 = vadd.f32 %v1278, %v1957
    %v2156 = vadd.f32 %v1283, %v1962
    %v2157 = vadd.f32 %v1288, %v1967
    %v2158 = vadd.f32 %v1293, %v1972
    %v2159 = vadd.f32 %v1298, %v1977
    %v2160 = vadd.f32 %v1303, %v1982
    %v2161 = vadd.f32 %v1308, %v1987
    %v2162 = vadd.f32 %v1313, %v1992
    %v2163 = vadd.f32 %v1318, %v1997
    %v2164 = vadd.f32 %v1323, %v2002
    %v2165 = vadd.f32 %v1328, %v2007
    %v2166 = vadd.f32 %v1333, %v2012
    %v2167 = vadd.f32 %v1338, %v2017
    %v2168 = vadd.f32 %v1343, %v2022
    %v2169 = vadd.f32 %v1348, %v2027
    %v2170 = vadd.f32 %v1353, %v2032
    %v2171 = vadd.f32 %v1358, %v2037
    %v2172 = vadd.f32 %v1363, %v2042
    %v2173 = vadd.f32 %v1368, %v2047
    %v2174 = vadd.f32 %v1373, %v2052
    %v2175 = vadd.f32 %v1378, %v2057
    %v2176 = vadd.f32 %v1383, %v2062
    %v2177 = vadd.f32 %v1388, %v2067
    %v2178 = vadd.f32 %v1393, %v2072
    %v2179 = vadd.f32 %v1398, %v2077
    %v2180 = vadd.f32 %v1403, %v2082
    %v2181 = vadd.f32 %v1408, %v2087
    %v2182 = vadd.f32 %v1413, %v2092
    %v2183 = vadd.f32 %v1418, %v2097
    %v2184 = vadd.f32 %v1423, %v2102
    %v2185 = vadd.f32 %v1428, %v2107
    %v2186 = vadd.f32 %v1433, %v2112
    %v2187 = vadd.f32 %v1438, %v2117
    %v2188 = vadd.f32 %v1443, %v2122
    %s2189 = scalar_lea.vmem %s1, 12
    %v2190 = vld [vmem:[%s2189] sm:$0xf]
    %v2192 = vsel %vm412, %v92, 0
    %v2195 = vsel %vm412, %v93, 0
    %v2198 = vsel %vm412, %v146, 0
    %v2201 = vsel %vm412, %v147, 0
    %v2204 = vsel %vm541, %v2190, 0
    %2206 = vmatprep.subr.mxu0 0.0
    %2207 = vmatpush1.msra.mxu0 0.0
    %2208 = vmatprep.subr.mxu0 0.0
    %2209 = vmatpush1.msra.mxu0 0.0
    %2210 = vmatprep.subr.mxu0 0.0
    %2211 = vmatpush1.msra.mxu0 0.0
    %2212 = vmatprep.subr.mxu0 0.0
    %2213 = vmatpush1.msra.mxu0 0.0
    %2214 = vmatprep.subr.mxu0 0.0
    %2215 = vmatpush1.msra.mxu0 0.0
    %2216 = vmatprep.subr.mxu0 0.0
    %2217 = vmatpush1.msra.mxu0 0.0
    %2218 = vmatprep.subr.mxu0 0.0
    %2219 = vmatpush1.msra.mxu0 0.0
    %2220 = vmatprep.subr.mxu0 0.0
    %2221 = vmatpush1.msra.mxu0 0.0
    %2222 = vmatprep.subr.mxu0 0.0
    %2223 = vmatpush1.msra.mxu0 0.0
    %2224 = vmatprep.subr.mxu0 0.0
    %2225 = vmatpush1.msra.mxu0 0.0
    %2226 = vmatprep.subr.mxu0 0.0
    %2227 = vmatpush1.msra.mxu0 0.0
    %2228 = vmatprep.subr.mxu0 0.0
    %2229 = vmatpush1.msra.mxu0 0.0
    %2230 = vmatprep.subr.mxu0 0.0
    %2231 = vmatpush1.msra.mxu0 0.0
    %2232 = vmatprep.subr.mxu0 0.0
    %2233 = vmatpush1.msra.mxu0 0.0
    %2234 = vmatprep.subr.mxu0 0.0
    %2235 = vmatpush1.msra.mxu0 0.0
    %2236 = vmatprep.subr.mxu0 0.0
    %2237 = vmatpush1.msra.mxu0 %v2204
    %2238 = vmatprep.subr.mxu0 0.0
    %2239 = vmatpush2.msra.mxu0 0.0
    %2240 = vmatprep.subr.mxu0 0.0
    %2241 = vmatpush2.msra.mxu0 0.0
    %2242 = vmatprep.subr.mxu0 0.0
    %2243 = vmatpush2.msra.mxu0 0.0
    %2244 = vmatprep.subr.mxu0 0.0
    %2245 = vmatpush2.msra.mxu0 0.0
    %2246 = vmatprep.subr.mxu0 0.0
    %2247 = vmatpush2.msra.mxu0 0.0
    %2248 = vmatprep.subr.mxu0 0.0
    %2249 = vmatpush2.msra.mxu0 0.0
    %2250 = vmatprep.subr.mxu0 0.0
    %2251 = vmatpush2.msra.mxu0 0.0
    %2252 = vmatprep.subr.mxu0 0.0
    %2253 = vmatpush2.msra.mxu0 0.0
    %2254 = vmatprep.subr.mxu0 0.0
    %2255 = vmatpush2.msra.mxu0 0.0
    %2256 = vmatprep.subr.mxu0 0.0
    %2257 = vmatpush2.msra.mxu0 0.0
    %2258 = vmatprep.subr.mxu0 0.0
    %2259 = vmatpush2.msra.mxu0 0.0
    %2260 = vmatprep.subr.mxu0 0.0
    %2261 = vmatpush2.msra.mxu0 0.0
    %2262 = vmatprep.subr.mxu0 0.0
    %2263 = vmatpush2.msra.mxu0 0.0
    %2264 = vmatprep.subr.mxu0 0.0
    %2265 = vmatpush2.msra.mxu0 0.0
    %2266 = vmatprep.subr.mxu0 0.0
    %2267 = vmatpush2.msra.mxu0 0.0
    %2268 = vmatprep.subr.mxu0 0.0
    %2269 = vmatpush2.msra.mxu0 0.0
    %2270 = vmatprep.mubr.f32.mxu0 0.0
    %2271 = vmatmul.mubr.f32.gmra.mxu0 %v934
    %v2272 = vpop.f32.mrf.mxu0
    %v2273 = vadd.f32 0.0, %v2272
    %v2274 = vpop.f32.mrf.mxu0
    %2275 = vmatprep.mubr.f32.mxu0 0.0
    %2276 = vmatmul.mubr.f32.gmra.mxu0 %v936
    %v2277 = vpop.f32.mrf.mxu0
    %v2278 = vadd.f32 0.0, %v2277
    %v2279 = vpop.f32.mrf.mxu0
    %2280 = vmatprep.mubr.f32.mxu0 0.0
    %2281 = vmatmul.mubr.f32.gmra.mxu0 %v938
    %v2282 = vpop.f32.mrf.mxu0
    %v2283 = vadd.f32 0.0, %v2282
    %v2284 = vpop.f32.mrf.mxu0
    %2285 = vmatprep.mubr.f32.mxu0 0.0
    %2286 = vmatmul.mubr.f32.gmra.mxu0 %v940
    %v2287 = vpop.f32.mrf.mxu0
    %v2288 = vadd.f32 0.0, %v2287
    %v2289 = vpop.f32.mrf.mxu0
    %2290 = vmatprep.mubr.f32.mxu0 0.0
    %2291 = vmatmul.mubr.f32.gmra.mxu0 %v942
    %v2292 = vpop.f32.mrf.mxu0
    %v2293 = vadd.f32 0.0, %v2292
    %v2294 = vpop.f32.mrf.mxu0
    %2295 = vmatprep.mubr.f32.mxu0 0.0
    %2296 = vmatmul.mubr.f32.gmra.mxu0 %v944
    %v2297 = vpop.f32.mrf.mxu0
    %v2298 = vadd.f32 0.0, %v2297
    %v2299 = vpop.f32.mrf.mxu0
    %2300 = vmatprep.mubr.f32.mxu0 0.0
    %2301 = vmatmul.mubr.f32.gmra.mxu0 %v946
    %v2302 = vpop.f32.mrf.mxu0
    %v2303 = vadd.f32 0.0, %v2302
    %v2304 = vpop.f32.mrf.mxu0
    %2305 = vmatprep.mubr.f32.mxu0 0.0
    %2306 = vmatmul.mubr.f32.gmra.mxu0 %v948
    %v2307 = vpop.f32.mrf.mxu0
    %v2308 = vadd.f32 0.0, %v2307
    %v2309 = vpop.f32.mrf.mxu0
    %2310 = vmatprep.mubr.f32.mxu0 0.0
    %2311 = vmatmul.mubr.f32.gmra.mxu0 %v950
    %v2312 = vpop.f32.mrf.mxu0
    %v2313 = vadd.f32 0.0, %v2312
    %v2314 = vpop.f32.mrf.mxu0
    %2315 = vmatprep.mubr.f32.mxu0 0.0
    %2316 = vmatmul.mubr.f32.gmra.mxu0 %v952
    %v2317 = vpop.f32.mrf.mxu0
    %v2318 = vadd.f32 0.0, %v2317
    %v2319 = vpop.f32.mrf.mxu0
    %2320 = vmatprep.mubr.f32.mxu0 0.0
    %2321 = vmatmul.mubr.f32.gmra.mxu0 %v954
    %v2322 = vpop.f32.mrf.mxu0
    %v2323 = vadd.f32 0.0, %v2322
    %v2324 = vpop.f32.mrf.mxu0
    %2325 = vmatprep.mubr.f32.mxu0 0.0
    %2326 = vmatmul.mubr.f32.gmra.mxu0 %v956
    %v2327 = vpop.f32.mrf.mxu0
    %v2328 = vadd.f32 0.0, %v2327
    %v2329 = vpop.f32.mrf.mxu0
    %2330 = vmatprep.mubr.f32.mxu0 0.0
    %2331 = vmatmul.mubr.f32.gmra.mxu0 %v958
    %v2332 = vpop.f32.mrf.mxu0
    %v2333 = vadd.f32 0.0, %v2332
    %v2334 = vpop.f32.mrf.mxu0
    %2335 = vmatprep.mubr.f32.mxu0 0.0
    %2336 = vmatmul.mubr.f32.gmra.mxu0 %v960
    %v2337 = vpop.f32.mrf.mxu0
    %v2338 = vadd.f32 0.0, %v2337
    %v2339 = vpop.f32.mrf.mxu0
    %2340 = vmatprep.mubr.f32.mxu0 0.0
    %2341 = vmatmul.mubr.f32.gmra.mxu0 %v962
    %v2342 = vpop.f32.mrf.mxu0
    %v2343 = vadd.f32 0.0, %v2342
    %v2344 = vpop.f32.mrf.mxu0
    %2345 = vmatprep.mubr.f32.mxu0 0.0
    %2346 = vmatmul.mubr.f32.gmra.mxu0 %v964
    %v2347 = vpop.f32.mrf.mxu0
    %v2348 = vadd.f32 0.0, %v2347
    %v2349 = vpop.f32.mrf.mxu0
    %2350 = vmatprep.mubr.f32.mxu0 0.0
    %2351 = vmatmul.mubr.f32.gmra.mxu0 %v966
    %v2352 = vpop.f32.mrf.mxu0
    %v2353 = vadd.f32 0.0, %v2352
    %v2354 = vpop.f32.mrf.mxu0
    %2355 = vmatprep.mubr.f32.mxu0 0.0
    %2356 = vmatmul.mubr.f32.gmra.mxu0 %v968
    %v2357 = vpop.f32.mrf.mxu0
    %v2358 = vadd.f32 0.0, %v2357
    %v2359 = vpop.f32.mrf.mxu0
    %2360 = vmatprep.mubr.f32.mxu0 0.0
    %2361 = vmatmul.mubr.f32.gmra.mxu0 %v970
    %v2362 = vpop.f32.mrf.mxu0
    %v2363 = vadd.f32 0.0, %v2362
    %v2364 = vpop.f32.mrf.mxu0
    %2365 = vmatprep.mubr.f32.mxu0 0.0
    %2366 = vmatmul.mubr.f32.gmra.mxu0 %v972
    %v2367 = vpop.f32.mrf.mxu0
    %v2368 = vadd.f32 0.0, %v2367
    %v2369 = vpop.f32.mrf.mxu0
    %2370 = vmatprep.mubr.f32.mxu0 0.0
    %2371 = vmatmul.mubr.f32.gmra.mxu0 %v974
    %v2372 = vpop.f32.mrf.mxu0
    %v2373 = vadd.f32 0.0, %v2372
    %v2374 = vpop.f32.mrf.mxu0
    %2375 = vmatprep.mubr.f32.mxu0 0.0
    %2376 = vmatmul.mubr.f32.gmra.mxu0 %v976
    %v2377 = vpop.f32.mrf.mxu0
    %v2378 = vadd.f32 0.0, %v2377
    %v2379 = vpop.f32.mrf.mxu0
    %2380 = vmatprep.mubr.f32.mxu0 0.0
    %2381 = vmatmul.mubr.f32.gmra.mxu0 %v978
    %v2382 = vpop.f32.mrf.mxu0
    %v2383 = vadd.f32 0.0, %v2382
    %v2384 = vpop.f32.mrf.mxu0
    %2385 = vmatprep.mubr.f32.mxu0 0.0
    %2386 = vmatmul.mubr.f32.gmra.mxu0 %v980
    %v2387 = vpop.f32.mrf.mxu0
    %v2388 = vadd.f32 0.0, %v2387
    %v2389 = vpop.f32.mrf.mxu0
    %2390 = vmatprep.mubr.f32.mxu0 0.0
    %2391 = vmatmul.mubr.f32.gmra.mxu0 %v982
    %v2392 = vpop.f32.mrf.mxu0
    %v2393 = vadd.f32 0.0, %v2392
    %v2394 = vpop.f32.mrf.mxu0
    %2395 = vmatprep.mubr.f32.mxu0 0.0
    %2396 = vmatmul.mubr.f32.gmra.mxu0 %v984
    %v2397 = vpop.f32.mrf.mxu0
    %v2398 = vadd.f32 0.0, %v2397
    %v2399 = vpop.f32.mrf.mxu0
    %2400 = vmatprep.mubr.f32.mxu0 0.0
    %2401 = vmatmul.mubr.f32.gmra.mxu0 %v986
    %v2402 = vpop.f32.mrf.mxu0
    %v2403 = vadd.f32 0.0, %v2402
    %v2404 = vpop.f32.mrf.mxu0
    %2405 = vmatprep.mubr.f32.mxu0 0.0
    %2406 = vmatmul.mubr.f32.gmra.mxu0 %v988
    %v2407 = vpop.f32.mrf.mxu0
    %v2408 = vadd.f32 0.0, %v2407
    %v2409 = vpop.f32.mrf.mxu0
    %2410 = vmatprep.mubr.f32.mxu0 0.0
    %2411 = vmatmul.mubr.f32.gmra.mxu0 %v990
    %v2412 = vpop.f32.mrf.mxu0
    %v2413 = vadd.f32 0.0, %v2412
    %v2414 = vpop.f32.mrf.mxu0
    %2415 = vmatprep.mubr.f32.mxu0 0.0
    %2416 = vmatmul.mubr.f32.gmra.mxu0 %v992
    %v2417 = vpop.f32.mrf.mxu0
    %v2418 = vadd.f32 0.0, %v2417
    %v2419 = vpop.f32.mrf.mxu0
    %2420 = vmatprep.mubr.f32.mxu0 0.0
    %2421 = vmatmul.mubr.f32.gmra.mxu0 %v2192
    %v2422 = vpop.f32.mrf.mxu0
    %v2423 = vadd.f32 0.0, %v2422
    %v2424 = vpop.f32.mrf.mxu0
    %2425 = vmatprep.mubr.f32.mxu0 0.0
    %2426 = vmatmul.mubr.f32.gmra.mxu0 %v2195
    %v2427 = vpop.f32.mrf.mxu0
    %v2428 = vadd.f32 0.0, %v2427
    %v2429 = vpop.f32.mrf.mxu0
    %2430 = vmatprep.mubr.f32.mxu0 0.0
    %2431 = vmatmul.mubr.f32.gmra.mxu0 %v998
    %v2432 = vpop.f32.mrf.mxu0
    %v2433 = vadd.f32 0.0, %v2432
    %v2434 = vpop.f32.mrf.mxu0
    %2435 = vmatprep.mubr.f32.mxu0 0.0
    %2436 = vmatmul.mubr.f32.gmra.mxu0 %v1000
    %v2437 = vpop.f32.mrf.mxu0
    %v2438 = vadd.f32 0.0, %v2437
    %v2439 = vpop.f32.mrf.mxu0
    %2440 = vmatprep.mubr.f32.mxu0 0.0
    %2441 = vmatmul.mubr.f32.gmra.mxu0 %v1002
    %v2442 = vpop.f32.mrf.mxu0
    %v2443 = vadd.f32 0.0, %v2442
    %v2444 = vpop.f32.mrf.mxu0
    %2445 = vmatprep.mubr.f32.mxu0 0.0
    %2446 = vmatmul.mubr.f32.gmra.mxu0 %v1004
    %v2447 = vpop.f32.mrf.mxu0
    %v2448 = vadd.f32 0.0, %v2447
    %v2449 = vpop.f32.mrf.mxu0
    %2450 = vmatprep.mubr.f32.mxu0 0.0
    %2451 = vmatmul.mubr.f32.gmra.mxu0 %v1006
    %v2452 = vpop.f32.mrf.mxu0
    %v2453 = vadd.f32 0.0, %v2452
    %v2454 = vpop.f32.mrf.mxu0
    %2455 = vmatprep.mubr.f32.mxu0 0.0
    %2456 = vmatmul.mubr.f32.gmra.mxu0 %v1008
    %v2457 = vpop.f32.mrf.mxu0
    %v2458 = vadd.f32 0.0, %v2457
    %v2459 = vpop.f32.mrf.mxu0
    %2460 = vmatprep.mubr.f32.mxu0 0.0
    %2461 = vmatmul.mubr.f32.gmra.mxu0 %v1010
    %v2462 = vpop.f32.mrf.mxu0
    %v2463 = vadd.f32 0.0, %v2462
    %v2464 = vpop.f32.mrf.mxu0
    %2465 = vmatprep.mubr.f32.mxu0 0.0
    %2466 = vmatmul.mubr.f32.gmra.mxu0 %v1012
    %v2467 = vpop.f32.mrf.mxu0
    %v2468 = vadd.f32 0.0, %v2467
    %v2469 = vpop.f32.mrf.mxu0
    %2470 = vmatprep.mubr.f32.mxu0 0.0
    %2471 = vmatmul.mubr.f32.gmra.mxu0 %v1014
    %v2472 = vpop.f32.mrf.mxu0
    %v2473 = vadd.f32 0.0, %v2472
    %v2474 = vpop.f32.mrf.mxu0
    %2475 = vmatprep.mubr.f32.mxu0 0.0
    %2476 = vmatmul.mubr.f32.gmra.mxu0 %v1016
    %v2477 = vpop.f32.mrf.mxu0
    %v2478 = vadd.f32 0.0, %v2477
    %v2479 = vpop.f32.mrf.mxu0
    %2480 = vmatprep.mubr.f32.mxu0 0.0
    %2481 = vmatmul.mubr.f32.gmra.mxu0 %v1018
    %v2482 = vpop.f32.mrf.mxu0
    %v2483 = vadd.f32 0.0, %v2482
    %v2484 = vpop.f32.mrf.mxu0
    %2485 = vmatprep.mubr.f32.mxu0 0.0
    %2486 = vmatmul.mubr.f32.gmra.mxu0 %v1020
    %v2487 = vpop.f32.mrf.mxu0
    %v2488 = vadd.f32 0.0, %v2487
    %v2489 = vpop.f32.mrf.mxu0
    %2490 = vmatprep.mubr.f32.mxu0 0.0
    %2491 = vmatmul.mubr.f32.gmra.mxu0 %v1022
    %v2492 = vpop.f32.mrf.mxu0
    %v2493 = vadd.f32 0.0, %v2492
    %v2494 = vpop.f32.mrf.mxu0
    %2495 = vmatprep.mubr.f32.mxu0 0.0
    %2496 = vmatmul.mubr.f32.gmra.mxu0 %v1024
    %v2497 = vpop.f32.mrf.mxu0
    %v2498 = vadd.f32 0.0, %v2497
    %v2499 = vpop.f32.mrf.mxu0
    %2500 = vmatprep.mubr.f32.mxu0 0.0
    %2501 = vmatmul.mubr.f32.gmra.mxu0 %v1026
    %v2502 = vpop.f32.mrf.mxu0
    %v2503 = vadd.f32 0.0, %v2502
    %v2504 = vpop.f32.mrf.mxu0
    %2505 = vmatprep.mubr.f32.mxu0 0.0
    %2506 = vmatmul.mubr.f32.gmra.mxu0 %v1028
    %v2507 = vpop.f32.mrf.mxu0
    %v2508 = vadd.f32 0.0, %v2507
    %v2509 = vpop.f32.mrf.mxu0
    %2510 = vmatprep.mubr.f32.mxu0 0.0
    %2511 = vmatmul.mubr.f32.gmra.mxu0 %v1030
    %v2512 = vpop.f32.mrf.mxu0
    %v2513 = vadd.f32 0.0, %v2512
    %v2514 = vpop.f32.mrf.mxu0
    %2515 = vmatprep.mubr.f32.mxu0 0.0
    %2516 = vmatmul.mubr.f32.gmra.mxu0 %v1032
    %v2517 = vpop.f32.mrf.mxu0
    %v2518 = vadd.f32 0.0, %v2517
    %v2519 = vpop.f32.mrf.mxu0
    %2520 = vmatprep.mubr.f32.mxu0 0.0
    %2521 = vmatmul.mubr.f32.gmra.mxu0 %v1034
    %v2522 = vpop.f32.mrf.mxu0
    %v2523 = vadd.f32 0.0, %v2522
    %v2524 = vpop.f32.mrf.mxu0
    %2525 = vmatprep.mubr.f32.mxu0 0.0
    %2526 = vmatmul.mubr.f32.gmra.mxu0 %v1036
    %v2527 = vpop.f32.mrf.mxu0
    %v2528 = vadd.f32 0.0, %v2527
    %v2529 = vpop.f32.mrf.mxu0
    %2530 = vmatprep.mubr.f32.mxu0 0.0
    %2531 = vmatmul.mubr.f32.gmra.mxu0 %v1038
    %v2532 = vpop.f32.mrf.mxu0
    %v2533 = vadd.f32 0.0, %v2532
    %v2534 = vpop.f32.mrf.mxu0
    %2535 = vmatprep.mubr.f32.mxu0 0.0
    %2536 = vmatmul.mubr.f32.gmra.mxu0 %v1040
    %v2537 = vpop.f32.mrf.mxu0
    %v2538 = vadd.f32 0.0, %v2537
    %v2539 = vpop.f32.mrf.mxu0
    %2540 = vmatprep.mubr.f32.mxu0 0.0
    %2541 = vmatmul.mubr.f32.gmra.mxu0 %v1042
    %v2542 = vpop.f32.mrf.mxu0
    %v2543 = vadd.f32 0.0, %v2542
    %v2544 = vpop.f32.mrf.mxu0
    %2545 = vmatprep.mubr.f32.mxu0 0.0
    %2546 = vmatmul.mubr.f32.gmra.mxu0 %v1044
    %v2547 = vpop.f32.mrf.mxu0
    %v2548 = vadd.f32 0.0, %v2547
    %v2549 = vpop.f32.mrf.mxu0
    %2550 = vmatprep.mubr.f32.mxu0 0.0
    %2551 = vmatmul.mubr.f32.gmra.mxu0 %v1046
    %v2552 = vpop.f32.mrf.mxu0
    %v2553 = vadd.f32 0.0, %v2552
    %v2554 = vpop.f32.mrf.mxu0
    %2555 = vmatprep.mubr.f32.mxu0 0.0
    %2556 = vmatmul.mubr.f32.gmra.mxu0 %v1048
    %v2557 = vpop.f32.mrf.mxu0
    %v2558 = vadd.f32 0.0, %v2557
    %v2559 = vpop.f32.mrf.mxu0
    %2560 = vmatprep.mubr.f32.mxu0 0.0
    %2561 = vmatmul.mubr.f32.gmra.mxu0 %v1050
    %v2562 = vpop.f32.mrf.mxu0
    %v2563 = vadd.f32 0.0, %v2562
    %v2564 = vpop.f32.mrf.mxu0
    %2565 = vmatprep.mubr.f32.mxu0 0.0
    %2566 = vmatmul.mubr.f32.gmra.mxu0 %v1052
    %v2567 = vpop.f32.mrf.mxu0
    %v2568 = vadd.f32 0.0, %v2567
    %v2569 = vpop.f32.mrf.mxu0
    %2570 = vmatprep.mubr.f32.mxu0 0.0
    %2571 = vmatmul.mubr.f32.gmra.mxu0 %v1054
    %v2572 = vpop.f32.mrf.mxu0
    %v2573 = vadd.f32 0.0, %v2572
    %v2574 = vpop.f32.mrf.mxu0
    %2575 = vmatprep.mubr.f32.mxu0 0.0
    %2576 = vmatmul.mubr.f32.gmra.mxu0 %v1056
    %v2577 = vpop.f32.mrf.mxu0
    %v2578 = vadd.f32 0.0, %v2577
    %v2579 = vpop.f32.mrf.mxu0
    %2580 = vmatprep.mubr.f32.mxu0 0.0
    %2581 = vmatmul.mubr.f32.gmra.mxu0 %v2198
    %v2582 = vpop.f32.mrf.mxu0
    %v2583 = vadd.f32 0.0, %v2582
    %v2584 = vpop.f32.mrf.mxu0
    %2585 = vmatprep.mubr.f32.mxu0 0.0
    %2586 = vmatmul.mubr.f32.gmra.mxu0 %v2201
    %v2587 = vpop.f32.mrf.mxu0
    %v2588 = vadd.f32 0.0, %v2587
    %v2589 = vpop.f32.mrf.mxu0
    %2590 = vdwg.mxu0
    %v2591 = vadd.f32 %v2125, %v2273
    %v2592 = vadd.f32 %v2126, %v2278
    %v2593 = vadd.f32 %v2127, %v2283
    %v2594 = vadd.f32 %v2128, %v2288
    %v2595 = vadd.f32 %v2129, %v2293
    %v2596 = vadd.f32 %v2130, %v2298
    %v2597 = vadd.f32 %v2131, %v2303
    %v2598 = vadd.f32 %v2132, %v2308
    %v2599 = vadd.f32 %v2133, %v2313
    %v2600 = vadd.f32 %v2134, %v2318
    %v2601 = vadd.f32 %v2135, %v2323
    %v2602 = vadd.f32 %v2136, %v2328
    %v2603 = vadd.f32 %v2137, %v2333
    %v2604 = vadd.f32 %v2138, %v2338
    %v2605 = vadd.f32 %v2139, %v2343
    %v2606 = vadd.f32 %v2140, %v2348
    %v2607 = vadd.f32 %v2141, %v2353
    %v2608 = vadd.f32 %v2142, %v2358
    %v2609 = vadd.f32 %v2143, %v2363
    %v2610 = vadd.f32 %v2144, %v2368
    %v2611 = vadd.f32 %v2145, %v2373
    %v2612 = vadd.f32 %v2146, %v2378
    %v2613 = vadd.f32 %v2147, %v2383
    %v2614 = vadd.f32 %v2148, %v2388
    %v2615 = vadd.f32 %v2149, %v2393
    %v2616 = vadd.f32 %v2150, %v2398
    %v2617 = vadd.f32 %v2151, %v2403
    %v2618 = vadd.f32 %v2152, %v2408
    %v2619 = vadd.f32 %v2153, %v2413
    %v2620 = vadd.f32 %v2154, %v2418
    %v2621 = vadd.f32 %v2155, %v2423
    %v2622 = vadd.f32 %v2156, %v2428
    %v2623 = vadd.f32 %v2157, %v2433
    %v2624 = vadd.f32 %v2158, %v2438
    %v2625 = vadd.f32 %v2159, %v2443
    %v2626 = vadd.f32 %v2160, %v2448
    %v2627 = vadd.f32 %v2161, %v2453
    %v2628 = vadd.f32 %v2162, %v2458
    %v2629 = vadd.f32 %v2163, %v2463
    %v2630 = vadd.f32 %v2164, %v2468
    %v2631 = vadd.f32 %v2165, %v2473
    %v2632 = vadd.f32 %v2166, %v2478
    %v2633 = vadd.f32 %v2167, %v2483
    %v2634 = vadd.f32 %v2168, %v2488
    %v2635 = vadd.f32 %v2169, %v2493
    %v2636 = vadd.f32 %v2170, %v2498
    %v2637 = vadd.f32 %v2171, %v2503
    %v2638 = vadd.f32 %v2172, %v2508
    %v2639 = vadd.f32 %v2173, %v2513
    %v2640 = vadd.f32 %v2174, %v2518
    %v2641 = vadd.f32 %v2175, %v2523
    %v2642 = vadd.f32 %v2176, %v2528
    %v2643 = vadd.f32 %v2177, %v2533
    %v2644 = vadd.f32 %v2178, %v2538
    %v2645 = vadd.f32 %v2179, %v2543
    %v2646 = vadd.f32 %v2180, %v2548
    %v2647 = vadd.f32 %v2181, %v2553
    %v2648 = vadd.f32 %v2182, %v2558
    %v2649 = vadd.f32 %v2183, %v2563
    %v2650 = vadd.f32 %v2184, %v2568
    %v2651 = vadd.f32 %v2185, %v2573
    %v2652 = vadd.f32 %v2186, %v2578
    %v2653 = vadd.f32 %v2187, %v2583
    %v2654 = vadd.f32 %v2188, %v2588
    %v2657 = vrot.slane %v92, 1
    %v2658 = vrot.slane %v93, 1
    %v2659 = vsel %vm249, %v2657, %v2658
    %v2660 = vrot.slane %v94, 1
    %v2661 = vsel %vm249, %v2658, %v2660
    %v2662 = vrot.slane %v146, 1
    %v2663 = vrot.slane %v147, 1
    %v2664 = vsel %vm249, %v2662, %v2663
    %v2665 = vrot.slane %v148, 1
    %v2666 = vsel %vm249, %v2663, %v2665
    %s2667 = scalar_lea.vmem %s1, 16
    %v2668 = vld [vmem:[%s2667] sm:$0xf]
    %v2669 = vsel %vm412, %v2659, 0
    %v2671 = vsel %vm412, %v2661, 0
    %v2673 = vsel %vm412, %v2664, 0
    %v2675 = vsel %vm412, %v2666, 0
    %v2678 = vsel %vm541, %v2668, 0
    %2680 = vmatprep.subr.mxu0 0.0
    %2681 = vmatpush1.msra.mxu0 0.0
    %2682 = vmatprep.subr.mxu0 0.0
    %2683 = vmatpush1.msra.mxu0 0.0
    %2684 = vmatprep.subr.mxu0 0.0
    %2685 = vmatpush1.msra.mxu0 0.0
    %2686 = vmatprep.subr.mxu0 0.0
    %2687 = vmatpush1.msra.mxu0 0.0
    %2688 = vmatprep.subr.mxu0 0.0
    %2689 = vmatpush1.msra.mxu0 0.0
    %2690 = vmatprep.subr.mxu0 0.0
    %2691 = vmatpush1.msra.mxu0 0.0
    %2692 = vmatprep.subr.mxu0 0.0
    %2693 = vmatpush1.msra.mxu0 0.0
    %2694 = vmatprep.subr.mxu0 0.0
    %2695 = vmatpush1.msra.mxu0 0.0
    %2696 = vmatprep.subr.mxu0 0.0
    %2697 = vmatpush1.msra.mxu0 0.0
    %2698 = vmatprep.subr.mxu0 0.0
    %2699 = vmatpush1.msra.mxu0 0.0
    %2700 = vmatprep.subr.mxu0 0.0
    %2701 = vmatpush1.msra.mxu0 0.0
    %2702 = vmatprep.subr.mxu0 0.0
    %2703 = vmatpush1.msra.mxu0 0.0
    %2704 = vmatprep.subr.mxu0 0.0
    %2705 = vmatpush1.msra.mxu0 0.0
    %2706 = vmatprep.subr.mxu0 0.0
    %2707 = vmatpush1.msra.mxu0 0.0
    %2708 = vmatprep.subr.mxu0 0.0
    %2709 = vmatpush1.msra.mxu0 0.0
    %2710 = vmatprep.subr.mxu0 0.0
    %2711 = vmatpush1.msra.mxu0 %v2678
    %2712 = vmatprep.subr.mxu0 0.0
    %2713 = vmatpush2.msra.mxu0 0.0
    %2714 = vmatprep.subr.mxu0 0.0
    %2715 = vmatpush2.msra.mxu0 0.0
    %2716 = vmatprep.subr.mxu0 0.0
    %2717 = vmatpush2.msra.mxu0 0.0
    %2718 = vmatprep.subr.mxu0 0.0
    %2719 = vmatpush2.msra.mxu0 0.0
    %2720 = vmatprep.subr.mxu0 0.0
    %2721 = vmatpush2.msra.mxu0 0.0
    %2722 = vmatprep.subr.mxu0 0.0
    %2723 = vmatpush2.msra.mxu0 0.0
    %2724 = vmatprep.subr.mxu0 0.0
    %2725 = vmatpush2.msra.mxu0 0.0
    %2726 = vmatprep.subr.mxu0 0.0
    %2727 = vmatpush2.msra.mxu0 0.0
    %2728 = vmatprep.subr.mxu0 0.0
    %2729 = vmatpush2.msra.mxu0 0.0
    %2730 = vmatprep.subr.mxu0 0.0
    %2731 = vmatpush2.msra.mxu0 0.0
    %2732 = vmatprep.subr.mxu0 0.0
    %2733 = vmatpush2.msra.mxu0 0.0
    %2734 = vmatprep.subr.mxu0 0.0
    %2735 = vmatpush2.msra.mxu0 0.0
    %2736 = vmatprep.subr.mxu0 0.0
    %2737 = vmatpush2.msra.mxu0 0.0
    %2738 = vmatprep.subr.mxu0 0.0
    %2739 = vmatpush2.msra.mxu0 0.0
    %2740 = vmatprep.subr.mxu0 0.0
    %2741 = vmatpush2.msra.mxu0 0.0
    %2742 = vmatprep.subr.mxu0 0.0
    %2743 = vmatpush2.msra.mxu0 0.0
    %2744 = vmatprep.mubr.f32.mxu0 0.0
    %2745 = vmatmul.mubr.f32.gmra.mxu0 %v417
    %v2746 = vpop.f32.mrf.mxu0
    %v2747 = vadd.f32 0.0, %v2746
    %v2748 = vpop.f32.mrf.mxu0
    %2749 = vmatprep.mubr.f32.mxu0 0.0
    %2750 = vmatmul.mubr.f32.gmra.mxu0 %v419
    %v2751 = vpop.f32.mrf.mxu0
    %v2752 = vadd.f32 0.0, %v2751
    %v2753 = vpop.f32.mrf.mxu0
    %2754 = vmatprep.mubr.f32.mxu0 0.0
    %2755 = vmatmul.mubr.f32.gmra.mxu0 %v421
    %v2756 = vpop.f32.mrf.mxu0
    %v2757 = vadd.f32 0.0, %v2756
    %v2758 = vpop.f32.mrf.mxu0
    %2759 = vmatprep.mubr.f32.mxu0 0.0
    %2760 = vmatmul.mubr.f32.gmra.mxu0 %v423
    %v2761 = vpop.f32.mrf.mxu0
    %v2762 = vadd.f32 0.0, %v2761
    %v2763 = vpop.f32.mrf.mxu0
    %2764 = vmatprep.mubr.f32.mxu0 0.0
    %2765 = vmatmul.mubr.f32.gmra.mxu0 %v425
    %v2766 = vpop.f32.mrf.mxu0
    %v2767 = vadd.f32 0.0, %v2766
    %v2768 = vpop.f32.mrf.mxu0
    %2769 = vmatprep.mubr.f32.mxu0 0.0
    %2770 = vmatmul.mubr.f32.gmra.mxu0 %v427
    %v2771 = vpop.f32.mrf.mxu0
    %v2772 = vadd.f32 0.0, %v2771
    %v2773 = vpop.f32.mrf.mxu0
    %2774 = vmatprep.mubr.f32.mxu0 0.0
    %2775 = vmatmul.mubr.f32.gmra.mxu0 %v429
    %v2776 = vpop.f32.mrf.mxu0
    %v2777 = vadd.f32 0.0, %v2776
    %v2778 = vpop.f32.mrf.mxu0
    %2779 = vmatprep.mubr.f32.mxu0 0.0
    %2780 = vmatmul.mubr.f32.gmra.mxu0 %v431
    %v2781 = vpop.f32.mrf.mxu0
    %v2782 = vadd.f32 0.0, %v2781
    %v2783 = vpop.f32.mrf.mxu0
    %2784 = vmatprep.mubr.f32.mxu0 0.0
    %2785 = vmatmul.mubr.f32.gmra.mxu0 %v433
    %v2786 = vpop.f32.mrf.mxu0
    %v2787 = vadd.f32 0.0, %v2786
    %v2788 = vpop.f32.mrf.mxu0
    %2789 = vmatprep.mubr.f32.mxu0 0.0
    %2790 = vmatmul.mubr.f32.gmra.mxu0 %v435
    %v2791 = vpop.f32.mrf.mxu0
    %v2792 = vadd.f32 0.0, %v2791
    %v2793 = vpop.f32.mrf.mxu0
    %2794 = vmatprep.mubr.f32.mxu0 0.0
    %2795 = vmatmul.mubr.f32.gmra.mxu0 %v437
    %v2796 = vpop.f32.mrf.mxu0
    %v2797 = vadd.f32 0.0, %v2796
    %v2798 = vpop.f32.mrf.mxu0
    %2799 = vmatprep.mubr.f32.mxu0 0.0
    %2800 = vmatmul.mubr.f32.gmra.mxu0 %v439
    %v2801 = vpop.f32.mrf.mxu0
    %v2802 = vadd.f32 0.0, %v2801
    %v2803 = vpop.f32.mrf.mxu0
    %2804 = vmatprep.mubr.f32.mxu0 0.0
    %2805 = vmatmul.mubr.f32.gmra.mxu0 %v441
    %v2806 = vpop.f32.mrf.mxu0
    %v2807 = vadd.f32 0.0, %v2806
    %v2808 = vpop.f32.mrf.mxu0
    %2809 = vmatprep.mubr.f32.mxu0 0.0
    %2810 = vmatmul.mubr.f32.gmra.mxu0 %v443
    %v2811 = vpop.f32.mrf.mxu0
    %v2812 = vadd.f32 0.0, %v2811
    %v2813 = vpop.f32.mrf.mxu0
    %2814 = vmatprep.mubr.f32.mxu0 0.0
    %2815 = vmatmul.mubr.f32.gmra.mxu0 %v445
    %v2816 = vpop.f32.mrf.mxu0
    %v2817 = vadd.f32 0.0, %v2816
    %v2818 = vpop.f32.mrf.mxu0
    %2819 = vmatprep.mubr.f32.mxu0 0.0
    %2820 = vmatmul.mubr.f32.gmra.mxu0 %v447
    %v2821 = vpop.f32.mrf.mxu0
    %v2822 = vadd.f32 0.0, %v2821
    %v2823 = vpop.f32.mrf.mxu0
    %2824 = vmatprep.mubr.f32.mxu0 0.0
    %2825 = vmatmul.mubr.f32.gmra.mxu0 %v449
    %v2826 = vpop.f32.mrf.mxu0
    %v2827 = vadd.f32 0.0, %v2826
    %v2828 = vpop.f32.mrf.mxu0
    %2829 = vmatprep.mubr.f32.mxu0 0.0
    %2830 = vmatmul.mubr.f32.gmra.mxu0 %v451
    %v2831 = vpop.f32.mrf.mxu0
    %v2832 = vadd.f32 0.0, %v2831
    %v2833 = vpop.f32.mrf.mxu0
    %2834 = vmatprep.mubr.f32.mxu0 0.0
    %2835 = vmatmul.mubr.f32.gmra.mxu0 %v453
    %v2836 = vpop.f32.mrf.mxu0
    %v2837 = vadd.f32 0.0, %v2836
    %v2838 = vpop.f32.mrf.mxu0
    %2839 = vmatprep.mubr.f32.mxu0 0.0
    %2840 = vmatmul.mubr.f32.gmra.mxu0 %v455
    %v2841 = vpop.f32.mrf.mxu0
    %v2842 = vadd.f32 0.0, %v2841
    %v2843 = vpop.f32.mrf.mxu0
    %2844 = vmatprep.mubr.f32.mxu0 0.0
    %2845 = vmatmul.mubr.f32.gmra.mxu0 %v457
    %v2846 = vpop.f32.mrf.mxu0
    %v2847 = vadd.f32 0.0, %v2846
    %v2848 = vpop.f32.mrf.mxu0
    %2849 = vmatprep.mubr.f32.mxu0 0.0
    %2850 = vmatmul.mubr.f32.gmra.mxu0 %v459
    %v2851 = vpop.f32.mrf.mxu0
    %v2852 = vadd.f32 0.0, %v2851
    %v2853 = vpop.f32.mrf.mxu0
    %2854 = vmatprep.mubr.f32.mxu0 0.0
    %2855 = vmatmul.mubr.f32.gmra.mxu0 %v461
    %v2856 = vpop.f32.mrf.mxu0
    %v2857 = vadd.f32 0.0, %v2856
    %v2858 = vpop.f32.mrf.mxu0
    %2859 = vmatprep.mubr.f32.mxu0 0.0
    %2860 = vmatmul.mubr.f32.gmra.mxu0 %v463
    %v2861 = vpop.f32.mrf.mxu0
    %v2862 = vadd.f32 0.0, %v2861
    %v2863 = vpop.f32.mrf.mxu0
    %2864 = vmatprep.mubr.f32.mxu0 0.0
    %2865 = vmatmul.mubr.f32.gmra.mxu0 %v465
    %v2866 = vpop.f32.mrf.mxu0
    %v2867 = vadd.f32 0.0, %v2866
    %v2868 = vpop.f32.mrf.mxu0
    %2869 = vmatprep.mubr.f32.mxu0 0.0
    %2870 = vmatmul.mubr.f32.gmra.mxu0 %v467
    %v2871 = vpop.f32.mrf.mxu0
    %v2872 = vadd.f32 0.0, %v2871
    %v2873 = vpop.f32.mrf.mxu0
    %2874 = vmatprep.mubr.f32.mxu0 0.0
    %2875 = vmatmul.mubr.f32.gmra.mxu0 %v469
    %v2876 = vpop.f32.mrf.mxu0
    %v2877 = vadd.f32 0.0, %v2876
    %v2878 = vpop.f32.mrf.mxu0
    %2879 = vmatprep.mubr.f32.mxu0 0.0
    %2880 = vmatmul.mubr.f32.gmra.mxu0 %v471
    %v2881 = vpop.f32.mrf.mxu0
    %v2882 = vadd.f32 0.0, %v2881
    %v2883 = vpop.f32.mrf.mxu0
    %2884 = vmatprep.mubr.f32.mxu0 0.0
    %2885 = vmatmul.mubr.f32.gmra.mxu0 %v473
    %v2886 = vpop.f32.mrf.mxu0
    %v2887 = vadd.f32 0.0, %v2886
    %v2888 = vpop.f32.mrf.mxu0
    %2889 = vmatprep.mubr.f32.mxu0 0.0
    %2890 = vmatmul.mubr.f32.gmra.mxu0 %v475
    %v2891 = vpop.f32.mrf.mxu0
    %v2892 = vadd.f32 0.0, %v2891
    %v2893 = vpop.f32.mrf.mxu0
    %2894 = vmatprep.mubr.f32.mxu0 0.0
    %2895 = vmatmul.mubr.f32.gmra.mxu0 %v2669
    %v2896 = vpop.f32.mrf.mxu0
    %v2897 = vadd.f32 0.0, %v2896
    %v2898 = vpop.f32.mrf.mxu0
    %2899 = vmatprep.mubr.f32.mxu0 0.0
    %2900 = vmatmul.mubr.f32.gmra.mxu0 %v2671
    %v2901 = vpop.f32.mrf.mxu0
    %v2902 = vadd.f32 0.0, %v2901
    %v2903 = vpop.f32.mrf.mxu0
    %2904 = vmatprep.mubr.f32.mxu0 0.0
    %2905 = vmatmul.mubr.f32.gmra.mxu0 %v481
    %v2906 = vpop.f32.mrf.mxu0
    %v2907 = vadd.f32 0.0, %v2906
    %v2908 = vpop.f32.mrf.mxu0
    %2909 = vmatprep.mubr.f32.mxu0 0.0
    %2910 = vmatmul.mubr.f32.gmra.mxu0 %v483
    %v2911 = vpop.f32.mrf.mxu0
    %v2912 = vadd.f32 0.0, %v2911
    %v2913 = vpop.f32.mrf.mxu0
    %2914 = vmatprep.mubr.f32.mxu0 0.0
    %2915 = vmatmul.mubr.f32.gmra.mxu0 %v485
    %v2916 = vpop.f32.mrf.mxu0
    %v2917 = vadd.f32 0.0, %v2916
    %v2918 = vpop.f32.mrf.mxu0
    %2919 = vmatprep.mubr.f32.mxu0 0.0
    %2920 = vmatmul.mubr.f32.gmra.mxu0 %v487
    %v2921 = vpop.f32.mrf.mxu0
    %v2922 = vadd.f32 0.0, %v2921
    %v2923 = vpop.f32.mrf.mxu0
    %2924 = vmatprep.mubr.f32.mxu0 0.0
    %2925 = vmatmul.mubr.f32.gmra.mxu0 %v489
    %v2926 = vpop.f32.mrf.mxu0
    %v2927 = vadd.f32 0.0, %v2926
    %v2928 = vpop.f32.mrf.mxu0
    %2929 = vmatprep.mubr.f32.mxu0 0.0
    %2930 = vmatmul.mubr.f32.gmra.mxu0 %v491
    %v2931 = vpop.f32.mrf.mxu0
    %v2932 = vadd.f32 0.0, %v2931
    %v2933 = vpop.f32.mrf.mxu0
    %2934 = vmatprep.mubr.f32.mxu0 0.0
    %2935 = vmatmul.mubr.f32.gmra.mxu0 %v493
    %v2936 = vpop.f32.mrf.mxu0
    %v2937 = vadd.f32 0.0, %v2936
    %v2938 = vpop.f32.mrf.mxu0
    %2939 = vmatprep.mubr.f32.mxu0 0.0
    %2940 = vmatmul.mubr.f32.gmra.mxu0 %v495
    %v2941 = vpop.f32.mrf.mxu0
    %v2942 = vadd.f32 0.0, %v2941
    %v2943 = vpop.f32.mrf.mxu0
    %2944 = vmatprep.mubr.f32.mxu0 0.0
    %2945 = vmatmul.mubr.f32.gmra.mxu0 %v497
    %v2946 = vpop.f32.mrf.mxu0
    %v2947 = vadd.f32 0.0, %v2946
    %v2948 = vpop.f32.mrf.mxu0
    %2949 = vmatprep.mubr.f32.mxu0 0.0
    %2950 = vmatmul.mubr.f32.gmra.mxu0 %v499
    %v2951 = vpop.f32.mrf.mxu0
    %v2952 = vadd.f32 0.0, %v2951
    %v2953 = vpop.f32.mrf.mxu0
    %2954 = vmatprep.mubr.f32.mxu0 0.0
    %2955 = vmatmul.mubr.f32.gmra.mxu0 %v501
    %v2956 = vpop.f32.mrf.mxu0
    %v2957 = vadd.f32 0.0, %v2956
    %v2958 = vpop.f32.mrf.mxu0
    %2959 = vmatprep.mubr.f32.mxu0 0.0
    %2960 = vmatmul.mubr.f32.gmra.mxu0 %v503
    %v2961 = vpop.f32.mrf.mxu0
    %v2962 = vadd.f32 0.0, %v2961
    %v2963 = vpop.f32.mrf.mxu0
    %2964 = vmatprep.mubr.f32.mxu0 0.0
    %2965 = vmatmul.mubr.f32.gmra.mxu0 %v505
    %v2966 = vpop.f32.mrf.mxu0
    %v2967 = vadd.f32 0.0, %v2966
    %v2968 = vpop.f32.mrf.mxu0
    %2969 = vmatprep.mubr.f32.mxu0 0.0
    %2970 = vmatmul.mubr.f32.gmra.mxu0 %v507
    %v2971 = vpop.f32.mrf.mxu0
    %v2972 = vadd.f32 0.0, %v2971
    %v2973 = vpop.f32.mrf.mxu0
    %2974 = vmatprep.mubr.f32.mxu0 0.0
    %2975 = vmatmul.mubr.f32.gmra.mxu0 %v509
    %v2976 = vpop.f32.mrf.mxu0
    %v2977 = vadd.f32 0.0, %v2976
    %v2978 = vpop.f32.mrf.mxu0
    %2979 = vmatprep.mubr.f32.mxu0 0.0
    %2980 = vmatmul.mubr.f32.gmra.mxu0 %v511
    %v2981 = vpop.f32.mrf.mxu0
    %v2982 = vadd.f32 0.0, %v2981
    %v2983 = vpop.f32.mrf.mxu0
    %2984 = vmatprep.mubr.f32.mxu0 0.0
    %2985 = vmatmul.mubr.f32.gmra.mxu0 %v513
    %v2986 = vpop.f32.mrf.mxu0
    %v2987 = vadd.f32 0.0, %v2986
    %v2988 = vpop.f32.mrf.mxu0
    %2989 = vmatprep.mubr.f32.mxu0 0.0
    %2990 = vmatmul.mubr.f32.gmra.mxu0 %v515
    %v2991 = vpop.f32.mrf.mxu0
    %v2992 = vadd.f32 0.0, %v2991
    %v2993 = vpop.f32.mrf.mxu0
    %2994 = vmatprep.mubr.f32.mxu0 0.0
    %2995 = vmatmul.mubr.f32.gmra.mxu0 %v517
    %v2996 = vpop.f32.mrf.mxu0
    %v2997 = vadd.f32 0.0, %v2996
    %v2998 = vpop.f32.mrf.mxu0
    %2999 = vmatprep.mubr.f32.mxu0 0.0
    %3000 = vmatmul.mubr.f32.gmra.mxu0 %v519
    %v3001 = vpop.f32.mrf.mxu0
    %v3002 = vadd.f32 0.0, %v3001
    %v3003 = vpop.f32.mrf.mxu0
    %3004 = vmatprep.mubr.f32.mxu0 0.0
    %3005 = vmatmul.mubr.f32.gmra.mxu0 %v521
    %v3006 = vpop.f32.mrf.mxu0
    %v3007 = vadd.f32 0.0, %v3006
    %v3008 = vpop.f32.mrf.mxu0
    %3009 = vmatprep.mubr.f32.mxu0 0.0
    %3010 = vmatmul.mubr.f32.gmra.mxu0 %v523
    %v3011 = vpop.f32.mrf.mxu0
    %v3012 = vadd.f32 0.0, %v3011
    %v3013 = vpop.f32.mrf.mxu0
    %3014 = vmatprep.mubr.f32.mxu0 0.0
    %3015 = vmatmul.mubr.f32.gmra.mxu0 %v525
    %v3016 = vpop.f32.mrf.mxu0
    %v3017 = vadd.f32 0.0, %v3016
    %v3018 = vpop.f32.mrf.mxu0
    %3019 = vmatprep.mubr.f32.mxu0 0.0
    %3020 = vmatmul.mubr.f32.gmra.mxu0 %v527
    %v3021 = vpop.f32.mrf.mxu0
    %v3022 = vadd.f32 0.0, %v3021
    %v3023 = vpop.f32.mrf.mxu0
    %3024 = vmatprep.mubr.f32.mxu0 0.0
    %3025 = vmatmul.mubr.f32.gmra.mxu0 %v529
    %v3026 = vpop.f32.mrf.mxu0
    %v3027 = vadd.f32 0.0, %v3026
    %v3028 = vpop.f32.mrf.mxu0
    %3029 = vmatprep.mubr.f32.mxu0 0.0
    %3030 = vmatmul.mubr.f32.gmra.mxu0 %v531
    %v3031 = vpop.f32.mrf.mxu0
    %v3032 = vadd.f32 0.0, %v3031
    %v3033 = vpop.f32.mrf.mxu0
    %3034 = vmatprep.mubr.f32.mxu0 0.0
    %3035 = vmatmul.mubr.f32.gmra.mxu0 %v533
    %v3036 = vpop.f32.mrf.mxu0
    %v3037 = vadd.f32 0.0, %v3036
    %v3038 = vpop.f32.mrf.mxu0
    %3039 = vmatprep.mubr.f32.mxu0 0.0
    %3040 = vmatmul.mubr.f32.gmra.mxu0 %v535
    %v3041 = vpop.f32.mrf.mxu0
    %v3042 = vadd.f32 0.0, %v3041
    %v3043 = vpop.f32.mrf.mxu0
    %3044 = vmatprep.mubr.f32.mxu0 0.0
    %3045 = vmatmul.mubr.f32.gmra.mxu0 %v537
    %v3046 = vpop.f32.mrf.mxu0
    %v3047 = vadd.f32 0.0, %v3046
    %v3048 = vpop.f32.mrf.mxu0
    %3049 = vmatprep.mubr.f32.mxu0 0.0
    %3050 = vmatmul.mubr.f32.gmra.mxu0 %v539
    %v3051 = vpop.f32.mrf.mxu0
    %v3052 = vadd.f32 0.0, %v3051
    %v3053 = vpop.f32.mrf.mxu0
    %3054 = vmatprep.mubr.f32.mxu0 0.0
    %3055 = vmatmul.mubr.f32.gmra.mxu0 %v2673
    %v3056 = vpop.f32.mrf.mxu0
    %v3057 = vadd.f32 0.0, %v3056
    %v3058 = vpop.f32.mrf.mxu0
    %3059 = vmatprep.mubr.f32.mxu0 0.0
    %3060 = vmatmul.mubr.f32.gmra.mxu0 %v2675
    %v3061 = vpop.f32.mrf.mxu0
    %v3062 = vadd.f32 0.0, %v3061
    %v3063 = vpop.f32.mrf.mxu0
    %3064 = vdwg.mxu0
    %v3065 = vadd.f32 %v2591, %v2747
    %v3066 = vadd.f32 %v2592, %v2752
    %v3067 = vadd.f32 %v2593, %v2757
    %v3068 = vadd.f32 %v2594, %v2762
    %v3069 = vadd.f32 %v2595, %v2767
    %v3070 = vadd.f32 %v2596, %v2772
    %v3071 = vadd.f32 %v2597, %v2777
    %v3072 = vadd.f32 %v2598, %v2782
    %v3073 = vadd.f32 %v2599, %v2787
    %v3074 = vadd.f32 %v2600, %v2792
    %v3075 = vadd.f32 %v2601, %v2797
    %v3076 = vadd.f32 %v2602, %v2802
    %v3077 = vadd.f32 %v2603, %v2807
    %v3078 = vadd.f32 %v2604, %v2812
    %v3079 = vadd.f32 %v2605, %v2817
    %v3080 = vadd.f32 %v2606, %v2822
    %v3081 = vadd.f32 %v2607, %v2827
    %v3082 = vadd.f32 %v2608, %v2832
    %v3083 = vadd.f32 %v2609, %v2837
    %v3084 = vadd.f32 %v2610, %v2842
    %v3085 = vadd.f32 %v2611, %v2847
    %v3086 = vadd.f32 %v2612, %v2852
    %v3087 = vadd.f32 %v2613, %v2857
    %v3088 = vadd.f32 %v2614, %v2862
    %v3089 = vadd.f32 %v2615, %v2867
    %v3090 = vadd.f32 %v2616, %v2872
    %v3091 = vadd.f32 %v2617, %v2877
    %v3092 = vadd.f32 %v2618, %v2882
    %v3093 = vadd.f32 %v2619, %v2887
    %v3094 = vadd.f32 %v2620, %v2892
    %v3095 = vadd.f32 %v2621, %v2897
    %v3096 = vadd.f32 %v2622, %v2902
    %v3097 = vadd.f32 %v2623, %v2907
    %v3098 = vadd.f32 %v2624, %v2912
    %v3099 = vadd.f32 %v2625, %v2917
    %v3100 = vadd.f32 %v2626, %v2922
    %v3101 = vadd.f32 %v2627, %v2927
    %v3102 = vadd.f32 %v2628, %v2932
    %v3103 = vadd.f32 %v2629, %v2937
    %v3104 = vadd.f32 %v2630, %v2942
    %v3105 = vadd.f32 %v2631, %v2947
    %v3106 = vadd.f32 %v2632, %v2952
    %v3107 = vadd.f32 %v2633, %v2957
    %v3108 = vadd.f32 %v2634, %v2962
    %v3109 = vadd.f32 %v2635, %v2967
    %v3110 = vadd.f32 %v2636, %v2972
    %v3111 = vadd.f32 %v2637, %v2977
    %v3112 = vadd.f32 %v2638, %v2982
    %v3113 = vadd.f32 %v2639, %v2987
    %v3114 = vadd.f32 %v2640, %v2992
    %v3115 = vadd.f32 %v2641, %v2997
    %v3116 = vadd.f32 %v2642, %v3002
    %v3117 = vadd.f32 %v2643, %v3007
    %v3118 = vadd.f32 %v2644, %v3012
    %v3119 = vadd.f32 %v2645, %v3017
    %v3120 = vadd.f32 %v2646, %v3022
    %v3121 = vadd.f32 %v2647, %v3027
    %v3122 = vadd.f32 %v2648, %v3032
    %v3123 = vadd.f32 %v2649, %v3037
    %v3124 = vadd.f32 %v2650, %v3042
    %v3125 = vadd.f32 %v2651, %v3047
    %v3126 = vadd.f32 %v2652, %v3052
    %v3127 = vadd.f32 %v2653, %v3057
    %v3128 = vadd.f32 %v2654, %v3062
    %v3129 = vrot.slane %v92, 2
    %v3130 = vrot.slane %v93, 2
    %v3131 = vsel %vm1446, %v3129, %v3130
    %v3132 = vrot.slane %v94, 2
    %v3133 = vsel %vm1446, %v3130, %v3132
    %v3134 = vrot.slane %v146, 2
    %v3135 = vrot.slane %v147, 2
    %v3136 = vsel %vm1446, %v3134, %v3135
    %v3137 = vrot.slane %v148, 2
    %v3138 = vsel %vm1446, %v3135, %v3137
    %s3139 = scalar_lea.vmem %s1, 20
    %v3140 = vld [vmem:[%s3139] sm:$0xf]
    %v3141 = vsel %vm412, %v3131, 0
    %v3143 = vsel %vm412, %v3133, 0
    %v3145 = vsel %vm412, %v3136, 0
    %v3147 = vsel %vm412, %v3138, 0
    %v3150 = vsel %vm541, %v3140, 0
    %3152 = vmatprep.subr.mxu0 0.0
    %3153 = vmatpush1.msra.mxu0 0.0
    %3154 = vmatprep.subr.mxu0 0.0
    %3155 = vmatpush1.msra.mxu0 0.0
    %3156 = vmatprep.subr.mxu0 0.0
    %3157 = vmatpush1.msra.mxu0 0.0
    %3158 = vmatprep.subr.mxu0 0.0
    %3159 = vmatpush1.msra.mxu0 0.0
    %3160 = vmatprep.subr.mxu0 0.0
    %3161 = vmatpush1.msra.mxu0 0.0
    %3162 = vmatprep.subr.mxu0 0.0
    %3163 = vmatpush1.msra.mxu0 0.0
    %3164 = vmatprep.subr.mxu0 0.0
    %3165 = vmatpush1.msra.mxu0 0.0
    %3166 = vmatprep.subr.mxu0 0.0
    %3167 = vmatpush1.msra.mxu0 0.0
    %3168 = vmatprep.subr.mxu0 0.0
    %3169 = vmatpush1.msra.mxu0 0.0
    %3170 = vmatprep.subr.mxu0 0.0
    %3171 = vmatpush1.msra.mxu0 0.0
    %3172 = vmatprep.subr.mxu0 0.0
    %3173 = vmatpush1.msra.mxu0 0.0
    %3174 = vmatprep.subr.mxu0 0.0
    %3175 = vmatpush1.msra.mxu0 0.0
    %3176 = vmatprep.subr.mxu0 0.0
    %3177 = vmatpush1.msra.mxu0 0.0
    %3178 = vmatprep.subr.mxu0 0.0
    %3179 = vmatpush1.msra.mxu0 0.0
    %3180 = vmatprep.subr.mxu0 0.0
    %3181 = vmatpush1.msra.mxu0 0.0
    %3182 = vmatprep.subr.mxu0 0.0
    %3183 = vmatpush1.msra.mxu0 %v3150
    %3184 = vmatprep.subr.mxu0 0.0
    %3185 = vmatpush2.msra.mxu0 0.0
    %3186 = vmatprep.subr.mxu0 0.0
    %3187 = vmatpush2.msra.mxu0 0.0
    %3188 = vmatprep.subr.mxu0 0.0
    %3189 = vmatpush2.msra.mxu0 0.0
    %3190 = vmatprep.subr.mxu0 0.0
    %3191 = vmatpush2.msra.mxu0 0.0
    %3192 = vmatprep.subr.mxu0 0.0
    %3193 = vmatpush2.msra.mxu0 0.0
    %3194 = vmatprep.subr.mxu0 0.0
    %3195 = vmatpush2.msra.mxu0 0.0
    %3196 = vmatprep.subr.mxu0 0.0
    %3197 = vmatpush2.msra.mxu0 0.0
    %3198 = vmatprep.subr.mxu0 0.0
    %3199 = vmatpush2.msra.mxu0 0.0
    %3200 = vmatprep.subr.mxu0 0.0
    %3201 = vmatpush2.msra.mxu0 0.0
    %3202 = vmatprep.subr.mxu0 0.0
    %3203 = vmatpush2.msra.mxu0 0.0
    %3204 = vmatprep.subr.mxu0 0.0
    %3205 = vmatpush2.msra.mxu0 0.0
    %3206 = vmatprep.subr.mxu0 0.0
    %3207 = vmatpush2.msra.mxu0 0.0
    %3208 = vmatprep.subr.mxu0 0.0
    %3209 = vmatpush2.msra.mxu0 0.0
    %3210 = vmatprep.subr.mxu0 0.0
    %3211 = vmatpush2.msra.mxu0 0.0
    %3212 = vmatprep.subr.mxu0 0.0
    %3213 = vmatpush2.msra.mxu0 0.0
    %3214 = vmatprep.subr.mxu0 0.0
    %3215 = vmatpush2.msra.mxu0 0.0
    %3216 = vmatprep.mubr.f32.mxu0 0.0
    %3217 = vmatmul.mubr.f32.gmra.mxu0 %v1613
    %v3218 = vpop.f32.mrf.mxu0
    %v3219 = vadd.f32 0.0, %v3218
    %v3220 = vpop.f32.mrf.mxu0
    %3221 = vmatprep.mubr.f32.mxu0 0.0
    %3222 = vmatmul.mubr.f32.gmra.mxu0 %v1615
    %v3223 = vpop.f32.mrf.mxu0
    %v3224 = vadd.f32 0.0, %v3223
    %v3225 = vpop.f32.mrf.mxu0
    %3226 = vmatprep.mubr.f32.mxu0 0.0
    %3227 = vmatmul.mubr.f32.gmra.mxu0 %v1617
    %v3228 = vpop.f32.mrf.mxu0
    %v3229 = vadd.f32 0.0, %v3228
    %v3230 = vpop.f32.mrf.mxu0
    %3231 = vmatprep.mubr.f32.mxu0 0.0
    %3232 = vmatmul.mubr.f32.gmra.mxu0 %v1619
    %v3233 = vpop.f32.mrf.mxu0
    %v3234 = vadd.f32 0.0, %v3233
    %v3235 = vpop.f32.mrf.mxu0
    %3236 = vmatprep.mubr.f32.mxu0 0.0
    %3237 = vmatmul.mubr.f32.gmra.mxu0 %v1621
    %v3238 = vpop.f32.mrf.mxu0
    %v3239 = vadd.f32 0.0, %v3238
    %v3240 = vpop.f32.mrf.mxu0
    %3241 = vmatprep.mubr.f32.mxu0 0.0
    %3242 = vmatmul.mubr.f32.gmra.mxu0 %v1623
    %v3243 = vpop.f32.mrf.mxu0
    %v3244 = vadd.f32 0.0, %v3243
    %v3245 = vpop.f32.mrf.mxu0
    %3246 = vmatprep.mubr.f32.mxu0 0.0
    %3247 = vmatmul.mubr.f32.gmra.mxu0 %v1625
    %v3248 = vpop.f32.mrf.mxu0
    %v3249 = vadd.f32 0.0, %v3248
    %v3250 = vpop.f32.mrf.mxu0
    %3251 = vmatprep.mubr.f32.mxu0 0.0
    %3252 = vmatmul.mubr.f32.gmra.mxu0 %v1627
    %v3253 = vpop.f32.mrf.mxu0
    %v3254 = vadd.f32 0.0, %v3253
    %v3255 = vpop.f32.mrf.mxu0
    %3256 = vmatprep.mubr.f32.mxu0 0.0
    %3257 = vmatmul.mubr.f32.gmra.mxu0 %v1629
    %v3258 = vpop.f32.mrf.mxu0
    %v3259 = vadd.f32 0.0, %v3258
    %v3260 = vpop.f32.mrf.mxu0
    %3261 = vmatprep.mubr.f32.mxu0 0.0
    %3262 = vmatmul.mubr.f32.gmra.mxu0 %v1631
    %v3263 = vpop.f32.mrf.mxu0
    %v3264 = vadd.f32 0.0, %v3263
    %v3265 = vpop.f32.mrf.mxu0
    %3266 = vmatprep.mubr.f32.mxu0 0.0
    %3267 = vmatmul.mubr.f32.gmra.mxu0 %v1633
    %v3268 = vpop.f32.mrf.mxu0
    %v3269 = vadd.f32 0.0, %v3268
    %v3270 = vpop.f32.mrf.mxu0
    %3271 = vmatprep.mubr.f32.mxu0 0.0
    %3272 = vmatmul.mubr.f32.gmra.mxu0 %v1635
    %v3273 = vpop.f32.mrf.mxu0
    %v3274 = vadd.f32 0.0, %v3273
    %v3275 = vpop.f32.mrf.mxu0
    %3276 = vmatprep.mubr.f32.mxu0 0.0
    %3277 = vmatmul.mubr.f32.gmra.mxu0 %v1637
    %v3278 = vpop.f32.mrf.mxu0
    %v3279 = vadd.f32 0.0, %v3278
    %v3280 = vpop.f32.mrf.mxu0
    %3281 = vmatprep.mubr.f32.mxu0 0.0
    %3282 = vmatmul.mubr.f32.gmra.mxu0 %v1639
    %v3283 = vpop.f32.mrf.mxu0
    %v3284 = vadd.f32 0.0, %v3283
    %v3285 = vpop.f32.mrf.mxu0
    %3286 = vmatprep.mubr.f32.mxu0 0.0
    %3287 = vmatmul.mubr.f32.gmra.mxu0 %v1641
    %v3288 = vpop.f32.mrf.mxu0
    %v3289 = vadd.f32 0.0, %v3288
    %v3290 = vpop.f32.mrf.mxu0
    %3291 = vmatprep.mubr.f32.mxu0 0.0
    %3292 = vmatmul.mubr.f32.gmra.mxu0 %v1643
    %v3293 = vpop.f32.mrf.mxu0
    %v3294 = vadd.f32 0.0, %v3293
    %v3295 = vpop.f32.mrf.mxu0
    %3296 = vmatprep.mubr.f32.mxu0 0.0
    %3297 = vmatmul.mubr.f32.gmra.mxu0 %v1645
    %v3298 = vpop.f32.mrf.mxu0
    %v3299 = vadd.f32 0.0, %v3298
    %v3300 = vpop.f32.mrf.mxu0
    %3301 = vmatprep.mubr.f32.mxu0 0.0
    %3302 = vmatmul.mubr.f32.gmra.mxu0 %v1647
    %v3303 = vpop.f32.mrf.mxu0
    %v3304 = vadd.f32 0.0, %v3303
    %v3305 = vpop.f32.mrf.mxu0
    %3306 = vmatprep.mubr.f32.mxu0 0.0
    %3307 = vmatmul.mubr.f32.gmra.mxu0 %v1649
    %v3308 = vpop.f32.mrf.mxu0
    %v3309 = vadd.f32 0.0, %v3308
    %v3310 = vpop.f32.mrf.mxu0
    %3311 = vmatprep.mubr.f32.mxu0 0.0
    %3312 = vmatmul.mubr.f32.gmra.mxu0 %v1651
    %v3313 = vpop.f32.mrf.mxu0
    %v3314 = vadd.f32 0.0, %v3313
    %v3315 = vpop.f32.mrf.mxu0
    %3316 = vmatprep.mubr.f32.mxu0 0.0
    %3317 = vmatmul.mubr.f32.gmra.mxu0 %v1653
    %v3318 = vpop.f32.mrf.mxu0
    %v3319 = vadd.f32 0.0, %v3318
    %v3320 = vpop.f32.mrf.mxu0
    %3321 = vmatprep.mubr.f32.mxu0 0.0
    %3322 = vmatmul.mubr.f32.gmra.mxu0 %v1655
    %v3323 = vpop.f32.mrf.mxu0
    %v3324 = vadd.f32 0.0, %v3323
    %v3325 = vpop.f32.mrf.mxu0
    %3326 = vmatprep.mubr.f32.mxu0 0.0
    %3327 = vmatmul.mubr.f32.gmra.mxu0 %v1657
    %v3328 = vpop.f32.mrf.mxu0
    %v3329 = vadd.f32 0.0, %v3328
    %v3330 = vpop.f32.mrf.mxu0
    %3331 = vmatprep.mubr.f32.mxu0 0.0
    %3332 = vmatmul.mubr.f32.gmra.mxu0 %v1659
    %v3333 = vpop.f32.mrf.mxu0
    %v3334 = vadd.f32 0.0, %v3333
    %v3335 = vpop.f32.mrf.mxu0
    %3336 = vmatprep.mubr.f32.mxu0 0.0
    %3337 = vmatmul.mubr.f32.gmra.mxu0 %v1661
    %v3338 = vpop.f32.mrf.mxu0
    %v3339 = vadd.f32 0.0, %v3338
    %v3340 = vpop.f32.mrf.mxu0
    %3341 = vmatprep.mubr.f32.mxu0 0.0
    %3342 = vmatmul.mubr.f32.gmra.mxu0 %v1663
    %v3343 = vpop.f32.mrf.mxu0
    %v3344 = vadd.f32 0.0, %v3343
    %v3345 = vpop.f32.mrf.mxu0
    %3346 = vmatprep.mubr.f32.mxu0 0.0
    %3347 = vmatmul.mubr.f32.gmra.mxu0 %v1665
    %v3348 = vpop.f32.mrf.mxu0
    %v3349 = vadd.f32 0.0, %v3348
    %v3350 = vpop.f32.mrf.mxu0
    %3351 = vmatprep.mubr.f32.mxu0 0.0
    %3352 = vmatmul.mubr.f32.gmra.mxu0 %v1667
    %v3353 = vpop.f32.mrf.mxu0
    %v3354 = vadd.f32 0.0, %v3353
    %v3355 = vpop.f32.mrf.mxu0
    %3356 = vmatprep.mubr.f32.mxu0 0.0
    %3357 = vmatmul.mubr.f32.gmra.mxu0 %v1669
    %v3358 = vpop.f32.mrf.mxu0
    %v3359 = vadd.f32 0.0, %v3358
    %v3360 = vpop.f32.mrf.mxu0
    %3361 = vmatprep.mubr.f32.mxu0 0.0
    %3362 = vmatmul.mubr.f32.gmra.mxu0 %v1671
    %v3363 = vpop.f32.mrf.mxu0
    %v3364 = vadd.f32 0.0, %v3363
    %v3365 = vpop.f32.mrf.mxu0
    %3366 = vmatprep.mubr.f32.mxu0 0.0
    %3367 = vmatmul.mubr.f32.gmra.mxu0 %v3141
    %v3368 = vpop.f32.mrf.mxu0
    %v3369 = vadd.f32 0.0, %v3368
    %v3370 = vpop.f32.mrf.mxu0
    %3371 = vmatprep.mubr.f32.mxu0 0.0
    %3372 = vmatmul.mubr.f32.gmra.mxu0 %v3143
    %v3373 = vpop.f32.mrf.mxu0
    %v3374 = vadd.f32 0.0, %v3373
    %v3375 = vpop.f32.mrf.mxu0
    %3376 = vmatprep.mubr.f32.mxu0 0.0
    %3377 = vmatmul.mubr.f32.gmra.mxu0 %v1677
    %v3378 = vpop.f32.mrf.mxu0
    %v3379 = vadd.f32 0.0, %v3378
    %v3380 = vpop.f32.mrf.mxu0
    %3381 = vmatprep.mubr.f32.mxu0 0.0
    %3382 = vmatmul.mubr.f32.gmra.mxu0 %v1679
    %v3383 = vpop.f32.mrf.mxu0
    %v3384 = vadd.f32 0.0, %v3383
    %v3385 = vpop.f32.mrf.mxu0
    %3386 = vmatprep.mubr.f32.mxu0 0.0
    %3387 = vmatmul.mubr.f32.gmra.mxu0 %v1681
    %v3388 = vpop.f32.mrf.mxu0
    %v3389 = vadd.f32 0.0, %v3388
    %v3390 = vpop.f32.mrf.mxu0
    %3391 = vmatprep.mubr.f32.mxu0 0.0
    %3392 = vmatmul.mubr.f32.gmra.mxu0 %v1683
    %v3393 = vpop.f32.mrf.mxu0
    %v3394 = vadd.f32 0.0, %v3393
    %v3395 = vpop.f32.mrf.mxu0
    %3396 = vmatprep.mubr.f32.mxu0 0.0
    %3397 = vmatmul.mubr.f32.gmra.mxu0 %v1685
    %v3398 = vpop.f32.mrf.mxu0
    %v3399 = vadd.f32 0.0, %v3398
    %v3400 = vpop.f32.mrf.mxu0
    %3401 = vmatprep.mubr.f32.mxu0 0.0
    %3402 = vmatmul.mubr.f32.gmra.mxu0 %v1687
    %v3403 = vpop.f32.mrf.mxu0
    %v3404 = vadd.f32 0.0, %v3403
    %v3405 = vpop.f32.mrf.mxu0
    %3406 = vmatprep.mubr.f32.mxu0 0.0
    %3407 = vmatmul.mubr.f32.gmra.mxu0 %v1689
    %v3408 = vpop.f32.mrf.mxu0
    %v3409 = vadd.f32 0.0, %v3408
    %v3410 = vpop.f32.mrf.mxu0
    %3411 = vmatprep.mubr.f32.mxu0 0.0
    %3412 = vmatmul.mubr.f32.gmra.mxu0 %v1691
    %v3413 = vpop.f32.mrf.mxu0
    %v3414 = vadd.f32 0.0, %v3413
    %v3415 = vpop.f32.mrf.mxu0
    %3416 = vmatprep.mubr.f32.mxu0 0.0
    %3417 = vmatmul.mubr.f32.gmra.mxu0 %v1693
    %v3418 = vpop.f32.mrf.mxu0
    %v3419 = vadd.f32 0.0, %v3418
    %v3420 = vpop.f32.mrf.mxu0
    %3421 = vmatprep.mubr.f32.mxu0 0.0
    %3422 = vmatmul.mubr.f32.gmra.mxu0 %v1695
    %v3423 = vpop.f32.mrf.mxu0
    %v3424 = vadd.f32 0.0, %v3423
    %v3425 = vpop.f32.mrf.mxu0
    %3426 = vmatprep.mubr.f32.mxu0 0.0
    %3427 = vmatmul.mubr.f32.gmra.mxu0 %v1697
    %v3428 = vpop.f32.mrf.mxu0
    %v3429 = vadd.f32 0.0, %v3428
    %v3430 = vpop.f32.mrf.mxu0
    %3431 = vmatprep.mubr.f32.mxu0 0.0
    %3432 = vmatmul.mubr.f32.gmra.mxu0 %v1699
    %v3433 = vpop.f32.mrf.mxu0
    %v3434 = vadd.f32 0.0, %v3433
    %v3435 = vpop.f32.mrf.mxu0
    %3436 = vmatprep.mubr.f32.mxu0 0.0
    %3437 = vmatmul.mubr.f32.gmra.mxu0 %v1701
    %v3438 = vpop.f32.mrf.mxu0
    %v3439 = vadd.f32 0.0, %v3438
    %v3440 = vpop.f32.mrf.mxu0
    %3441 = vmatprep.mubr.f32.mxu0 0.0
    %3442 = vmatmul.mubr.f32.gmra.mxu0 %v1703
    %v3443 = vpop.f32.mrf.mxu0
    %v3444 = vadd.f32 0.0, %v3443
    %v3445 = vpop.f32.mrf.mxu0
    %3446 = vmatprep.mubr.f32.mxu0 0.0
    %3447 = vmatmul.mubr.f32.gmra.mxu0 %v1705
    %v3448 = vpop.f32.mrf.mxu0
    %v3449 = vadd.f32 0.0, %v3448
    %v3450 = vpop.f32.mrf.mxu0
    %3451 = vmatprep.mubr.f32.mxu0 0.0
    %3452 = vmatmul.mubr.f32.gmra.mxu0 %v1707
    %v3453 = vpop.f32.mrf.mxu0
    %v3454 = vadd.f32 0.0, %v3453
    %v3455 = vpop.f32.mrf.mxu0
    %3456 = vmatprep.mubr.f32.mxu0 0.0
    %3457 = vmatmul.mubr.f32.gmra.mxu0 %v1709
    %v3458 = vpop.f32.mrf.mxu0
    %v3459 = vadd.f32 0.0, %v3458
    %v3460 = vpop.f32.mrf.mxu0
    %3461 = vmatprep.mubr.f32.mxu0 0.0
    %3462 = vmatmul.mubr.f32.gmra.mxu0 %v1711
    %v3463 = vpop.f32.mrf.mxu0
    %v3464 = vadd.f32 0.0, %v3463
    %v3465 = vpop.f32.mrf.mxu0
    %3466 = vmatprep.mubr.f32.mxu0 0.0
    %3467 = vmatmul.mubr.f32.gmra.mxu0 %v1713
    %v3468 = vpop.f32.mrf.mxu0
    %v3469 = vadd.f32 0.0, %v3468
    %v3470 = vpop.f32.mrf.mxu0
    %3471 = vmatprep.mubr.f32.mxu0 0.0
    %3472 = vmatmul.mubr.f32.gmra.mxu0 %v1715
    %v3473 = vpop.f32.mrf.mxu0
    %v3474 = vadd.f32 0.0, %v3473
    %v3475 = vpop.f32.mrf.mxu0
    %3476 = vmatprep.mubr.f32.mxu0 0.0
    %3477 = vmatmul.mubr.f32.gmra.mxu0 %v1717
    %v3478 = vpop.f32.mrf.mxu0
    %v3479 = vadd.f32 0.0, %v3478
    %v3480 = vpop.f32.mrf.mxu0
    %3481 = vmatprep.mubr.f32.mxu0 0.0
    %3482 = vmatmul.mubr.f32.gmra.mxu0 %v1719
    %v3483 = vpop.f32.mrf.mxu0
    %v3484 = vadd.f32 0.0, %v3483
    %v3485 = vpop.f32.mrf.mxu0
    %3486 = vmatprep.mubr.f32.mxu0 0.0
    %3487 = vmatmul.mubr.f32.gmra.mxu0 %v1721
    %v3488 = vpop.f32.mrf.mxu0
    %v3489 = vadd.f32 0.0, %v3488
    %v3490 = vpop.f32.mrf.mxu0
    %3491 = vmatprep.mubr.f32.mxu0 0.0
    %3492 = vmatmul.mubr.f32.gmra.mxu0 %v1723
    %v3493 = vpop.f32.mrf.mxu0
    %v3494 = vadd.f32 0.0, %v3493
    %v3495 = vpop.f32.mrf.mxu0
    %3496 = vmatprep.mubr.f32.mxu0 0.0
    %3497 = vmatmul.mubr.f32.gmra.mxu0 %v1725
    %v3498 = vpop.f32.mrf.mxu0
    %v3499 = vadd.f32 0.0, %v3498
    %v3500 = vpop.f32.mrf.mxu0
    %3501 = vmatprep.mubr.f32.mxu0 0.0
    %3502 = vmatmul.mubr.f32.gmra.mxu0 %v1727
    %v3503 = vpop.f32.mrf.mxu0
    %v3504 = vadd.f32 0.0, %v3503
    %v3505 = vpop.f32.mrf.mxu0
    %3506 = vmatprep.mubr.f32.mxu0 0.0
    %3507 = vmatmul.mubr.f32.gmra.mxu0 %v1729
    %v3508 = vpop.f32.mrf.mxu0
    %v3509 = vadd.f32 0.0, %v3508
    %v3510 = vpop.f32.mrf.mxu0
    %3511 = vmatprep.mubr.f32.mxu0 0.0
    %3512 = vmatmul.mubr.f32.gmra.mxu0 %v1731
    %v3513 = vpop.f32.mrf.mxu0
    %v3514 = vadd.f32 0.0, %v3513
    %v3515 = vpop.f32.mrf.mxu0
    %3516 = vmatprep.mubr.f32.mxu0 0.0
    %3517 = vmatmul.mubr.f32.gmra.mxu0 %v1733
    %v3518 = vpop.f32.mrf.mxu0
    %v3519 = vadd.f32 0.0, %v3518
    %v3520 = vpop.f32.mrf.mxu0
    %3521 = vmatprep.mubr.f32.mxu0 0.0
    %3522 = vmatmul.mubr.f32.gmra.mxu0 %v1735
    %v3523 = vpop.f32.mrf.mxu0
    %v3524 = vadd.f32 0.0, %v3523
    %v3525 = vpop.f32.mrf.mxu0
    %3526 = vmatprep.mubr.f32.mxu0 0.0
    %3527 = vmatmul.mubr.f32.gmra.mxu0 %v3145
    %v3528 = vpop.f32.mrf.mxu0
    %v3529 = vadd.f32 0.0, %v3528
    %v3530 = vpop.f32.mrf.mxu0
    %3531 = vmatprep.mubr.f32.mxu0 0.0
    %3532 = vmatmul.mubr.f32.gmra.mxu0 %v3147
    %v3533 = vpop.f32.mrf.mxu0
    %v3534 = vadd.f32 0.0, %v3533
    %v3535 = vpop.f32.mrf.mxu0
    %3536 = vdwg.mxu0
    %v3537 = vadd.f32 %v3065, %v3219
    %v3538 = vadd.f32 %v3066, %v3224
    %v3539 = vadd.f32 %v3067, %v3229
    %v3540 = vadd.f32 %v3068, %v3234
    %v3541 = vadd.f32 %v3069, %v3239
    %v3542 = vadd.f32 %v3070, %v3244
    %v3543 = vadd.f32 %v3071, %v3249
    %v3544 = vadd.f32 %v3072, %v3254
    %v3545 = vadd.f32 %v3073, %v3259
    %v3546 = vadd.f32 %v3074, %v3264
    %v3547 = vadd.f32 %v3075, %v3269
    %v3548 = vadd.f32 %v3076, %v3274
    %v3549 = vadd.f32 %v3077, %v3279
    %v3550 = vadd.f32 %v3078, %v3284
    %v3551 = vadd.f32 %v3079, %v3289
    %v3552 = vadd.f32 %v3080, %v3294
    %v3553 = vadd.f32 %v3081, %v3299
    %v3554 = vadd.f32 %v3082, %v3304
    %v3555 = vadd.f32 %v3083, %v3309
    %v3556 = vadd.f32 %v3084, %v3314
    %v3557 = vadd.f32 %v3085, %v3319
    %v3558 = vadd.f32 %v3086, %v3324
    %v3559 = vadd.f32 %v3087, %v3329
    %v3560 = vadd.f32 %v3088, %v3334
    %v3561 = vadd.f32 %v3089, %v3339
    %v3562 = vadd.f32 %v3090, %v3344
    %v3563 = vadd.f32 %v3091, %v3349
    %v3564 = vadd.f32 %v3092, %v3354
    %v3565 = vadd.f32 %v3093, %v3359
    %v3566 = vadd.f32 %v3094, %v3364
    %v3567 = vadd.f32 %v3095, %v3369
    %v3568 = vadd.f32 %v3096, %v3374
    %v3569 = vadd.f32 %v3097, %v3379
    %v3570 = vadd.f32 %v3098, %v3384
    %v3571 = vadd.f32 %v3099, %v3389
    %v3572 = vadd.f32 %v3100, %v3394
    %v3573 = vadd.f32 %v3101, %v3399
    %v3574 = vadd.f32 %v3102, %v3404
    %v3575 = vadd.f32 %v3103, %v3409
    %v3576 = vadd.f32 %v3104, %v3414
    %v3577 = vadd.f32 %v3105, %v3419
    %v3578 = vadd.f32 %v3106, %v3424
    %v3579 = vadd.f32 %v3107, %v3429
    %v3580 = vadd.f32 %v3108, %v3434
    %v3581 = vadd.f32 %v3109, %v3439
    %v3582 = vadd.f32 %v3110, %v3444
    %v3583 = vadd.f32 %v3111, %v3449
    %v3584 = vadd.f32 %v3112, %v3454
    %v3585 = vadd.f32 %v3113, %v3459
    %v3586 = vadd.f32 %v3114, %v3464
    %v3587 = vadd.f32 %v3115, %v3469
    %v3588 = vadd.f32 %v3116, %v3474
    %v3589 = vadd.f32 %v3117, %v3479
    %v3590 = vadd.f32 %v3118, %v3484
    %v3591 = vadd.f32 %v3119, %v3489
    %v3592 = vadd.f32 %v3120, %v3494
    %v3593 = vadd.f32 %v3121, %v3499
    %v3594 = vadd.f32 %v3122, %v3504
    %v3595 = vadd.f32 %v3123, %v3509
    %v3596 = vadd.f32 %v3124, %v3514
    %v3597 = vadd.f32 %v3125, %v3519
    %v3598 = vadd.f32 %v3126, %v3524
    %v3599 = vadd.f32 %v3127, %v3529
    %v3600 = vadd.f32 %v3128, %v3534
    %s3601 = scalar_lea.vmem %s1, 24
    %v3602 = vld [vmem:[%s3601] sm:$0xf]
    %v3604 = vsel %vm412, %v95, 0
    %v3607 = vsel %vm412, %v96, 0
    %v3610 = vsel %vm412, %v149, 0
    %v3613 = vsel %vm412, %v150, 0
    %v3616 = vsel %vm541, %v3602, 0
    %3618 = vmatprep.subr.mxu0 0.0
    %3619 = vmatpush1.msra.mxu0 0.0
    %3620 = vmatprep.subr.mxu0 0.0
    %3621 = vmatpush1.msra.mxu0 0.0
    %3622 = vmatprep.subr.mxu0 0.0
    %3623 = vmatpush1.msra.mxu0 0.0
    %3624 = vmatprep.subr.mxu0 0.0
    %3625 = vmatpush1.msra.mxu0 0.0
    %3626 = vmatprep.subr.mxu0 0.0
    %3627 = vmatpush1.msra.mxu0 0.0
    %3628 = vmatprep.subr.mxu0 0.0
    %3629 = vmatpush1.msra.mxu0 0.0
    %3630 = vmatprep.subr.mxu0 0.0
    %3631 = vmatpush1.msra.mxu0 0.0
    %3632 = vmatprep.subr.mxu0 0.0
    %3633 = vmatpush1.msra.mxu0 0.0
    %3634 = vmatprep.subr.mxu0 0.0
    %3635 = vmatpush1.msra.mxu0 0.0
    %3636 = vmatprep.subr.mxu0 0.0
    %3637 = vmatpush1.msra.mxu0 0.0
    %3638 = vmatprep.subr.mxu0 0.0
    %3639 = vmatpush1.msra.mxu0 0.0
    %3640 = vmatprep.subr.mxu0 0.0
    %3641 = vmatpush1.msra.mxu0 0.0
    %3642 = vmatprep.subr.mxu0 0.0
    %3643 = vmatpush1.msra.mxu0 0.0
    %3644 = vmatprep.subr.mxu0 0.0
    %3645 = vmatpush1.msra.mxu0 0.0
    %3646 = vmatprep.subr.mxu0 0.0
    %3647 = vmatpush1.msra.mxu0 0.0
    %3648 = vmatprep.subr.mxu0 0.0
    %3649 = vmatpush1.msra.mxu0 %v3616
    %3650 = vmatprep.subr.mxu0 0.0
    %3651 = vmatpush2.msra.mxu0 0.0
    %3652 = vmatprep.subr.mxu0 0.0
    %3653 = vmatpush2.msra.mxu0 0.0
    %3654 = vmatprep.subr.mxu0 0.0
    %3655 = vmatpush2.msra.mxu0 0.0
    %3656 = vmatprep.subr.mxu0 0.0
    %3657 = vmatpush2.msra.mxu0 0.0
    %3658 = vmatprep.subr.mxu0 0.0
    %3659 = vmatpush2.msra.mxu0 0.0
    %3660 = vmatprep.subr.mxu0 0.0
    %3661 = vmatpush2.msra.mxu0 0.0
    %3662 = vmatprep.subr.mxu0 0.0
    %3663 = vmatpush2.msra.mxu0 0.0
    %3664 = vmatprep.subr.mxu0 0.0
    %3665 = vmatpush2.msra.mxu0 0.0
    %3666 = vmatprep.subr.mxu0 0.0
    %3667 = vmatpush2.msra.mxu0 0.0
    %3668 = vmatprep.subr.mxu0 0.0
    %3669 = vmatpush2.msra.mxu0 0.0
    %3670 = vmatprep.subr.mxu0 0.0
    %3671 = vmatpush2.msra.mxu0 0.0
    %3672 = vmatprep.subr.mxu0 0.0
    %3673 = vmatpush2.msra.mxu0 0.0
    %3674 = vmatprep.subr.mxu0 0.0
    %3675 = vmatpush2.msra.mxu0 0.0
    %3676 = vmatprep.subr.mxu0 0.0
    %3677 = vmatpush2.msra.mxu0 0.0
    %3678 = vmatprep.subr.mxu0 0.0
    %3679 = vmatpush2.msra.mxu0 0.0
    %3680 = vmatprep.subr.mxu0 0.0
    %3681 = vmatpush2.msra.mxu0 0.0
    %3682 = vmatprep.mubr.f32.mxu0 0.0
    %3683 = vmatmul.mubr.f32.gmra.mxu0 %v938
    %v3684 = vpop.f32.mrf.mxu0
    %v3685 = vadd.f32 0.0, %v3684
    %v3686 = vpop.f32.mrf.mxu0
    %3687 = vmatprep.mubr.f32.mxu0 0.0
    %3688 = vmatmul.mubr.f32.gmra.mxu0 %v940
    %v3689 = vpop.f32.mrf.mxu0
    %v3690 = vadd.f32 0.0, %v3689
    %v3691 = vpop.f32.mrf.mxu0
    %3692 = vmatprep.mubr.f32.mxu0 0.0
    %3693 = vmatmul.mubr.f32.gmra.mxu0 %v942
    %v3694 = vpop.f32.mrf.mxu0
    %v3695 = vadd.f32 0.0, %v3694
    %v3696 = vpop.f32.mrf.mxu0
    %3697 = vmatprep.mubr.f32.mxu0 0.0
    %3698 = vmatmul.mubr.f32.gmra.mxu0 %v944
    %v3699 = vpop.f32.mrf.mxu0
    %v3700 = vadd.f32 0.0, %v3699
    %v3701 = vpop.f32.mrf.mxu0
    %3702 = vmatprep.mubr.f32.mxu0 0.0
    %3703 = vmatmul.mubr.f32.gmra.mxu0 %v946
    %v3704 = vpop.f32.mrf.mxu0
    %v3705 = vadd.f32 0.0, %v3704
    %v3706 = vpop.f32.mrf.mxu0
    %3707 = vmatprep.mubr.f32.mxu0 0.0
    %3708 = vmatmul.mubr.f32.gmra.mxu0 %v948
    %v3709 = vpop.f32.mrf.mxu0
    %v3710 = vadd.f32 0.0, %v3709
    %v3711 = vpop.f32.mrf.mxu0
    %3712 = vmatprep.mubr.f32.mxu0 0.0
    %3713 = vmatmul.mubr.f32.gmra.mxu0 %v950
    %v3714 = vpop.f32.mrf.mxu0
    %v3715 = vadd.f32 0.0, %v3714
    %v3716 = vpop.f32.mrf.mxu0
    %3717 = vmatprep.mubr.f32.mxu0 0.0
    %3718 = vmatmul.mubr.f32.gmra.mxu0 %v952
    %v3719 = vpop.f32.mrf.mxu0
    %v3720 = vadd.f32 0.0, %v3719
    %v3721 = vpop.f32.mrf.mxu0
    %3722 = vmatprep.mubr.f32.mxu0 0.0
    %3723 = vmatmul.mubr.f32.gmra.mxu0 %v954
    %v3724 = vpop.f32.mrf.mxu0
    %v3725 = vadd.f32 0.0, %v3724
    %v3726 = vpop.f32.mrf.mxu0
    %3727 = vmatprep.mubr.f32.mxu0 0.0
    %3728 = vmatmul.mubr.f32.gmra.mxu0 %v956
    %v3729 = vpop.f32.mrf.mxu0
    %v3730 = vadd.f32 0.0, %v3729
    %v3731 = vpop.f32.mrf.mxu0
    %3732 = vmatprep.mubr.f32.mxu0 0.0
    %3733 = vmatmul.mubr.f32.gmra.mxu0 %v958
    %v3734 = vpop.f32.mrf.mxu0
    %v3735 = vadd.f32 0.0, %v3734
    %v3736 = vpop.f32.mrf.mxu0
    %3737 = vmatprep.mubr.f32.mxu0 0.0
    %3738 = vmatmul.mubr.f32.gmra.mxu0 %v960
    %v3739 = vpop.f32.mrf.mxu0
    %v3740 = vadd.f32 0.0, %v3739
    %v3741 = vpop.f32.mrf.mxu0
    %3742 = vmatprep.mubr.f32.mxu0 0.0
    %3743 = vmatmul.mubr.f32.gmra.mxu0 %v962
    %v3744 = vpop.f32.mrf.mxu0
    %v3745 = vadd.f32 0.0, %v3744
    %v3746 = vpop.f32.mrf.mxu0
    %3747 = vmatprep.mubr.f32.mxu0 0.0
    %3748 = vmatmul.mubr.f32.gmra.mxu0 %v964
    %v3749 = vpop.f32.mrf.mxu0
    %v3750 = vadd.f32 0.0, %v3749
    %v3751 = vpop.f32.mrf.mxu0
    %3752 = vmatprep.mubr.f32.mxu0 0.0
    %3753 = vmatmul.mubr.f32.gmra.mxu0 %v966
    %v3754 = vpop.f32.mrf.mxu0
    %v3755 = vadd.f32 0.0, %v3754
    %v3756 = vpop.f32.mrf.mxu0
    %3757 = vmatprep.mubr.f32.mxu0 0.0
    %3758 = vmatmul.mubr.f32.gmra.mxu0 %v968
    %v3759 = vpop.f32.mrf.mxu0
    %v3760 = vadd.f32 0.0, %v3759
    %v3761 = vpop.f32.mrf.mxu0
    %3762 = vmatprep.mubr.f32.mxu0 0.0
    %3763 = vmatmul.mubr.f32.gmra.mxu0 %v970
    %v3764 = vpop.f32.mrf.mxu0
    %v3765 = vadd.f32 0.0, %v3764
    %v3766 = vpop.f32.mrf.mxu0
    %3767 = vmatprep.mubr.f32.mxu0 0.0
    %3768 = vmatmul.mubr.f32.gmra.mxu0 %v972
    %v3769 = vpop.f32.mrf.mxu0
    %v3770 = vadd.f32 0.0, %v3769
    %v3771 = vpop.f32.mrf.mxu0
    %3772 = vmatprep.mubr.f32.mxu0 0.0
    %3773 = vmatmul.mubr.f32.gmra.mxu0 %v974
    %v3774 = vpop.f32.mrf.mxu0
    %v3775 = vadd.f32 0.0, %v3774
    %v3776 = vpop.f32.mrf.mxu0
    %3777 = vmatprep.mubr.f32.mxu0 0.0
    %3778 = vmatmul.mubr.f32.gmra.mxu0 %v976
    %v3779 = vpop.f32.mrf.mxu0
    %v3780 = vadd.f32 0.0, %v3779
    %v3781 = vpop.f32.mrf.mxu0
    %3782 = vmatprep.mubr.f32.mxu0 0.0
    %3783 = vmatmul.mubr.f32.gmra.mxu0 %v978
    %v3784 = vpop.f32.mrf.mxu0
    %v3785 = vadd.f32 0.0, %v3784
    %v3786 = vpop.f32.mrf.mxu0
    %3787 = vmatprep.mubr.f32.mxu0 0.0
    %3788 = vmatmul.mubr.f32.gmra.mxu0 %v980
    %v3789 = vpop.f32.mrf.mxu0
    %v3790 = vadd.f32 0.0, %v3789
    %v3791 = vpop.f32.mrf.mxu0
    %3792 = vmatprep.mubr.f32.mxu0 0.0
    %3793 = vmatmul.mubr.f32.gmra.mxu0 %v982
    %v3794 = vpop.f32.mrf.mxu0
    %v3795 = vadd.f32 0.0, %v3794
    %v3796 = vpop.f32.mrf.mxu0
    %3797 = vmatprep.mubr.f32.mxu0 0.0
    %3798 = vmatmul.mubr.f32.gmra.mxu0 %v984
    %v3799 = vpop.f32.mrf.mxu0
    %v3800 = vadd.f32 0.0, %v3799
    %v3801 = vpop.f32.mrf.mxu0
    %3802 = vmatprep.mubr.f32.mxu0 0.0
    %3803 = vmatmul.mubr.f32.gmra.mxu0 %v986
    %v3804 = vpop.f32.mrf.mxu0
    %v3805 = vadd.f32 0.0, %v3804
    %v3806 = vpop.f32.mrf.mxu0
    %3807 = vmatprep.mubr.f32.mxu0 0.0
    %3808 = vmatmul.mubr.f32.gmra.mxu0 %v988
    %v3809 = vpop.f32.mrf.mxu0
    %v3810 = vadd.f32 0.0, %v3809
    %v3811 = vpop.f32.mrf.mxu0
    %3812 = vmatprep.mubr.f32.mxu0 0.0
    %3813 = vmatmul.mubr.f32.gmra.mxu0 %v990
    %v3814 = vpop.f32.mrf.mxu0
    %v3815 = vadd.f32 0.0, %v3814
    %v3816 = vpop.f32.mrf.mxu0
    %3817 = vmatprep.mubr.f32.mxu0 0.0
    %3818 = vmatmul.mubr.f32.gmra.mxu0 %v992
    %v3819 = vpop.f32.mrf.mxu0
    %v3820 = vadd.f32 0.0, %v3819
    %v3821 = vpop.f32.mrf.mxu0
    %3822 = vmatprep.mubr.f32.mxu0 0.0
    %3823 = vmatmul.mubr.f32.gmra.mxu0 %v2192
    %v3824 = vpop.f32.mrf.mxu0
    %v3825 = vadd.f32 0.0, %v3824
    %v3826 = vpop.f32.mrf.mxu0
    %3827 = vmatprep.mubr.f32.mxu0 0.0
    %3828 = vmatmul.mubr.f32.gmra.mxu0 %v2195
    %v3829 = vpop.f32.mrf.mxu0
    %v3830 = vadd.f32 0.0, %v3829
    %v3831 = vpop.f32.mrf.mxu0
    %3832 = vmatprep.mubr.f32.mxu0 0.0
    %3833 = vmatmul.mubr.f32.gmra.mxu0 %v3604
    %v3834 = vpop.f32.mrf.mxu0
    %v3835 = vadd.f32 0.0, %v3834
    %v3836 = vpop.f32.mrf.mxu0
    %3837 = vmatprep.mubr.f32.mxu0 0.0
    %3838 = vmatmul.mubr.f32.gmra.mxu0 %v3607
    %v3839 = vpop.f32.mrf.mxu0
    %v3840 = vadd.f32 0.0, %v3839
    %v3841 = vpop.f32.mrf.mxu0
    %3842 = vmatprep.mubr.f32.mxu0 0.0
    %3843 = vmatmul.mubr.f32.gmra.mxu0 %v1002
    %v3844 = vpop.f32.mrf.mxu0
    %v3845 = vadd.f32 0.0, %v3844
    %v3846 = vpop.f32.mrf.mxu0
    %3847 = vmatprep.mubr.f32.mxu0 0.0
    %3848 = vmatmul.mubr.f32.gmra.mxu0 %v1004
    %v3849 = vpop.f32.mrf.mxu0
    %v3850 = vadd.f32 0.0, %v3849
    %v3851 = vpop.f32.mrf.mxu0
    %3852 = vmatprep.mubr.f32.mxu0 0.0
    %3853 = vmatmul.mubr.f32.gmra.mxu0 %v1006
    %v3854 = vpop.f32.mrf.mxu0
    %v3855 = vadd.f32 0.0, %v3854
    %v3856 = vpop.f32.mrf.mxu0
    %3857 = vmatprep.mubr.f32.mxu0 0.0
    %3858 = vmatmul.mubr.f32.gmra.mxu0 %v1008
    %v3859 = vpop.f32.mrf.mxu0
    %v3860 = vadd.f32 0.0, %v3859
    %v3861 = vpop.f32.mrf.mxu0
    %3862 = vmatprep.mubr.f32.mxu0 0.0
    %3863 = vmatmul.mubr.f32.gmra.mxu0 %v1010
    %v3864 = vpop.f32.mrf.mxu0
    %v3865 = vadd.f32 0.0, %v3864
    %v3866 = vpop.f32.mrf.mxu0
    %3867 = vmatprep.mubr.f32.mxu0 0.0
    %3868 = vmatmul.mubr.f32.gmra.mxu0 %v1012
    %v3869 = vpop.f32.mrf.mxu0
    %v3870 = vadd.f32 0.0, %v3869
    %v3871 = vpop.f32.mrf.mxu0
    %3872 = vmatprep.mubr.f32.mxu0 0.0
    %3873 = vmatmul.mubr.f32.gmra.mxu0 %v1014
    %v3874 = vpop.f32.mrf.mxu0
    %v3875 = vadd.f32 0.0, %v3874
    %v3876 = vpop.f32.mrf.mxu0
    %3877 = vmatprep.mubr.f32.mxu0 0.0
    %3878 = vmatmul.mubr.f32.gmra.mxu0 %v1016
    %v3879 = vpop.f32.mrf.mxu0
    %v3880 = vadd.f32 0.0, %v3879
    %v3881 = vpop.f32.mrf.mxu0
    %3882 = vmatprep.mubr.f32.mxu0 0.0
    %3883 = vmatmul.mubr.f32.gmra.mxu0 %v1018
    %v3884 = vpop.f32.mrf.mxu0
    %v3885 = vadd.f32 0.0, %v3884
    %v3886 = vpop.f32.mrf.mxu0
    %3887 = vmatprep.mubr.f32.mxu0 0.0
    %3888 = vmatmul.mubr.f32.gmra.mxu0 %v1020
    %v3889 = vpop.f32.mrf.mxu0
    %v3890 = vadd.f32 0.0, %v3889
    %v3891 = vpop.f32.mrf.mxu0
    %3892 = vmatprep.mubr.f32.mxu0 0.0
    %3893 = vmatmul.mubr.f32.gmra.mxu0 %v1022
    %v3894 = vpop.f32.mrf.mxu0
    %v3895 = vadd.f32 0.0, %v3894
    %v3896 = vpop.f32.mrf.mxu0
    %3897 = vmatprep.mubr.f32.mxu0 0.0
    %3898 = vmatmul.mubr.f32.gmra.mxu0 %v1024
    %v3899 = vpop.f32.mrf.mxu0
    %v3900 = vadd.f32 0.0, %v3899
    %v3901 = vpop.f32.mrf.mxu0
    %3902 = vmatprep.mubr.f32.mxu0 0.0
    %3903 = vmatmul.mubr.f32.gmra.mxu0 %v1026
    %v3904 = vpop.f32.mrf.mxu0
    %v3905 = vadd.f32 0.0, %v3904
    %v3906 = vpop.f32.mrf.mxu0
    %3907 = vmatprep.mubr.f32.mxu0 0.0
    %3908 = vmatmul.mubr.f32.gmra.mxu0 %v1028
    %v3909 = vpop.f32.mrf.mxu0
    %v3910 = vadd.f32 0.0, %v3909
    %v3911 = vpop.f32.mrf.mxu0
    %3912 = vmatprep.mubr.f32.mxu0 0.0
    %3913 = vmatmul.mubr.f32.gmra.mxu0 %v1030
    %v3914 = vpop.f32.mrf.mxu0
    %v3915 = vadd.f32 0.0, %v3914
    %v3916 = vpop.f32.mrf.mxu0
    %3917 = vmatprep.mubr.f32.mxu0 0.0
    %3918 = vmatmul.mubr.f32.gmra.mxu0 %v1032
    %v3919 = vpop.f32.mrf.mxu0
    %v3920 = vadd.f32 0.0, %v3919
    %v3921 = vpop.f32.mrf.mxu0
    %3922 = vmatprep.mubr.f32.mxu0 0.0
    %3923 = vmatmul.mubr.f32.gmra.mxu0 %v1034
    %v3924 = vpop.f32.mrf.mxu0
    %v3925 = vadd.f32 0.0, %v3924
    %v3926 = vpop.f32.mrf.mxu0
    %3927 = vmatprep.mubr.f32.mxu0 0.0
    %3928 = vmatmul.mubr.f32.gmra.mxu0 %v1036
    %v3929 = vpop.f32.mrf.mxu0
    %v3930 = vadd.f32 0.0, %v3929
    %v3931 = vpop.f32.mrf.mxu0
    %3932 = vmatprep.mubr.f32.mxu0 0.0
    %3933 = vmatmul.mubr.f32.gmra.mxu0 %v1038
    %v3934 = vpop.f32.mrf.mxu0
    %v3935 = vadd.f32 0.0, %v3934
    %v3936 = vpop.f32.mrf.mxu0
    %3937 = vmatprep.mubr.f32.mxu0 0.0
    %3938 = vmatmul.mubr.f32.gmra.mxu0 %v1040
    %v3939 = vpop.f32.mrf.mxu0
    %v3940 = vadd.f32 0.0, %v3939
    %v3941 = vpop.f32.mrf.mxu0
    %3942 = vmatprep.mubr.f32.mxu0 0.0
    %3943 = vmatmul.mubr.f32.gmra.mxu0 %v1042
    %v3944 = vpop.f32.mrf.mxu0
    %v3945 = vadd.f32 0.0, %v3944
    %v3946 = vpop.f32.mrf.mxu0
    %3947 = vmatprep.mubr.f32.mxu0 0.0
    %3948 = vmatmul.mubr.f32.gmra.mxu0 %v1044
    %v3949 = vpop.f32.mrf.mxu0
    %v3950 = vadd.f32 0.0, %v3949
    %v3951 = vpop.f32.mrf.mxu0
    %3952 = vmatprep.mubr.f32.mxu0 0.0
    %3953 = vmatmul.mubr.f32.gmra.mxu0 %v1046
    %v3954 = vpop.f32.mrf.mxu0
    %v3955 = vadd.f32 0.0, %v3954
    %v3956 = vpop.f32.mrf.mxu0
    %3957 = vmatprep.mubr.f32.mxu0 0.0
    %3958 = vmatmul.mubr.f32.gmra.mxu0 %v1048
    %v3959 = vpop.f32.mrf.mxu0
    %v3960 = vadd.f32 0.0, %v3959
    %v3961 = vpop.f32.mrf.mxu0
    %3962 = vmatprep.mubr.f32.mxu0 0.0
    %3963 = vmatmul.mubr.f32.gmra.mxu0 %v1050
    %v3964 = vpop.f32.mrf.mxu0
    %v3965 = vadd.f32 0.0, %v3964
    %v3966 = vpop.f32.mrf.mxu0
    %3967 = vmatprep.mubr.f32.mxu0 0.0
    %3968 = vmatmul.mubr.f32.gmra.mxu0 %v1052
    %v3969 = vpop.f32.mrf.mxu0
    %v3970 = vadd.f32 0.0, %v3969
    %v3971 = vpop.f32.mrf.mxu0
    %3972 = vmatprep.mubr.f32.mxu0 0.0
    %3973 = vmatmul.mubr.f32.gmra.mxu0 %v1054
    %v3974 = vpop.f32.mrf.mxu0
    %v3975 = vadd.f32 0.0, %v3974
    %v3976 = vpop.f32.mrf.mxu0
    %3977 = vmatprep.mubr.f32.mxu0 0.0
    %3978 = vmatmul.mubr.f32.gmra.mxu0 %v1056
    %v3979 = vpop.f32.mrf.mxu0
    %v3980 = vadd.f32 0.0, %v3979
    %v3981 = vpop.f32.mrf.mxu0
    %3982 = vmatprep.mubr.f32.mxu0 0.0
    %3983 = vmatmul.mubr.f32.gmra.mxu0 %v2198
    %v3984 = vpop.f32.mrf.mxu0
    %v3985 = vadd.f32 0.0, %v3984
    %v3986 = vpop.f32.mrf.mxu0
    %3987 = vmatprep.mubr.f32.mxu0 0.0
    %3988 = vmatmul.mubr.f32.gmra.mxu0 %v2201
    %v3989 = vpop.f32.mrf.mxu0
    %v3990 = vadd.f32 0.0, %v3989
    %v3991 = vpop.f32.mrf.mxu0
    %3992 = vmatprep.mubr.f32.mxu0 0.0
    %3993 = vmatmul.mubr.f32.gmra.mxu0 %v3610
    %v3994 = vpop.f32.mrf.mxu0
    %v3995 = vadd.f32 0.0, %v3994
    %v3996 = vpop.f32.mrf.mxu0
    %3997 = vmatprep.mubr.f32.mxu0 0.0
    %3998 = vmatmul.mubr.f32.gmra.mxu0 %v3613
    %v3999 = vpop.f32.mrf.mxu0
    %v4000 = vadd.f32 0.0, %v3999
    %v4001 = vpop.f32.mrf.mxu0
    %4002 = vdwg.mxu0
    %v4003 = vadd.f32 %v3537, %v3685
    %v4004 = vadd.f32 %v3538, %v3690
    %v4005 = vadd.f32 %v3539, %v3695
    %v4006 = vadd.f32 %v3540, %v3700
    %v4007 = vadd.f32 %v3541, %v3705
    %v4008 = vadd.f32 %v3542, %v3710
    %v4009 = vadd.f32 %v3543, %v3715
    %v4010 = vadd.f32 %v3544, %v3720
    %v4011 = vadd.f32 %v3545, %v3725
    %v4012 = vadd.f32 %v3546, %v3730
    %v4013 = vadd.f32 %v3547, %v3735
    %v4014 = vadd.f32 %v3548, %v3740
    %v4015 = vadd.f32 %v3549, %v3745
    %v4016 = vadd.f32 %v3550, %v3750
    %v4017 = vadd.f32 %v3551, %v3755
    %v4018 = vadd.f32 %v3552, %v3760
    %v4019 = vadd.f32 %v3553, %v3765
    %v4020 = vadd.f32 %v3554, %v3770
    %v4021 = vadd.f32 %v3555, %v3775
    %v4022 = vadd.f32 %v3556, %v3780
    %v4023 = vadd.f32 %v3557, %v3785
    %v4024 = vadd.f32 %v3558, %v3790
    %v4025 = vadd.f32 %v3559, %v3795
    %v4026 = vadd.f32 %v3560, %v3800
    %v4027 = vadd.f32 %v3561, %v3805
    %v4028 = vadd.f32 %v3562, %v3810
    %v4029 = vadd.f32 %v3563, %v3815
    %v4030 = vadd.f32 %v3564, %v3820
    %v4031 = vadd.f32 %v3565, %v3825
    %v4032 = vadd.f32 %v3566, %v3830
    %v4033 = vadd.f32 %v3567, %v3835
    %v4034 = vadd.f32 %v3568, %v3840
    %v4035 = vadd.f32 %v3569, %v3845
    %v4036 = vadd.f32 %v3570, %v3850
    %v4037 = vadd.f32 %v3571, %v3855
    %v4038 = vadd.f32 %v3572, %v3860
    %v4039 = vadd.f32 %v3573, %v3865
    %v4040 = vadd.f32 %v3574, %v3870
    %v4041 = vadd.f32 %v3575, %v3875
    %v4042 = vadd.f32 %v3576, %v3880
    %v4043 = vadd.f32 %v3577, %v3885
    %v4044 = vadd.f32 %v3578, %v3890
    %v4045 = vadd.f32 %v3579, %v3895
    %v4046 = vadd.f32 %v3580, %v3900
    %v4047 = vadd.f32 %v3581, %v3905
    %v4048 = vadd.f32 %v3582, %v3910
    %v4049 = vadd.f32 %v3583, %v3915
    %v4050 = vadd.f32 %v3584, %v3920
    %v4051 = vadd.f32 %v3585, %v3925
    %v4052 = vadd.f32 %v3586, %v3930
    %v4053 = vadd.f32 %v3587, %v3935
    %v4054 = vadd.f32 %v3588, %v3940
    %v4055 = vadd.f32 %v3589, %v3945
    %v4056 = vadd.f32 %v3590, %v3950
    %v4057 = vadd.f32 %v3591, %v3955
    %v4058 = vadd.f32 %v3592, %v3960
    %v4059 = vadd.f32 %v3593, %v3965
    %v4060 = vadd.f32 %v3594, %v3970
    %v4061 = vadd.f32 %v3595, %v3975
    %v4062 = vadd.f32 %v3596, %v3980
    %v4063 = vadd.f32 %v3597, %v3985
    %v4064 = vadd.f32 %v3598, %v3990
    %v4065 = vadd.f32 %v3599, %v3995
    %v4066 = vadd.f32 %v3600, %v4000
    %v4069 = vrot.slane %v95, 1
    %v4070 = vrot.slane %v96, 1
    %v4071 = vsel %vm249, %v4069, %v4070
    %v4072 = vrot.slane %v97, 1
    %v4073 = vsel %vm249, %v4070, %v4072
    %v4074 = vrot.slane %v149, 1
    %v4075 = vrot.slane %v150, 1
    %v4076 = vsel %vm249, %v4074, %v4075
    %v4077 = vrot.slane %v151, 1
    %v4078 = vsel %vm249, %v4075, %v4077
    %s4079 = scalar_lea.vmem %s1, 28
    %v4080 = vld [vmem:[%s4079] sm:$0xf]
    %v4081 = vsel %vm412, %v4071, 0
    %v4083 = vsel %vm412, %v4073, 0
    %v4085 = vsel %vm412, %v4076, 0
    %v4087 = vsel %vm412, %v4078, 0
    %v4090 = vsel %vm541, %v4080, 0
    %4092 = vmatprep.subr.mxu0 0.0
    %4093 = vmatpush1.msra.mxu0 0.0
    %4094 = vmatprep.subr.mxu0 0.0
    %4095 = vmatpush1.msra.mxu0 0.0
    %4096 = vmatprep.subr.mxu0 0.0
    %4097 = vmatpush1.msra.mxu0 0.0
    %4098 = vmatprep.subr.mxu0 0.0
    %4099 = vmatpush1.msra.mxu0 0.0
    %4100 = vmatprep.subr.mxu0 0.0
    %4101 = vmatpush1.msra.mxu0 0.0
    %4102 = vmatprep.subr.mxu0 0.0
    %4103 = vmatpush1.msra.mxu0 0.0
    %4104 = vmatprep.subr.mxu0 0.0
    %4105 = vmatpush1.msra.mxu0 0.0
    %4106 = vmatprep.subr.mxu0 0.0
    %4107 = vmatpush1.msra.mxu0 0.0
    %4108 = vmatprep.subr.mxu0 0.0
    %4109 = vmatpush1.msra.mxu0 0.0
    %4110 = vmatprep.subr.mxu0 0.0
    %4111 = vmatpush1.msra.mxu0 0.0
    %4112 = vmatprep.subr.mxu0 0.0
    %4113 = vmatpush1.msra.mxu0 0.0
    %4114 = vmatprep.subr.mxu0 0.0
    %4115 = vmatpush1.msra.mxu0 0.0
    %4116 = vmatprep.subr.mxu0 0.0
    %4117 = vmatpush1.msra.mxu0 0.0
    %4118 = vmatprep.subr.mxu0 0.0
    %4119 = vmatpush1.msra.mxu0 0.0
    %4120 = vmatprep.subr.mxu0 0.0
    %4121 = vmatpush1.msra.mxu0 0.0
    %4122 = vmatprep.subr.mxu0 0.0
    %4123 = vmatpush1.msra.mxu0 %v4090
    %4124 = vmatprep.subr.mxu0 0.0
    %4125 = vmatpush2.msra.mxu0 0.0
    %4126 = vmatprep.subr.mxu0 0.0
    %4127 = vmatpush2.msra.mxu0 0.0
    %4128 = vmatprep.subr.mxu0 0.0
    %4129 = vmatpush2.msra.mxu0 0.0
    %4130 = vmatprep.subr.mxu0 0.0
    %4131 = vmatpush2.msra.mxu0 0.0
    %4132 = vmatprep.subr.mxu0 0.0
    %4133 = vmatpush2.msra.mxu0 0.0
    %4134 = vmatprep.subr.mxu0 0.0
    %4135 = vmatpush2.msra.mxu0 0.0
    %4136 = vmatprep.subr.mxu0 0.0
    %4137 = vmatpush2.msra.mxu0 0.0
    %4138 = vmatprep.subr.mxu0 0.0
    %4139 = vmatpush2.msra.mxu0 0.0
    %4140 = vmatprep.subr.mxu0 0.0
    %4141 = vmatpush2.msra.mxu0 0.0
    %4142 = vmatprep.subr.mxu0 0.0
    %4143 = vmatpush2.msra.mxu0 0.0
    %4144 = vmatprep.subr.mxu0 0.0
    %4145 = vmatpush2.msra.mxu0 0.0
    %4146 = vmatprep.subr.mxu0 0.0
    %4147 = vmatpush2.msra.mxu0 0.0
    %4148 = vmatprep.subr.mxu0 0.0
    %4149 = vmatpush2.msra.mxu0 0.0
    %4150 = vmatprep.subr.mxu0 0.0
    %4151 = vmatpush2.msra.mxu0 0.0
    %4152 = vmatprep.subr.mxu0 0.0
    %4153 = vmatpush2.msra.mxu0 0.0
    %4154 = vmatprep.subr.mxu0 0.0
    %4155 = vmatpush2.msra.mxu0 0.0
    %4156 = vmatprep.mubr.f32.mxu0 0.0
    %4157 = vmatmul.mubr.f32.gmra.mxu0 %v421
    %v4158 = vpop.f32.mrf.mxu0
    %v4159 = vadd.f32 0.0, %v4158
    %v4160 = vpop.f32.mrf.mxu0
    %4161 = vmatprep.mubr.f32.mxu0 0.0
    %4162 = vmatmul.mubr.f32.gmra.mxu0 %v423
    %v4163 = vpop.f32.mrf.mxu0
    %v4164 = vadd.f32 0.0, %v4163
    %v4165 = vpop.f32.mrf.mxu0
    %4166 = vmatprep.mubr.f32.mxu0 0.0
    %4167 = vmatmul.mubr.f32.gmra.mxu0 %v425
    %v4168 = vpop.f32.mrf.mxu0
    %v4169 = vadd.f32 0.0, %v4168
    %v4170 = vpop.f32.mrf.mxu0
    %4171 = vmatprep.mubr.f32.mxu0 0.0
    %4172 = vmatmul.mubr.f32.gmra.mxu0 %v427
    %v4173 = vpop.f32.mrf.mxu0
    %v4174 = vadd.f32 0.0, %v4173
    %v4175 = vpop.f32.mrf.mxu0
    %4176 = vmatprep.mubr.f32.mxu0 0.0
    %4177 = vmatmul.mubr.f32.gmra.mxu0 %v429
    %v4178 = vpop.f32.mrf.mxu0
    %v4179 = vadd.f32 0.0, %v4178
    %v4180 = vpop.f32.mrf.mxu0
    %4181 = vmatprep.mubr.f32.mxu0 0.0
    %4182 = vmatmul.mubr.f32.gmra.mxu0 %v431
    %v4183 = vpop.f32.mrf.mxu0
    %v4184 = vadd.f32 0.0, %v4183
    %v4185 = vpop.f32.mrf.mxu0
    %4186 = vmatprep.mubr.f32.mxu0 0.0
    %4187 = vmatmul.mubr.f32.gmra.mxu0 %v433
    %v4188 = vpop.f32.mrf.mxu0
    %v4189 = vadd.f32 0.0, %v4188
    %v4190 = vpop.f32.mrf.mxu0
    %4191 = vmatprep.mubr.f32.mxu0 0.0
    %4192 = vmatmul.mubr.f32.gmra.mxu0 %v435
    %v4193 = vpop.f32.mrf.mxu0
    %v4194 = vadd.f32 0.0, %v4193
    %v4195 = vpop.f32.mrf.mxu0
    %4196 = vmatprep.mubr.f32.mxu0 0.0
    %4197 = vmatmul.mubr.f32.gmra.mxu0 %v437
    %v4198 = vpop.f32.mrf.mxu0
    %v4199 = vadd.f32 0.0, %v4198
    %v4200 = vpop.f32.mrf.mxu0
    %4201 = vmatprep.mubr.f32.mxu0 0.0
    %4202 = vmatmul.mubr.f32.gmra.mxu0 %v439
    %v4203 = vpop.f32.mrf.mxu0
    %v4204 = vadd.f32 0.0, %v4203
    %v4205 = vpop.f32.mrf.mxu0
    %4206 = vmatprep.mubr.f32.mxu0 0.0
    %4207 = vmatmul.mubr.f32.gmra.mxu0 %v441
    %v4208 = vpop.f32.mrf.mxu0
    %v4209 = vadd.f32 0.0, %v4208
    %v4210 = vpop.f32.mrf.mxu0
    %4211 = vmatprep.mubr.f32.mxu0 0.0
    %4212 = vmatmul.mubr.f32.gmra.mxu0 %v443
    %v4213 = vpop.f32.mrf.mxu0
    %v4214 = vadd.f32 0.0, %v4213
    %v4215 = vpop.f32.mrf.mxu0
    %4216 = vmatprep.mubr.f32.mxu0 0.0
    %4217 = vmatmul.mubr.f32.gmra.mxu0 %v445
    %v4218 = vpop.f32.mrf.mxu0
    %v4219 = vadd.f32 0.0, %v4218
    %v4220 = vpop.f32.mrf.mxu0
    %4221 = vmatprep.mubr.f32.mxu0 0.0
    %4222 = vmatmul.mubr.f32.gmra.mxu0 %v447
    %v4223 = vpop.f32.mrf.mxu0
    %v4224 = vadd.f32 0.0, %v4223
    %v4225 = vpop.f32.mrf.mxu0
    %4226 = vmatprep.mubr.f32.mxu0 0.0
    %4227 = vmatmul.mubr.f32.gmra.mxu0 %v449
    %v4228 = vpop.f32.mrf.mxu0
    %v4229 = vadd.f32 0.0, %v4228
    %v4230 = vpop.f32.mrf.mxu0
    %4231 = vmatprep.mubr.f32.mxu0 0.0
    %4232 = vmatmul.mubr.f32.gmra.mxu0 %v451
    %v4233 = vpop.f32.mrf.mxu0
    %v4234 = vadd.f32 0.0, %v4233
    %v4235 = vpop.f32.mrf.mxu0
    %4236 = vmatprep.mubr.f32.mxu0 0.0
    %4237 = vmatmul.mubr.f32.gmra.mxu0 %v453
    %v4238 = vpop.f32.mrf.mxu0
    %v4239 = vadd.f32 0.0, %v4238
    %v4240 = vpop.f32.mrf.mxu0
    %4241 = vmatprep.mubr.f32.mxu0 0.0
    %4242 = vmatmul.mubr.f32.gmra.mxu0 %v455
    %v4243 = vpop.f32.mrf.mxu0
    %v4244 = vadd.f32 0.0, %v4243
    %v4245 = vpop.f32.mrf.mxu0
    %4246 = vmatprep.mubr.f32.mxu0 0.0
    %4247 = vmatmul.mubr.f32.gmra.mxu0 %v457
    %v4248 = vpop.f32.mrf.mxu0
    %v4249 = vadd.f32 0.0, %v4248
    %v4250 = vpop.f32.mrf.mxu0
    %4251 = vmatprep.mubr.f32.mxu0 0.0
    %4252 = vmatmul.mubr.f32.gmra.mxu0 %v459
    %v4253 = vpop.f32.mrf.mxu0
    %v4254 = vadd.f32 0.0, %v4253
    %v4255 = vpop.f32.mrf.mxu0
    %4256 = vmatprep.mubr.f32.mxu0 0.0
    %4257 = vmatmul.mubr.f32.gmra.mxu0 %v461
    %v4258 = vpop.f32.mrf.mxu0
    %v4259 = vadd.f32 0.0, %v4258
    %v4260 = vpop.f32.mrf.mxu0
    %4261 = vmatprep.mubr.f32.mxu0 0.0
    %4262 = vmatmul.mubr.f32.gmra.mxu0 %v463
    %v4263 = vpop.f32.mrf.mxu0
    %v4264 = vadd.f32 0.0, %v4263
    %v4265 = vpop.f32.mrf.mxu0
    %4266 = vmatprep.mubr.f32.mxu0 0.0
    %4267 = vmatmul.mubr.f32.gmra.mxu0 %v465
    %v4268 = vpop.f32.mrf.mxu0
    %v4269 = vadd.f32 0.0, %v4268
    %v4270 = vpop.f32.mrf.mxu0
    %4271 = vmatprep.mubr.f32.mxu0 0.0
    %4272 = vmatmul.mubr.f32.gmra.mxu0 %v467
    %v4273 = vpop.f32.mrf.mxu0
    %v4274 = vadd.f32 0.0, %v4273
    %v4275 = vpop.f32.mrf.mxu0
    %4276 = vmatprep.mubr.f32.mxu0 0.0
    %4277 = vmatmul.mubr.f32.gmra.mxu0 %v469
    %v4278 = vpop.f32.mrf.mxu0
    %v4279 = vadd.f32 0.0, %v4278
    %v4280 = vpop.f32.mrf.mxu0
    %4281 = vmatprep.mubr.f32.mxu0 0.0
    %4282 = vmatmul.mubr.f32.gmra.mxu0 %v471
    %v4283 = vpop.f32.mrf.mxu0
    %v4284 = vadd.f32 0.0, %v4283
    %v4285 = vpop.f32.mrf.mxu0
    %4286 = vmatprep.mubr.f32.mxu0 0.0
    %4287 = vmatmul.mubr.f32.gmra.mxu0 %v473
    %v4288 = vpop.f32.mrf.mxu0
    %v4289 = vadd.f32 0.0, %v4288
    %v4290 = vpop.f32.mrf.mxu0
    %4291 = vmatprep.mubr.f32.mxu0 0.0
    %4292 = vmatmul.mubr.f32.gmra.mxu0 %v475
    %v4293 = vpop.f32.mrf.mxu0
    %v4294 = vadd.f32 0.0, %v4293
    %v4295 = vpop.f32.mrf.mxu0
    %4296 = vmatprep.mubr.f32.mxu0 0.0
    %4297 = vmatmul.mubr.f32.gmra.mxu0 %v2669
    %v4298 = vpop.f32.mrf.mxu0
    %v4299 = vadd.f32 0.0, %v4298
    %v4300 = vpop.f32.mrf.mxu0
    %4301 = vmatprep.mubr.f32.mxu0 0.0
    %4302 = vmatmul.mubr.f32.gmra.mxu0 %v2671
    %v4303 = vpop.f32.mrf.mxu0
    %v4304 = vadd.f32 0.0, %v4303
    %v4305 = vpop.f32.mrf.mxu0
    %4306 = vmatprep.mubr.f32.mxu0 0.0
    %4307 = vmatmul.mubr.f32.gmra.mxu0 %v4081
    %v4308 = vpop.f32.mrf.mxu0
    %v4309 = vadd.f32 0.0, %v4308
    %v4310 = vpop.f32.mrf.mxu0
    %4311 = vmatprep.mubr.f32.mxu0 0.0
    %4312 = vmatmul.mubr.f32.gmra.mxu0 %v4083
    %v4313 = vpop.f32.mrf.mxu0
    %v4314 = vadd.f32 0.0, %v4313
    %v4315 = vpop.f32.mrf.mxu0
    %4316 = vmatprep.mubr.f32.mxu0 0.0
    %4317 = vmatmul.mubr.f32.gmra.mxu0 %v485
    %v4318 = vpop.f32.mrf.mxu0
    %v4319 = vadd.f32 0.0, %v4318
    %v4320 = vpop.f32.mrf.mxu0
    %4321 = vmatprep.mubr.f32.mxu0 0.0
    %4322 = vmatmul.mubr.f32.gmra.mxu0 %v487
    %v4323 = vpop.f32.mrf.mxu0
    %v4324 = vadd.f32 0.0, %v4323
    %v4325 = vpop.f32.mrf.mxu0
    %4326 = vmatprep.mubr.f32.mxu0 0.0
    %4327 = vmatmul.mubr.f32.gmra.mxu0 %v489
    %v4328 = vpop.f32.mrf.mxu0
    %v4329 = vadd.f32 0.0, %v4328
    %v4330 = vpop.f32.mrf.mxu0
    %4331 = vmatprep.mubr.f32.mxu0 0.0
    %4332 = vmatmul.mubr.f32.gmra.mxu0 %v491
    %v4333 = vpop.f32.mrf.mxu0
    %v4334 = vadd.f32 0.0, %v4333
    %v4335 = vpop.f32.mrf.mxu0
    %4336 = vmatprep.mubr.f32.mxu0 0.0
    %4337 = vmatmul.mubr.f32.gmra.mxu0 %v493
    %v4338 = vpop.f32.mrf.mxu0
    %v4339 = vadd.f32 0.0, %v4338
    %v4340 = vpop.f32.mrf.mxu0
    %4341 = vmatprep.mubr.f32.mxu0 0.0
    %4342 = vmatmul.mubr.f32.gmra.mxu0 %v495
    %v4343 = vpop.f32.mrf.mxu0
    %v4344 = vadd.f32 0.0, %v4343
    %v4345 = vpop.f32.mrf.mxu0
    %4346 = vmatprep.mubr.f32.mxu0 0.0
    %4347 = vmatmul.mubr.f32.gmra.mxu0 %v497
    %v4348 = vpop.f32.mrf.mxu0
    %v4349 = vadd.f32 0.0, %v4348
    %v4350 = vpop.f32.mrf.mxu0
    %4351 = vmatprep.mubr.f32.mxu0 0.0
    %4352 = vmatmul.mubr.f32.gmra.mxu0 %v499
    %v4353 = vpop.f32.mrf.mxu0
    %v4354 = vadd.f32 0.0, %v4353
    %v4355 = vpop.f32.mrf.mxu0
    %4356 = vmatprep.mubr.f32.mxu0 0.0
    %4357 = vmatmul.mubr.f32.gmra.mxu0 %v501
    %v4358 = vpop.f32.mrf.mxu0
    %v4359 = vadd.f32 0.0, %v4358
    %v4360 = vpop.f32.mrf.mxu0
    %4361 = vmatprep.mubr.f32.mxu0 0.0
    %4362 = vmatmul.mubr.f32.gmra.mxu0 %v503
    %v4363 = vpop.f32.mrf.mxu0
    %v4364 = vadd.f32 0.0, %v4363
    %v4365 = vpop.f32.mrf.mxu0
    %4366 = vmatprep.mubr.f32.mxu0 0.0
    %4367 = vmatmul.mubr.f32.gmra.mxu0 %v505
    %v4368 = vpop.f32.mrf.mxu0
    %v4369 = vadd.f32 0.0, %v4368
    %v4370 = vpop.f32.mrf.mxu0
    %4371 = vmatprep.mubr.f32.mxu0 0.0
    %4372 = vmatmul.mubr.f32.gmra.mxu0 %v507
    %v4373 = vpop.f32.mrf.mxu0
    %v4374 = vadd.f32 0.0, %v4373
    %v4375 = vpop.f32.mrf.mxu0
    %4376 = vmatprep.mubr.f32.mxu0 0.0
    %4377 = vmatmul.mubr.f32.gmra.mxu0 %v509
    %v4378 = vpop.f32.mrf.mxu0
    %v4379 = vadd.f32 0.0, %v4378
    %v4380 = vpop.f32.mrf.mxu0
    %4381 = vmatprep.mubr.f32.mxu0 0.0
    %4382 = vmatmul.mubr.f32.gmra.mxu0 %v511
    %v4383 = vpop.f32.mrf.mxu0
    %v4384 = vadd.f32 0.0, %v4383
    %v4385 = vpop.f32.mrf.mxu0
    %4386 = vmatprep.mubr.f32.mxu0 0.0
    %4387 = vmatmul.mubr.f32.gmra.mxu0 %v513
    %v4388 = vpop.f32.mrf.mxu0
    %v4389 = vadd.f32 0.0, %v4388
    %v4390 = vpop.f32.mrf.mxu0
    %4391 = vmatprep.mubr.f32.mxu0 0.0
    %4392 = vmatmul.mubr.f32.gmra.mxu0 %v515
    %v4393 = vpop.f32.mrf.mxu0
    %v4394 = vadd.f32 0.0, %v4393
    %v4395 = vpop.f32.mrf.mxu0
    %4396 = vmatprep.mubr.f32.mxu0 0.0
    %4397 = vmatmul.mubr.f32.gmra.mxu0 %v517
    %v4398 = vpop.f32.mrf.mxu0
    %v4399 = vadd.f32 0.0, %v4398
    %v4400 = vpop.f32.mrf.mxu0
    %4401 = vmatprep.mubr.f32.mxu0 0.0
    %4402 = vmatmul.mubr.f32.gmra.mxu0 %v519
    %v4403 = vpop.f32.mrf.mxu0
    %v4404 = vadd.f32 0.0, %v4403
    %v4405 = vpop.f32.mrf.mxu0
    %4406 = vmatprep.mubr.f32.mxu0 0.0
    %4407 = vmatmul.mubr.f32.gmra.mxu0 %v521
    %v4408 = vpop.f32.mrf.mxu0
    %v4409 = vadd.f32 0.0, %v4408
    %v4410 = vpop.f32.mrf.mxu0
    %4411 = vmatprep.mubr.f32.mxu0 0.0
    %4412 = vmatmul.mubr.f32.gmra.mxu0 %v523
    %v4413 = vpop.f32.mrf.mxu0
    %v4414 = vadd.f32 0.0, %v4413
    %v4415 = vpop.f32.mrf.mxu0
    %4416 = vmatprep.mubr.f32.mxu0 0.0
    %4417 = vmatmul.mubr.f32.gmra.mxu0 %v525
    %v4418 = vpop.f32.mrf.mxu0
    %v4419 = vadd.f32 0.0, %v4418
    %v4420 = vpop.f32.mrf.mxu0
    %4421 = vmatprep.mubr.f32.mxu0 0.0
    %4422 = vmatmul.mubr.f32.gmra.mxu0 %v527
    %v4423 = vpop.f32.mrf.mxu0
    %v4424 = vadd.f32 0.0, %v4423
    %v4425 = vpop.f32.mrf.mxu0
    %4426 = vmatprep.mubr.f32.mxu0 0.0
    %4427 = vmatmul.mubr.f32.gmra.mxu0 %v529
    %v4428 = vpop.f32.mrf.mxu0
    %v4429 = vadd.f32 0.0, %v4428
    %v4430 = vpop.f32.mrf.mxu0
    %4431 = vmatprep.mubr.f32.mxu0 0.0
    %4432 = vmatmul.mubr.f32.gmra.mxu0 %v531
    %v4433 = vpop.f32.mrf.mxu0
    %v4434 = vadd.f32 0.0, %v4433
    %v4435 = vpop.f32.mrf.mxu0
    %4436 = vmatprep.mubr.f32.mxu0 0.0
    %4437 = vmatmul.mubr.f32.gmra.mxu0 %v533
    %v4438 = vpop.f32.mrf.mxu0
    %v4439 = vadd.f32 0.0, %v4438
    %v4440 = vpop.f32.mrf.mxu0
    %4441 = vmatprep.mubr.f32.mxu0 0.0
    %4442 = vmatmul.mubr.f32.gmra.mxu0 %v535
    %v4443 = vpop.f32.mrf.mxu0
    %v4444 = vadd.f32 0.0, %v4443
    %v4445 = vpop.f32.mrf.mxu0
    %4446 = vmatprep.mubr.f32.mxu0 0.0
    %4447 = vmatmul.mubr.f32.gmra.mxu0 %v537
    %v4448 = vpop.f32.mrf.mxu0
    %v4449 = vadd.f32 0.0, %v4448
    %v4450 = vpop.f32.mrf.mxu0
    %4451 = vmatprep.mubr.f32.mxu0 0.0
    %4452 = vmatmul.mubr.f32.gmra.mxu0 %v539
    %v4453 = vpop.f32.mrf.mxu0
    %v4454 = vadd.f32 0.0, %v4453
    %v4455 = vpop.f32.mrf.mxu0
    %4456 = vmatprep.mubr.f32.mxu0 0.0
    %4457 = vmatmul.mubr.f32.gmra.mxu0 %v2673
    %v4458 = vpop.f32.mrf.mxu0
    %v4459 = vadd.f32 0.0, %v4458
    %v4460 = vpop.f32.mrf.mxu0
    %4461 = vmatprep.mubr.f32.mxu0 0.0
    %4462 = vmatmul.mubr.f32.gmra.mxu0 %v2675
    %v4463 = vpop.f32.mrf.mxu0
    %v4464 = vadd.f32 0.0, %v4463
    %v4465 = vpop.f32.mrf.mxu0
    %4466 = vmatprep.mubr.f32.mxu0 0.0
    %4467 = vmatmul.mubr.f32.gmra.mxu0 %v4085
    %v4468 = vpop.f32.mrf.mxu0
    %v4469 = vadd.f32 0.0, %v4468
    %v4470 = vpop.f32.mrf.mxu0
    %4471 = vmatprep.mubr.f32.mxu0 0.0
    %4472 = vmatmul.mubr.f32.gmra.mxu0 %v4087
    %v4473 = vpop.f32.mrf.mxu0
    %v4474 = vadd.f32 0.0, %v4473
    %v4475 = vpop.f32.mrf.mxu0
    %4476 = vdwg.mxu0
    %v4477 = vadd.f32 %v4003, %v4159
    %v4478 = vadd.f32 %v4004, %v4164
    %v4479 = vadd.f32 %v4005, %v4169
    %v4480 = vadd.f32 %v4006, %v4174
    %v4481 = vadd.f32 %v4007, %v4179
    %v4482 = vadd.f32 %v4008, %v4184
    %v4483 = vadd.f32 %v4009, %v4189
    %v4484 = vadd.f32 %v4010, %v4194
    %v4485 = vadd.f32 %v4011, %v4199
    %v4486 = vadd.f32 %v4012, %v4204
    %v4487 = vadd.f32 %v4013, %v4209
    %v4488 = vadd.f32 %v4014, %v4214
    %v4489 = vadd.f32 %v4015, %v4219
    %v4490 = vadd.f32 %v4016, %v4224
    %v4491 = vadd.f32 %v4017, %v4229
    %v4492 = vadd.f32 %v4018, %v4234
    %v4493 = vadd.f32 %v4019, %v4239
    %v4494 = vadd.f32 %v4020, %v4244
    %v4495 = vadd.f32 %v4021, %v4249
    %v4496 = vadd.f32 %v4022, %v4254
    %v4497 = vadd.f32 %v4023, %v4259
    %v4498 = vadd.f32 %v4024, %v4264
    %v4499 = vadd.f32 %v4025, %v4269
    %v4500 = vadd.f32 %v4026, %v4274
    %v4501 = vadd.f32 %v4027, %v4279
    %v4502 = vadd.f32 %v4028, %v4284
    %v4503 = vadd.f32 %v4029, %v4289
    %v4504 = vadd.f32 %v4030, %v4294
    %v4505 = vadd.f32 %v4031, %v4299
    %v4506 = vadd.f32 %v4032, %v4304
    %v4507 = vadd.f32 %v4033, %v4309
    %v4508 = vadd.f32 %v4034, %v4314
    %v4509 = vadd.f32 %v4035, %v4319
    %v4510 = vadd.f32 %v4036, %v4324
    %v4511 = vadd.f32 %v4037, %v4329
    %v4512 = vadd.f32 %v4038, %v4334
    %v4513 = vadd.f32 %v4039, %v4339
    %v4514 = vadd.f32 %v4040, %v4344
    %v4515 = vadd.f32 %v4041, %v4349
    %v4516 = vadd.f32 %v4042, %v4354
    %v4517 = vadd.f32 %v4043, %v4359
    %v4518 = vadd.f32 %v4044, %v4364
    %v4519 = vadd.f32 %v4045, %v4369
    %v4520 = vadd.f32 %v4046, %v4374
    %v4521 = vadd.f32 %v4047, %v4379
    %v4522 = vadd.f32 %v4048, %v4384
    %v4523 = vadd.f32 %v4049, %v4389
    %v4524 = vadd.f32 %v4050, %v4394
    %v4525 = vadd.f32 %v4051, %v4399
    %v4526 = vadd.f32 %v4052, %v4404
    %v4527 = vadd.f32 %v4053, %v4409
    %v4528 = vadd.f32 %v4054, %v4414
    %v4529 = vadd.f32 %v4055, %v4419
    %v4530 = vadd.f32 %v4056, %v4424
    %v4531 = vadd.f32 %v4057, %v4429
    %v4532 = vadd.f32 %v4058, %v4434
    %v4533 = vadd.f32 %v4059, %v4439
    %v4534 = vadd.f32 %v4060, %v4444
    %v4535 = vadd.f32 %v4061, %v4449
    %v4536 = vadd.f32 %v4062, %v4454
    %v4537 = vadd.f32 %v4063, %v4459
    %v4538 = vadd.f32 %v4064, %v4464
    %v4539 = vadd.f32 %v4065, %v4469
    %v4540 = vadd.f32 %v4066, %v4474
    %v4541 = vrot.slane %v95, 2
    %v4542 = vrot.slane %v96, 2
    %v4543 = vsel %vm1446, %v4541, %v4542
    %v4544 = vrot.slane %v97, 2
    %v4545 = vsel %vm1446, %v4542, %v4544
    %v4546 = vrot.slane %v149, 2
    %v4547 = vrot.slane %v150, 2
    %v4548 = vsel %vm1446, %v4546, %v4547
    %v4549 = vrot.slane %v151, 2
    %v4550 = vsel %vm1446, %v4547, %v4549
    %s4551 = scalar_lea.vmem %s1, 32
    %v4552 = vld [vmem:[%s4551] sm:$0xf]
    %v4553 = vsel %vm412, %v4543, 0
    %v4555 = vsel %vm412, %v4545, 0
    %v4557 = vsel %vm412, %v4548, 0
    %v4559 = vsel %vm412, %v4550, 0
    %v4562 = vsel %vm541, %v4552, 0
    %4564 = vmatprep.subr.mxu0 0.0
    %4565 = vmatpush1.msra.mxu0 0.0
    %4566 = vmatprep.subr.mxu0 0.0
    %4567 = vmatpush1.msra.mxu0 0.0
    %4568 = vmatprep.subr.mxu0 0.0
    %4569 = vmatpush1.msra.mxu0 0.0
    %4570 = vmatprep.subr.mxu0 0.0
    %4571 = vmatpush1.msra.mxu0 0.0
    %4572 = vmatprep.subr.mxu0 0.0
    %4573 = vmatpush1.msra.mxu0 0.0
    %4574 = vmatprep.subr.mxu0 0.0
    %4575 = vmatpush1.msra.mxu0 0.0
    %4576 = vmatprep.subr.mxu0 0.0
    %4577 = vmatpush1.msra.mxu0 0.0
    %4578 = vmatprep.subr.mxu0 0.0
    %4579 = vmatpush1.msra.mxu0 0.0
    %4580 = vmatprep.subr.mxu0 0.0
    %4581 = vmatpush1.msra.mxu0 0.0
    %4582 = vmatprep.subr.mxu0 0.0
    %4583 = vmatpush1.msra.mxu0 0.0
    %4584 = vmatprep.subr.mxu0 0.0
    %4585 = vmatpush1.msra.mxu0 0.0
    %4586 = vmatprep.subr.mxu0 0.0
    %4587 = vmatpush1.msra.mxu0 0.0
    %4588 = vmatprep.subr.mxu0 0.0
    %4589 = vmatpush1.msra.mxu0 0.0
    %4590 = vmatprep.subr.mxu0 0.0
    %4591 = vmatpush1.msra.mxu0 0.0
    %4592 = vmatprep.subr.mxu0 0.0
    %4593 = vmatpush1.msra.mxu0 0.0
    %4594 = vmatprep.subr.mxu0 0.0
    %4595 = vmatpush1.msra.mxu0 %v4562
    %4596 = vmatprep.subr.mxu0 0.0
    %4597 = vmatpush2.msra.mxu0 0.0
    %4598 = vmatprep.subr.mxu0 0.0
    %4599 = vmatpush2.msra.mxu0 0.0
    %4600 = vmatprep.subr.mxu0 0.0
    %4601 = vmatpush2.msra.mxu0 0.0
    %4602 = vmatprep.subr.mxu0 0.0
    %4603 = vmatpush2.msra.mxu0 0.0
    %4604 = vmatprep.subr.mxu0 0.0
    %4605 = vmatpush2.msra.mxu0 0.0
    %4606 = vmatprep.subr.mxu0 0.0
    %4607 = vmatpush2.msra.mxu0 0.0
    %4608 = vmatprep.subr.mxu0 0.0
    %4609 = vmatpush2.msra.mxu0 0.0
    %4610 = vmatprep.subr.mxu0 0.0
    %4611 = vmatpush2.msra.mxu0 0.0
    %4612 = vmatprep.subr.mxu0 0.0
    %4613 = vmatpush2.msra.mxu0 0.0
    %4614 = vmatprep.subr.mxu0 0.0
    %4615 = vmatpush2.msra.mxu0 0.0
    %4616 = vmatprep.subr.mxu0 0.0
    %4617 = vmatpush2.msra.mxu0 0.0
    %4618 = vmatprep.subr.mxu0 0.0
    %4619 = vmatpush2.msra.mxu0 0.0
    %4620 = vmatprep.subr.mxu0 0.0
    %4621 = vmatpush2.msra.mxu0 0.0
    %4622 = vmatprep.subr.mxu0 0.0
    %4623 = vmatpush2.msra.mxu0 0.0
    %4624 = vmatprep.subr.mxu0 0.0
    %4625 = vmatpush2.msra.mxu0 0.0
    %4626 = vmatprep.subr.mxu0 0.0
    %4627 = vmatpush2.msra.mxu0 0.0
    %4628 = vmatprep.mubr.f32.mxu0 0.0
    %4629 = vmatmul.mubr.f32.gmra.mxu0 %v1617
    %v4630 = vpop.f32.mrf.mxu0
    %v4631 = vadd.f32 0.0, %v4630
    %v4632 = vpop.f32.mrf.mxu0
    %4633 = vmatprep.mubr.f32.mxu0 0.0
    %4634 = vmatmul.mubr.f32.gmra.mxu0 %v1619
    %v4635 = vpop.f32.mrf.mxu0
    %v4636 = vadd.f32 0.0, %v4635
    %v4637 = vpop.f32.mrf.mxu0
    %4638 = vmatprep.mubr.f32.mxu0 0.0
    %4639 = vmatmul.mubr.f32.gmra.mxu0 %v1621
    %v4640 = vpop.f32.mrf.mxu0
    %v4641 = vadd.f32 0.0, %v4640
    %v4642 = vpop.f32.mrf.mxu0
    %4643 = vmatprep.mubr.f32.mxu0 0.0
    %4644 = vmatmul.mubr.f32.gmra.mxu0 %v1623
    %v4645 = vpop.f32.mrf.mxu0
    %v4646 = vadd.f32 0.0, %v4645
    %v4647 = vpop.f32.mrf.mxu0
    %4648 = vmatprep.mubr.f32.mxu0 0.0
    %4649 = vmatmul.mubr.f32.gmra.mxu0 %v1625
    %v4650 = vpop.f32.mrf.mxu0
    %v4651 = vadd.f32 0.0, %v4650
    %v4652 = vpop.f32.mrf.mxu0
    %4653 = vmatprep.mubr.f32.mxu0 0.0
    %4654 = vmatmul.mubr.f32.gmra.mxu0 %v1627
    %v4655 = vpop.f32.mrf.mxu0
    %v4656 = vadd.f32 0.0, %v4655
    %v4657 = vpop.f32.mrf.mxu0
    %4658 = vmatprep.mubr.f32.mxu0 0.0
    %4659 = vmatmul.mubr.f32.gmra.mxu0 %v1629
    %v4660 = vpop.f32.mrf.mxu0
    %v4661 = vadd.f32 0.0, %v4660
    %v4662 = vpop.f32.mrf.mxu0
    %4663 = vmatprep.mubr.f32.mxu0 0.0
    %4664 = vmatmul.mubr.f32.gmra.mxu0 %v1631
    %v4665 = vpop.f32.mrf.mxu0
    %v4666 = vadd.f32 0.0, %v4665
    %v4667 = vpop.f32.mrf.mxu0
    %4668 = vmatprep.mubr.f32.mxu0 0.0
    %4669 = vmatmul.mubr.f32.gmra.mxu0 %v1633
    %v4670 = vpop.f32.mrf.mxu0
    %v4671 = vadd.f32 0.0, %v4670
    %v4672 = vpop.f32.mrf.mxu0
    %4673 = vmatprep.mubr.f32.mxu0 0.0
    %4674 = vmatmul.mubr.f32.gmra.mxu0 %v1635
    %v4675 = vpop.f32.mrf.mxu0
    %v4676 = vadd.f32 0.0, %v4675
    %v4677 = vpop.f32.mrf.mxu0
    %4678 = vmatprep.mubr.f32.mxu0 0.0
    %4679 = vmatmul.mubr.f32.gmra.mxu0 %v1637
    %v4680 = vpop.f32.mrf.mxu0
    %v4681 = vadd.f32 0.0, %v4680
    %v4682 = vpop.f32.mrf.mxu0
    %4683 = vmatprep.mubr.f32.mxu0 0.0
    %4684 = vmatmul.mubr.f32.gmra.mxu0 %v1639
    %v4685 = vpop.f32.mrf.mxu0
    %v4686 = vadd.f32 0.0, %v4685
    %v4687 = vpop.f32.mrf.mxu0
    %4688 = vmatprep.mubr.f32.mxu0 0.0
    %4689 = vmatmul.mubr.f32.gmra.mxu0 %v1641
    %v4690 = vpop.f32.mrf.mxu0
    %v4691 = vadd.f32 0.0, %v4690
    %v4692 = vpop.f32.mrf.mxu0
    %4693 = vmatprep.mubr.f32.mxu0 0.0
    %4694 = vmatmul.mubr.f32.gmra.mxu0 %v1643
    %v4695 = vpop.f32.mrf.mxu0
    %v4696 = vadd.f32 0.0, %v4695
    %v4697 = vpop.f32.mrf.mxu0
    %4698 = vmatprep.mubr.f32.mxu0 0.0
    %4699 = vmatmul.mubr.f32.gmra.mxu0 %v1645
    %v4700 = vpop.f32.mrf.mxu0
    %v4701 = vadd.f32 0.0, %v4700
    %v4702 = vpop.f32.mrf.mxu0
    %4703 = vmatprep.mubr.f32.mxu0 0.0
    %4704 = vmatmul.mubr.f32.gmra.mxu0 %v1647
    %v4705 = vpop.f32.mrf.mxu0
    %v4706 = vadd.f32 0.0, %v4705
    %v4707 = vpop.f32.mrf.mxu0
    %4708 = vmatprep.mubr.f32.mxu0 0.0
    %4709 = vmatmul.mubr.f32.gmra.mxu0 %v1649
    %v4710 = vpop.f32.mrf.mxu0
    %v4711 = vadd.f32 0.0, %v4710
    %v4712 = vpop.f32.mrf.mxu0
    %4713 = vmatprep.mubr.f32.mxu0 0.0
    %4714 = vmatmul.mubr.f32.gmra.mxu0 %v1651
    %v4715 = vpop.f32.mrf.mxu0
    %v4716 = vadd.f32 0.0, %v4715
    %v4717 = vpop.f32.mrf.mxu0
    %4718 = vmatprep.mubr.f32.mxu0 0.0
    %4719 = vmatmul.mubr.f32.gmra.mxu0 %v1653
    %v4720 = vpop.f32.mrf.mxu0
    %v4721 = vadd.f32 0.0, %v4720
    %v4722 = vpop.f32.mrf.mxu0
    %4723 = vmatprep.mubr.f32.mxu0 0.0
    %4724 = vmatmul.mubr.f32.gmra.mxu0 %v1655
    %v4725 = vpop.f32.mrf.mxu0
    %v4726 = vadd.f32 0.0, %v4725
    %v4727 = vpop.f32.mrf.mxu0
    %4728 = vmatprep.mubr.f32.mxu0 0.0
    %4729 = vmatmul.mubr.f32.gmra.mxu0 %v1657
    %v4730 = vpop.f32.mrf.mxu0
    %v4731 = vadd.f32 0.0, %v4730
    %v4732 = vpop.f32.mrf.mxu0
    %4733 = vmatprep.mubr.f32.mxu0 0.0
    %4734 = vmatmul.mubr.f32.gmra.mxu0 %v1659
    %v4735 = vpop.f32.mrf.mxu0
    %v4736 = vadd.f32 0.0, %v4735
    %v4737 = vpop.f32.mrf.mxu0
    %4738 = vmatprep.mubr.f32.mxu0 0.0
    %4739 = vmatmul.mubr.f32.gmra.mxu0 %v1661
    %v4740 = vpop.f32.mrf.mxu0
    %v4741 = vadd.f32 0.0, %v4740
    %v4742 = vpop.f32.mrf.mxu0
    %4743 = vmatprep.mubr.f32.mxu0 0.0
    %4744 = vmatmul.mubr.f32.gmra.mxu0 %v1663
    %v4745 = vpop.f32.mrf.mxu0
    %v4746 = vadd.f32 0.0, %v4745
    %v4747 = vpop.f32.mrf.mxu0
    %4748 = vmatprep.mubr.f32.mxu0 0.0
    %4749 = vmatmul.mubr.f32.gmra.mxu0 %v1665
    %v4750 = vpop.f32.mrf.mxu0
    %v4751 = vadd.f32 0.0, %v4750
    %v4752 = vpop.f32.mrf.mxu0
    %4753 = vmatprep.mubr.f32.mxu0 0.0
    %4754 = vmatmul.mubr.f32.gmra.mxu0 %v1667
    %v4755 = vpop.f32.mrf.mxu0
    %v4756 = vadd.f32 0.0, %v4755
    %v4757 = vpop.f32.mrf.mxu0
    %4758 = vmatprep.mubr.f32.mxu0 0.0
    %4759 = vmatmul.mubr.f32.gmra.mxu0 %v1669
    %v4760 = vpop.f32.mrf.mxu0
    %v4761 = vadd.f32 0.0, %v4760
    %v4762 = vpop.f32.mrf.mxu0
    %4763 = vmatprep.mubr.f32.mxu0 0.0
    %4764 = vmatmul.mubr.f32.gmra.mxu0 %v1671
    %v4765 = vpop.f32.mrf.mxu0
    %v4766 = vadd.f32 0.0, %v4765
    %v4767 = vpop.f32.mrf.mxu0
    %4768 = vmatprep.mubr.f32.mxu0 0.0
    %4769 = vmatmul.mubr.f32.gmra.mxu0 %v3141
    %v4770 = vpop.f32.mrf.mxu0
    %v4771 = vadd.f32 0.0, %v4770
    %v4772 = vpop.f32.mrf.mxu0
    %4773 = vmatprep.mubr.f32.mxu0 0.0
    %4774 = vmatmul.mubr.f32.gmra.mxu0 %v3143
    %v4775 = vpop.f32.mrf.mxu0
    %v4776 = vadd.f32 0.0, %v4775
    %v4777 = vpop.f32.mrf.mxu0
    %4778 = vmatprep.mubr.f32.mxu0 0.0
    %4779 = vmatmul.mubr.f32.gmra.mxu0 %v4553
    %v4780 = vpop.f32.mrf.mxu0
    %v4781 = vadd.f32 0.0, %v4780
    %v4782 = vpop.f32.mrf.mxu0
    %4783 = vmatprep.mubr.f32.mxu0 0.0
    %4784 = vmatmul.mubr.f32.gmra.mxu0 %v4555
    %v4785 = vpop.f32.mrf.mxu0
    %v4786 = vadd.f32 0.0, %v4785
    %v4787 = vpop.f32.mrf.mxu0
    %4788 = vmatprep.mubr.f32.mxu0 0.0
    %4789 = vmatmul.mubr.f32.gmra.mxu0 %v1681
    %v4790 = vpop.f32.mrf.mxu0
    %v4791 = vadd.f32 0.0, %v4790
    %v4792 = vpop.f32.mrf.mxu0
    %4793 = vmatprep.mubr.f32.mxu0 0.0
    %4794 = vmatmul.mubr.f32.gmra.mxu0 %v1683
    %v4795 = vpop.f32.mrf.mxu0
    %v4796 = vadd.f32 0.0, %v4795
    %v4797 = vpop.f32.mrf.mxu0
    %4798 = vmatprep.mubr.f32.mxu0 0.0
    %4799 = vmatmul.mubr.f32.gmra.mxu0 %v1685
    %v4800 = vpop.f32.mrf.mxu0
    %v4801 = vadd.f32 0.0, %v4800
    %v4802 = vpop.f32.mrf.mxu0
    %4803 = vmatprep.mubr.f32.mxu0 0.0
    %4804 = vmatmul.mubr.f32.gmra.mxu0 %v1687
    %v4805 = vpop.f32.mrf.mxu0
    %v4806 = vadd.f32 0.0, %v4805
    %v4807 = vpop.f32.mrf.mxu0
    %4808 = vmatprep.mubr.f32.mxu0 0.0
    %4809 = vmatmul.mubr.f32.gmra.mxu0 %v1689
    %v4810 = vpop.f32.mrf.mxu0
    %v4811 = vadd.f32 0.0, %v4810
    %v4812 = vpop.f32.mrf.mxu0
    %4813 = vmatprep.mubr.f32.mxu0 0.0
    %4814 = vmatmul.mubr.f32.gmra.mxu0 %v1691
    %v4815 = vpop.f32.mrf.mxu0
    %v4816 = vadd.f32 0.0, %v4815
    %v4817 = vpop.f32.mrf.mxu0
    %4818 = vmatprep.mubr.f32.mxu0 0.0
    %4819 = vmatmul.mubr.f32.gmra.mxu0 %v1693
    %v4820 = vpop.f32.mrf.mxu0
    %v4821 = vadd.f32 0.0, %v4820
    %v4822 = vpop.f32.mrf.mxu0
    %4823 = vmatprep.mubr.f32.mxu0 0.0
    %4824 = vmatmul.mubr.f32.gmra.mxu0 %v1695
    %v4825 = vpop.f32.mrf.mxu0
    %v4826 = vadd.f32 0.0, %v4825
    %v4827 = vpop.f32.mrf.mxu0
    %4828 = vmatprep.mubr.f32.mxu0 0.0
    %4829 = vmatmul.mubr.f32.gmra.mxu0 %v1697
    %v4830 = vpop.f32.mrf.mxu0
    %v4831 = vadd.f32 0.0, %v4830
    %v4832 = vpop.f32.mrf.mxu0
    %4833 = vmatprep.mubr.f32.mxu0 0.0
    %4834 = vmatmul.mubr.f32.gmra.mxu0 %v1699
    %v4835 = vpop.f32.mrf.mxu0
    %v4836 = vadd.f32 0.0, %v4835
    %v4837 = vpop.f32.mrf.mxu0
    %4838 = vmatprep.mubr.f32.mxu0 0.0
    %4839 = vmatmul.mubr.f32.gmra.mxu0 %v1701
    %v4840 = vpop.f32.mrf.mxu0
    %v4841 = vadd.f32 0.0, %v4840
    %v4842 = vpop.f32.mrf.mxu0
    %4843 = vmatprep.mubr.f32.mxu0 0.0
    %4844 = vmatmul.mubr.f32.gmra.mxu0 %v1703
    %v4845 = vpop.f32.mrf.mxu0
    %v4846 = vadd.f32 0.0, %v4845
    %v4847 = vpop.f32.mrf.mxu0
    %4848 = vmatprep.mubr.f32.mxu0 0.0
    %4849 = vmatmul.mubr.f32.gmra.mxu0 %v1705
    %v4850 = vpop.f32.mrf.mxu0
    %v4851 = vadd.f32 0.0, %v4850
    %v4852 = vpop.f32.mrf.mxu0
    %4853 = vmatprep.mubr.f32.mxu0 0.0
    %4854 = vmatmul.mubr.f32.gmra.mxu0 %v1707
    %v4855 = vpop.f32.mrf.mxu0
    %v4856 = vadd.f32 0.0, %v4855
    %v4857 = vpop.f32.mrf.mxu0
    %4858 = vmatprep.mubr.f32.mxu0 0.0
    %4859 = vmatmul.mubr.f32.gmra.mxu0 %v1709
    %v4860 = vpop.f32.mrf.mxu0
    %v4861 = vadd.f32 0.0, %v4860
    %v4862 = vpop.f32.mrf.mxu0
    %4863 = vmatprep.mubr.f32.mxu0 0.0
    %4864 = vmatmul.mubr.f32.gmra.mxu0 %v1711
    %v4865 = vpop.f32.mrf.mxu0
    %v4866 = vadd.f32 0.0, %v4865
    %v4867 = vpop.f32.mrf.mxu0
    %4868 = vmatprep.mubr.f32.mxu0 0.0
    %4869 = vmatmul.mubr.f32.gmra.mxu0 %v1713
    %v4870 = vpop.f32.mrf.mxu0
    %v4871 = vadd.f32 0.0, %v4870
    %v4872 = vpop.f32.mrf.mxu0
    %4873 = vmatprep.mubr.f32.mxu0 0.0
    %4874 = vmatmul.mubr.f32.gmra.mxu0 %v1715
    %v4875 = vpop.f32.mrf.mxu0
    %v4876 = vadd.f32 0.0, %v4875
    %v4877 = vpop.f32.mrf.mxu0
    %4878 = vmatprep.mubr.f32.mxu0 0.0
    %4879 = vmatmul.mubr.f32.gmra.mxu0 %v1717
    %v4880 = vpop.f32.mrf.mxu0
    %v4881 = vadd.f32 0.0, %v4880
    %v4882 = vpop.f32.mrf.mxu0
    %4883 = vmatprep.mubr.f32.mxu0 0.0
    %4884 = vmatmul.mubr.f32.gmra.mxu0 %v1719
    %v4885 = vpop.f32.mrf.mxu0
    %v4886 = vadd.f32 0.0, %v4885
    %v4887 = vpop.f32.mrf.mxu0
    %4888 = vmatprep.mubr.f32.mxu0 0.0
    %4889 = vmatmul.mubr.f32.gmra.mxu0 %v1721
    %v4890 = vpop.f32.mrf.mxu0
    %v4891 = vadd.f32 0.0, %v4890
    %v4892 = vpop.f32.mrf.mxu0
    %4893 = vmatprep.mubr.f32.mxu0 0.0
    %4894 = vmatmul.mubr.f32.gmra.mxu0 %v1723
    %v4895 = vpop.f32.mrf.mxu0
    %v4896 = vadd.f32 0.0, %v4895
    %v4897 = vpop.f32.mrf.mxu0
    %4898 = vmatprep.mubr.f32.mxu0 0.0
    %4899 = vmatmul.mubr.f32.gmra.mxu0 %v1725
    %v4900 = vpop.f32.mrf.mxu0
    %v4901 = vadd.f32 0.0, %v4900
    %v4902 = vpop.f32.mrf.mxu0
    %4903 = vmatprep.mubr.f32.mxu0 0.0
    %4904 = vmatmul.mubr.f32.gmra.mxu0 %v1727
    %v4905 = vpop.f32.mrf.mxu0
    %v4906 = vadd.f32 0.0, %v4905
    %v4907 = vpop.f32.mrf.mxu0
    %4908 = vmatprep.mubr.f32.mxu0 0.0
    %4909 = vmatmul.mubr.f32.gmra.mxu0 %v1729
    %v4910 = vpop.f32.mrf.mxu0
    %v4911 = vadd.f32 0.0, %v4910
    %v4912 = vpop.f32.mrf.mxu0
    %4913 = vmatprep.mubr.f32.mxu0 0.0
    %4914 = vmatmul.mubr.f32.gmra.mxu0 %v1731
    %v4915 = vpop.f32.mrf.mxu0
    %v4916 = vadd.f32 0.0, %v4915
    %v4917 = vpop.f32.mrf.mxu0
    %4918 = vmatprep.mubr.f32.mxu0 0.0
    %4919 = vmatmul.mubr.f32.gmra.mxu0 %v1733
    %v4920 = vpop.f32.mrf.mxu0
    %v4921 = vadd.f32 0.0, %v4920
    %v4922 = vpop.f32.mrf.mxu0
    %4923 = vmatprep.mubr.f32.mxu0 0.0
    %4924 = vmatmul.mubr.f32.gmra.mxu0 %v1735
    %v4925 = vpop.f32.mrf.mxu0
    %v4926 = vadd.f32 0.0, %v4925
    %v4927 = vpop.f32.mrf.mxu0
    %4928 = vmatprep.mubr.f32.mxu0 0.0
    %4929 = vmatmul.mubr.f32.gmra.mxu0 %v3145
    %v4930 = vpop.f32.mrf.mxu0
    %v4931 = vadd.f32 0.0, %v4930
    %v4932 = vpop.f32.mrf.mxu0
    %4933 = vmatprep.mubr.f32.mxu0 0.0
    %4934 = vmatmul.mubr.f32.gmra.mxu0 %v3147
    %v4935 = vpop.f32.mrf.mxu0
    %v4936 = vadd.f32 0.0, %v4935
    %v4937 = vpop.f32.mrf.mxu0
    %4938 = vmatprep.mubr.f32.mxu0 0.0
    %4939 = vmatmul.mubr.f32.gmra.mxu0 %v4557
    %v4940 = vpop.f32.mrf.mxu0
    %v4941 = vadd.f32 0.0, %v4940
    %v4942 = vpop.f32.mrf.mxu0
    %4943 = vmatprep.mubr.f32.mxu0 0.0
    %4944 = vmatmul.mubr.f32.gmra.mxu0 %v4559
    %v4945 = vpop.f32.mrf.mxu0
    %v4946 = vadd.f32 0.0, %v4945
    %v4947 = vpop.f32.mrf.mxu0
    %4948 = vdwg.mxu0
    %v4949 = vadd.f32 %v4477, %v4631
    %v4950 = vadd.f32 %v4478, %v4636
    %v4951 = vadd.f32 %v4479, %v4641
    %v4952 = vadd.f32 %v4480, %v4646
    %v4953 = vadd.f32 %v4481, %v4651
    %v4954 = vadd.f32 %v4482, %v4656
    %v4955 = vadd.f32 %v4483, %v4661
    %v4956 = vadd.f32 %v4484, %v4666
    %v4957 = vadd.f32 %v4485, %v4671
    %v4958 = vadd.f32 %v4486, %v4676
    %v4959 = vadd.f32 %v4487, %v4681
    %v4960 = vadd.f32 %v4488, %v4686
    %v4961 = vadd.f32 %v4489, %v4691
    %v4962 = vadd.f32 %v4490, %v4696
    %v4963 = vadd.f32 %v4491, %v4701
    %v4964 = vadd.f32 %v4492, %v4706
    %v4965 = vadd.f32 %v4493, %v4711
    %v4966 = vadd.f32 %v4494, %v4716
    %v4967 = vadd.f32 %v4495, %v4721
    %v4968 = vadd.f32 %v4496, %v4726
    %v4969 = vadd.f32 %v4497, %v4731
    %v4970 = vadd.f32 %v4498, %v4736
    %v4971 = vadd.f32 %v4499, %v4741
    %v4972 = vadd.f32 %v4500, %v4746
    %v4973 = vadd.f32 %v4501, %v4751
    %v4974 = vadd.f32 %v4502, %v4756
    %v4975 = vadd.f32 %v4503, %v4761
    %v4976 = vadd.f32 %v4504, %v4766
    %v4977 = vadd.f32 %v4505, %v4771
    %v4978 = vadd.f32 %v4506, %v4776
    %v4979 = vadd.f32 %v4507, %v4781
    %v4980 = vadd.f32 %v4508, %v4786
    %v4981 = vadd.f32 %v4509, %v4791
    %v4982 = vadd.f32 %v4510, %v4796
    %v4983 = vadd.f32 %v4511, %v4801
    %v4984 = vadd.f32 %v4512, %v4806
    %v4985 = vadd.f32 %v4513, %v4811
    %v4986 = vadd.f32 %v4514, %v4816
    %v4987 = vadd.f32 %v4515, %v4821
    %v4988 = vadd.f32 %v4516, %v4826
    %v4989 = vadd.f32 %v4517, %v4831
    %v4990 = vadd.f32 %v4518, %v4836
    %v4991 = vadd.f32 %v4519, %v4841
    %v4992 = vadd.f32 %v4520, %v4846
    %v4993 = vadd.f32 %v4521, %v4851
    %v4994 = vadd.f32 %v4522, %v4856
    %v4995 = vadd.f32 %v4523, %v4861
    %v4996 = vadd.f32 %v4524, %v4866
    %v4997 = vadd.f32 %v4525, %v4871
    %v4998 = vadd.f32 %v4526, %v4876
    %v4999 = vadd.f32 %v4527, %v4881
    %v5000 = vadd.f32 %v4528, %v4886
    %v5001 = vadd.f32 %v4529, %v4891
    %v5002 = vadd.f32 %v4530, %v4896
    %v5003 = vadd.f32 %v4531, %v4901
    %v5004 = vadd.f32 %v4532, %v4906
    %v5005 = vadd.f32 %v4533, %v4911
    %v5006 = vadd.f32 %v4534, %v4916
    %v5007 = vadd.f32 %v4535, %v4921
    %v5008 = vadd.f32 %v4536, %v4926
    %v5009 = vadd.f32 %v4537, %v4931
    %v5010 = vadd.f32 %v4538, %v4936
    %v5011 = vadd.f32 %v4539, %v4941
    %v5012 = vadd.f32 %v4540, %v4946
    %v5013 = vadd.f32 %v4949, %v4950
    %v5014 = vadd.f32 %v5013, %v4951
    %v5015 = vadd.f32 %v5014, %v4952
    %v5016 = vadd.f32 %v5015, %v4953
    %v5017 = vadd.f32 %v5016, %v4954
    %v5018 = vadd.f32 %v5017, %v4955
    %v5019 = vadd.f32 %v5018, %v4956
    %v5020 = vadd.f32 %v5019, %v4957
    %v5021 = vadd.f32 %v5020, %v4958
    %v5022 = vadd.f32 %v5021, %v4959
    %v5023 = vadd.f32 %v5022, %v4960
    %v5024 = vadd.f32 %v5023, %v4961
    %v5025 = vadd.f32 %v5024, %v4962
    %v5026 = vadd.f32 %v5025, %v4963
    %v5027 = vadd.f32 %v5026, %v4964
    %v5028 = vadd.f32 %v5027, %v4965
    %v5029 = vadd.f32 %v5028, %v4966
    %v5030 = vadd.f32 %v5029, %v4967
    %v5031 = vadd.f32 %v5030, %v4968
    %v5032 = vadd.f32 %v5031, %v4969
    %v5033 = vadd.f32 %v5032, %v4970
    %v5034 = vadd.f32 %v5033, %v4971
    %v5035 = vadd.f32 %v5034, %v4972
    %v5036 = vadd.f32 %v5035, %v4973
    %v5037 = vadd.f32 %v5036, %v4974
    %v5038 = vadd.f32 %v5037, %v4975
    %v5039 = vadd.f32 %v5038, %v4976
    %v5040 = vadd.f32 %v5039, %v4977
    %v5041 = vadd.f32 %v5040, %v4978
    %v5042 = vadd.f32 %v5041, %v4979
    %v5043 = vadd.f32 %v5042, %v4980
    %v5044 = vadd.f32 %v5043, %v4981
    %v5045 = vadd.f32 %v5044, %v4982
    %v5046 = vadd.f32 %v5045, %v4983
    %v5047 = vadd.f32 %v5046, %v4984
    %v5048 = vadd.f32 %v5047, %v4985
    %v5049 = vadd.f32 %v5048, %v4986
    %v5050 = vadd.f32 %v5049, %v4987
    %v5051 = vadd.f32 %v5050, %v4988
    %v5052 = vadd.f32 %v5051, %v4989
    %v5053 = vadd.f32 %v5052, %v4990
    %v5054 = vadd.f32 %v5053, %v4991
    %v5055 = vadd.f32 %v5054, %v4992
    %v5056 = vadd.f32 %v5055, %v4993
    %v5057 = vadd.f32 %v5056, %v4994
    %v5058 = vadd.f32 %v5057, %v4995
    %v5059 = vadd.f32 %v5058, %v4996
    %v5060 = vadd.f32 %v5059, %v4997
    %v5061 = vadd.f32 %v5060, %v4998
    %v5062 = vadd.f32 %v5061, %v4999
    %v5063 = vadd.f32 %v5062, %v5000
    %v5064 = vadd.f32 %v5063, %v5001
    %v5065 = vadd.f32 %v5064, %v5002
    %v5066 = vadd.f32 %v5065, %v5003
    %v5067 = vadd.f32 %v5066, %v5004
    %v5068 = vadd.f32 %v5067, %v5005
    %v5069 = vadd.f32 %v5068, %v5006
    %v5070 = vadd.f32 %v5069, %v5007
    %v5071 = vadd.f32 %v5070, %v5008
    %v5072 = vadd.f32 %v5071, %v5009
    %v5073 = vadd.f32 %v5072, %v5010
    %v5074 = vadd.f32 %v5073, %v5011
    %v5075 = vadd.f32 %v5074, %v5012
    %v5076 = vrot.slane %v5075, 4
    %v5077 = vadd.f32 %v5075, %v5076
    %v5078 = vrot.slane %v5077, 2
    %v5079 = vadd.f32 %v5077, %v5078
    %v5080 = vrot.slane %v5079, 1
    %v5081 = vadd.f32 %v5079, %v5080
    %v5082 = vmul.f32 %v5081, 0.001953125
    %v5083 = vmul.f32 %v4949, %v4949
    %v5084 = vmul.f32 %v4950, %v4950
    %v5085 = vmul.f32 %v4951, %v4951
    %v5086 = vmul.f32 %v4952, %v4952
    %v5087 = vmul.f32 %v4953, %v4953
    %v5088 = vmul.f32 %v4954, %v4954
    %v5089 = vmul.f32 %v4955, %v4955
    %v5090 = vmul.f32 %v4956, %v4956
    %v5091 = vmul.f32 %v4957, %v4957
    %v5092 = vmul.f32 %v4958, %v4958
    %v5093 = vmul.f32 %v4959, %v4959
    %v5094 = vmul.f32 %v4960, %v4960
    %v5095 = vmul.f32 %v4961, %v4961
    %v5096 = vmul.f32 %v4962, %v4962
    %v5097 = vmul.f32 %v4963, %v4963
    %v5098 = vmul.f32 %v4964, %v4964
    %v5099 = vmul.f32 %v4965, %v4965
    %v5100 = vmul.f32 %v4966, %v4966
    %v5101 = vmul.f32 %v4967, %v4967
    %v5102 = vmul.f32 %v4968, %v4968
    %v5103 = vmul.f32 %v4969, %v4969
    %v5104 = vmul.f32 %v4970, %v4970
    %v5105 = vmul.f32 %v4971, %v4971
    %v5106 = vmul.f32 %v4972, %v4972
    %v5107 = vmul.f32 %v4973, %v4973
    %v5108 = vmul.f32 %v4974, %v4974
    %v5109 = vmul.f32 %v4975, %v4975
    %v5110 = vmul.f32 %v4976, %v4976
    %v5111 = vmul.f32 %v4977, %v4977
    %v5112 = vmul.f32 %v4978, %v4978
    %v5113 = vmul.f32 %v4979, %v4979
    %v5114 = vmul.f32 %v4980, %v4980
    %v5115 = vmul.f32 %v4981, %v4981
    %v5116 = vmul.f32 %v4982, %v4982
    %v5117 = vmul.f32 %v4983, %v4983
    %v5118 = vmul.f32 %v4984, %v4984
    %v5119 = vmul.f32 %v4985, %v4985
    %v5120 = vmul.f32 %v4986, %v4986
    %v5121 = vmul.f32 %v4987, %v4987
    %v5122 = vmul.f32 %v4988, %v4988
    %v5123 = vmul.f32 %v4989, %v4989
    %v5124 = vmul.f32 %v4990, %v4990
    %v5125 = vmul.f32 %v4991, %v4991
    %v5126 = vmul.f32 %v4992, %v4992
    %v5127 = vmul.f32 %v4993, %v4993
    %v5128 = vmul.f32 %v4994, %v4994
    %v5129 = vmul.f32 %v4995, %v4995
    %v5130 = vmul.f32 %v4996, %v4996
    %v5131 = vmul.f32 %v4997, %v4997
    %v5132 = vmul.f32 %v4998, %v4998
    %v5133 = vmul.f32 %v4999, %v4999
    %v5134 = vmul.f32 %v5000, %v5000
    %v5135 = vmul.f32 %v5001, %v5001
    %v5136 = vmul.f32 %v5002, %v5002
    %v5137 = vmul.f32 %v5003, %v5003
    %v5138 = vmul.f32 %v5004, %v5004
    %v5139 = vmul.f32 %v5005, %v5005
    %v5140 = vmul.f32 %v5006, %v5006
    %v5141 = vmul.f32 %v5007, %v5007
    %v5142 = vmul.f32 %v5008, %v5008
    %v5143 = vmul.f32 %v5009, %v5009
    %v5144 = vmul.f32 %v5010, %v5010
    %v5145 = vmul.f32 %v5011, %v5011
    %v5146 = vmul.f32 %v5012, %v5012
    %v5147 = vadd.f32 %v5083, %v5084
    %v5148 = vadd.f32 %v5147, %v5085
    %v5149 = vadd.f32 %v5148, %v5086
    %v5150 = vadd.f32 %v5149, %v5087
    %v5151 = vadd.f32 %v5150, %v5088
    %v5152 = vadd.f32 %v5151, %v5089
    %v5153 = vadd.f32 %v5152, %v5090
    %v5154 = vadd.f32 %v5153, %v5091
    %v5155 = vadd.f32 %v5154, %v5092
    %v5156 = vadd.f32 %v5155, %v5093
    %v5157 = vadd.f32 %v5156, %v5094
    %v5158 = vadd.f32 %v5157, %v5095
    %v5159 = vadd.f32 %v5158, %v5096
    %v5160 = vadd.f32 %v5159, %v5097
    %v5161 = vadd.f32 %v5160, %v5098
    %v5162 = vadd.f32 %v5161, %v5099
    %v5163 = vadd.f32 %v5162, %v5100
    %v5164 = vadd.f32 %v5163, %v5101
    %v5165 = vadd.f32 %v5164, %v5102
    %v5166 = vadd.f32 %v5165, %v5103
    %v5167 = vadd.f32 %v5166, %v5104
    %v5168 = vadd.f32 %v5167, %v5105
    %v5169 = vadd.f32 %v5168, %v5106
    %v5170 = vadd.f32 %v5169, %v5107
    %v5171 = vadd.f32 %v5170, %v5108
    %v5172 = vadd.f32 %v5171, %v5109
    %v5173 = vadd.f32 %v5172, %v5110
    %v5174 = vadd.f32 %v5173, %v5111
    %v5175 = vadd.f32 %v5174, %v5112
    %v5176 = vadd.f32 %v5175, %v5113
    %v5177 = vadd.f32 %v5176, %v5114
    %v5178 = vadd.f32 %v5177, %v5115
    %v5179 = vadd.f32 %v5178, %v5116
    %v5180 = vadd.f32 %v5179, %v5117
    %v5181 = vadd.f32 %v5180, %v5118
    %v5182 = vadd.f32 %v5181, %v5119
    %v5183 = vadd.f32 %v5182, %v5120
    %v5184 = vadd.f32 %v5183, %v5121
    %v5185 = vadd.f32 %v5184, %v5122
    %v5186 = vadd.f32 %v5185, %v5123
    %v5187 = vadd.f32 %v5186, %v5124
    %v5188 = vadd.f32 %v5187, %v5125
    %v5189 = vadd.f32 %v5188, %v5126
    %v5190 = vadd.f32 %v5189, %v5127
    %v5191 = vadd.f32 %v5190, %v5128
    %v5192 = vadd.f32 %v5191, %v5129
    %v5193 = vadd.f32 %v5192, %v5130
    %v5194 = vadd.f32 %v5193, %v5131
    %v5195 = vadd.f32 %v5194, %v5132
    %v5196 = vadd.f32 %v5195, %v5133
    %v5197 = vadd.f32 %v5196, %v5134
    %v5198 = vadd.f32 %v5197, %v5135
    %v5199 = vadd.f32 %v5198, %v5136
    %v5200 = vadd.f32 %v5199, %v5137
    %v5201 = vadd.f32 %v5200, %v5138
    %v5202 = vadd.f32 %v5201, %v5139
    %v5203 = vadd.f32 %v5202, %v5140
    %v5204 = vadd.f32 %v5203, %v5141
    %v5205 = vadd.f32 %v5204, %v5142
    %v5206 = vadd.f32 %v5205, %v5143
    %v5207 = vadd.f32 %v5206, %v5144
    %v5208 = vadd.f32 %v5207, %v5145
    %v5209 = vadd.f32 %v5208, %v5146
    %v5210 = vrot.slane %v5209, 4
    %v5211 = vadd.f32 %v5209, %v5210
    %v5212 = vrot.slane %v5211, 2
    %v5213 = vadd.f32 %v5211, %v5212
    %v5214 = vrot.slane %v5213, 1
    %v5215 = vadd.f32 %v5213, %v5214
    %v5216 = vmul.f32 %v5215, 0.001953125
    %v5217 = vmul.f32 %v5082, %v5082
    %v5218 = vsub.f32 %v5216, %v5217
    %v5219 = vld [vmem:[%s4] sm:$0x1]
    %v5220 = vadd.f32 %v5218, 1e-05
    %v5221 = vrsqrt.pop %v5220
    %v5222 = vmul.f32 %v5219, %v5221
    %v5223 = vld [vmem:[%s5] sm:$0x1]
    %v5224 = vmul.f32 %v5082, %v5222
    %v5225 = vsub.f32 %v5223, %v5224
    %v5227 = vlaneseq
    %v5228 = vshrl.u32 %v5227, 7
    %v5229 = vsub.s32 0, %v5228
    %v5230 = vrot.slane %v5222, %v5229
    %v5232 = vmul.f32 %v4949, %v5230
    %v5233 = vmul.f32 %v4950, %v5230
    %v5234 = vmul.f32 %v4951, %v5230
    %v5235 = vmul.f32 %v4952, %v5230
    %v5236 = vmul.f32 %v4953, %v5230
    %v5237 = vmul.f32 %v4954, %v5230
    %v5238 = vmul.f32 %v4955, %v5230
    %v5239 = vmul.f32 %v4956, %v5230
    %v5240 = vmul.f32 %v4957, %v5230
    %v5241 = vmul.f32 %v4958, %v5230
    %v5242 = vmul.f32 %v4959, %v5230
    %v5243 = vmul.f32 %v4960, %v5230
    %v5244 = vmul.f32 %v4961, %v5230
    %v5245 = vmul.f32 %v4962, %v5230
    %v5246 = vmul.f32 %v4963, %v5230
    %v5247 = vmul.f32 %v4964, %v5230
    %v5248 = vmul.f32 %v4965, %v5230
    %v5249 = vmul.f32 %v4966, %v5230
    %v5250 = vmul.f32 %v4967, %v5230
    %v5251 = vmul.f32 %v4968, %v5230
    %v5252 = vmul.f32 %v4969, %v5230
    %v5253 = vmul.f32 %v4970, %v5230
    %v5254 = vmul.f32 %v4971, %v5230
    %v5255 = vmul.f32 %v4972, %v5230
    %v5256 = vmul.f32 %v4973, %v5230
    %v5257 = vmul.f32 %v4974, %v5230
    %v5258 = vmul.f32 %v4975, %v5230
    %v5259 = vmul.f32 %v4976, %v5230
    %v5260 = vmul.f32 %v4977, %v5230
    %v5261 = vmul.f32 %v4978, %v5230
    %v5262 = vmul.f32 %v4979, %v5230
    %v5263 = vmul.f32 %v4980, %v5230
    %v5264 = vmul.f32 %v4981, %v5230
    %v5265 = vmul.f32 %v4982, %v5230
    %v5266 = vmul.f32 %v4983, %v5230
    %v5267 = vmul.f32 %v4984, %v5230
    %v5268 = vmul.f32 %v4985, %v5230
    %v5269 = vmul.f32 %v4986, %v5230
    %v5270 = vmul.f32 %v4987, %v5230
    %v5271 = vmul.f32 %v4988, %v5230
    %v5272 = vmul.f32 %v4989, %v5230
    %v5273 = vmul.f32 %v4990, %v5230
    %v5274 = vmul.f32 %v4991, %v5230
    %v5275 = vmul.f32 %v4992, %v5230
    %v5276 = vmul.f32 %v4993, %v5230
    %v5277 = vmul.f32 %v4994, %v5230
    %v5278 = vmul.f32 %v4995, %v5230
    %v5279 = vmul.f32 %v4996, %v5230
    %v5280 = vmul.f32 %v4997, %v5230
    %v5281 = vmul.f32 %v4998, %v5230
    %v5282 = vmul.f32 %v4999, %v5230
    %v5283 = vmul.f32 %v5000, %v5230
    %v5284 = vmul.f32 %v5001, %v5230
    %v5285 = vmul.f32 %v5002, %v5230
    %v5286 = vmul.f32 %v5003, %v5230
    %v5287 = vmul.f32 %v5004, %v5230
    %v5288 = vmul.f32 %v5005, %v5230
    %v5289 = vmul.f32 %v5006, %v5230
    %v5290 = vmul.f32 %v5007, %v5230
    %v5291 = vmul.f32 %v5008, %v5230
    %v5292 = vmul.f32 %v5009, %v5230
    %v5293 = vmul.f32 %v5010, %v5230
    %v5294 = vmul.f32 %v5011, %v5230
    %v5295 = vmul.f32 %v5012, %v5230
    %v5297 = vlaneseq
    %v5298 = vshrl.u32 %v5297, 7
    %v5299 = vsub.s32 0, %v5298
    %v5300 = vrot.slane %v5225, %v5299
    %v5302 = vadd.f32 %v5232, %v5300
    %v5303 = vadd.f32 %v5233, %v5300
    %v5304 = vadd.f32 %v5234, %v5300
    %v5305 = vadd.f32 %v5235, %v5300
    %v5306 = vadd.f32 %v5236, %v5300
    %v5307 = vadd.f32 %v5237, %v5300
    %v5308 = vadd.f32 %v5238, %v5300
    %v5309 = vadd.f32 %v5239, %v5300
    %v5310 = vadd.f32 %v5240, %v5300
    %v5311 = vadd.f32 %v5241, %v5300
    %v5312 = vadd.f32 %v5242, %v5300
    %v5313 = vadd.f32 %v5243, %v5300
    %v5314 = vadd.f32 %v5244, %v5300
    %v5315 = vadd.f32 %v5245, %v5300
    %v5316 = vadd.f32 %v5246, %v5300
    %v5317 = vadd.f32 %v5247, %v5300
    %v5318 = vadd.f32 %v5248, %v5300
    %v5319 = vadd.f32 %v5249, %v5300
    %v5320 = vadd.f32 %v5250, %v5300
    %v5321 = vadd.f32 %v5251, %v5300
    %v5322 = vadd.f32 %v5252, %v5300
    %v5323 = vadd.f32 %v5253, %v5300
    %v5324 = vadd.f32 %v5254, %v5300
    %v5325 = vadd.f32 %v5255, %v5300
    %v5326 = vadd.f32 %v5256, %v5300
    %v5327 = vadd.f32 %v5257, %v5300
    %v5328 = vadd.f32 %v5258, %v5300
    %v5329 = vadd.f32 %v5259, %v5300
    %v5330 = vadd.f32 %v5260, %v5300
    %v5331 = vadd.f32 %v5261, %v5300
    %v5332 = vadd.f32 %v5262, %v5300
    %v5333 = vadd.f32 %v5263, %v5300
    %v5334 = vadd.f32 %v5264, %v5300
    %v5335 = vadd.f32 %v5265, %v5300
    %v5336 = vadd.f32 %v5266, %v5300
    %v5337 = vadd.f32 %v5267, %v5300
    %v5338 = vadd.f32 %v5268, %v5300
    %v5339 = vadd.f32 %v5269, %v5300
    %v5340 = vadd.f32 %v5270, %v5300
    %v5341 = vadd.f32 %v5271, %v5300
    %v5342 = vadd.f32 %v5272, %v5300
    %v5343 = vadd.f32 %v5273, %v5300
    %v5344 = vadd.f32 %v5274, %v5300
    %v5345 = vadd.f32 %v5275, %v5300
    %v5346 = vadd.f32 %v5276, %v5300
    %v5347 = vadd.f32 %v5277, %v5300
    %v5348 = vadd.f32 %v5278, %v5300
    %v5349 = vadd.f32 %v5279, %v5300
    %v5350 = vadd.f32 %v5280, %v5300
    %v5351 = vadd.f32 %v5281, %v5300
    %v5352 = vadd.f32 %v5282, %v5300
    %v5353 = vadd.f32 %v5283, %v5300
    %v5354 = vadd.f32 %v5284, %v5300
    %v5355 = vadd.f32 %v5285, %v5300
    %v5356 = vadd.f32 %v5286, %v5300
    %v5357 = vadd.f32 %v5287, %v5300
    %v5358 = vadd.f32 %v5288, %v5300
    %v5359 = vadd.f32 %v5289, %v5300
    %v5360 = vadd.f32 %v5290, %v5300
    %v5361 = vadd.f32 %v5291, %v5300
    %v5362 = vadd.f32 %v5292, %v5300
    %v5363 = vadd.f32 %v5293, %v5300
    %v5364 = vadd.f32 %v5294, %v5300
    %v5365 = vadd.f32 %v5295, %v5300
    %v5366 = vmax.f32 %v5302, 0.0
    %v5367 = vmax.f32 %v5303, 0.0
    %v5368 = vmax.f32 %v5304, 0.0
    %v5369 = vmax.f32 %v5305, 0.0
    %v5370 = vmax.f32 %v5306, 0.0
    %v5371 = vmax.f32 %v5307, 0.0
    %v5372 = vmax.f32 %v5308, 0.0
    %v5373 = vmax.f32 %v5309, 0.0
    %v5374 = vmax.f32 %v5310, 0.0
    %v5375 = vmax.f32 %v5311, 0.0
    %v5376 = vmax.f32 %v5312, 0.0
    %v5377 = vmax.f32 %v5313, 0.0
    %v5378 = vmax.f32 %v5314, 0.0
    %v5379 = vmax.f32 %v5315, 0.0
    %v5380 = vmax.f32 %v5316, 0.0
    %v5381 = vmax.f32 %v5317, 0.0
    %v5382 = vmax.f32 %v5318, 0.0
    %v5383 = vmax.f32 %v5319, 0.0
    %v5384 = vmax.f32 %v5320, 0.0
    %v5385 = vmax.f32 %v5321, 0.0
    %v5386 = vmax.f32 %v5322, 0.0
    %v5387 = vmax.f32 %v5323, 0.0
    %v5388 = vmax.f32 %v5324, 0.0
    %v5389 = vmax.f32 %v5325, 0.0
    %v5390 = vmax.f32 %v5326, 0.0
    %v5391 = vmax.f32 %v5327, 0.0
    %v5392 = vmax.f32 %v5328, 0.0
    %v5393 = vmax.f32 %v5329, 0.0
    %v5394 = vmax.f32 %v5330, 0.0
    %v5395 = vmax.f32 %v5331, 0.0
    %v5396 = vmax.f32 %v5332, 0.0
    %v5397 = vmax.f32 %v5333, 0.0
    %v5398 = vmax.f32 %v5334, 0.0
    %v5399 = vmax.f32 %v5335, 0.0
    %v5400 = vmax.f32 %v5336, 0.0
    %v5401 = vmax.f32 %v5337, 0.0
    %v5402 = vmax.f32 %v5338, 0.0
    %v5403 = vmax.f32 %v5339, 0.0
    %v5404 = vmax.f32 %v5340, 0.0
    %v5405 = vmax.f32 %v5341, 0.0
    %v5406 = vmax.f32 %v5342, 0.0
    %v5407 = vmax.f32 %v5343, 0.0
    %v5408 = vmax.f32 %v5344, 0.0
    %v5409 = vmax.f32 %v5345, 0.0
    %v5410 = vmax.f32 %v5346, 0.0
    %v5411 = vmax.f32 %v5347, 0.0
    %v5412 = vmax.f32 %v5348, 0.0
    %v5413 = vmax.f32 %v5349, 0.0
    %v5414 = vmax.f32 %v5350, 0.0
    %v5415 = vmax.f32 %v5351, 0.0
    %v5416 = vmax.f32 %v5352, 0.0
    %v5417 = vmax.f32 %v5353, 0.0
    %v5418 = vmax.f32 %v5354, 0.0
    %v5419 = vmax.f32 %v5355, 0.0
    %v5420 = vmax.f32 %v5356, 0.0
    %v5421 = vmax.f32 %v5357, 0.0
    %v5422 = vmax.f32 %v5358, 0.0
    %v5423 = vmax.f32 %v5359, 0.0
    %v5424 = vmax.f32 %v5360, 0.0
    %v5425 = vmax.f32 %v5361, 0.0
    %v5426 = vmax.f32 %v5362, 0.0
    %v5427 = vmax.f32 %v5363, 0.0
    %v5428 = vmax.f32 %v5364, 0.0
    %v5429 = vmax.f32 %v5365, 0.0
    %5430 = vst [vmem:[#allocation2] sm:$0xff] 0.0
    %5431 = vst [vmem:[#allocation2 + $0x8] sm:$0xff] 0.0
    %5432 = vst [vmem:[#allocation2 + $0x10] sm:$0x3] 0.0
    %5433 = vst [vmem:[#allocation2 + $0x1b0] sm:$0xff] 0.0
    %5434 = vst [vmem:[#allocation2 + $0x1b8] sm:$0xff] 0.0
    %5435 = vst [vmem:[#allocation2 + $0x1c0] sm:$0x3] 0.0
    %s5436 = scalar_lea.vmem [#allocation2], 408
    %5437 = vst [vmem:[%s5436] sm:$0xff] 0.0
    %5438 = vst [vmem:[%s5436 + $0x8] sm:$0xff] 0.0
    %5439 = vst [vmem:[%s5436 + $0x10] sm:$0x3] 0.0
    %5440 = vst [vmem:[%s5436 + $0x1b0] sm:$0xff] 0.0
    %5441 = vst [vmem:[%s5436 + $0x1b8] sm:$0xff] 0.0
    %5442 = vst [vmem:[%s5436 + $0x1c0] sm:$0x3] 0.0
    %s5443 = scalar_lea.vmem [#allocation2], 24
    %5444 = vst [vmem:[%s5443] sm:$0x1] 0.0
    %5445 = vst [vmem:[%s5443 + $0x18] sm:$0x1] 0.0
    %5446 = vst [vmem:[%s5443 + $0x30] sm:$0x1] 0.0
    %5447 = vst [vmem:[%s5443 + $0x48] sm:$0x1] 0.0
    %5448 = vst [vmem:[%s5443 + $0x60] sm:$0x1] 0.0
    %5449 = vst [vmem:[%s5443 + $0x78] sm:$0x1] 0.0
    %5450 = vst [vmem:[%s5443 + $0x90] sm:$0x1] 0.0
    %5451 = vst [vmem:[%s5443 + $0xa8] sm:$0x1] 0.0
    %5452 = vst [vmem:[%s5443 + $0xc0] sm:$0x1] 0.0
    %5453 = vst [vmem:[%s5443 + $0xd8] sm:$0x1] 0.0
    %5454 = vst [vmem:[%s5443 + $0xf0] sm:$0x1] 0.0
    %5455 = vst [vmem:[%s5443 + $0x108] sm:$0x1] 0.0
    %5456 = vst [vmem:[%s5443 + $0x120] sm:$0x1] 0.0
    %5457 = vst [vmem:[%s5443 + $0x138] sm:$0x1] 0.0
    %5458 = vst [vmem:[%s5443 + $0x150] sm:$0x1] 0.0
    %5459 = vst [vmem:[%s5443 + $0x168] sm:$0x1] 0.0
    %5460 = vst [vmem:[%s5443 + $0x1b0] sm:$0x1] 0.0
    %5461 = vst [vmem:[%s5443 + $0x1c8] sm:$0x1] 0.0
    %5462 = vst [vmem:[%s5443 + $0x1e0] sm:$0x1] 0.0
    %5463 = vst [vmem:[%s5443 + $0x1f8] sm:$0x1] 0.0
    %5464 = vst [vmem:[%s5443 + $0x210] sm:$0x1] 0.0
    %5465 = vst [vmem:[%s5443 + $0x228] sm:$0x1] 0.0
    %5466 = vst [vmem:[%s5443 + $0x240] sm:$0x1] 0.0
    %5467 = vst [vmem:[%s5443 + $0x258] sm:$0x1] 0.0
    %5468 = vst [vmem:[%s5443 + $0x270] sm:$0x1] 0.0
    %5469 = vst [vmem:[%s5443 + $0x288] sm:$0x1] 0.0
    %5470 = vst [vmem:[%s5443 + $0x2a0] sm:$0x1] 0.0
    %5471 = vst [vmem:[%s5443 + $0x2b8] sm:$0x1] 0.0
    %5472 = vst [vmem:[%s5443 + $0x2d0] sm:$0x1] 0.0
    %5473 = vst [vmem:[%s5443 + $0x2e8] sm:$0x1] 0.0
    %5474 = vst [vmem:[%s5443 + $0x300] sm:$0x1] 0.0
    %5475 = vst [vmem:[%s5443 + $0x318] sm:$0x1] 0.0
    %5476 = vst [vmem:[%s5443 + $0x11] sm:$0x1] 0.0
    %5477 = vst [vmem:[%s5443 + $0x29] sm:$0x1] 0.0
    %5478 = vst [vmem:[%s5443 + $0x41] sm:$0x1] 0.0
    %5479 = vst [vmem:[%s5443 + $0x59] sm:$0x1] 0.0
    %5480 = vst [vmem:[%s5443 + $0x71] sm:$0x1] 0.0
    %5481 = vst [vmem:[%s5443 + $0x89] sm:$0x1] 0.0
    %5482 = vst [vmem:[%s5443 + $0xa1] sm:$0x1] 0.0
    %5483 = vst [vmem:[%s5443 + $0xb9] sm:$0x1] 0.0
    %5484 = vst [vmem:[%s5443 + $0xd1] sm:$0x1] 0.0
    %5485 = vst [vmem:[%s5443 + $0xe9] sm:$0x1] 0.0
    %5486 = vst [vmem:[%s5443 + $0x101] sm:$0x1] 0.0
    %5487 = vst [vmem:[%s5443 + $0x119] sm:$0x1] 0.0
    %5488 = vst [vmem:[%s5443 + $0x131] sm:$0x1] 0.0
    %5489 = vst [vmem:[%s5443 + $0x149] sm:$0x1] 0.0
    %5490 = vst [vmem:[%s5443 + $0x161] sm:$0x1] 0.0
    %5491 = vst [vmem:[%s5443 + $0x179] sm:$0x1] 0.0
    %5492 = vst [vmem:[%s5443 + $0x1c1] sm:$0x1] 0.0
    %5493 = vst [vmem:[%s5443 + $0x1d9] sm:$0x1] 0.0
    %5494 = vst [vmem:[%s5443 + $0x1f1] sm:$0x1] 0.0
    %5495 = vst [vmem:[%s5443 + $0x209] sm:$0x1] 0.0
    %5496 = vst [vmem:[%s5443 + $0x221] sm:$0x1] 0.0
    %5497 = vst [vmem:[%s5443 + $0x239] sm:$0x1] 0.0
    %5498 = vst [vmem:[%s5443 + $0x251] sm:$0x1] 0.0
    %5499 = vst [vmem:[%s5443 + $0x269] sm:$0x1] 0.0
    %5500 = vst [vmem:[%s5443 + $0x281] sm:$0x1] 0.0
    %5501 = vst [vmem:[%s5443 + $0x299] sm:$0x1] 0.0
    %5502 = vst [vmem:[%s5443 + $0x2b1] sm:$0x1] 0.0
    %5503 = vst [vmem:[%s5443 + $0x2c9] sm:$0x1] 0.0
    %5504 = vst [vmem:[%s5443 + $0x2e1] sm:$0x1] 0.0
    %5505 = vst [vmem:[%s5443 + $0x2f9] sm:$0x1] 0.0
    %5506 = vst [vmem:[%s5443 + $0x311] sm:$0x1] 0.0
    %5507 = vst [vmem:[%s5443 + $0x329] sm:$0x1] 0.0
    %5508 = vst [vmem:[%s5443 + $0x1] sm:$0xff] %v5366
    %5509 = vst [vmem:[%s5443 + $0x9] sm:$0xff] %v5367
    %5510 = vst [vmem:[%s5443 + $0x19] sm:$0xff] %v5368
    %5511 = vst [vmem:[%s5443 + $0x21] sm:$0xff] %v5369
    %5512 = vst [vmem:[%s5443 + $0x31] sm:$0xff] %v5370
    %5513 = vst [vmem:[%s5443 + $0x39] sm:$0xff] %v5371
    %5514 = vst [vmem:[%s5443 + $0x49] sm:$0xff] %v5372
    %5515 = vst [vmem:[%s5443 + $0x51] sm:$0xff] %v5373
    %5516 = vst [vmem:[%s5443 + $0x61] sm:$0xff] %v5374
    %5517 = vst [vmem:[%s5443 + $0x69] sm:$0xff] %v5375
    %5518 = vst [vmem:[%s5443 + $0x79] sm:$0xff] %v5376
    %5519 = vst [vmem:[%s5443 + $0x81] sm:$0xff] %v5377
    %5520 = vst [vmem:[%s5443 + $0x91] sm:$0xff] %v5378
    %5521 = vst [vmem:[%s5443 + $0x99] sm:$0xff] %v5379
    %5522 = vst [vmem:[%s5443 + $0xa9] sm:$0xff] %v5380
    %5523 = vst [vmem:[%s5443 + $0xb1] sm:$0xff] %v5381
    %5524 = vst [vmem:[%s5443 + $0xc1] sm:$0xff] %v5382
    %5525 = vst [vmem:[%s5443 + $0xc9] sm:$0xff] %v5383
    %5526 = vst [vmem:[%s5443 + $0xd9] sm:$0xff] %v5384
    %5527 = vst [vmem:[%s5443 + $0xe1] sm:$0xff] %v5385
    %5528 = vst [vmem:[%s5443 + $0xf1] sm:$0xff] %v5386
    %5529 = vst [vmem:[%s5443 + $0xf9] sm:$0xff] %v5387
    %5530 = vst [vmem:[%s5443 + $0x109] sm:$0xff] %v5388
    %5531 = vst [vmem:[%s5443 + $0x111] sm:$0xff] %v5389
    %5532 = vst [vmem:[%s5443 + $0x121] sm:$0xff] %v5390
    %5533 = vst [vmem:[%s5443 + $0x129] sm:$0xff] %v5391
    %5534 = vst [vmem:[%s5443 + $0x139] sm:$0xff] %v5392
    %5535 = vst [vmem:[%s5443 + $0x141] sm:$0xff] %v5393
    %5536 = vst [vmem:[%s5443 + $0x151] sm:$0xff] %v5394
    %5537 = vst [vmem:[%s5443 + $0x159] sm:$0xff] %v5395
    %5538 = vst [vmem:[%s5443 + $0x169] sm:$0xff] %v5396
    %5539 = vst [vmem:[%s5443 + $0x171] sm:$0xff] %v5397
    %5540 = vst [vmem:[%s5443 + $0x1b1] sm:$0xff] %v5398
    %5541 = vst [vmem:[%s5443 + $0x1b9] sm:$0xff] %v5399
    %5542 = vst [vmem:[%s5443 + $0x1c9] sm:$0xff] %v5400
    %5543 = vst [vmem:[%s5443 + $0x1d1] sm:$0xff] %v5401
    %5544 = vst [vmem:[%s5443 + $0x1e1] sm:$0xff] %v5402
    %5545 = vst [vmem:[%s5443 + $0x1e9] sm:$0xff] %v5403
    %5546 = vst [vmem:[%s5443 + $0x1f9] sm:$0xff] %v5404
    %5547 = vst [vmem:[%s5443 + $0x201] sm:$0xff] %v5405
    %5548 = vst [vmem:[%s5443 + $0x211] sm:$0xff] %v5406
    %5549 = vst [vmem:[%s5443 + $0x219] sm:$0xff] %v5407
    %5550 = vst [vmem:[%s5443 + $0x229] sm:$0xff] %v5408
    %5551 = vst [vmem:[%s5443 + $0x231] sm:$0xff] %v5409
    %5552 = vst [vmem:[%s5443 + $0x241] sm:$0xff] %v5410
    %5553 = vst [vmem:[%s5443 + $0x249] sm:$0xff] %v5411
    %5554 = vst [vmem:[%s5443 + $0x259] sm:$0xff] %v5412
    %5555 = vst [vmem:[%s5443 + $0x261] sm:$0xff] %v5413
    %5556 = vst [vmem:[%s5443 + $0x271] sm:$0xff] %v5414
    %5557 = vst [vmem:[%s5443 + $0x279] sm:$0xff] %v5415
    %5558 = vst [vmem:[%s5443 + $0x289] sm:$0xff] %v5416
    %5559 = vst [vmem:[%s5443 + $0x291] sm:$0xff] %v5417
    %5560 = vst [vmem:[%s5443 + $0x2a1] sm:$0xff] %v5418
    %5561 = vst [vmem:[%s5443 + $0x2a9] sm:$0xff] %v5419
    %5562 = vst [vmem:[%s5443 + $0x2b9] sm:$0xff] %v5420
    %5563 = vst [vmem:[%s5443 + $0x2c1] sm:$0xff] %v5421
    %5564 = vst [vmem:[%s5443 + $0x2d1] sm:$0xff] %v5422
    %5565 = vst [vmem:[%s5443 + $0x2d9] sm:$0xff] %v5423
    %5566 = vst [vmem:[%s5443 + $0x2e9] sm:$0xff] %v5424
    %5567 = vst [vmem:[%s5443 + $0x2f1] sm:$0xff] %v5425
    %5568 = vst [vmem:[%s5443 + $0x301] sm:$0xff] %v5426
    %5569 = vst [vmem:[%s5443 + $0x309] sm:$0xff] %v5427
    %5570 = vst [vmem:[%s5443 + $0x319] sm:$0xff] %v5428
    %5571 = vst [vmem:[%s5443 + $0x321] sm:$0xff] %v5429
    %v5572 = vld [vmem:[#allocation2] sm:$0xff]
    %v5573 = vld [vmem:[#allocation2 + $0x8] sm:$0xff]
    %v5574 = vld [vmem:[#allocation2 + $0x10] sm:$0x3]
    %v5575 = vld [vmem:[#allocation2 + $0x18] sm:$0xff]
    %v5576 = vld [vmem:[#allocation2 + $0x20] sm:$0xff]
    %v5577 = vld [vmem:[#allocation2 + $0x28] sm:$0x3]
    %v5578 = vld [vmem:[#allocation2 + $0x30] sm:$0xff]
    %v5579 = vld [vmem:[#allocation2 + $0x38] sm:$0xff]
    %v5580 = vld [vmem:[#allocation2 + $0x40] sm:$0x3]
    %v5581 = vld [vmem:[#allocation2 + $0x48] sm:$0xff]
    %v5582 = vld [vmem:[#allocation2 + $0x50] sm:$0xff]
    %v5583 = vld [vmem:[#allocation2 + $0x58] sm:$0x3]
    %v5584 = vld [vmem:[#allocation2 + $0x60] sm:$0xff]
    %v5585 = vld [vmem:[#allocation2 + $0x68] sm:$0xff]
    %v5586 = vld [vmem:[#allocation2 + $0x70] sm:$0x3]
    %v5587 = vld [vmem:[#allocation2 + $0x78] sm:$0xff]
    %v5588 = vld [vmem:[#allocation2 + $0x80] sm:$0xff]
    %v5589 = vld [vmem:[#allocation2 + $0x88] sm:$0x3]
    %v5590 = vld [vmem:[#allocation2 + $0x90] sm:$0xff]
    %v5591 = vld [vmem:[#allocation2 + $0x98] sm:$0xff]
    %v5592 = vld [vmem:[#allocation2 + $0xa0] sm:$0x3]
    %v5593 = vld [vmem:[#allocation2 + $0xa8] sm:$0xff]
    %v5594 = vld [vmem:[#allocation2 + $0xb0] sm:$0xff]
    %v5595 = vld [vmem:[#allocation2 + $0xb8] sm:$0x3]
    %v5596 = vld [vmem:[#allocation2 + $0xc0] sm:$0xff]
    %v5597 = vld [vmem:[#allocation2 + $0xc8] sm:$0xff]
    %v5598 = vld [vmem:[#allocation2 + $0xd0] sm:$0x3]
    %v5599 = vld [vmem:[#allocation2 + $0xd8] sm:$0xff]
    %v5600 = vld [vmem:[#allocation2 + $0xe0] sm:$0xff]
    %v5601 = vld [vmem:[#allocation2 + $0xe8] sm:$0x3]
    %v5602 = vld [vmem:[#allocation2 + $0xf0] sm:$0xff]
    %v5603 = vld [vmem:[#allocation2 + $0xf8] sm:$0xff]
    %v5604 = vld [vmem:[#allocation2 + $0x100] sm:$0x3]
    %v5605 = vld [vmem:[#allocation2 + $0x108] sm:$0xff]
    %v5606 = vld [vmem:[#allocation2 + $0x110] sm:$0xff]
    %v5607 = vld [vmem:[#allocation2 + $0x118] sm:$0x3]
    %v5608 = vld [vmem:[#allocation2 + $0x120] sm:$0xff]
    %v5609 = vld [vmem:[#allocation2 + $0x128] sm:$0xff]
    %v5610 = vld [vmem:[#allocation2 + $0x130] sm:$0x3]
    %v5611 = vld [vmem:[#allocation2 + $0x138] sm:$0xff]
    %v5612 = vld [vmem:[#allocation2 + $0x140] sm:$0xff]
    %v5613 = vld [vmem:[#allocation2 + $0x148] sm:$0x3]
    %v5614 = vld [vmem:[#allocation2 + $0x150] sm:$0xff]
    %v5615 = vld [vmem:[#allocation2 + $0x158] sm:$0xff]
    %v5616 = vld [vmem:[#allocation2 + $0x160] sm:$0x3]
    %v5617 = vld [vmem:[#allocation2 + $0x168] sm:$0xff]
    %v5618 = vld [vmem:[#allocation2 + $0x170] sm:$0xff]
    %v5619 = vld [vmem:[#allocation2 + $0x178] sm:$0x3]
    %v5620 = vld [vmem:[#allocation2 + $0x180] sm:$0xff]
    %v5621 = vld [vmem:[#allocation2 + $0x188] sm:$0xff]
    %v5622 = vld [vmem:[#allocation2 + $0x190] sm:$0x3]
    %v5623 = vld [vmem:[#allocation2 + $0x198] sm:$0xff]
    %v5624 = vld [vmem:[#allocation2 + $0x1a0] sm:$0xff]
    %v5625 = vld [vmem:[#allocation2 + $0x1a8] sm:$0x3]
    %v5626 = vld [vmem:[#allocation2 + $0x1b0] sm:$0xff]
    %v5627 = vld [vmem:[#allocation2 + $0x1b8] sm:$0xff]
    %v5628 = vld [vmem:[#allocation2 + $0x1c0] sm:$0x3]
    %v5629 = vld [vmem:[#allocation2 + $0x1c8] sm:$0xff]
    %v5630 = vld [vmem:[#allocation2 + $0x1d0] sm:$0xff]
    %v5631 = vld [vmem:[#allocation2 + $0x1d8] sm:$0x3]
    %v5632 = vld [vmem:[#allocation2 + $0x1e0] sm:$0xff]
    %v5633 = vld [vmem:[#allocation2 + $0x1e8] sm:$0xff]
    %v5634 = vld [vmem:[#allocation2 + $0x1f0] sm:$0x3]
    %v5635 = vld [vmem:[#allocation2 + $0x1f8] sm:$0xff]
    %v5636 = vld [vmem:[#allocation2 + $0x200] sm:$0xff]
    %v5637 = vld [vmem:[#allocation2 + $0x208] sm:$0x3]
    %v5638 = vld [vmem:[#allocation2 + $0x210] sm:$0xff]
    %v5639 = vld [vmem:[#allocation2 + $0x218] sm:$0xff]
    %v5640 = vld [vmem:[#allocation2 + $0x220] sm:$0x3]
    %v5641 = vld [vmem:[#allocation2 + $0x228] sm:$0xff]
    %v5642 = vld [vmem:[#allocation2 + $0x230] sm:$0xff]
    %v5643 = vld [vmem:[#allocation2 + $0x238] sm:$0x3]
    %v5644 = vld [vmem:[#allocation2 + $0x240] sm:$0xff]
    %v5645 = vld [vmem:[#allocation2 + $0x248] sm:$0xff]
    %v5646 = vld [vmem:[#allocation2 + $0x250] sm:$0x3]
    %v5647 = vld [vmem:[#allocation2 + $0x258] sm:$0xff]
    %v5648 = vld [vmem:[#allocation2 + $0x260] sm:$0xff]
    %v5649 = vld [vmem:[#allocation2 + $0x268] sm:$0x3]
    %v5650 = vld [vmem:[#allocation2 + $0x270] sm:$0xff]
    %v5651 = vld [vmem:[#allocation2 + $0x278] sm:$0xff]
    %v5652 = vld [vmem:[#allocation2 + $0x280] sm:$0x3]
    %v5653 = vld [vmem:[#allocation2 + $0x288] sm:$0xff]
    %v5654 = vld [vmem:[#allocation2 + $0x290] sm:$0xff]
    %v5655 = vld [vmem:[#allocation2 + $0x298] sm:$0x3]
    %v5656 = vld [vmem:[#allocation2 + $0x2a0] sm:$0xff]
    %v5657 = vld [vmem:[#allocation2 + $0x2a8] sm:$0xff]
    %v5658 = vld [vmem:[#allocation2 + $0x2b0] sm:$0x3]
    %v5659 = vld [vmem:[#allocation2 + $0x2b8] sm:$0xff]
    %v5660 = vld [vmem:[#allocation2 + $0x2c0] sm:$0xff]
    %v5661 = vld [vmem:[#allocation2 + $0x2c8] sm:$0x3]
    %v5662 = vld [vmem:[#allocation2 + $0x2d0] sm:$0xff]
    %v5663 = vld [vmem:[#allocation2 + $0x2d8] sm:$0xff]
    %v5664 = vld [vmem:[#allocation2 + $0x2e0] sm:$0x3]
    %v5665 = vld [vmem:[#allocation2 + $0x2e8] sm:$0xff]
    %v5666 = vld [vmem:[#allocation2 + $0x2f0] sm:$0xff]
    %v5667 = vld [vmem:[#allocation2 + $0x2f8] sm:$0x3]
    %v5668 = vld [vmem:[#allocation2 + $0x300] sm:$0xff]
    %v5669 = vld [vmem:[#allocation2 + $0x308] sm:$0xff]
    %v5670 = vld [vmem:[#allocation2 + $0x310] sm:$0x3]
    %v5671 = vld [vmem:[#allocation2 + $0x318] sm:$0xff]
    %v5672 = vld [vmem:[#allocation2 + $0x320] sm:$0xff]
    %v5673 = vld [vmem:[#allocation2 + $0x328] sm:$0x3]
    %v5674 = vld [vmem:[#allocation2 + $0x330] sm:$0xff]
    %v5675 = vld [vmem:[#allocation2 + $0x338] sm:$0xff]
    %v5676 = vld [vmem:[#allocation2 + $0x340] sm:$0x3]
    %v5677 = vld [vmem:[#allocation2 + $0x348] sm:$0xff]
    %v5678 = vld [vmem:[#allocation2 + $0x350] sm:$0xff]
    %v5679 = vld [vmem:[#allocation2 + $0x358] sm:$0x3]
    %v5680 = vld [vmem:[#allocation3] sm:$0xff]
    %v5681 = vld [vmem:[#allocation3 + $0x8] sm:$0xff]
    %v5682 = vld [vmem:[#allocation3 + $0x10] sm:$0xff]
    %v5683 = vld [vmem:[#allocation3 + $0x18] sm:$0xff]
    %v5684 = vld [vmem:[#allocation3 + $0x20] sm:$0xff]
    %v5685 = vld [vmem:[#allocation3 + $0x28] sm:$0xff]
    %v5686 = vld [vmem:[#allocation3 + $0x30] sm:$0xff]
    %v5687 = vld [vmem:[#allocation3 + $0x38] sm:$0xff]
    %v5688 = vld [vmem:[#allocation3 + $0x40] sm:$0xff]
    %v5689 = vld [vmem:[#allocation3 + $0x48] sm:$0xff]
    %v5690 = vld [vmem:[#allocation3 + $0x50] sm:$0xff]
    %v5691 = vld [vmem:[#allocation3 + $0x58] sm:$0xff]
    %v5692 = vld [vmem:[#allocation3 + $0x60] sm:$0xff]
    %v5693 = vld [vmem:[#allocation3 + $0x68] sm:$0xff]
    %v5694 = vld [vmem:[#allocation3 + $0x70] sm:$0xff]
    %v5695 = vld [vmem:[#allocation3 + $0x78] sm:$0xff]
    %v5792 = vrot.slane %v5572, 1
    %v5793 = vrot.slane %v5573, 1
    %v5794 = vsel %vm249, %v5792, %v5793
    %v5795 = vrot.slane %v5574, 1
    %v5796 = vsel %vm249, %v5793, %v5795
    %v5797 = vrot.slane %v5575, 1
    %v5798 = vrot.slane %v5576, 1
    %v5799 = vsel %vm249, %v5797, %v5798
    %v5800 = vrot.slane %v5577, 1
    %v5801 = vsel %vm249, %v5798, %v5800
    %v5802 = vrot.slane %v5578, 1
    %v5803 = vrot.slane %v5579, 1
    %v5804 = vsel %vm249, %v5802, %v5803
    %v5805 = vrot.slane %v5580, 1
    %v5806 = vsel %vm249, %v5803, %v5805
    %v5807 = vrot.slane %v5581, 1
    %v5808 = vrot.slane %v5582, 1
    %v5809 = vsel %vm249, %v5807, %v5808
    %v5810 = vrot.slane %v5583, 1
    %v5811 = vsel %vm249, %v5808, %v5810
    %v5812 = vrot.slane %v5584, 1
    %v5813 = vrot.slane %v5585, 1
    %v5814 = vsel %vm249, %v5812, %v5813
    %v5815 = vrot.slane %v5586, 1
    %v5816 = vsel %vm249, %v5813, %v5815
    %v5817 = vrot.slane %v5587, 1
    %v5818 = vrot.slane %v5588, 1
    %v5819 = vsel %vm249, %v5817, %v5818
    %v5820 = vrot.slane %v5589, 1
    %v5821 = vsel %vm249, %v5818, %v5820
    %v5822 = vrot.slane %v5590, 1
    %v5823 = vrot.slane %v5591, 1
    %v5824 = vsel %vm249, %v5822, %v5823
    %v5825 = vrot.slane %v5592, 1
    %v5826 = vsel %vm249, %v5823, %v5825
    %v5827 = vrot.slane %v5593, 1
    %v5828 = vrot.slane %v5594, 1
    %v5829 = vsel %vm249, %v5827, %v5828
    %v5830 = vrot.slane %v5595, 1
    %v5831 = vsel %vm249, %v5828, %v5830
    %v5832 = vrot.slane %v5596, 1
    %v5833 = vrot.slane %v5597, 1
    %v5834 = vsel %vm249, %v5832, %v5833
    %v5835 = vrot.slane %v5598, 1
    %v5836 = vsel %vm249, %v5833, %v5835
    %v5837 = vrot.slane %v5599, 1
    %v5838 = vrot.slane %v5600, 1
    %v5839 = vsel %vm249, %v5837, %v5838
    %v5840 = vrot.slane %v5601, 1
    %v5841 = vsel %vm249, %v5838, %v5840
    %v5842 = vrot.slane %v5602, 1
    %v5843 = vrot.slane %v5603, 1
    %v5844 = vsel %vm249, %v5842, %v5843
    %v5845 = vrot.slane %v5604, 1
    %v5846 = vsel %vm249, %v5843, %v5845
    %v5847 = vrot.slane %v5605, 1
    %v5848 = vrot.slane %v5606, 1
    %v5849 = vsel %vm249, %v5847, %v5848
    %v5850 = vrot.slane %v5607, 1
    %v5851 = vsel %vm249, %v5848, %v5850
    %v5852 = vrot.slane %v5608, 1
    %v5853 = vrot.slane %v5609, 1
    %v5854 = vsel %vm249, %v5852, %v5853
    %v5855 = vrot.slane %v5610, 1
    %v5856 = vsel %vm249, %v5853, %v5855
    %v5857 = vrot.slane %v5611, 1
    %v5858 = vrot.slane %v5612, 1
    %v5859 = vsel %vm249, %v5857, %v5858
    %v5860 = vrot.slane %v5613, 1
    %v5861 = vsel %vm249, %v5858, %v5860
    %v5862 = vrot.slane %v5614, 1
    %v5863 = vrot.slane %v5615, 1
    %v5864 = vsel %vm249, %v5862, %v5863
    %v5865 = vrot.slane %v5616, 1
    %v5866 = vsel %vm249, %v5863, %v5865
    %v5867 = vrot.slane %v5617, 1
    %v5868 = vrot.slane %v5618, 1
    %v5869 = vsel %vm249, %v5867, %v5868
    %v5870 = vrot.slane %v5619, 1
    %v5871 = vsel %vm249, %v5868, %v5870
    %v5872 = vrot.slane %v5626, 1
    %v5873 = vrot.slane %v5627, 1
    %v5874 = vsel %vm249, %v5872, %v5873
    %v5875 = vrot.slane %v5628, 1
    %v5876 = vsel %vm249, %v5873, %v5875
    %v5877 = vrot.slane %v5629, 1
    %v5878 = vrot.slane %v5630, 1
    %v5879 = vsel %vm249, %v5877, %v5878
    %v5880 = vrot.slane %v5631, 1
    %v5881 = vsel %vm249, %v5878, %v5880
    %v5882 = vrot.slane %v5632, 1
    %v5883 = vrot.slane %v5633, 1
    %v5884 = vsel %vm249, %v5882, %v5883
    %v5885 = vrot.slane %v5634, 1
    %v5886 = vsel %vm249, %v5883, %v5885
    %v5887 = vrot.slane %v5635, 1
    %v5888 = vrot.slane %v5636, 1
    %v5889 = vsel %vm249, %v5887, %v5888
    %v5890 = vrot.slane %v5637, 1
    %v5891 = vsel %vm249, %v5888, %v5890
    %v5892 = vrot.slane %v5638, 1
    %v5893 = vrot.slane %v5639, 1
    %v5894 = vsel %vm249, %v5892, %v5893
    %v5895 = vrot.slane %v5640, 1
    %v5896 = vsel %vm249, %v5893, %v5895
    %v5897 = vrot.slane %v5641, 1
    %v5898 = vrot.slane %v5642, 1
    %v5899 = vsel %vm249, %v5897, %v5898
    %v5900 = vrot.slane %v5643, 1
    %v5901 = vsel %vm249, %v5898, %v5900
    %v5902 = vrot.slane %v5644, 1
    %v5903 = vrot.slane %v5645, 1
    %v5904 = vsel %vm249, %v5902, %v5903
    %v5905 = vrot.slane %v5646, 1
    %v5906 = vsel %vm249, %v5903, %v5905
    %v5907 = vrot.slane %v5647, 1
    %v5908 = vrot.slane %v5648, 1
    %v5909 = vsel %vm249, %v5907, %v5908
    %v5910 = vrot.slane %v5649, 1
    %v5911 = vsel %vm249, %v5908, %v5910
    %v5912 = vrot.slane %v5650, 1
    %v5913 = vrot.slane %v5651, 1
    %v5914 = vsel %vm249, %v5912, %v5913
    %v5915 = vrot.slane %v5652, 1
    %v5916 = vsel %vm249, %v5913, %v5915
    %v5917 = vrot.slane %v5653, 1
    %v5918 = vrot.slane %v5654, 1
    %v5919 = vsel %vm249, %v5917, %v5918
    %v5920 = vrot.slane %v5655, 1
    %v5921 = vsel %vm249, %v5918, %v5920
    %v5922 = vrot.slane %v5656, 1
    %v5923 = vrot.slane %v5657, 1
    %v5924 = vsel %vm249, %v5922, %v5923
    %v5925 = vrot.slane %v5658, 1
    %v5926 = vsel %vm249, %v5923, %v5925
    %v5927 = vrot.slane %v5659, 1
    %v5928 = vrot.slane %v5660, 1
    %v5929 = vsel %vm249, %v5927, %v5928
    %v5930 = vrot.slane %v5661, 1
    %v5931 = vsel %vm249, %v5928, %v5930
    %v5932 = vrot.slane %v5662, 1
    %v5933 = vrot.slane %v5663, 1
    %v5934 = vsel %vm249, %v5932, %v5933
    %v5935 = vrot.slane %v5664, 1
    %v5936 = vsel %vm249, %v5933, %v5935
    %v5937 = vrot.slane %v5665, 1
    %v5938 = vrot.slane %v5666, 1
    %v5939 = vsel %vm249, %v5937, %v5938
    %v5940 = vrot.slane %v5667, 1
    %v5941 = vsel %vm249, %v5938, %v5940
    %v5942 = vrot.slane %v5668, 1
    %v5943 = vrot.slane %v5669, 1
    %v5944 = vsel %vm249, %v5942, %v5943
    %v5945 = vrot.slane %v5670, 1
    %v5946 = vsel %vm249, %v5943, %v5945
    %v5947 = vrot.slane %v5671, 1
    %v5948 = vrot.slane %v5672, 1
    %v5949 = vsel %vm249, %v5947, %v5948
    %v5950 = vrot.slane %v5673, 1
    %v5951 = vsel %vm249, %v5948, %v5950
    %s6016 = scalar_lea.vmem [#allocation3], 128
    %v6017 = vld [vmem:[%s6016] sm:$0xff]
    %v6018 = vld [vmem:[%s6016 + $0x8] sm:$0xff]
    %v6019 = vld [vmem:[%s6016 + $0x10] sm:$0xff]
    %v6020 = vld [vmem:[%s6016 + $0x18] sm:$0xff]
    %v6021 = vld [vmem:[%s6016 + $0x20] sm:$0xff]
    %v6022 = vld [vmem:[%s6016 + $0x28] sm:$0xff]
    %v6023 = vld [vmem:[%s6016 + $0x30] sm:$0xff]
    %v6024 = vld [vmem:[%s6016 + $0x38] sm:$0xff]
    %v6025 = vld [vmem:[%s6016 + $0x40] sm:$0xff]
    %v6026 = vld [vmem:[%s6016 + $0x48] sm:$0xff]
    %v6027 = vld [vmem:[%s6016 + $0x50] sm:$0xff]
    %v6028 = vld [vmem:[%s6016 + $0x58] sm:$0xff]
    %v6029 = vld [vmem:[%s6016 + $0x60] sm:$0xff]
    %v6030 = vld [vmem:[%s6016 + $0x68] sm:$0xff]
    %v6031 = vld [vmem:[%s6016 + $0x70] sm:$0xff]
    %v6032 = vld [vmem:[%s6016 + $0x78] sm:$0xff]
    %6033 = vmatprep.subr.mxu0 0.0
    %6034 = vmatpush1.msra.mxu0 %v6032
    %6035 = vmatprep.subr.mxu0 0.0
    %6036 = vmatpush1.msra.mxu0 %v6031
    %6037 = vmatprep.subr.mxu0 0.0
    %6038 = vmatpush1.msra.mxu0 %v6030
    %6039 = vmatprep.subr.mxu0 0.0
    %6040 = vmatpush1.msra.mxu0 %v6029
    %6041 = vmatprep.subr.mxu0 0.0
    %6042 = vmatpush1.msra.mxu0 %v6028
    %6043 = vmatprep.subr.mxu0 0.0
    %6044 = vmatpush1.msra.mxu0 %v6027
    %6045 = vmatprep.subr.mxu0 0.0
    %6046 = vmatpush1.msra.mxu0 %v6026
    %6047 = vmatprep.subr.mxu0 0.0
    %6048 = vmatpush1.msra.mxu0 %v6025
    %6049 = vmatprep.subr.mxu0 0.0
    %6050 = vmatpush1.msra.mxu0 %v6024
    %6051 = vmatprep.subr.mxu0 0.0
    %6052 = vmatpush1.msra.mxu0 %v6023
    %6053 = vmatprep.subr.mxu0 0.0
    %6054 = vmatpush1.msra.mxu0 %v6022
    %6055 = vmatprep.subr.mxu0 0.0
    %6056 = vmatpush1.msra.mxu0 %v6021
    %6057 = vmatprep.subr.mxu0 0.0
    %6058 = vmatpush1.msra.mxu0 %v6020
    %6059 = vmatprep.subr.mxu0 0.0
    %6060 = vmatpush1.msra.mxu0 %v6019
    %6061 = vmatprep.subr.mxu0 0.0
    %6062 = vmatpush1.msra.mxu0 %v6018
    %6063 = vmatprep.subr.mxu0 0.0
    %6064 = vmatpush1.msra.mxu0 %v6017
    %6065 = vmatprep.subr.mxu0 0.0
    %6066 = vmatpush2.msra.mxu0 0.0
    %6067 = vmatprep.subr.mxu0 0.0
    %6068 = vmatpush2.msra.mxu0 0.0
    %6069 = vmatprep.subr.mxu0 0.0
    %6070 = vmatpush2.msra.mxu0 0.0
    %6071 = vmatprep.subr.mxu0 0.0
    %6072 = vmatpush2.msra.mxu0 0.0
    %6073 = vmatprep.subr.mxu0 0.0
    %6074 = vmatpush2.msra.mxu0 0.0
    %6075 = vmatprep.subr.mxu0 0.0
    %6076 = vmatpush2.msra.mxu0 0.0
    %6077 = vmatprep.subr.mxu0 0.0
    %6078 = vmatpush2.msra.mxu0 0.0
    %6079 = vmatprep.subr.mxu0 0.0
    %6080 = vmatpush2.msra.mxu0 0.0
    %6081 = vmatprep.subr.mxu0 0.0
    %6082 = vmatpush2.msra.mxu0 0.0
    %6083 = vmatprep.subr.mxu0 0.0
    %6084 = vmatpush2.msra.mxu0 0.0
    %6085 = vmatprep.subr.mxu0 0.0
    %6086 = vmatpush2.msra.mxu0 0.0
    %6087 = vmatprep.subr.mxu0 0.0
    %6088 = vmatpush2.msra.mxu0 0.0
    %6089 = vmatprep.subr.mxu0 0.0
    %6090 = vmatpush2.msra.mxu0 0.0
    %6091 = vmatprep.subr.mxu0 0.0
    %6092 = vmatpush2.msra.mxu0 0.0
    %6093 = vmatprep.subr.mxu0 0.0
    %6094 = vmatpush2.msra.mxu0 0.0
    %6095 = vmatprep.subr.mxu0 0.0
    %6096 = vmatpush2.msra.mxu0 0.0
    %6097 = vmatprep.mubr.f32.mxu0 0.0
    %6098 = vmatmul.mubr.f32.gmra.mxu0 %v5794
    %v6099 = vpop.f32.mrf.mxu0
    %v6100 = vadd.f32 0.0, %v6099
    %v6101 = vpop.f32.mrf.mxu0
    %6102 = vmatprep.mubr.f32.mxu0 0.0
    %6103 = vmatmul.mubr.f32.gmra.mxu0 %v5796
    %v6104 = vpop.f32.mrf.mxu0
    %v6105 = vadd.f32 0.0, %v6104
    %v6106 = vpop.f32.mrf.mxu0
    %6107 = vmatprep.mubr.f32.mxu0 0.0
    %6108 = vmatmul.mubr.f32.gmra.mxu0 %v5799
    %v6109 = vpop.f32.mrf.mxu0
    %v6110 = vadd.f32 0.0, %v6109
    %v6111 = vpop.f32.mrf.mxu0
    %6112 = vmatprep.mubr.f32.mxu0 0.0
    %6113 = vmatmul.mubr.f32.gmra.mxu0 %v5801
    %v6114 = vpop.f32.mrf.mxu0
    %v6115 = vadd.f32 0.0, %v6114
    %v6116 = vpop.f32.mrf.mxu0
    %6117 = vmatprep.mubr.f32.mxu0 0.0
    %6118 = vmatmul.mubr.f32.gmra.mxu0 %v5804
    %v6119 = vpop.f32.mrf.mxu0
    %v6120 = vadd.f32 0.0, %v6119
    %v6121 = vpop.f32.mrf.mxu0
    %6122 = vmatprep.mubr.f32.mxu0 0.0
    %6123 = vmatmul.mubr.f32.gmra.mxu0 %v5806
    %v6124 = vpop.f32.mrf.mxu0
    %v6125 = vadd.f32 0.0, %v6124
    %v6126 = vpop.f32.mrf.mxu0
    %6127 = vmatprep.mubr.f32.mxu0 0.0
    %6128 = vmatmul.mubr.f32.gmra.mxu0 %v5809
    %v6129 = vpop.f32.mrf.mxu0
    %v6130 = vadd.f32 0.0, %v6129
    %v6131 = vpop.f32.mrf.mxu0
    %6132 = vmatprep.mubr.f32.mxu0 0.0
    %6133 = vmatmul.mubr.f32.gmra.mxu0 %v5811
    %v6134 = vpop.f32.mrf.mxu0
    %v6135 = vadd.f32 0.0, %v6134
    %v6136 = vpop.f32.mrf.mxu0
    %6137 = vmatprep.mubr.f32.mxu0 0.0
    %6138 = vmatmul.mubr.f32.gmra.mxu0 %v5814
    %v6139 = vpop.f32.mrf.mxu0
    %v6140 = vadd.f32 0.0, %v6139
    %v6141 = vpop.f32.mrf.mxu0
    %6142 = vmatprep.mubr.f32.mxu0 0.0
    %6143 = vmatmul.mubr.f32.gmra.mxu0 %v5816
    %v6144 = vpop.f32.mrf.mxu0
    %v6145 = vadd.f32 0.0, %v6144
    %v6146 = vpop.f32.mrf.mxu0
    %6147 = vmatprep.mubr.f32.mxu0 0.0
    %6148 = vmatmul.mubr.f32.gmra.mxu0 %v5819
    %v6149 = vpop.f32.mrf.mxu0
    %v6150 = vadd.f32 0.0, %v6149
    %v6151 = vpop.f32.mrf.mxu0
    %6152 = vmatprep.mubr.f32.mxu0 0.0
    %6153 = vmatmul.mubr.f32.gmra.mxu0 %v5821
    %v6154 = vpop.f32.mrf.mxu0
    %v6155 = vadd.f32 0.0, %v6154
    %v6156 = vpop.f32.mrf.mxu0
    %6157 = vmatprep.mubr.f32.mxu0 0.0
    %6158 = vmatmul.mubr.f32.gmra.mxu0 %v5824
    %v6159 = vpop.f32.mrf.mxu0
    %v6160 = vadd.f32 0.0, %v6159
    %v6161 = vpop.f32.mrf.mxu0
    %6162 = vmatprep.mubr.f32.mxu0 0.0
    %6163 = vmatmul.mubr.f32.gmra.mxu0 %v5826
    %v6164 = vpop.f32.mrf.mxu0
    %v6165 = vadd.f32 0.0, %v6164
    %v6166 = vpop.f32.mrf.mxu0
    %6167 = vmatprep.mubr.f32.mxu0 0.0
    %6168 = vmatmul.mubr.f32.gmra.mxu0 %v5829
    %v6169 = vpop.f32.mrf.mxu0
    %v6170 = vadd.f32 0.0, %v6169
    %v6171 = vpop.f32.mrf.mxu0
    %6172 = vmatprep.mubr.f32.mxu0 0.0
    %6173 = vmatmul.mubr.f32.gmra.mxu0 %v5831
    %v6174 = vpop.f32.mrf.mxu0
    %v6175 = vadd.f32 0.0, %v6174
    %v6176 = vpop.f32.mrf.mxu0
    %6177 = vmatprep.mubr.f32.mxu0 0.0
    %6178 = vmatmul.mubr.f32.gmra.mxu0 %v5834
    %v6179 = vpop.f32.mrf.mxu0
    %v6180 = vadd.f32 0.0, %v6179
    %v6181 = vpop.f32.mrf.mxu0
    %6182 = vmatprep.mubr.f32.mxu0 0.0
    %6183 = vmatmul.mubr.f32.gmra.mxu0 %v5836
    %v6184 = vpop.f32.mrf.mxu0
    %v6185 = vadd.f32 0.0, %v6184
    %v6186 = vpop.f32.mrf.mxu0
    %6187 = vmatprep.mubr.f32.mxu0 0.0
    %6188 = vmatmul.mubr.f32.gmra.mxu0 %v5839
    %v6189 = vpop.f32.mrf.mxu0
    %v6190 = vadd.f32 0.0, %v6189
    %v6191 = vpop.f32.mrf.mxu0
    %6192 = vmatprep.mubr.f32.mxu0 0.0
    %6193 = vmatmul.mubr.f32.gmra.mxu0 %v5841
    %v6194 = vpop.f32.mrf.mxu0
    %v6195 = vadd.f32 0.0, %v6194
    %v6196 = vpop.f32.mrf.mxu0
    %6197 = vmatprep.mubr.f32.mxu0 0.0
    %6198 = vmatmul.mubr.f32.gmra.mxu0 %v5844
    %v6199 = vpop.f32.mrf.mxu0
    %v6200 = vadd.f32 0.0, %v6199
    %v6201 = vpop.f32.mrf.mxu0
    %6202 = vmatprep.mubr.f32.mxu0 0.0
    %6203 = vmatmul.mubr.f32.gmra.mxu0 %v5846
    %v6204 = vpop.f32.mrf.mxu0
    %v6205 = vadd.f32 0.0, %v6204
    %v6206 = vpop.f32.mrf.mxu0
    %6207 = vmatprep.mubr.f32.mxu0 0.0
    %6208 = vmatmul.mubr.f32.gmra.mxu0 %v5849
    %v6209 = vpop.f32.mrf.mxu0
    %v6210 = vadd.f32 0.0, %v6209
    %v6211 = vpop.f32.mrf.mxu0
    %6212 = vmatprep.mubr.f32.mxu0 0.0
    %6213 = vmatmul.mubr.f32.gmra.mxu0 %v5851
    %v6214 = vpop.f32.mrf.mxu0
    %v6215 = vadd.f32 0.0, %v6214
    %v6216 = vpop.f32.mrf.mxu0
    %6217 = vmatprep.mubr.f32.mxu0 0.0
    %6218 = vmatmul.mubr.f32.gmra.mxu0 %v5854
    %v6219 = vpop.f32.mrf.mxu0
    %v6220 = vadd.f32 0.0, %v6219
    %v6221 = vpop.f32.mrf.mxu0
    %6222 = vmatprep.mubr.f32.mxu0 0.0
    %6223 = vmatmul.mubr.f32.gmra.mxu0 %v5856
    %v6224 = vpop.f32.mrf.mxu0
    %v6225 = vadd.f32 0.0, %v6224
    %v6226 = vpop.f32.mrf.mxu0
    %6227 = vmatprep.mubr.f32.mxu0 0.0
    %6228 = vmatmul.mubr.f32.gmra.mxu0 %v5859
    %v6229 = vpop.f32.mrf.mxu0
    %v6230 = vadd.f32 0.0, %v6229
    %v6231 = vpop.f32.mrf.mxu0
    %6232 = vmatprep.mubr.f32.mxu0 0.0
    %6233 = vmatmul.mubr.f32.gmra.mxu0 %v5861
    %v6234 = vpop.f32.mrf.mxu0
    %v6235 = vadd.f32 0.0, %v6234
    %v6236 = vpop.f32.mrf.mxu0
    %6237 = vmatprep.mubr.f32.mxu0 0.0
    %6238 = vmatmul.mubr.f32.gmra.mxu0 %v5864
    %v6239 = vpop.f32.mrf.mxu0
    %v6240 = vadd.f32 0.0, %v6239
    %v6241 = vpop.f32.mrf.mxu0
    %6242 = vmatprep.mubr.f32.mxu0 0.0
    %6243 = vmatmul.mubr.f32.gmra.mxu0 %v5866
    %v6244 = vpop.f32.mrf.mxu0
    %v6245 = vadd.f32 0.0, %v6244
    %v6246 = vpop.f32.mrf.mxu0
    %6247 = vmatprep.mubr.f32.mxu0 0.0
    %6248 = vmatmul.mubr.f32.gmra.mxu0 %v5869
    %v6249 = vpop.f32.mrf.mxu0
    %v6250 = vadd.f32 0.0, %v6249
    %v6251 = vpop.f32.mrf.mxu0
    %6252 = vmatprep.mubr.f32.mxu0 0.0
    %6253 = vmatmul.mubr.f32.gmra.mxu0 %v5871
    %v6254 = vpop.f32.mrf.mxu0
    %v6255 = vadd.f32 0.0, %v6254
    %v6256 = vpop.f32.mrf.mxu0
    %6257 = vmatprep.mubr.f32.mxu0 0.0
    %6258 = vmatmul.mubr.f32.gmra.mxu0 %v5874
    %v6259 = vpop.f32.mrf.mxu0
    %v6260 = vadd.f32 0.0, %v6259
    %v6261 = vpop.f32.mrf.mxu0
    %6262 = vmatprep.mubr.f32.mxu0 0.0
    %6263 = vmatmul.mubr.f32.gmra.mxu0 %v5876
    %v6264 = vpop.f32.mrf.mxu0
    %v6265 = vadd.f32 0.0, %v6264
    %v6266 = vpop.f32.mrf.mxu0
    %6267 = vmatprep.mubr.f32.mxu0 0.0
    %6268 = vmatmul.mubr.f32.gmra.mxu0 %v5879
    %v6269 = vpop.f32.mrf.mxu0
    %v6270 = vadd.f32 0.0, %v6269
    %v6271 = vpop.f32.mrf.mxu0
    %6272 = vmatprep.mubr.f32.mxu0 0.0
    %6273 = vmatmul.mubr.f32.gmra.mxu0 %v5881
    %v6274 = vpop.f32.mrf.mxu0
    %v6275 = vadd.f32 0.0, %v6274
    %v6276 = vpop.f32.mrf.mxu0
    %6277 = vmatprep.mubr.f32.mxu0 0.0
    %6278 = vmatmul.mubr.f32.gmra.mxu0 %v5884
    %v6279 = vpop.f32.mrf.mxu0
    %v6280 = vadd.f32 0.0, %v6279
    %v6281 = vpop.f32.mrf.mxu0
    %6282 = vmatprep.mubr.f32.mxu0 0.0
    %6283 = vmatmul.mubr.f32.gmra.mxu0 %v5886
    %v6284 = vpop.f32.mrf.mxu0
    %v6285 = vadd.f32 0.0, %v6284
    %v6286 = vpop.f32.mrf.mxu0
    %6287 = vmatprep.mubr.f32.mxu0 0.0
    %6288 = vmatmul.mubr.f32.gmra.mxu0 %v5889
    %v6289 = vpop.f32.mrf.mxu0
    %v6290 = vadd.f32 0.0, %v6289
    %v6291 = vpop.f32.mrf.mxu0
    %6292 = vmatprep.mubr.f32.mxu0 0.0
    %6293 = vmatmul.mubr.f32.gmra.mxu0 %v5891
    %v6294 = vpop.f32.mrf.mxu0
    %v6295 = vadd.f32 0.0, %v6294
    %v6296 = vpop.f32.mrf.mxu0
    %6297 = vmatprep.mubr.f32.mxu0 0.0
    %6298 = vmatmul.mubr.f32.gmra.mxu0 %v5894
    %v6299 = vpop.f32.mrf.mxu0
    %v6300 = vadd.f32 0.0, %v6299
    %v6301 = vpop.f32.mrf.mxu0
    %6302 = vmatprep.mubr.f32.mxu0 0.0
    %6303 = vmatmul.mubr.f32.gmra.mxu0 %v5896
    %v6304 = vpop.f32.mrf.mxu0
    %v6305 = vadd.f32 0.0, %v6304
    %v6306 = vpop.f32.mrf.mxu0
    %6307 = vmatprep.mubr.f32.mxu0 0.0
    %6308 = vmatmul.mubr.f32.gmra.mxu0 %v5899
    %v6309 = vpop.f32.mrf.mxu0
    %v6310 = vadd.f32 0.0, %v6309
    %v6311 = vpop.f32.mrf.mxu0
    %6312 = vmatprep.mubr.f32.mxu0 0.0
    %6313 = vmatmul.mubr.f32.gmra.mxu0 %v5901
    %v6314 = vpop.f32.mrf.mxu0
    %v6315 = vadd.f32 0.0, %v6314
    %v6316 = vpop.f32.mrf.mxu0
    %6317 = vmatprep.mubr.f32.mxu0 0.0
    %6318 = vmatmul.mubr.f32.gmra.mxu0 %v5904
    %v6319 = vpop.f32.mrf.mxu0
    %v6320 = vadd.f32 0.0, %v6319
    %v6321 = vpop.f32.mrf.mxu0
    %6322 = vmatprep.mubr.f32.mxu0 0.0
    %6323 = vmatmul.mubr.f32.gmra.mxu0 %v5906
    %v6324 = vpop.f32.mrf.mxu0
    %v6325 = vadd.f32 0.0, %v6324
    %v6326 = vpop.f32.mrf.mxu0
    %6327 = vmatprep.mubr.f32.mxu0 0.0
    %6328 = vmatmul.mubr.f32.gmra.mxu0 %v5909
    %v6329 = vpop.f32.mrf.mxu0
    %v6330 = vadd.f32 0.0, %v6329
    %v6331 = vpop.f32.mrf.mxu0
    %6332 = vmatprep.mubr.f32.mxu0 0.0
    %6333 = vmatmul.mubr.f32.gmra.mxu0 %v5911
    %v6334 = vpop.f32.mrf.mxu0
    %v6335 = vadd.f32 0.0, %v6334
    %v6336 = vpop.f32.mrf.mxu0
    %6337 = vmatprep.mubr.f32.mxu0 0.0
    %6338 = vmatmul.mubr.f32.gmra.mxu0 %v5914
    %v6339 = vpop.f32.mrf.mxu0
    %v6340 = vadd.f32 0.0, %v6339
    %v6341 = vpop.f32.mrf.mxu0
    %6342 = vmatprep.mubr.f32.mxu0 0.0
    %6343 = vmatmul.mubr.f32.gmra.mxu0 %v5916
    %v6344 = vpop.f32.mrf.mxu0
    %v6345 = vadd.f32 0.0, %v6344
    %v6346 = vpop.f32.mrf.mxu0
    %6347 = vmatprep.mubr.f32.mxu0 0.0
    %6348 = vmatmul.mubr.f32.gmra.mxu0 %v5919
    %v6349 = vpop.f32.mrf.mxu0
    %v6350 = vadd.f32 0.0, %v6349
    %v6351 = vpop.f32.mrf.mxu0
    %6352 = vmatprep.mubr.f32.mxu0 0.0
    %6353 = vmatmul.mubr.f32.gmra.mxu0 %v5921
    %v6354 = vpop.f32.mrf.mxu0
    %v6355 = vadd.f32 0.0, %v6354
    %v6356 = vpop.f32.mrf.mxu0
    %6357 = vmatprep.mubr.f32.mxu0 0.0
    %6358 = vmatmul.mubr.f32.gmra.mxu0 %v5924
    %v6359 = vpop.f32.mrf.mxu0
    %v6360 = vadd.f32 0.0, %v6359
    %v6361 = vpop.f32.mrf.mxu0
    %6362 = vmatprep.mubr.f32.mxu0 0.0
    %6363 = vmatmul.mubr.f32.gmra.mxu0 %v5926
    %v6364 = vpop.f32.mrf.mxu0
    %v6365 = vadd.f32 0.0, %v6364
    %v6366 = vpop.f32.mrf.mxu0
    %6367 = vmatprep.mubr.f32.mxu0 0.0
    %6368 = vmatmul.mubr.f32.gmra.mxu0 %v5929
    %v6369 = vpop.f32.mrf.mxu0
    %v6370 = vadd.f32 0.0, %v6369
    %v6371 = vpop.f32.mrf.mxu0
    %6372 = vmatprep.mubr.f32.mxu0 0.0
    %6373 = vmatmul.mubr.f32.gmra.mxu0 %v5931
    %v6374 = vpop.f32.mrf.mxu0
    %v6375 = vadd.f32 0.0, %v6374
    %v6376 = vpop.f32.mrf.mxu0
    %6377 = vmatprep.mubr.f32.mxu0 0.0
    %6378 = vmatmul.mubr.f32.gmra.mxu0 %v5934
    %v6379 = vpop.f32.mrf.mxu0
    %v6380 = vadd.f32 0.0, %v6379
    %v6381 = vpop.f32.mrf.mxu0
    %6382 = vmatprep.mubr.f32.mxu0 0.0
    %6383 = vmatmul.mubr.f32.gmra.mxu0 %v5936
    %v6384 = vpop.f32.mrf.mxu0
    %v6385 = vadd.f32 0.0, %v6384
    %v6386 = vpop.f32.mrf.mxu0
    %6387 = vmatprep.mubr.f32.mxu0 0.0
    %6388 = vmatmul.mubr.f32.gmra.mxu0 %v5939
    %v6389 = vpop.f32.mrf.mxu0
    %v6390 = vadd.f32 0.0, %v6389
    %v6391 = vpop.f32.mrf.mxu0
    %6392 = vmatprep.mubr.f32.mxu0 0.0
    %6393 = vmatmul.mubr.f32.gmra.mxu0 %v5941
    %v6394 = vpop.f32.mrf.mxu0
    %v6395 = vadd.f32 0.0, %v6394
    %v6396 = vpop.f32.mrf.mxu0
    %6397 = vmatprep.mubr.f32.mxu0 0.0
    %6398 = vmatmul.mubr.f32.gmra.mxu0 %v5944
    %v6399 = vpop.f32.mrf.mxu0
    %v6400 = vadd.f32 0.0, %v6399
    %v6401 = vpop.f32.mrf.mxu0
    %6402 = vmatprep.mubr.f32.mxu0 0.0
    %6403 = vmatmul.mubr.f32.gmra.mxu0 %v5946
    %v6404 = vpop.f32.mrf.mxu0
    %v6405 = vadd.f32 0.0, %v6404
    %v6406 = vpop.f32.mrf.mxu0
    %6407 = vmatprep.mubr.f32.mxu0 0.0
    %6408 = vmatmul.mubr.f32.gmra.mxu0 %v5949
    %v6409 = vpop.f32.mrf.mxu0
    %v6410 = vadd.f32 0.0, %v6409
    %v6411 = vpop.f32.mrf.mxu0
    %6412 = vmatprep.mubr.f32.mxu0 0.0
    %6413 = vmatmul.mubr.f32.gmra.mxu0 %v5951
    %v6414 = vpop.f32.mrf.mxu0
    %v6415 = vadd.f32 0.0, %v6414
    %v6416 = vpop.f32.mrf.mxu0
    %6417 = vdwg.mxu0
    %6418 = vmatprep.subr.mxu0 0.0
    %6419 = vmatpush1.msra.mxu0 %v5695
    %6420 = vmatprep.subr.mxu0 0.0
    %6421 = vmatpush1.msra.mxu0 %v5694
    %6422 = vmatprep.subr.mxu0 0.0
    %6423 = vmatpush1.msra.mxu0 %v5693
    %6424 = vmatprep.subr.mxu0 0.0
    %6425 = vmatpush1.msra.mxu0 %v5692
    %6426 = vmatprep.subr.mxu0 0.0
    %6427 = vmatpush1.msra.mxu0 %v5691
    %6428 = vmatprep.subr.mxu0 0.0
    %6429 = vmatpush1.msra.mxu0 %v5690
    %6430 = vmatprep.subr.mxu0 0.0
    %6431 = vmatpush1.msra.mxu0 %v5689
    %6432 = vmatprep.subr.mxu0 0.0
    %6433 = vmatpush1.msra.mxu0 %v5688
    %6434 = vmatprep.subr.mxu0 0.0
    %6435 = vmatpush1.msra.mxu0 %v5687
    %6436 = vmatprep.subr.mxu0 0.0
    %6437 = vmatpush1.msra.mxu0 %v5686
    %6438 = vmatprep.subr.mxu0 0.0
    %6439 = vmatpush1.msra.mxu0 %v5685
    %6440 = vmatprep.subr.mxu0 0.0
    %6441 = vmatpush1.msra.mxu0 %v5684
    %6442 = vmatprep.subr.mxu0 0.0
    %6443 = vmatpush1.msra.mxu0 %v5683
    %6444 = vmatprep.subr.mxu0 0.0
    %6445 = vmatpush1.msra.mxu0 %v5682
    %6446 = vmatprep.subr.mxu0 0.0
    %6447 = vmatpush1.msra.mxu0 %v5681
    %6448 = vmatprep.subr.mxu0 0.0
    %6449 = vmatpush1.msra.mxu0 %v5680
    %6450 = vmatprep.subr.mxu0 0.0
    %6451 = vmatpush2.msra.mxu0 0.0
    %6452 = vmatprep.subr.mxu0 0.0
    %6453 = vmatpush2.msra.mxu0 0.0
    %6454 = vmatprep.subr.mxu0 0.0
    %6455 = vmatpush2.msra.mxu0 0.0
    %6456 = vmatprep.subr.mxu0 0.0
    %6457 = vmatpush2.msra.mxu0 0.0
    %6458 = vmatprep.subr.mxu0 0.0
    %6459 = vmatpush2.msra.mxu0 0.0
    %6460 = vmatprep.subr.mxu0 0.0
    %6461 = vmatpush2.msra.mxu0 0.0
    %6462 = vmatprep.subr.mxu0 0.0
    %6463 = vmatpush2.msra.mxu0 0.0
    %6464 = vmatprep.subr.mxu0 0.0
    %6465 = vmatpush2.msra.mxu0 0.0
    %6466 = vmatprep.subr.mxu0 0.0
    %6467 = vmatpush2.msra.mxu0 0.0
    %6468 = vmatprep.subr.mxu0 0.0
    %6469 = vmatpush2.msra.mxu0 0.0
    %6470 = vmatprep.subr.mxu0 0.0
    %6471 = vmatpush2.msra.mxu0 0.0
    %6472 = vmatprep.subr.mxu0 0.0
    %6473 = vmatpush2.msra.mxu0 0.0
    %6474 = vmatprep.subr.mxu0 0.0
    %6475 = vmatpush2.msra.mxu0 0.0
    %6476 = vmatprep.subr.mxu0 0.0
    %6477 = vmatpush2.msra.mxu0 0.0
    %6478 = vmatprep.subr.mxu0 0.0
    %6479 = vmatpush2.msra.mxu0 0.0
    %6480 = vmatprep.subr.mxu0 0.0
    %6481 = vmatpush2.msra.mxu0 0.0
    %6482 = vmatprep.mubr.f32.mxu0 0.0
    %6483 = vmatmul.mubr.f32.gmra.mxu0 %v5572
    %v6484 = vpop.f32.mrf.mxu0
    %v6485 = vadd.f32 %v6100, %v6484
    %v6486 = vpop.f32.mrf.mxu0
    %6487 = vmatprep.mubr.f32.mxu0 0.0
    %6488 = vmatmul.mubr.f32.gmra.mxu0 %v5573
    %v6489 = vpop.f32.mrf.mxu0
    %v6490 = vadd.f32 %v6105, %v6489
    %v6491 = vpop.f32.mrf.mxu0
    %6492 = vmatprep.mubr.f32.mxu0 0.0
    %6493 = vmatmul.mubr.f32.gmra.mxu0 %v5575
    %v6494 = vpop.f32.mrf.mxu0
    %v6495 = vadd.f32 %v6110, %v6494
    %v6496 = vpop.f32.mrf.mxu0
    %6497 = vmatprep.mubr.f32.mxu0 0.0
    %6498 = vmatmul.mubr.f32.gmra.mxu0 %v5576
    %v6499 = vpop.f32.mrf.mxu0
    %v6500 = vadd.f32 %v6115, %v6499
    %v6501 = vpop.f32.mrf.mxu0
    %6502 = vmatprep.mubr.f32.mxu0 0.0
    %6503 = vmatmul.mubr.f32.gmra.mxu0 %v5578
    %v6504 = vpop.f32.mrf.mxu0
    %v6505 = vadd.f32 %v6120, %v6504
    %v6506 = vpop.f32.mrf.mxu0
    %6507 = vmatprep.mubr.f32.mxu0 0.0
    %6508 = vmatmul.mubr.f32.gmra.mxu0 %v5579
    %v6509 = vpop.f32.mrf.mxu0
    %v6510 = vadd.f32 %v6125, %v6509
    %v6511 = vpop.f32.mrf.mxu0
    %6512 = vmatprep.mubr.f32.mxu0 0.0
    %6513 = vmatmul.mubr.f32.gmra.mxu0 %v5581
    %v6514 = vpop.f32.mrf.mxu0
    %v6515 = vadd.f32 %v6130, %v6514
    %v6516 = vpop.f32.mrf.mxu0
    %6517 = vmatprep.mubr.f32.mxu0 0.0
    %6518 = vmatmul.mubr.f32.gmra.mxu0 %v5582
    %v6519 = vpop.f32.mrf.mxu0
    %v6520 = vadd.f32 %v6135, %v6519
    %v6521 = vpop.f32.mrf.mxu0
    %6522 = vmatprep.mubr.f32.mxu0 0.0
    %6523 = vmatmul.mubr.f32.gmra.mxu0 %v5584
    %v6524 = vpop.f32.mrf.mxu0
    %v6525 = vadd.f32 %v6140, %v6524
    %v6526 = vpop.f32.mrf.mxu0
    %6527 = vmatprep.mubr.f32.mxu0 0.0
    %6528 = vmatmul.mubr.f32.gmra.mxu0 %v5585
    %v6529 = vpop.f32.mrf.mxu0
    %v6530 = vadd.f32 %v6145, %v6529
    %v6531 = vpop.f32.mrf.mxu0
    %6532 = vmatprep.mubr.f32.mxu0 0.0
    %6533 = vmatmul.mubr.f32.gmra.mxu0 %v5587
    %v6534 = vpop.f32.mrf.mxu0
    %v6535 = vadd.f32 %v6150, %v6534
    %v6536 = vpop.f32.mrf.mxu0
    %6537 = vmatprep.mubr.f32.mxu0 0.0
    %6538 = vmatmul.mubr.f32.gmra.mxu0 %v5588
    %v6539 = vpop.f32.mrf.mxu0
    %v6540 = vadd.f32 %v6155, %v6539
    %v6541 = vpop.f32.mrf.mxu0
    %6542 = vmatprep.mubr.f32.mxu0 0.0
    %6543 = vmatmul.mubr.f32.gmra.mxu0 %v5590
    %v6544 = vpop.f32.mrf.mxu0
    %v6545 = vadd.f32 %v6160, %v6544
    %v6546 = vpop.f32.mrf.mxu0
    %6547 = vmatprep.mubr.f32.mxu0 0.0
    %6548 = vmatmul.mubr.f32.gmra.mxu0 %v5591
    %v6549 = vpop.f32.mrf.mxu0
    %v6550 = vadd.f32 %v6165, %v6549
    %v6551 = vpop.f32.mrf.mxu0
    %6552 = vmatprep.mubr.f32.mxu0 0.0
    %6553 = vmatmul.mubr.f32.gmra.mxu0 %v5593
    %v6554 = vpop.f32.mrf.mxu0
    %v6555 = vadd.f32 %v6170, %v6554
    %v6556 = vpop.f32.mrf.mxu0
    %6557 = vmatprep.mubr.f32.mxu0 0.0
    %6558 = vmatmul.mubr.f32.gmra.mxu0 %v5594
    %v6559 = vpop.f32.mrf.mxu0
    %v6560 = vadd.f32 %v6175, %v6559
    %v6561 = vpop.f32.mrf.mxu0
    %6562 = vmatprep.mubr.f32.mxu0 0.0
    %6563 = vmatmul.mubr.f32.gmra.mxu0 %v5596
    %v6564 = vpop.f32.mrf.mxu0
    %v6565 = vadd.f32 %v6180, %v6564
    %v6566 = vpop.f32.mrf.mxu0
    %6567 = vmatprep.mubr.f32.mxu0 0.0
    %6568 = vmatmul.mubr.f32.gmra.mxu0 %v5597
    %v6569 = vpop.f32.mrf.mxu0
    %v6570 = vadd.f32 %v6185, %v6569
    %v6571 = vpop.f32.mrf.mxu0
    %6572 = vmatprep.mubr.f32.mxu0 0.0
    %6573 = vmatmul.mubr.f32.gmra.mxu0 %v5599
    %v6574 = vpop.f32.mrf.mxu0
    %v6575 = vadd.f32 %v6190, %v6574
    %v6576 = vpop.f32.mrf.mxu0
    %6577 = vmatprep.mubr.f32.mxu0 0.0
    %6578 = vmatmul.mubr.f32.gmra.mxu0 %v5600
    %v6579 = vpop.f32.mrf.mxu0
    %v6580 = vadd.f32 %v6195, %v6579
    %v6581 = vpop.f32.mrf.mxu0
    %6582 = vmatprep.mubr.f32.mxu0 0.0
    %6583 = vmatmul.mubr.f32.gmra.mxu0 %v5602
    %v6584 = vpop.f32.mrf.mxu0
    %v6585 = vadd.f32 %v6200, %v6584
    %v6586 = vpop.f32.mrf.mxu0
    %6587 = vmatprep.mubr.f32.mxu0 0.0
    %6588 = vmatmul.mubr.f32.gmra.mxu0 %v5603
    %v6589 = vpop.f32.mrf.mxu0
    %v6590 = vadd.f32 %v6205, %v6589
    %v6591 = vpop.f32.mrf.mxu0
    %6592 = vmatprep.mubr.f32.mxu0 0.0
    %6593 = vmatmul.mubr.f32.gmra.mxu0 %v5605
    %v6594 = vpop.f32.mrf.mxu0
    %v6595 = vadd.f32 %v6210, %v6594
    %v6596 = vpop.f32.mrf.mxu0
    %6597 = vmatprep.mubr.f32.mxu0 0.0
    %6598 = vmatmul.mubr.f32.gmra.mxu0 %v5606
    %v6599 = vpop.f32.mrf.mxu0
    %v6600 = vadd.f32 %v6215, %v6599
    %v6601 = vpop.f32.mrf.mxu0
    %6602 = vmatprep.mubr.f32.mxu0 0.0
    %6603 = vmatmul.mubr.f32.gmra.mxu0 %v5608
    %v6604 = vpop.f32.mrf.mxu0
    %v6605 = vadd.f32 %v6220, %v6604
    %v6606 = vpop.f32.mrf.mxu0
    %6607 = vmatprep.mubr.f32.mxu0 0.0
    %6608 = vmatmul.mubr.f32.gmra.mxu0 %v5609
    %v6609 = vpop.f32.mrf.mxu0
    %v6610 = vadd.f32 %v6225, %v6609
    %v6611 = vpop.f32.mrf.mxu0
    %6612 = vmatprep.mubr.f32.mxu0 0.0
    %6613 = vmatmul.mubr.f32.gmra.mxu0 %v5611
    %v6614 = vpop.f32.mrf.mxu0
    %v6615 = vadd.f32 %v6230, %v6614
    %v6616 = vpop.f32.mrf.mxu0
    %6617 = vmatprep.mubr.f32.mxu0 0.0
    %6618 = vmatmul.mubr.f32.gmra.mxu0 %v5612
    %v6619 = vpop.f32.mrf.mxu0
    %v6620 = vadd.f32 %v6235, %v6619
    %v6621 = vpop.f32.mrf.mxu0
    %6622 = vmatprep.mubr.f32.mxu0 0.0
    %6623 = vmatmul.mubr.f32.gmra.mxu0 %v5614
    %v6624 = vpop.f32.mrf.mxu0
    %v6625 = vadd.f32 %v6240, %v6624
    %v6626 = vpop.f32.mrf.mxu0
    %6627 = vmatprep.mubr.f32.mxu0 0.0
    %6628 = vmatmul.mubr.f32.gmra.mxu0 %v5615
    %v6629 = vpop.f32.mrf.mxu0
    %v6630 = vadd.f32 %v6245, %v6629
    %v6631 = vpop.f32.mrf.mxu0
    %6632 = vmatprep.mubr.f32.mxu0 0.0
    %6633 = vmatmul.mubr.f32.gmra.mxu0 %v5617
    %v6634 = vpop.f32.mrf.mxu0
    %v6635 = vadd.f32 %v6250, %v6634
    %v6636 = vpop.f32.mrf.mxu0
    %6637 = vmatprep.mubr.f32.mxu0 0.0
    %6638 = vmatmul.mubr.f32.gmra.mxu0 %v5618
    %v6639 = vpop.f32.mrf.mxu0
    %v6640 = vadd.f32 %v6255, %v6639
    %v6641 = vpop.f32.mrf.mxu0
    %6642 = vmatprep.mubr.f32.mxu0 0.0
    %6643 = vmatmul.mubr.f32.gmra.mxu0 %v5626
    %v6644 = vpop.f32.mrf.mxu0
    %v6645 = vadd.f32 %v6260, %v6644
    %v6646 = vpop.f32.mrf.mxu0
    %6647 = vmatprep.mubr.f32.mxu0 0.0
    %6648 = vmatmul.mubr.f32.gmra.mxu0 %v5627
    %v6649 = vpop.f32.mrf.mxu0
    %v6650 = vadd.f32 %v6265, %v6649
    %v6651 = vpop.f32.mrf.mxu0
    %6652 = vmatprep.mubr.f32.mxu0 0.0
    %6653 = vmatmul.mubr.f32.gmra.mxu0 %v5629
    %v6654 = vpop.f32.mrf.mxu0
    %v6655 = vadd.f32 %v6270, %v6654
    %v6656 = vpop.f32.mrf.mxu0
    %6657 = vmatprep.mubr.f32.mxu0 0.0
    %6658 = vmatmul.mubr.f32.gmra.mxu0 %v5630
    %v6659 = vpop.f32.mrf.mxu0
    %v6660 = vadd.f32 %v6275, %v6659
    %v6661 = vpop.f32.mrf.mxu0
    %6662 = vmatprep.mubr.f32.mxu0 0.0
    %6663 = vmatmul.mubr.f32.gmra.mxu0 %v5632
    %v6664 = vpop.f32.mrf.mxu0
    %v6665 = vadd.f32 %v6280, %v6664
    %v6666 = vpop.f32.mrf.mxu0
    %6667 = vmatprep.mubr.f32.mxu0 0.0
    %6668 = vmatmul.mubr.f32.gmra.mxu0 %v5633
    %v6669 = vpop.f32.mrf.mxu0
    %v6670 = vadd.f32 %v6285, %v6669
    %v6671 = vpop.f32.mrf.mxu0
    %6672 = vmatprep.mubr.f32.mxu0 0.0
    %6673 = vmatmul.mubr.f32.gmra.mxu0 %v5635
    %v6674 = vpop.f32.mrf.mxu0
    %v6675 = vadd.f32 %v6290, %v6674
    %v6676 = vpop.f32.mrf.mxu0
    %6677 = vmatprep.mubr.f32.mxu0 0.0
    %6678 = vmatmul.mubr.f32.gmra.mxu0 %v5636
    %v6679 = vpop.f32.mrf.mxu0
    %v6680 = vadd.f32 %v6295, %v6679
    %v6681 = vpop.f32.mrf.mxu0
    %6682 = vmatprep.mubr.f32.mxu0 0.0
    %6683 = vmatmul.mubr.f32.gmra.mxu0 %v5638
    %v6684 = vpop.f32.mrf.mxu0
    %v6685 = vadd.f32 %v6300, %v6684
    %v6686 = vpop.f32.mrf.mxu0
    %6687 = vmatprep.mubr.f32.mxu0 0.0
    %6688 = vmatmul.mubr.f32.gmra.mxu0 %v5639
    %v6689 = vpop.f32.mrf.mxu0
    %v6690 = vadd.f32 %v6305, %v6689
    %v6691 = vpop.f32.mrf.mxu0
    %6692 = vmatprep.mubr.f32.mxu0 0.0
    %6693 = vmatmul.mubr.f32.gmra.mxu0 %v5641
    %v6694 = vpop.f32.mrf.mxu0
    %v6695 = vadd.f32 %v6310, %v6694
    %v6696 = vpop.f32.mrf.mxu0
    %6697 = vmatprep.mubr.f32.mxu0 0.0
    %6698 = vmatmul.mubr.f32.gmra.mxu0 %v5642
    %v6699 = vpop.f32.mrf.mxu0
    %v6700 = vadd.f32 %v6315, %v6699
    %v6701 = vpop.f32.mrf.mxu0
    %6702 = vmatprep.mubr.f32.mxu0 0.0
    %6703 = vmatmul.mubr.f32.gmra.mxu0 %v5644
    %v6704 = vpop.f32.mrf.mxu0
    %v6705 = vadd.f32 %v6320, %v6704
    %v6706 = vpop.f32.mrf.mxu0
    %6707 = vmatprep.mubr.f32.mxu0 0.0
    %6708 = vmatmul.mubr.f32.gmra.mxu0 %v5645
    %v6709 = vpop.f32.mrf.mxu0
    %v6710 = vadd.f32 %v6325, %v6709
    %v6711 = vpop.f32.mrf.mxu0
    %6712 = vmatprep.mubr.f32.mxu0 0.0
    %6713 = vmatmul.mubr.f32.gmra.mxu0 %v5647
    %v6714 = vpop.f32.mrf.mxu0
    %v6715 = vadd.f32 %v6330, %v6714
    %v6716 = vpop.f32.mrf.mxu0
    %6717 = vmatprep.mubr.f32.mxu0 0.0
    %6718 = vmatmul.mubr.f32.gmra.mxu0 %v5648
    %v6719 = vpop.f32.mrf.mxu0
    %v6720 = vadd.f32 %v6335, %v6719
    %v6721 = vpop.f32.mrf.mxu0
    %6722 = vmatprep.mubr.f32.mxu0 0.0
    %6723 = vmatmul.mubr.f32.gmra.mxu0 %v5650
    %v6724 = vpop.f32.mrf.mxu0
    %v6725 = vadd.f32 %v6340, %v6724
    %v6726 = vpop.f32.mrf.mxu0
    %6727 = vmatprep.mubr.f32.mxu0 0.0
    %6728 = vmatmul.mubr.f32.gmra.mxu0 %v5651
    %v6729 = vpop.f32.mrf.mxu0
    %v6730 = vadd.f32 %v6345, %v6729
    %v6731 = vpop.f32.mrf.mxu0
    %6732 = vmatprep.mubr.f32.mxu0 0.0
    %6733 = vmatmul.mubr.f32.gmra.mxu0 %v5653
    %v6734 = vpop.f32.mrf.mxu0
    %v6735 = vadd.f32 %v6350, %v6734
    %v6736 = vpop.f32.mrf.mxu0
    %6737 = vmatprep.mubr.f32.mxu0 0.0
    %6738 = vmatmul.mubr.f32.gmra.mxu0 %v5654
    %v6739 = vpop.f32.mrf.mxu0
    %v6740 = vadd.f32 %v6355, %v6739
    %v6741 = vpop.f32.mrf.mxu0
    %6742 = vmatprep.mubr.f32.mxu0 0.0
    %6743 = vmatmul.mubr.f32.gmra.mxu0 %v5656
    %v6744 = vpop.f32.mrf.mxu0
    %v6745 = vadd.f32 %v6360, %v6744
    %v6746 = vpop.f32.mrf.mxu0
    %6747 = vmatprep.mubr.f32.mxu0 0.0
    %6748 = vmatmul.mubr.f32.gmra.mxu0 %v5657
    %v6749 = vpop.f32.mrf.mxu0
    %v6750 = vadd.f32 %v6365, %v6749
    %v6751 = vpop.f32.mrf.mxu0
    %6752 = vmatprep.mubr.f32.mxu0 0.0
    %6753 = vmatmul.mubr.f32.gmra.mxu0 %v5659
    %v6754 = vpop.f32.mrf.mxu0
    %v6755 = vadd.f32 %v6370, %v6754
    %v6756 = vpop.f32.mrf.mxu0
    %6757 = vmatprep.mubr.f32.mxu0 0.0
    %6758 = vmatmul.mubr.f32.gmra.mxu0 %v5660
    %v6759 = vpop.f32.mrf.mxu0
    %v6760 = vadd.f32 %v6375, %v6759
    %v6761 = vpop.f32.mrf.mxu0
    %6762 = vmatprep.mubr.f32.mxu0 0.0
    %6763 = vmatmul.mubr.f32.gmra.mxu0 %v5662
    %v6764 = vpop.f32.mrf.mxu0
    %v6765 = vadd.f32 %v6380, %v6764
    %v6766 = vpop.f32.mrf.mxu0
    %6767 = vmatprep.mubr.f32.mxu0 0.0
    %6768 = vmatmul.mubr.f32.gmra.mxu0 %v5663
    %v6769 = vpop.f32.mrf.mxu0
    %v6770 = vadd.f32 %v6385, %v6769
    %v6771 = vpop.f32.mrf.mxu0
    %6772 = vmatprep.mubr.f32.mxu0 0.0
    %6773 = vmatmul.mubr.f32.gmra.mxu0 %v5665
    %v6774 = vpop.f32.mrf.mxu0
    %v6775 = vadd.f32 %v6390, %v6774
    %v6776 = vpop.f32.mrf.mxu0
    %6777 = vmatprep.mubr.f32.mxu0 0.0
    %6778 = vmatmul.mubr.f32.gmra.mxu0 %v5666
    %v6779 = vpop.f32.mrf.mxu0
    %v6780 = vadd.f32 %v6395, %v6779
    %v6781 = vpop.f32.mrf.mxu0
    %6782 = vmatprep.mubr.f32.mxu0 0.0
    %6783 = vmatmul.mubr.f32.gmra.mxu0 %v5668
    %v6784 = vpop.f32.mrf.mxu0
    %v6785 = vadd.f32 %v6400, %v6784
    %v6786 = vpop.f32.mrf.mxu0
    %6787 = vmatprep.mubr.f32.mxu0 0.0
    %6788 = vmatmul.mubr.f32.gmra.mxu0 %v5669
    %v6789 = vpop.f32.mrf.mxu0
    %v6790 = vadd.f32 %v6405, %v6789
    %v6791 = vpop.f32.mrf.mxu0
    %6792 = vmatprep.mubr.f32.mxu0 0.0
    %6793 = vmatmul.mubr.f32.gmra.mxu0 %v5671
    %v6794 = vpop.f32.mrf.mxu0
    %v6795 = vadd.f32 %v6410, %v6794
    %v6796 = vpop.f32.mrf.mxu0
    %6797 = vmatprep.mubr.f32.mxu0 0.0
    %6798 = vmatmul.mubr.f32.gmra.mxu0 %v5672
    %v6799 = vpop.f32.mrf.mxu0
    %v6800 = vadd.f32 %v6415, %v6799
    %v6801 = vpop.f32.mrf.mxu0
    %6802 = vdwg.mxu0
    %v6803 = vrot.slane %v5572, 2
    %v6804 = vrot.slane %v5573, 2
    %v6805 = vsel %vm1446, %v6803, %v6804
    %v6806 = vrot.slane %v5574, 2
    %v6807 = vsel %vm1446, %v6804, %v6806
    %v6808 = vrot.slane %v5575, 2
    %v6809 = vrot.slane %v5576, 2
    %v6810 = vsel %vm1446, %v6808, %v6809
    %v6811 = vrot.slane %v5577, 2
    %v6812 = vsel %vm1446, %v6809, %v6811
    %v6813 = vrot.slane %v5578, 2
    %v6814 = vrot.slane %v5579, 2
    %v6815 = vsel %vm1446, %v6813, %v6814
    %v6816 = vrot.slane %v5580, 2
    %v6817 = vsel %vm1446, %v6814, %v6816
    %v6818 = vrot.slane %v5581, 2
    %v6819 = vrot.slane %v5582, 2
    %v6820 = vsel %vm1446, %v6818, %v6819
    %v6821 = vrot.slane %v5583, 2
    %v6822 = vsel %vm1446, %v6819, %v6821
    %v6823 = vrot.slane %v5584, 2
    %v6824 = vrot.slane %v5585, 2
    %v6825 = vsel %vm1446, %v6823, %v6824
    %v6826 = vrot.slane %v5586, 2
    %v6827 = vsel %vm1446, %v6824, %v6826
    %v6828 = vrot.slane %v5587, 2
    %v6829 = vrot.slane %v5588, 2
    %v6830 = vsel %vm1446, %v6828, %v6829
    %v6831 = vrot.slane %v5589, 2
    %v6832 = vsel %vm1446, %v6829, %v6831
    %v6833 = vrot.slane %v5590, 2
    %v6834 = vrot.slane %v5591, 2
    %v6835 = vsel %vm1446, %v6833, %v6834
    %v6836 = vrot.slane %v5592, 2
    %v6837 = vsel %vm1446, %v6834, %v6836
    %v6838 = vrot.slane %v5593, 2
    %v6839 = vrot.slane %v5594, 2
    %v6840 = vsel %vm1446, %v6838, %v6839
    %v6841 = vrot.slane %v5595, 2
    %v6842 = vsel %vm1446, %v6839, %v6841
    %v6843 = vrot.slane %v5596, 2
    %v6844 = vrot.slane %v5597, 2
    %v6845 = vsel %vm1446, %v6843, %v6844
    %v6846 = vrot.slane %v5598, 2
    %v6847 = vsel %vm1446, %v6844, %v6846
    %v6848 = vrot.slane %v5599, 2
    %v6849 = vrot.slane %v5600, 2
    %v6850 = vsel %vm1446, %v6848, %v6849
    %v6851 = vrot.slane %v5601, 2
    %v6852 = vsel %vm1446, %v6849, %v6851
    %v6853 = vrot.slane %v5602, 2
    %v6854 = vrot.slane %v5603, 2
    %v6855 = vsel %vm1446, %v6853, %v6854
    %v6856 = vrot.slane %v5604, 2
    %v6857 = vsel %vm1446, %v6854, %v6856
    %v6858 = vrot.slane %v5605, 2
    %v6859 = vrot.slane %v5606, 2
    %v6860 = vsel %vm1446, %v6858, %v6859
    %v6861 = vrot.slane %v5607, 2
    %v6862 = vsel %vm1446, %v6859, %v6861
    %v6863 = vrot.slane %v5608, 2
    %v6864 = vrot.slane %v5609, 2
    %v6865 = vsel %vm1446, %v6863, %v6864
    %v6866 = vrot.slane %v5610, 2
    %v6867 = vsel %vm1446, %v6864, %v6866
    %v6868 = vrot.slane %v5611, 2
    %v6869 = vrot.slane %v5612, 2
    %v6870 = vsel %vm1446, %v6868, %v6869
    %v6871 = vrot.slane %v5613, 2
    %v6872 = vsel %vm1446, %v6869, %v6871
    %v6873 = vrot.slane %v5614, 2
    %v6874 = vrot.slane %v5615, 2
    %v6875 = vsel %vm1446, %v6873, %v6874
    %v6876 = vrot.slane %v5616, 2
    %v6877 = vsel %vm1446, %v6874, %v6876
    %v6878 = vrot.slane %v5617, 2
    %v6879 = vrot.slane %v5618, 2
    %v6880 = vsel %vm1446, %v6878, %v6879
    %v6881 = vrot.slane %v5619, 2
    %v6882 = vsel %vm1446, %v6879, %v6881
    %v6883 = vrot.slane %v5626, 2
    %v6884 = vrot.slane %v5627, 2
    %v6885 = vsel %vm1446, %v6883, %v6884
    %v6886 = vrot.slane %v5628, 2
    %v6887 = vsel %vm1446, %v6884, %v6886
    %v6888 = vrot.slane %v5629, 2
    %v6889 = vrot.slane %v5630, 2
    %v6890 = vsel %vm1446, %v6888, %v6889
    %v6891 = vrot.slane %v5631, 2
    %v6892 = vsel %vm1446, %v6889, %v6891
    %v6893 = vrot.slane %v5632, 2
    %v6894 = vrot.slane %v5633, 2
    %v6895 = vsel %vm1446, %v6893, %v6894
    %v6896 = vrot.slane %v5634, 2
    %v6897 = vsel %vm1446, %v6894, %v6896
    %v6898 = vrot.slane %v5635, 2
    %v6899 = vrot.slane %v5636, 2
    %v6900 = vsel %vm1446, %v6898, %v6899
    %v6901 = vrot.slane %v5637, 2
    %v6902 = vsel %vm1446, %v6899, %v6901
    %v6903 = vrot.slane %v5638, 2
    %v6904 = vrot.slane %v5639, 2
    %v6905 = vsel %vm1446, %v6903, %v6904
    %v6906 = vrot.slane %v5640, 2
    %v6907 = vsel %vm1446, %v6904, %v6906
    %v6908 = vrot.slane %v5641, 2
    %v6909 = vrot.slane %v5642, 2
    %v6910 = vsel %vm1446, %v6908, %v6909
    %v6911 = vrot.slane %v5643, 2
    %v6912 = vsel %vm1446, %v6909, %v6911
    %v6913 = vrot.slane %v5644, 2
    %v6914 = vrot.slane %v5645, 2
    %v6915 = vsel %vm1446, %v6913, %v6914
    %v6916 = vrot.slane %v5646, 2
    %v6917 = vsel %vm1446, %v6914, %v6916
    %v6918 = vrot.slane %v5647, 2
    %v6919 = vrot.slane %v5648, 2
    %v6920 = vsel %vm1446, %v6918, %v6919
    %v6921 = vrot.slane %v5649, 2
    %v6922 = vsel %vm1446, %v6919, %v6921
    %v6923 = vrot.slane %v5650, 2
    %v6924 = vrot.slane %v5651, 2
    %v6925 = vsel %vm1446, %v6923, %v6924
    %v6926 = vrot.slane %v5652, 2
    %v6927 = vsel %vm1446, %v6924, %v6926
    %v6928 = vrot.slane %v5653, 2
    %v6929 = vrot.slane %v5654, 2
    %v6930 = vsel %vm1446, %v6928, %v6929
    %v6931 = vrot.slane %v5655, 2
    %v6932 = vsel %vm1446, %v6929, %v6931
    %v6933 = vrot.slane %v5656, 2
    %v6934 = vrot.slane %v5657, 2
    %v6935 = vsel %vm1446, %v6933, %v6934
    %v6936 = vrot.slane %v5658, 2
    %v6937 = vsel %vm1446, %v6934, %v6936
    %v6938 = vrot.slane %v5659, 2
    %v6939 = vrot.slane %v5660, 2
    %v6940 = vsel %vm1446, %v6938, %v6939
    %v6941 = vrot.slane %v5661, 2
    %v6942 = vsel %vm1446, %v6939, %v6941
    %v6943 = vrot.slane %v5662, 2
    %v6944 = vrot.slane %v5663, 2
    %v6945 = vsel %vm1446, %v6943, %v6944
    %v6946 = vrot.slane %v5664, 2
    %v6947 = vsel %vm1446, %v6944, %v6946
    %v6948 = vrot.slane %v5665, 2
    %v6949 = vrot.slane %v5666, 2
    %v6950 = vsel %vm1446, %v6948, %v6949
    %v6951 = vrot.slane %v5667, 2
    %v6952 = vsel %vm1446, %v6949, %v6951
    %v6953 = vrot.slane %v5668, 2
    %v6954 = vrot.slane %v5669, 2
    %v6955 = vsel %vm1446, %v6953, %v6954
    %v6956 = vrot.slane %v5670, 2
    %v6957 = vsel %vm1446, %v6954, %v6956
    %v6958 = vrot.slane %v5671, 2
    %v6959 = vrot.slane %v5672, 2
    %v6960 = vsel %vm1446, %v6958, %v6959
    %v6961 = vrot.slane %v5673, 2
    %v6962 = vsel %vm1446, %v6959, %v6961
    %s7027 = scalar_lea.vmem [#allocation3], 256
    %v7028 = vld [vmem:[%s7027] sm:$0xff]
    %v7029 = vld [vmem:[%s7027 + $0x8] sm:$0xff]
    %v7030 = vld [vmem:[%s7027 + $0x10] sm:$0xff]
    %v7031 = vld [vmem:[%s7027 + $0x18] sm:$0xff]
    %v7032 = vld [vmem:[%s7027 + $0x20] sm:$0xff]
    %v7033 = vld [vmem:[%s7027 + $0x28] sm:$0xff]
    %v7034 = vld [vmem:[%s7027 + $0x30] sm:$0xff]
    %v7035 = vld [vmem:[%s7027 + $0x38] sm:$0xff]
    %v7036 = vld [vmem:[%s7027 + $0x40] sm:$0xff]
    %v7037 = vld [vmem:[%s7027 + $0x48] sm:$0xff]
    %v7038 = vld [vmem:[%s7027 + $0x50] sm:$0xff]
    %v7039 = vld [vmem:[%s7027 + $0x58] sm:$0xff]
    %v7040 = vld [vmem:[%s7027 + $0x60] sm:$0xff]
    %v7041 = vld [vmem:[%s7027 + $0x68] sm:$0xff]
    %v7042 = vld [vmem:[%s7027 + $0x70] sm:$0xff]
    %v7043 = vld [vmem:[%s7027 + $0x78] sm:$0xff]
    %7044 = vmatprep.subr.mxu0 0.0
    %7045 = vmatpush1.msra.mxu0 %v7043
    %7046 = vmatprep.subr.mxu0 0.0
    %7047 = vmatpush1.msra.mxu0 %v7042
    %7048 = vmatprep.subr.mxu0 0.0
    %7049 = vmatpush1.msra.mxu0 %v7041
    %7050 = vmatprep.subr.mxu0 0.0
    %7051 = vmatpush1.msra.mxu0 %v7040
    %7052 = vmatprep.subr.mxu0 0.0
    %7053 = vmatpush1.msra.mxu0 %v7039
    %7054 = vmatprep.subr.mxu0 0.0
    %7055 = vmatpush1.msra.mxu0 %v7038
    %7056 = vmatprep.subr.mxu0 0.0
    %7057 = vmatpush1.msra.mxu0 %v7037
    %7058 = vmatprep.subr.mxu0 0.0
    %7059 = vmatpush1.msra.mxu0 %v7036
    %7060 = vmatprep.subr.mxu0 0.0
    %7061 = vmatpush1.msra.mxu0 %v7035
    %7062 = vmatprep.subr.mxu0 0.0
    %7063 = vmatpush1.msra.mxu0 %v7034
    %7064 = vmatprep.subr.mxu0 0.0
    %7065 = vmatpush1.msra.mxu0 %v7033
    %7066 = vmatprep.subr.mxu0 0.0
    %7067 = vmatpush1.msra.mxu0 %v7032
    %7068 = vmatprep.subr.mxu0 0.0
    %7069 = vmatpush1.msra.mxu0 %v7031
    %7070 = vmatprep.subr.mxu0 0.0
    %7071 = vmatpush1.msra.mxu0 %v7030
    %7072 = vmatprep.subr.mxu0 0.0
    %7073 = vmatpush1.msra.mxu0 %v7029
    %7074 = vmatprep.subr.mxu0 0.0
    %7075 = vmatpush1.msra.mxu0 %v7028
    %7076 = vmatprep.subr.mxu0 0.0
    %7077 = vmatpush2.msra.mxu0 0.0
    %7078 = vmatprep.subr.mxu0 0.0
    %7079 = vmatpush2.msra.mxu0 0.0
    %7080 = vmatprep.subr.mxu0 0.0
    %7081 = vmatpush2.msra.mxu0 0.0
    %7082 = vmatprep.subr.mxu0 0.0
    %7083 = vmatpush2.msra.mxu0 0.0
    %7084 = vmatprep.subr.mxu0 0.0
    %7085 = vmatpush2.msra.mxu0 0.0
    %7086 = vmatprep.subr.mxu0 0.0
    %7087 = vmatpush2.msra.mxu0 0.0
    %7088 = vmatprep.subr.mxu0 0.0
    %7089 = vmatpush2.msra.mxu0 0.0
    %7090 = vmatprep.subr.mxu0 0.0
    %7091 = vmatpush2.msra.mxu0 0.0
    %7092 = vmatprep.subr.mxu0 0.0
    %7093 = vmatpush2.msra.mxu0 0.0
    %7094 = vmatprep.subr.mxu0 0.0
    %7095 = vmatpush2.msra.mxu0 0.0
    %7096 = vmatprep.subr.mxu0 0.0
    %7097 = vmatpush2.msra.mxu0 0.0
    %7098 = vmatprep.subr.mxu0 0.0
    %7099 = vmatpush2.msra.mxu0 0.0
    %7100 = vmatprep.subr.mxu0 0.0
    %7101 = vmatpush2.msra.mxu0 0.0
    %7102 = vmatprep.subr.mxu0 0.0
    %7103 = vmatpush2.msra.mxu0 0.0
    %7104 = vmatprep.subr.mxu0 0.0
    %7105 = vmatpush2.msra.mxu0 0.0
    %7106 = vmatprep.subr.mxu0 0.0
    %7107 = vmatpush2.msra.mxu0 0.0
    %7108 = vmatprep.mubr.f32.mxu0 0.0
    %7109 = vmatmul.mubr.f32.gmra.mxu0 %v6805
    %v7110 = vpop.f32.mrf.mxu0
    %v7111 = vadd.f32 0.0, %v7110
    %v7112 = vpop.f32.mrf.mxu0
    %7113 = vmatprep.mubr.f32.mxu0 0.0
    %7114 = vmatmul.mubr.f32.gmra.mxu0 %v6807
    %v7115 = vpop.f32.mrf.mxu0
    %v7116 = vadd.f32 0.0, %v7115
    %v7117 = vpop.f32.mrf.mxu0
    %7118 = vmatprep.mubr.f32.mxu0 0.0
    %7119 = vmatmul.mubr.f32.gmra.mxu0 %v6810
    %v7120 = vpop.f32.mrf.mxu0
    %v7121 = vadd.f32 0.0, %v7120
    %v7122 = vpop.f32.mrf.mxu0
    %7123 = vmatprep.mubr.f32.mxu0 0.0
    %7124 = vmatmul.mubr.f32.gmra.mxu0 %v6812
    %v7125 = vpop.f32.mrf.mxu0
    %v7126 = vadd.f32 0.0, %v7125
    %v7127 = vpop.f32.mrf.mxu0
    %7128 = vmatprep.mubr.f32.mxu0 0.0
    %7129 = vmatmul.mubr.f32.gmra.mxu0 %v6815
    %v7130 = vpop.f32.mrf.mxu0
    %v7131 = vadd.f32 0.0, %v7130
    %v7132 = vpop.f32.mrf.mxu0
    %7133 = vmatprep.mubr.f32.mxu0 0.0
    %7134 = vmatmul.mubr.f32.gmra.mxu0 %v6817
    %v7135 = vpop.f32.mrf.mxu0
    %v7136 = vadd.f32 0.0, %v7135
    %v7137 = vpop.f32.mrf.mxu0
    %7138 = vmatprep.mubr.f32.mxu0 0.0
    %7139 = vmatmul.mubr.f32.gmra.mxu0 %v6820
    %v7140 = vpop.f32.mrf.mxu0
    %v7141 = vadd.f32 0.0, %v7140
    %v7142 = vpop.f32.mrf.mxu0
    %7143 = vmatprep.mubr.f32.mxu0 0.0
    %7144 = vmatmul.mubr.f32.gmra.mxu0 %v6822
    %v7145 = vpop.f32.mrf.mxu0
    %v7146 = vadd.f32 0.0, %v7145
    %v7147 = vpop.f32.mrf.mxu0
    %7148 = vmatprep.mubr.f32.mxu0 0.0
    %7149 = vmatmul.mubr.f32.gmra.mxu0 %v6825
    %v7150 = vpop.f32.mrf.mxu0
    %v7151 = vadd.f32 0.0, %v7150
    %v7152 = vpop.f32.mrf.mxu0
    %7153 = vmatprep.mubr.f32.mxu0 0.0
    %7154 = vmatmul.mubr.f32.gmra.mxu0 %v6827
    %v7155 = vpop.f32.mrf.mxu0
    %v7156 = vadd.f32 0.0, %v7155
    %v7157 = vpop.f32.mrf.mxu0
    %7158 = vmatprep.mubr.f32.mxu0 0.0
    %7159 = vmatmul.mubr.f32.gmra.mxu0 %v6830
    %v7160 = vpop.f32.mrf.mxu0
    %v7161 = vadd.f32 0.0, %v7160
    %v7162 = vpop.f32.mrf.mxu0
    %7163 = vmatprep.mubr.f32.mxu0 0.0
    %7164 = vmatmul.mubr.f32.gmra.mxu0 %v6832
    %v7165 = vpop.f32.mrf.mxu0
    %v7166 = vadd.f32 0.0, %v7165
    %v7167 = vpop.f32.mrf.mxu0
    %7168 = vmatprep.mubr.f32.mxu0 0.0
    %7169 = vmatmul.mubr.f32.gmra.mxu0 %v6835
    %v7170 = vpop.f32.mrf.mxu0
    %v7171 = vadd.f32 0.0, %v7170
    %v7172 = vpop.f32.mrf.mxu0
    %7173 = vmatprep.mubr.f32.mxu0 0.0
    %7174 = vmatmul.mubr.f32.gmra.mxu0 %v6837
    %v7175 = vpop.f32.mrf.mxu0
    %v7176 = vadd.f32 0.0, %v7175
    %v7177 = vpop.f32.mrf.mxu0
    %7178 = vmatprep.mubr.f32.mxu0 0.0
    %7179 = vmatmul.mubr.f32.gmra.mxu0 %v6840
    %v7180 = vpop.f32.mrf.mxu0
    %v7181 = vadd.f32 0.0, %v7180
    %v7182 = vpop.f32.mrf.mxu0
    %7183 = vmatprep.mubr.f32.mxu0 0.0
    %7184 = vmatmul.mubr.f32.gmra.mxu0 %v6842
    %v7185 = vpop.f32.mrf.mxu0
    %v7186 = vadd.f32 0.0, %v7185
    %v7187 = vpop.f32.mrf.mxu0
    %7188 = vmatprep.mubr.f32.mxu0 0.0
    %7189 = vmatmul.mubr.f32.gmra.mxu0 %v6845
    %v7190 = vpop.f32.mrf.mxu0
    %v7191 = vadd.f32 0.0, %v7190
    %v7192 = vpop.f32.mrf.mxu0
    %7193 = vmatprep.mubr.f32.mxu0 0.0
    %7194 = vmatmul.mubr.f32.gmra.mxu0 %v6847
    %v7195 = vpop.f32.mrf.mxu0
    %v7196 = vadd.f32 0.0, %v7195
    %v7197 = vpop.f32.mrf.mxu0
    %7198 = vmatprep.mubr.f32.mxu0 0.0
    %7199 = vmatmul.mubr.f32.gmra.mxu0 %v6850
    %v7200 = vpop.f32.mrf.mxu0
    %v7201 = vadd.f32 0.0, %v7200
    %v7202 = vpop.f32.mrf.mxu0
    %7203 = vmatprep.mubr.f32.mxu0 0.0
    %7204 = vmatmul.mubr.f32.gmra.mxu0 %v6852
    %v7205 = vpop.f32.mrf.mxu0
    %v7206 = vadd.f32 0.0, %v7205
    %v7207 = vpop.f32.mrf.mxu0
    %7208 = vmatprep.mubr.f32.mxu0 0.0
    %7209 = vmatmul.mubr.f32.gmra.mxu0 %v6855
    %v7210 = vpop.f32.mrf.mxu0
    %v7211 = vadd.f32 0.0, %v7210
    %v7212 = vpop.f32.mrf.mxu0
    %7213 = vmatprep.mubr.f32.mxu0 0.0
    %7214 = vmatmul.mubr.f32.gmra.mxu0 %v6857
    %v7215 = vpop.f32.mrf.mxu0
    %v7216 = vadd.f32 0.0, %v7215
    %v7217 = vpop.f32.mrf.mxu0
    %7218 = vmatprep.mubr.f32.mxu0 0.0
    %7219 = vmatmul.mubr.f32.gmra.mxu0 %v6860
    %v7220 = vpop.f32.mrf.mxu0
    %v7221 = vadd.f32 0.0, %v7220
    %v7222 = vpop.f32.mrf.mxu0
    %7223 = vmatprep.mubr.f32.mxu0 0.0
    %7224 = vmatmul.mubr.f32.gmra.mxu0 %v6862
    %v7225 = vpop.f32.mrf.mxu0
    %v7226 = vadd.f32 0.0, %v7225
    %v7227 = vpop.f32.mrf.mxu0
    %7228 = vmatprep.mubr.f32.mxu0 0.0
    %7229 = vmatmul.mubr.f32.gmra.mxu0 %v6865
    %v7230 = vpop.f32.mrf.mxu0
    %v7231 = vadd.f32 0.0, %v7230
    %v7232 = vpop.f32.mrf.mxu0
    %7233 = vmatprep.mubr.f32.mxu0 0.0
    %7234 = vmatmul.mubr.f32.gmra.mxu0 %v6867
    %v7235 = vpop.f32.mrf.mxu0
    %v7236 = vadd.f32 0.0, %v7235
    %v7237 = vpop.f32.mrf.mxu0
    %7238 = vmatprep.mubr.f32.mxu0 0.0
    %7239 = vmatmul.mubr.f32.gmra.mxu0 %v6870
    %v7240 = vpop.f32.mrf.mxu0
    %v7241 = vadd.f32 0.0, %v7240
    %v7242 = vpop.f32.mrf.mxu0
    %7243 = vmatprep.mubr.f32.mxu0 0.0
    %7244 = vmatmul.mubr.f32.gmra.mxu0 %v6872
    %v7245 = vpop.f32.mrf.mxu0
    %v7246 = vadd.f32 0.0, %v7245
    %v7247 = vpop.f32.mrf.mxu0
    %7248 = vmatprep.mubr.f32.mxu0 0.0
    %7249 = vmatmul.mubr.f32.gmra.mxu0 %v6875
    %v7250 = vpop.f32.mrf.mxu0
    %v7251 = vadd.f32 0.0, %v7250
    %v7252 = vpop.f32.mrf.mxu0
    %7253 = vmatprep.mubr.f32.mxu0 0.0
    %7254 = vmatmul.mubr.f32.gmra.mxu0 %v6877
    %v7255 = vpop.f32.mrf.mxu0
    %v7256 = vadd.f32 0.0, %v7255
    %v7257 = vpop.f32.mrf.mxu0
    %7258 = vmatprep.mubr.f32.mxu0 0.0
    %7259 = vmatmul.mubr.f32.gmra.mxu0 %v6880
    %v7260 = vpop.f32.mrf.mxu0
    %v7261 = vadd.f32 0.0, %v7260
    %v7262 = vpop.f32.mrf.mxu0
    %7263 = vmatprep.mubr.f32.mxu0 0.0
    %7264 = vmatmul.mubr.f32.gmra.mxu0 %v6882
    %v7265 = vpop.f32.mrf.mxu0
    %v7266 = vadd.f32 0.0, %v7265
    %v7267 = vpop.f32.mrf.mxu0
    %7268 = vmatprep.mubr.f32.mxu0 0.0
    %7269 = vmatmul.mubr.f32.gmra.mxu0 %v6885
    %v7270 = vpop.f32.mrf.mxu0
    %v7271 = vadd.f32 0.0, %v7270
    %v7272 = vpop.f32.mrf.mxu0
    %7273 = vmatprep.mubr.f32.mxu0 0.0
    %7274 = vmatmul.mubr.f32.gmra.mxu0 %v6887
    %v7275 = vpop.f32.mrf.mxu0
    %v7276 = vadd.f32 0.0, %v7275
    %v7277 = vpop.f32.mrf.mxu0
    %7278 = vmatprep.mubr.f32.mxu0 0.0
    %7279 = vmatmul.mubr.f32.gmra.mxu0 %v6890
    %v7280 = vpop.f32.mrf.mxu0
    %v7281 = vadd.f32 0.0, %v7280
    %v7282 = vpop.f32.mrf.mxu0
    %7283 = vmatprep.mubr.f32.mxu0 0.0
    %7284 = vmatmul.mubr.f32.gmra.mxu0 %v6892
    %v7285 = vpop.f32.mrf.mxu0
    %v7286 = vadd.f32 0.0, %v7285
    %v7287 = vpop.f32.mrf.mxu0
    %7288 = vmatprep.mubr.f32.mxu0 0.0
    %7289 = vmatmul.mubr.f32.gmra.mxu0 %v6895
    %v7290 = vpop.f32.mrf.mxu0
    %v7291 = vadd.f32 0.0, %v7290
    %v7292 = vpop.f32.mrf.mxu0
    %7293 = vmatprep.mubr.f32.mxu0 0.0
    %7294 = vmatmul.mubr.f32.gmra.mxu0 %v6897
    %v7295 = vpop.f32.mrf.mxu0
    %v7296 = vadd.f32 0.0, %v7295
    %v7297 = vpop.f32.mrf.mxu0
    %7298 = vmatprep.mubr.f32.mxu0 0.0
    %7299 = vmatmul.mubr.f32.gmra.mxu0 %v6900
    %v7300 = vpop.f32.mrf.mxu0
    %v7301 = vadd.f32 0.0, %v7300
    %v7302 = vpop.f32.mrf.mxu0
    %7303 = vmatprep.mubr.f32.mxu0 0.0
    %7304 = vmatmul.mubr.f32.gmra.mxu0 %v6902
    %v7305 = vpop.f32.mrf.mxu0
    %v7306 = vadd.f32 0.0, %v7305
    %v7307 = vpop.f32.mrf.mxu0
    %7308 = vmatprep.mubr.f32.mxu0 0.0
    %7309 = vmatmul.mubr.f32.gmra.mxu0 %v6905
    %v7310 = vpop.f32.mrf.mxu0
    %v7311 = vadd.f32 0.0, %v7310
    %v7312 = vpop.f32.mrf.mxu0
    %7313 = vmatprep.mubr.f32.mxu0 0.0
    %7314 = vmatmul.mubr.f32.gmra.mxu0 %v6907
    %v7315 = vpop.f32.mrf.mxu0
    %v7316 = vadd.f32 0.0, %v7315
    %v7317 = vpop.f32.mrf.mxu0
    %7318 = vmatprep.mubr.f32.mxu0 0.0
    %7319 = vmatmul.mubr.f32.gmra.mxu0 %v6910
    %v7320 = vpop.f32.mrf.mxu0
    %v7321 = vadd.f32 0.0, %v7320
    %v7322 = vpop.f32.mrf.mxu0
    %7323 = vmatprep.mubr.f32.mxu0 0.0
    %7324 = vmatmul.mubr.f32.gmra.mxu0 %v6912
    %v7325 = vpop.f32.mrf.mxu0
    %v7326 = vadd.f32 0.0, %v7325
    %v7327 = vpop.f32.mrf.mxu0
    %7328 = vmatprep.mubr.f32.mxu0 0.0
    %7329 = vmatmul.mubr.f32.gmra.mxu0 %v6915
    %v7330 = vpop.f32.mrf.mxu0
    %v7331 = vadd.f32 0.0, %v7330
    %v7332 = vpop.f32.mrf.mxu0
    %7333 = vmatprep.mubr.f32.mxu0 0.0
    %7334 = vmatmul.mubr.f32.gmra.mxu0 %v6917
    %v7335 = vpop.f32.mrf.mxu0
    %v7336 = vadd.f32 0.0, %v7335
    %v7337 = vpop.f32.mrf.mxu0
    %7338 = vmatprep.mubr.f32.mxu0 0.0
    %7339 = vmatmul.mubr.f32.gmra.mxu0 %v6920
    %v7340 = vpop.f32.mrf.mxu0
    %v7341 = vadd.f32 0.0, %v7340
    %v7342 = vpop.f32.mrf.mxu0
    %7343 = vmatprep.mubr.f32.mxu0 0.0
    %7344 = vmatmul.mubr.f32.gmra.mxu0 %v6922
    %v7345 = vpop.f32.mrf.mxu0
    %v7346 = vadd.f32 0.0, %v7345
    %v7347 = vpop.f32.mrf.mxu0
    %7348 = vmatprep.mubr.f32.mxu0 0.0
    %7349 = vmatmul.mubr.f32.gmra.mxu0 %v6925
    %v7350 = vpop.f32.mrf.mxu0
    %v7351 = vadd.f32 0.0, %v7350
    %v7352 = vpop.f32.mrf.mxu0
    %7353 = vmatprep.mubr.f32.mxu0 0.0
    %7354 = vmatmul.mubr.f32.gmra.mxu0 %v6927
    %v7355 = vpop.f32.mrf.mxu0
    %v7356 = vadd.f32 0.0, %v7355
    %v7357 = vpop.f32.mrf.mxu0
    %7358 = vmatprep.mubr.f32.mxu0 0.0
    %7359 = vmatmul.mubr.f32.gmra.mxu0 %v6930
    %v7360 = vpop.f32.mrf.mxu0
    %v7361 = vadd.f32 0.0, %v7360
    %v7362 = vpop.f32.mrf.mxu0
    %7363 = vmatprep.mubr.f32.mxu0 0.0
    %7364 = vmatmul.mubr.f32.gmra.mxu0 %v6932
    %v7365 = vpop.f32.mrf.mxu0
    %v7366 = vadd.f32 0.0, %v7365
    %v7367 = vpop.f32.mrf.mxu0
    %7368 = vmatprep.mubr.f32.mxu0 0.0
    %7369 = vmatmul.mubr.f32.gmra.mxu0 %v6935
    %v7370 = vpop.f32.mrf.mxu0
    %v7371 = vadd.f32 0.0, %v7370
    %v7372 = vpop.f32.mrf.mxu0
    %7373 = vmatprep.mubr.f32.mxu0 0.0
    %7374 = vmatmul.mubr.f32.gmra.mxu0 %v6937
    %v7375 = vpop.f32.mrf.mxu0
    %v7376 = vadd.f32 0.0, %v7375
    %v7377 = vpop.f32.mrf.mxu0
    %7378 = vmatprep.mubr.f32.mxu0 0.0
    %7379 = vmatmul.mubr.f32.gmra.mxu0 %v6940
    %v7380 = vpop.f32.mrf.mxu0
    %v7381 = vadd.f32 0.0, %v7380
    %v7382 = vpop.f32.mrf.mxu0
    %7383 = vmatprep.mubr.f32.mxu0 0.0
    %7384 = vmatmul.mubr.f32.gmra.mxu0 %v6942
    %v7385 = vpop.f32.mrf.mxu0
    %v7386 = vadd.f32 0.0, %v7385
    %v7387 = vpop.f32.mrf.mxu0
    %7388 = vmatprep.mubr.f32.mxu0 0.0
    %7389 = vmatmul.mubr.f32.gmra.mxu0 %v6945
    %v7390 = vpop.f32.mrf.mxu0
    %v7391 = vadd.f32 0.0, %v7390
    %v7392 = vpop.f32.mrf.mxu0
    %7393 = vmatprep.mubr.f32.mxu0 0.0
    %7394 = vmatmul.mubr.f32.gmra.mxu0 %v6947
    %v7395 = vpop.f32.mrf.mxu0
    %v7396 = vadd.f32 0.0, %v7395
    %v7397 = vpop.f32.mrf.mxu0
    %7398 = vmatprep.mubr.f32.mxu0 0.0
    %7399 = vmatmul.mubr.f32.gmra.mxu0 %v6950
    %v7400 = vpop.f32.mrf.mxu0
    %v7401 = vadd.f32 0.0, %v7400
    %v7402 = vpop.f32.mrf.mxu0
    %7403 = vmatprep.mubr.f32.mxu0 0.0
    %7404 = vmatmul.mubr.f32.gmra.mxu0 %v6952
    %v7405 = vpop.f32.mrf.mxu0
    %v7406 = vadd.f32 0.0, %v7405
    %v7407 = vpop.f32.mrf.mxu0
    %7408 = vmatprep.mubr.f32.mxu0 0.0
    %7409 = vmatmul.mubr.f32.gmra.mxu0 %v6955
    %v7410 = vpop.f32.mrf.mxu0
    %v7411 = vadd.f32 0.0, %v7410
    %v7412 = vpop.f32.mrf.mxu0
    %7413 = vmatprep.mubr.f32.mxu0 0.0
    %7414 = vmatmul.mubr.f32.gmra.mxu0 %v6957
    %v7415 = vpop.f32.mrf.mxu0
    %v7416 = vadd.f32 0.0, %v7415
    %v7417 = vpop.f32.mrf.mxu0
    %7418 = vmatprep.mubr.f32.mxu0 0.0
    %7419 = vmatmul.mubr.f32.gmra.mxu0 %v6960
    %v7420 = vpop.f32.mrf.mxu0
    %v7421 = vadd.f32 0.0, %v7420
    %v7422 = vpop.f32.mrf.mxu0
    %7423 = vmatprep.mubr.f32.mxu0 0.0
    %7424 = vmatmul.mubr.f32.gmra.mxu0 %v6962
    %v7425 = vpop.f32.mrf.mxu0
    %v7426 = vadd.f32 0.0, %v7425
    %v7427 = vpop.f32.mrf.mxu0
    %7428 = vdwg.mxu0
    %v7429 = vadd.f32 %v6485, %v7111
    %v7430 = vadd.f32 %v6490, %v7116
    %v7431 = vadd.f32 %v6495, %v7121
    %v7432 = vadd.f32 %v6500, %v7126
    %v7433 = vadd.f32 %v6505, %v7131
    %v7434 = vadd.f32 %v6510, %v7136
    %v7435 = vadd.f32 %v6515, %v7141
    %v7436 = vadd.f32 %v6520, %v7146
    %v7437 = vadd.f32 %v6525, %v7151
    %v7438 = vadd.f32 %v6530, %v7156
    %v7439 = vadd.f32 %v6535, %v7161
    %v7440 = vadd.f32 %v6540, %v7166
    %v7441 = vadd.f32 %v6545, %v7171
    %v7442 = vadd.f32 %v6550, %v7176
    %v7443 = vadd.f32 %v6555, %v7181
    %v7444 = vadd.f32 %v6560, %v7186
    %v7445 = vadd.f32 %v6565, %v7191
    %v7446 = vadd.f32 %v6570, %v7196
    %v7447 = vadd.f32 %v6575, %v7201
    %v7448 = vadd.f32 %v6580, %v7206
    %v7449 = vadd.f32 %v6585, %v7211
    %v7450 = vadd.f32 %v6590, %v7216
    %v7451 = vadd.f32 %v6595, %v7221
    %v7452 = vadd.f32 %v6600, %v7226
    %v7453 = vadd.f32 %v6605, %v7231
    %v7454 = vadd.f32 %v6610, %v7236
    %v7455 = vadd.f32 %v6615, %v7241
    %v7456 = vadd.f32 %v6620, %v7246
    %v7457 = vadd.f32 %v6625, %v7251
    %v7458 = vadd.f32 %v6630, %v7256
    %v7459 = vadd.f32 %v6635, %v7261
    %v7460 = vadd.f32 %v6640, %v7266
    %v7461 = vadd.f32 %v6645, %v7271
    %v7462 = vadd.f32 %v6650, %v7276
    %v7463 = vadd.f32 %v6655, %v7281
    %v7464 = vadd.f32 %v6660, %v7286
    %v7465 = vadd.f32 %v6665, %v7291
    %v7466 = vadd.f32 %v6670, %v7296
    %v7467 = vadd.f32 %v6675, %v7301
    %v7468 = vadd.f32 %v6680, %v7306
    %v7469 = vadd.f32 %v6685, %v7311
    %v7470 = vadd.f32 %v6690, %v7316
    %v7471 = vadd.f32 %v6695, %v7321
    %v7472 = vadd.f32 %v6700, %v7326
    %v7473 = vadd.f32 %v6705, %v7331
    %v7474 = vadd.f32 %v6710, %v7336
    %v7475 = vadd.f32 %v6715, %v7341
    %v7476 = vadd.f32 %v6720, %v7346
    %v7477 = vadd.f32 %v6725, %v7351
    %v7478 = vadd.f32 %v6730, %v7356
    %v7479 = vadd.f32 %v6735, %v7361
    %v7480 = vadd.f32 %v6740, %v7366
    %v7481 = vadd.f32 %v6745, %v7371
    %v7482 = vadd.f32 %v6750, %v7376
    %v7483 = vadd.f32 %v6755, %v7381
    %v7484 = vadd.f32 %v6760, %v7386
    %v7485 = vadd.f32 %v6765, %v7391
    %v7486 = vadd.f32 %v6770, %v7396
    %v7487 = vadd.f32 %v6775, %v7401
    %v7488 = vadd.f32 %v6780, %v7406
    %v7489 = vadd.f32 %v6785, %v7411
    %v7490 = vadd.f32 %v6790, %v7416
    %v7491 = vadd.f32 %v6795, %v7421
    %v7492 = vadd.f32 %v6800, %v7426
    %s7493 = scalar_lea.vmem [#allocation3], 384
    %v7494 = vld [vmem:[%s7493] sm:$0xff]
    %v7495 = vld [vmem:[%s7493 + $0x8] sm:$0xff]
    %v7496 = vld [vmem:[%s7493 + $0x10] sm:$0xff]
    %v7497 = vld [vmem:[%s7493 + $0x18] sm:$0xff]
    %v7498 = vld [vmem:[%s7493 + $0x20] sm:$0xff]
    %v7499 = vld [vmem:[%s7493 + $0x28] sm:$0xff]
    %v7500 = vld [vmem:[%s7493 + $0x30] sm:$0xff]
    %v7501 = vld [vmem:[%s7493 + $0x38] sm:$0xff]
    %v7502 = vld [vmem:[%s7493 + $0x40] sm:$0xff]
    %v7503 = vld [vmem:[%s7493 + $0x48] sm:$0xff]
    %v7504 = vld [vmem:[%s7493 + $0x50] sm:$0xff]
    %v7505 = vld [vmem:[%s7493 + $0x58] sm:$0xff]
    %v7506 = vld [vmem:[%s7493 + $0x60] sm:$0xff]
    %v7507 = vld [vmem:[%s7493 + $0x68] sm:$0xff]
    %v7508 = vld [vmem:[%s7493 + $0x70] sm:$0xff]
    %v7509 = vld [vmem:[%s7493 + $0x78] sm:$0xff]
    %7510 = vmatprep.subr.mxu0 0.0
    %7511 = vmatpush1.msra.mxu0 %v7509
    %7512 = vmatprep.subr.mxu0 0.0
    %7513 = vmatpush1.msra.mxu0 %v7508
    %7514 = vmatprep.subr.mxu0 0.0
    %7515 = vmatpush1.msra.mxu0 %v7507
    %7516 = vmatprep.subr.mxu0 0.0
    %7517 = vmatpush1.msra.mxu0 %v7506
    %7518 = vmatprep.subr.mxu0 0.0
    %7519 = vmatpush1.msra.mxu0 %v7505
    %7520 = vmatprep.subr.mxu0 0.0
    %7521 = vmatpush1.msra.mxu0 %v7504
    %7522 = vmatprep.subr.mxu0 0.0
    %7523 = vmatpush1.msra.mxu0 %v7503
    %7524 = vmatprep.subr.mxu0 0.0
    %7525 = vmatpush1.msra.mxu0 %v7502
    %7526 = vmatprep.subr.mxu0 0.0
    %7527 = vmatpush1.msra.mxu0 %v7501
    %7528 = vmatprep.subr.mxu0 0.0
    %7529 = vmatpush1.msra.mxu0 %v7500
    %7530 = vmatprep.subr.mxu0 0.0
    %7531 = vmatpush1.msra.mxu0 %v7499
    %7532 = vmatprep.subr.mxu0 0.0
    %7533 = vmatpush1.msra.mxu0 %v7498
    %7534 = vmatprep.subr.mxu0 0.0
    %7535 = vmatpush1.msra.mxu0 %v7497
    %7536 = vmatprep.subr.mxu0 0.0
    %7537 = vmatpush1.msra.mxu0 %v7496
    %7538 = vmatprep.subr.mxu0 0.0
    %7539 = vmatpush1.msra.mxu0 %v7495
    %7540 = vmatprep.subr.mxu0 0.0
    %7541 = vmatpush1.msra.mxu0 %v7494
    %7542 = vmatprep.subr.mxu0 0.0
    %7543 = vmatpush2.msra.mxu0 0.0
    %7544 = vmatprep.subr.mxu0 0.0
    %7545 = vmatpush2.msra.mxu0 0.0
    %7546 = vmatprep.subr.mxu0 0.0
    %7547 = vmatpush2.msra.mxu0 0.0
    %7548 = vmatprep.subr.mxu0 0.0
    %7549 = vmatpush2.msra.mxu0 0.0
    %7550 = vmatprep.subr.mxu0 0.0
    %7551 = vmatpush2.msra.mxu0 0.0
    %7552 = vmatprep.subr.mxu0 0.0
    %7553 = vmatpush2.msra.mxu0 0.0
    %7554 = vmatprep.subr.mxu0 0.0
    %7555 = vmatpush2.msra.mxu0 0.0
    %7556 = vmatprep.subr.mxu0 0.0
    %7557 = vmatpush2.msra.mxu0 0.0
    %7558 = vmatprep.subr.mxu0 0.0
    %7559 = vmatpush2.msra.mxu0 0.0
    %7560 = vmatprep.subr.mxu0 0.0
    %7561 = vmatpush2.msra.mxu0 0.0
    %7562 = vmatprep.subr.mxu0 0.0
    %7563 = vmatpush2.msra.mxu0 0.0
    %7564 = vmatprep.subr.mxu0 0.0
    %7565 = vmatpush2.msra.mxu0 0.0
    %7566 = vmatprep.subr.mxu0 0.0
    %7567 = vmatpush2.msra.mxu0 0.0
    %7568 = vmatprep.subr.mxu0 0.0
    %7569 = vmatpush2.msra.mxu0 0.0
    %7570 = vmatprep.subr.mxu0 0.0
    %7571 = vmatpush2.msra.mxu0 0.0
    %7572 = vmatprep.subr.mxu0 0.0
    %7573 = vmatpush2.msra.mxu0 0.0
    %7574 = vmatprep.mubr.f32.mxu0 0.0
    %7575 = vmatmul.mubr.f32.gmra.mxu0 %v5575
    %v7576 = vpop.f32.mrf.mxu0
    %v7577 = vadd.f32 0.0, %v7576
    %v7578 = vpop.f32.mrf.mxu0
    %7579 = vmatprep.mubr.f32.mxu0 0.0
    %7580 = vmatmul.mubr.f32.gmra.mxu0 %v5576
    %v7581 = vpop.f32.mrf.mxu0
    %v7582 = vadd.f32 0.0, %v7581
    %v7583 = vpop.f32.mrf.mxu0
    %7584 = vmatprep.mubr.f32.mxu0 0.0
    %7585 = vmatmul.mubr.f32.gmra.mxu0 %v5578
    %v7586 = vpop.f32.mrf.mxu0
    %v7587 = vadd.f32 0.0, %v7586
    %v7588 = vpop.f32.mrf.mxu0
    %7589 = vmatprep.mubr.f32.mxu0 0.0
    %7590 = vmatmul.mubr.f32.gmra.mxu0 %v5579
    %v7591 = vpop.f32.mrf.mxu0
    %v7592 = vadd.f32 0.0, %v7591
    %v7593 = vpop.f32.mrf.mxu0
    %7594 = vmatprep.mubr.f32.mxu0 0.0
    %7595 = vmatmul.mubr.f32.gmra.mxu0 %v5581
    %v7596 = vpop.f32.mrf.mxu0
    %v7597 = vadd.f32 0.0, %v7596
    %v7598 = vpop.f32.mrf.mxu0
    %7599 = vmatprep.mubr.f32.mxu0 0.0
    %7600 = vmatmul.mubr.f32.gmra.mxu0 %v5582
    %v7601 = vpop.f32.mrf.mxu0
    %v7602 = vadd.f32 0.0, %v7601
    %v7603 = vpop.f32.mrf.mxu0
    %7604 = vmatprep.mubr.f32.mxu0 0.0
    %7605 = vmatmul.mubr.f32.gmra.mxu0 %v5584
    %v7606 = vpop.f32.mrf.mxu0
    %v7607 = vadd.f32 0.0, %v7606
    %v7608 = vpop.f32.mrf.mxu0
    %7609 = vmatprep.mubr.f32.mxu0 0.0
    %7610 = vmatmul.mubr.f32.gmra.mxu0 %v5585
    %v7611 = vpop.f32.mrf.mxu0
    %v7612 = vadd.f32 0.0, %v7611
    %v7613 = vpop.f32.mrf.mxu0
    %7614 = vmatprep.mubr.f32.mxu0 0.0
    %7615 = vmatmul.mubr.f32.gmra.mxu0 %v5587
    %v7616 = vpop.f32.mrf.mxu0
    %v7617 = vadd.f32 0.0, %v7616
    %v7618 = vpop.f32.mrf.mxu0
    %7619 = vmatprep.mubr.f32.mxu0 0.0
    %7620 = vmatmul.mubr.f32.gmra.mxu0 %v5588
    %v7621 = vpop.f32.mrf.mxu0
    %v7622 = vadd.f32 0.0, %v7621
    %v7623 = vpop.f32.mrf.mxu0
    %7624 = vmatprep.mubr.f32.mxu0 0.0
    %7625 = vmatmul.mubr.f32.gmra.mxu0 %v5590
    %v7626 = vpop.f32.mrf.mxu0
    %v7627 = vadd.f32 0.0, %v7626
    %v7628 = vpop.f32.mrf.mxu0
    %7629 = vmatprep.mubr.f32.mxu0 0.0
    %7630 = vmatmul.mubr.f32.gmra.mxu0 %v5591
    %v7631 = vpop.f32.mrf.mxu0
    %v7632 = vadd.f32 0.0, %v7631
    %v7633 = vpop.f32.mrf.mxu0
    %7634 = vmatprep.mubr.f32.mxu0 0.0
    %7635 = vmatmul.mubr.f32.gmra.mxu0 %v5593
    %v7636 = vpop.f32.mrf.mxu0
    %v7637 = vadd.f32 0.0, %v7636
    %v7638 = vpop.f32.mrf.mxu0
    %7639 = vmatprep.mubr.f32.mxu0 0.0
    %7640 = vmatmul.mubr.f32.gmra.mxu0 %v5594
    %v7641 = vpop.f32.mrf.mxu0
    %v7642 = vadd.f32 0.0, %v7641
    %v7643 = vpop.f32.mrf.mxu0
    %7644 = vmatprep.mubr.f32.mxu0 0.0
    %7645 = vmatmul.mubr.f32.gmra.mxu0 %v5596
    %v7646 = vpop.f32.mrf.mxu0
    %v7647 = vadd.f32 0.0, %v7646
    %v7648 = vpop.f32.mrf.mxu0
    %7649 = vmatprep.mubr.f32.mxu0 0.0
    %7650 = vmatmul.mubr.f32.gmra.mxu0 %v5597
    %v7651 = vpop.f32.mrf.mxu0
    %v7652 = vadd.f32 0.0, %v7651
    %v7653 = vpop.f32.mrf.mxu0
    %7654 = vmatprep.mubr.f32.mxu0 0.0
    %7655 = vmatmul.mubr.f32.gmra.mxu0 %v5599
    %v7656 = vpop.f32.mrf.mxu0
    %v7657 = vadd.f32 0.0, %v7656
    %v7658 = vpop.f32.mrf.mxu0
    %7659 = vmatprep.mubr.f32.mxu0 0.0
    %7660 = vmatmul.mubr.f32.gmra.mxu0 %v5600
    %v7661 = vpop.f32.mrf.mxu0
    %v7662 = vadd.f32 0.0, %v7661
    %v7663 = vpop.f32.mrf.mxu0
    %7664 = vmatprep.mubr.f32.mxu0 0.0
    %7665 = vmatmul.mubr.f32.gmra.mxu0 %v5602
    %v7666 = vpop.f32.mrf.mxu0
    %v7667 = vadd.f32 0.0, %v7666
    %v7668 = vpop.f32.mrf.mxu0
    %7669 = vmatprep.mubr.f32.mxu0 0.0
    %7670 = vmatmul.mubr.f32.gmra.mxu0 %v5603
    %v7671 = vpop.f32.mrf.mxu0
    %v7672 = vadd.f32 0.0, %v7671
    %v7673 = vpop.f32.mrf.mxu0
    %7674 = vmatprep.mubr.f32.mxu0 0.0
    %7675 = vmatmul.mubr.f32.gmra.mxu0 %v5605
    %v7676 = vpop.f32.mrf.mxu0
    %v7677 = vadd.f32 0.0, %v7676
    %v7678 = vpop.f32.mrf.mxu0
    %7679 = vmatprep.mubr.f32.mxu0 0.0
    %7680 = vmatmul.mubr.f32.gmra.mxu0 %v5606
    %v7681 = vpop.f32.mrf.mxu0
    %v7682 = vadd.f32 0.0, %v7681
    %v7683 = vpop.f32.mrf.mxu0
    %7684 = vmatprep.mubr.f32.mxu0 0.0
    %7685 = vmatmul.mubr.f32.gmra.mxu0 %v5608
    %v7686 = vpop.f32.mrf.mxu0
    %v7687 = vadd.f32 0.0, %v7686
    %v7688 = vpop.f32.mrf.mxu0
    %7689 = vmatprep.mubr.f32.mxu0 0.0
    %7690 = vmatmul.mubr.f32.gmra.mxu0 %v5609
    %v7691 = vpop.f32.mrf.mxu0
    %v7692 = vadd.f32 0.0, %v7691
    %v7693 = vpop.f32.mrf.mxu0
    %7694 = vmatprep.mubr.f32.mxu0 0.0
    %7695 = vmatmul.mubr.f32.gmra.mxu0 %v5611
    %v7696 = vpop.f32.mrf.mxu0
    %v7697 = vadd.f32 0.0, %v7696
    %v7698 = vpop.f32.mrf.mxu0
    %7699 = vmatprep.mubr.f32.mxu0 0.0
    %7700 = vmatmul.mubr.f32.gmra.mxu0 %v5612
    %v7701 = vpop.f32.mrf.mxu0
    %v7702 = vadd.f32 0.0, %v7701
    %v7703 = vpop.f32.mrf.mxu0
    %7704 = vmatprep.mubr.f32.mxu0 0.0
    %7705 = vmatmul.mubr.f32.gmra.mxu0 %v5614
    %v7706 = vpop.f32.mrf.mxu0
    %v7707 = vadd.f32 0.0, %v7706
    %v7708 = vpop.f32.mrf.mxu0
    %7709 = vmatprep.mubr.f32.mxu0 0.0
    %7710 = vmatmul.mubr.f32.gmra.mxu0 %v5615
    %v7711 = vpop.f32.mrf.mxu0
    %v7712 = vadd.f32 0.0, %v7711
    %v7713 = vpop.f32.mrf.mxu0
    %7714 = vmatprep.mubr.f32.mxu0 0.0
    %7715 = vmatmul.mubr.f32.gmra.mxu0 %v5617
    %v7716 = vpop.f32.mrf.mxu0
    %v7717 = vadd.f32 0.0, %v7716
    %v7718 = vpop.f32.mrf.mxu0
    %7719 = vmatprep.mubr.f32.mxu0 0.0
    %7720 = vmatmul.mubr.f32.gmra.mxu0 %v5618
    %v7721 = vpop.f32.mrf.mxu0
    %v7722 = vadd.f32 0.0, %v7721
    %v7723 = vpop.f32.mrf.mxu0
    %7724 = vmatprep.mubr.f32.mxu0 0.0
    %7725 = vmatmul.mubr.f32.gmra.mxu0 %v5620
    %v7726 = vpop.f32.mrf.mxu0
    %v7727 = vadd.f32 0.0, %v7726
    %v7728 = vpop.f32.mrf.mxu0
    %7729 = vmatprep.mubr.f32.mxu0 0.0
    %7730 = vmatmul.mubr.f32.gmra.mxu0 %v5621
    %v7731 = vpop.f32.mrf.mxu0
    %v7732 = vadd.f32 0.0, %v7731
    %v7733 = vpop.f32.mrf.mxu0
    %7734 = vmatprep.mubr.f32.mxu0 0.0
    %7735 = vmatmul.mubr.f32.gmra.mxu0 %v5629
    %v7736 = vpop.f32.mrf.mxu0
    %v7737 = vadd.f32 0.0, %v7736
    %v7738 = vpop.f32.mrf.mxu0
    %7739 = vmatprep.mubr.f32.mxu0 0.0
    %7740 = vmatmul.mubr.f32.gmra.mxu0 %v5630
    %v7741 = vpop.f32.mrf.mxu0
    %v7742 = vadd.f32 0.0, %v7741
    %v7743 = vpop.f32.mrf.mxu0
    %7744 = vmatprep.mubr.f32.mxu0 0.0
    %7745 = vmatmul.mubr.f32.gmra.mxu0 %v5632
    %v7746 = vpop.f32.mrf.mxu0
    %v7747 = vadd.f32 0.0, %v7746
    %v7748 = vpop.f32.mrf.mxu0
    %7749 = vmatprep.mubr.f32.mxu0 0.0
    %7750 = vmatmul.mubr.f32.gmra.mxu0 %v5633
    %v7751 = vpop.f32.mrf.mxu0
    %v7752 = vadd.f32 0.0, %v7751
    %v7753 = vpop.f32.mrf.mxu0
    %7754 = vmatprep.mubr.f32.mxu0 0.0
    %7755 = vmatmul.mubr.f32.gmra.mxu0 %v5635
    %v7756 = vpop.f32.mrf.mxu0
    %v7757 = vadd.f32 0.0, %v7756
    %v7758 = vpop.f32.mrf.mxu0
    %7759 = vmatprep.mubr.f32.mxu0 0.0
    %7760 = vmatmul.mubr.f32.gmra.mxu0 %v5636
    %v7761 = vpop.f32.mrf.mxu0
    %v7762 = vadd.f32 0.0, %v7761
    %v7763 = vpop.f32.mrf.mxu0
    %7764 = vmatprep.mubr.f32.mxu0 0.0
    %7765 = vmatmul.mubr.f32.gmra.mxu0 %v5638
    %v7766 = vpop.f32.mrf.mxu0
    %v7767 = vadd.f32 0.0, %v7766
    %v7768 = vpop.f32.mrf.mxu0
    %7769 = vmatprep.mubr.f32.mxu0 0.0
    %7770 = vmatmul.mubr.f32.gmra.mxu0 %v5639
    %v7771 = vpop.f32.mrf.mxu0
    %v7772 = vadd.f32 0.0, %v7771
    %v7773 = vpop.f32.mrf.mxu0
    %7774 = vmatprep.mubr.f32.mxu0 0.0
    %7775 = vmatmul.mubr.f32.gmra.mxu0 %v5641
    %v7776 = vpop.f32.mrf.mxu0
    %v7777 = vadd.f32 0.0, %v7776
    %v7778 = vpop.f32.mrf.mxu0
    %7779 = vmatprep.mubr.f32.mxu0 0.0
    %7780 = vmatmul.mubr.f32.gmra.mxu0 %v5642
    %v7781 = vpop.f32.mrf.mxu0
    %v7782 = vadd.f32 0.0, %v7781
    %v7783 = vpop.f32.mrf.mxu0
    %7784 = vmatprep.mubr.f32.mxu0 0.0
    %7785 = vmatmul.mubr.f32.gmra.mxu0 %v5644
    %v7786 = vpop.f32.mrf.mxu0
    %v7787 = vadd.f32 0.0, %v7786
    %v7788 = vpop.f32.mrf.mxu0
    %7789 = vmatprep.mubr.f32.mxu0 0.0
    %7790 = vmatmul.mubr.f32.gmra.mxu0 %v5645
    %v7791 = vpop.f32.mrf.mxu0
    %v7792 = vadd.f32 0.0, %v7791
    %v7793 = vpop.f32.mrf.mxu0
    %7794 = vmatprep.mubr.f32.mxu0 0.0
    %7795 = vmatmul.mubr.f32.gmra.mxu0 %v5647
    %v7796 = vpop.f32.mrf.mxu0
    %v7797 = vadd.f32 0.0, %v7796
    %v7798 = vpop.f32.mrf.mxu0
    %7799 = vmatprep.mubr.f32.mxu0 0.0
    %7800 = vmatmul.mubr.f32.gmra.mxu0 %v5648
    %v7801 = vpop.f32.mrf.mxu0
    %v7802 = vadd.f32 0.0, %v7801
    %v7803 = vpop.f32.mrf.mxu0
    %7804 = vmatprep.mubr.f32.mxu0 0.0
    %7805 = vmatmul.mubr.f32.gmra.mxu0 %v5650
    %v7806 = vpop.f32.mrf.mxu0
    %v7807 = vadd.f32 0.0, %v7806
    %v7808 = vpop.f32.mrf.mxu0
    %7809 = vmatprep.mubr.f32.mxu0 0.0
    %7810 = vmatmul.mubr.f32.gmra.mxu0 %v5651
    %v7811 = vpop.f32.mrf.mxu0
    %v7812 = vadd.f32 0.0, %v7811
    %v7813 = vpop.f32.mrf.mxu0
    %7814 = vmatprep.mubr.f32.mxu0 0.0
    %7815 = vmatmul.mubr.f32.gmra.mxu0 %v5653
    %v7816 = vpop.f32.mrf.mxu0
    %v7817 = vadd.f32 0.0, %v7816
    %v7818 = vpop.f32.mrf.mxu0
    %7819 = vmatprep.mubr.f32.mxu0 0.0
    %7820 = vmatmul.mubr.f32.gmra.mxu0 %v5654
    %v7821 = vpop.f32.mrf.mxu0
    %v7822 = vadd.f32 0.0, %v7821
    %v7823 = vpop.f32.mrf.mxu0
    %7824 = vmatprep.mubr.f32.mxu0 0.0
    %7825 = vmatmul.mubr.f32.gmra.mxu0 %v5656
    %v7826 = vpop.f32.mrf.mxu0
    %v7827 = vadd.f32 0.0, %v7826
    %v7828 = vpop.f32.mrf.mxu0
    %7829 = vmatprep.mubr.f32.mxu0 0.0
    %7830 = vmatmul.mubr.f32.gmra.mxu0 %v5657
    %v7831 = vpop.f32.mrf.mxu0
    %v7832 = vadd.f32 0.0, %v7831
    %v7833 = vpop.f32.mrf.mxu0
    %7834 = vmatprep.mubr.f32.mxu0 0.0
    %7835 = vmatmul.mubr.f32.gmra.mxu0 %v5659
    %v7836 = vpop.f32.mrf.mxu0
    %v7837 = vadd.f32 0.0, %v7836
    %v7838 = vpop.f32.mrf.mxu0
    %7839 = vmatprep.mubr.f32.mxu0 0.0
    %7840 = vmatmul.mubr.f32.gmra.mxu0 %v5660
    %v7841 = vpop.f32.mrf.mxu0
    %v7842 = vadd.f32 0.0, %v7841
    %v7843 = vpop.f32.mrf.mxu0
    %7844 = vmatprep.mubr.f32.mxu0 0.0
    %7845 = vmatmul.mubr.f32.gmra.mxu0 %v5662
    %v7846 = vpop.f32.mrf.mxu0
    %v7847 = vadd.f32 0.0, %v7846
    %v7848 = vpop.f32.mrf.mxu0
    %7849 = vmatprep.mubr.f32.mxu0 0.0
    %7850 = vmatmul.mubr.f32.gmra.mxu0 %v5663
    %v7851 = vpop.f32.mrf.mxu0
    %v7852 = vadd.f32 0.0, %v7851
    %v7853 = vpop.f32.mrf.mxu0
    %7854 = vmatprep.mubr.f32.mxu0 0.0
    %7855 = vmatmul.mubr.f32.gmra.mxu0 %v5665
    %v7856 = vpop.f32.mrf.mxu0
    %v7857 = vadd.f32 0.0, %v7856
    %v7858 = vpop.f32.mrf.mxu0
    %7859 = vmatprep.mubr.f32.mxu0 0.0
    %7860 = vmatmul.mubr.f32.gmra.mxu0 %v5666
    %v7861 = vpop.f32.mrf.mxu0
    %v7862 = vadd.f32 0.0, %v7861
    %v7863 = vpop.f32.mrf.mxu0
    %7864 = vmatprep.mubr.f32.mxu0 0.0
    %7865 = vmatmul.mubr.f32.gmra.mxu0 %v5668
    %v7866 = vpop.f32.mrf.mxu0
    %v7867 = vadd.f32 0.0, %v7866
    %v7868 = vpop.f32.mrf.mxu0
    %7869 = vmatprep.mubr.f32.mxu0 0.0
    %7870 = vmatmul.mubr.f32.gmra.mxu0 %v5669
    %v7871 = vpop.f32.mrf.mxu0
    %v7872 = vadd.f32 0.0, %v7871
    %v7873 = vpop.f32.mrf.mxu0
    %7874 = vmatprep.mubr.f32.mxu0 0.0
    %7875 = vmatmul.mubr.f32.gmra.mxu0 %v5671
    %v7876 = vpop.f32.mrf.mxu0
    %v7877 = vadd.f32 0.0, %v7876
    %v7878 = vpop.f32.mrf.mxu0
    %7879 = vmatprep.mubr.f32.mxu0 0.0
    %7880 = vmatmul.mubr.f32.gmra.mxu0 %v5672
    %v7881 = vpop.f32.mrf.mxu0
    %v7882 = vadd.f32 0.0, %v7881
    %v7883 = vpop.f32.mrf.mxu0
    %7884 = vmatprep.mubr.f32.mxu0 0.0
    %7885 = vmatmul.mubr.f32.gmra.mxu0 %v5674
    %v7886 = vpop.f32.mrf.mxu0
    %v7887 = vadd.f32 0.0, %v7886
    %v7888 = vpop.f32.mrf.mxu0
    %7889 = vmatprep.mubr.f32.mxu0 0.0
    %7890 = vmatmul.mubr.f32.gmra.mxu0 %v5675
    %v7891 = vpop.f32.mrf.mxu0
    %v7892 = vadd.f32 0.0, %v7891
    %v7893 = vpop.f32.mrf.mxu0
    %7894 = vdwg.mxu0
    %v7895 = vadd.f32 %v7429, %v7577
    %v7896 = vadd.f32 %v7430, %v7582
    %v7897 = vadd.f32 %v7431, %v7587
    %v7898 = vadd.f32 %v7432, %v7592
    %v7899 = vadd.f32 %v7433, %v7597
    %v7900 = vadd.f32 %v7434, %v7602
    %v7901 = vadd.f32 %v7435, %v7607
    %v7902 = vadd.f32 %v7436, %v7612
    %v7903 = vadd.f32 %v7437, %v7617
    %v7904 = vadd.f32 %v7438, %v7622
    %v7905 = vadd.f32 %v7439, %v7627
    %v7906 = vadd.f32 %v7440, %v7632
    %v7907 = vadd.f32 %v7441, %v7637
    %v7908 = vadd.f32 %v7442, %v7642
    %v7909 = vadd.f32 %v7443, %v7647
    %v7910 = vadd.f32 %v7444, %v7652
    %v7911 = vadd.f32 %v7445, %v7657
    %v7912 = vadd.f32 %v7446, %v7662
    %v7913 = vadd.f32 %v7447, %v7667
    %v7914 = vadd.f32 %v7448, %v7672
    %v7915 = vadd.f32 %v7449, %v7677
    %v7916 = vadd.f32 %v7450, %v7682
    %v7917 = vadd.f32 %v7451, %v7687
    %v7918 = vadd.f32 %v7452, %v7692
    %v7919 = vadd.f32 %v7453, %v7697
    %v7920 = vadd.f32 %v7454, %v7702
    %v7921 = vadd.f32 %v7455, %v7707
    %v7922 = vadd.f32 %v7456, %v7712
    %v7923 = vadd.f32 %v7457, %v7717
    %v7924 = vadd.f32 %v7458, %v7722
    %v7925 = vadd.f32 %v7459, %v7727
    %v7926 = vadd.f32 %v7460, %v7732
    %v7927 = vadd.f32 %v7461, %v7737
    %v7928 = vadd.f32 %v7462, %v7742
    %v7929 = vadd.f32 %v7463, %v7747
    %v7930 = vadd.f32 %v7464, %v7752
    %v7931 = vadd.f32 %v7465, %v7757
    %v7932 = vadd.f32 %v7466, %v7762
    %v7933 = vadd.f32 %v7467, %v7767
    %v7934 = vadd.f32 %v7468, %v7772
    %v7935 = vadd.f32 %v7469, %v7777
    %v7936 = vadd.f32 %v7470, %v7782
    %v7937 = vadd.f32 %v7471, %v7787
    %v7938 = vadd.f32 %v7472, %v7792
    %v7939 = vadd.f32 %v7473, %v7797
    %v7940 = vadd.f32 %v7474, %v7802
    %v7941 = vadd.f32 %v7475, %v7807
    %v7942 = vadd.f32 %v7476, %v7812
    %v7943 = vadd.f32 %v7477, %v7817
    %v7944 = vadd.f32 %v7478, %v7822
    %v7945 = vadd.f32 %v7479, %v7827
    %v7946 = vadd.f32 %v7480, %v7832
    %v7947 = vadd.f32 %v7481, %v7837
    %v7948 = vadd.f32 %v7482, %v7842
    %v7949 = vadd.f32 %v7483, %v7847
    %v7950 = vadd.f32 %v7484, %v7852
    %v7951 = vadd.f32 %v7485, %v7857
    %v7952 = vadd.f32 %v7486, %v7862
    %v7953 = vadd.f32 %v7487, %v7867
    %v7954 = vadd.f32 %v7488, %v7872
    %v7955 = vadd.f32 %v7489, %v7877
    %v7956 = vadd.f32 %v7490, %v7882
    %v7957 = vadd.f32 %v7491, %v7887
    %v7958 = vadd.f32 %v7492, %v7892
    %v7965 = vrot.slane %v5620, 1
    %v7966 = vrot.slane %v5621, 1
    %v7967 = vsel %vm249, %v7965, %v7966
    %v7968 = vrot.slane %v5622, 1
    %v7969 = vsel %vm249, %v7966, %v7968
    %v7970 = vrot.slane %v5674, 1
    %v7971 = vrot.slane %v5675, 1
    %v7972 = vsel %vm249, %v7970, %v7971
    %v7973 = vrot.slane %v5676, 1
    %v7974 = vsel %vm249, %v7971, %v7973
    %s7979 = scalar_lea.vmem [#allocation3], 512
    %v7980 = vld [vmem:[%s7979] sm:$0xff]
    %v7981 = vld [vmem:[%s7979 + $0x8] sm:$0xff]
    %v7982 = vld [vmem:[%s7979 + $0x10] sm:$0xff]
    %v7983 = vld [vmem:[%s7979 + $0x18] sm:$0xff]
    %v7984 = vld [vmem:[%s7979 + $0x20] sm:$0xff]
    %v7985 = vld [vmem:[%s7979 + $0x28] sm:$0xff]
    %v7986 = vld [vmem:[%s7979 + $0x30] sm:$0xff]
    %v7987 = vld [vmem:[%s7979 + $0x38] sm:$0xff]
    %v7988 = vld [vmem:[%s7979 + $0x40] sm:$0xff]
    %v7989 = vld [vmem:[%s7979 + $0x48] sm:$0xff]
    %v7990 = vld [vmem:[%s7979 + $0x50] sm:$0xff]
    %v7991 = vld [vmem:[%s7979 + $0x58] sm:$0xff]
    %v7992 = vld [vmem:[%s7979 + $0x60] sm:$0xff]
    %v7993 = vld [vmem:[%s7979 + $0x68] sm:$0xff]
    %v7994 = vld [vmem:[%s7979 + $0x70] sm:$0xff]
    %v7995 = vld [vmem:[%s7979 + $0x78] sm:$0xff]
    %7996 = vmatprep.subr.mxu0 0.0
    %7997 = vmatpush1.msra.mxu0 %v7995
    %7998 = vmatprep.subr.mxu0 0.0
    %7999 = vmatpush1.msra.mxu0 %v7994
    %8000 = vmatprep.subr.mxu0 0.0
    %8001 = vmatpush1.msra.mxu0 %v7993
    %8002 = vmatprep.subr.mxu0 0.0
    %8003 = vmatpush1.msra.mxu0 %v7992
    %8004 = vmatprep.subr.mxu0 0.0
    %8005 = vmatpush1.msra.mxu0 %v7991
    %8006 = vmatprep.subr.mxu0 0.0
    %8007 = vmatpush1.msra.mxu0 %v7990
    %8008 = vmatprep.subr.mxu0 0.0
    %8009 = vmatpush1.msra.mxu0 %v7989
    %8010 = vmatprep.subr.mxu0 0.0
    %8011 = vmatpush1.msra.mxu0 %v7988
    %8012 = vmatprep.subr.mxu0 0.0
    %8013 = vmatpush1.msra.mxu0 %v7987
    %8014 = vmatprep.subr.mxu0 0.0
    %8015 = vmatpush1.msra.mxu0 %v7986
    %8016 = vmatprep.subr.mxu0 0.0
    %8017 = vmatpush1.msra.mxu0 %v7985
    %8018 = vmatprep.subr.mxu0 0.0
    %8019 = vmatpush1.msra.mxu0 %v7984
    %8020 = vmatprep.subr.mxu0 0.0
    %8021 = vmatpush1.msra.mxu0 %v7983
    %8022 = vmatprep.subr.mxu0 0.0
    %8023 = vmatpush1.msra.mxu0 %v7982
    %8024 = vmatprep.subr.mxu0 0.0
    %8025 = vmatpush1.msra.mxu0 %v7981
    %8026 = vmatprep.subr.mxu0 0.0
    %8027 = vmatpush1.msra.mxu0 %v7980
    %8028 = vmatprep.subr.mxu0 0.0
    %8029 = vmatpush2.msra.mxu0 0.0
    %8030 = vmatprep.subr.mxu0 0.0
    %8031 = vmatpush2.msra.mxu0 0.0
    %8032 = vmatprep.subr.mxu0 0.0
    %8033 = vmatpush2.msra.mxu0 0.0
    %8034 = vmatprep.subr.mxu0 0.0
    %8035 = vmatpush2.msra.mxu0 0.0
    %8036 = vmatprep.subr.mxu0 0.0
    %8037 = vmatpush2.msra.mxu0 0.0
    %8038 = vmatprep.subr.mxu0 0.0
    %8039 = vmatpush2.msra.mxu0 0.0
    %8040 = vmatprep.subr.mxu0 0.0
    %8041 = vmatpush2.msra.mxu0 0.0
    %8042 = vmatprep.subr.mxu0 0.0
    %8043 = vmatpush2.msra.mxu0 0.0
    %8044 = vmatprep.subr.mxu0 0.0
    %8045 = vmatpush2.msra.mxu0 0.0
    %8046 = vmatprep.subr.mxu0 0.0
    %8047 = vmatpush2.msra.mxu0 0.0
    %8048 = vmatprep.subr.mxu0 0.0
    %8049 = vmatpush2.msra.mxu0 0.0
    %8050 = vmatprep.subr.mxu0 0.0
    %8051 = vmatpush2.msra.mxu0 0.0
    %8052 = vmatprep.subr.mxu0 0.0
    %8053 = vmatpush2.msra.mxu0 0.0
    %8054 = vmatprep.subr.mxu0 0.0
    %8055 = vmatpush2.msra.mxu0 0.0
    %8056 = vmatprep.subr.mxu0 0.0
    %8057 = vmatpush2.msra.mxu0 0.0
    %8058 = vmatprep.subr.mxu0 0.0
    %8059 = vmatpush2.msra.mxu0 0.0
    %8060 = vmatprep.mubr.f32.mxu0 0.0
    %8061 = vmatmul.mubr.f32.gmra.mxu0 %v5799
    %v8062 = vpop.f32.mrf.mxu0
    %v8063 = vadd.f32 0.0, %v8062
    %v8064 = vpop.f32.mrf.mxu0
    %8065 = vmatprep.mubr.f32.mxu0 0.0
    %8066 = vmatmul.mubr.f32.gmra.mxu0 %v5801
    %v8067 = vpop.f32.mrf.mxu0
    %v8068 = vadd.f32 0.0, %v8067
    %v8069 = vpop.f32.mrf.mxu0
    %8070 = vmatprep.mubr.f32.mxu0 0.0
    %8071 = vmatmul.mubr.f32.gmra.mxu0 %v5804
    %v8072 = vpop.f32.mrf.mxu0
    %v8073 = vadd.f32 0.0, %v8072
    %v8074 = vpop.f32.mrf.mxu0
    %8075 = vmatprep.mubr.f32.mxu0 0.0
    %8076 = vmatmul.mubr.f32.gmra.mxu0 %v5806
    %v8077 = vpop.f32.mrf.mxu0
    %v8078 = vadd.f32 0.0, %v8077
    %v8079 = vpop.f32.mrf.mxu0
    %8080 = vmatprep.mubr.f32.mxu0 0.0
    %8081 = vmatmul.mubr.f32.gmra.mxu0 %v5809
    %v8082 = vpop.f32.mrf.mxu0
    %v8083 = vadd.f32 0.0, %v8082
    %v8084 = vpop.f32.mrf.mxu0
    %8085 = vmatprep.mubr.f32.mxu0 0.0
    %8086 = vmatmul.mubr.f32.gmra.mxu0 %v5811
    %v8087 = vpop.f32.mrf.mxu0
    %v8088 = vadd.f32 0.0, %v8087
    %v8089 = vpop.f32.mrf.mxu0
    %8090 = vmatprep.mubr.f32.mxu0 0.0
    %8091 = vmatmul.mubr.f32.gmra.mxu0 %v5814
    %v8092 = vpop.f32.mrf.mxu0
    %v8093 = vadd.f32 0.0, %v8092
    %v8094 = vpop.f32.mrf.mxu0
    %8095 = vmatprep.mubr.f32.mxu0 0.0
    %8096 = vmatmul.mubr.f32.gmra.mxu0 %v5816
    %v8097 = vpop.f32.mrf.mxu0
    %v8098 = vadd.f32 0.0, %v8097
    %v8099 = vpop.f32.mrf.mxu0
    %8100 = vmatprep.mubr.f32.mxu0 0.0
    %8101 = vmatmul.mubr.f32.gmra.mxu0 %v5819
    %v8102 = vpop.f32.mrf.mxu0
    %v8103 = vadd.f32 0.0, %v8102
    %v8104 = vpop.f32.mrf.mxu0
    %8105 = vmatprep.mubr.f32.mxu0 0.0
    %8106 = vmatmul.mubr.f32.gmra.mxu0 %v5821
    %v8107 = vpop.f32.mrf.mxu0
    %v8108 = vadd.f32 0.0, %v8107
    %v8109 = vpop.f32.mrf.mxu0
    %8110 = vmatprep.mubr.f32.mxu0 0.0
    %8111 = vmatmul.mubr.f32.gmra.mxu0 %v5824
    %v8112 = vpop.f32.mrf.mxu0
    %v8113 = vadd.f32 0.0, %v8112
    %v8114 = vpop.f32.mrf.mxu0
    %8115 = vmatprep.mubr.f32.mxu0 0.0
    %8116 = vmatmul.mubr.f32.gmra.mxu0 %v5826
    %v8117 = vpop.f32.mrf.mxu0
    %v8118 = vadd.f32 0.0, %v8117
    %v8119 = vpop.f32.mrf.mxu0
    %8120 = vmatprep.mubr.f32.mxu0 0.0
    %8121 = vmatmul.mubr.f32.gmra.mxu0 %v5829
    %v8122 = vpop.f32.mrf.mxu0
    %v8123 = vadd.f32 0.0, %v8122
    %v8124 = vpop.f32.mrf.mxu0
    %8125 = vmatprep.mubr.f32.mxu0 0.0
    %8126 = vmatmul.mubr.f32.gmra.mxu0 %v5831
    %v8127 = vpop.f32.mrf.mxu0
    %v8128 = vadd.f32 0.0, %v8127
    %v8129 = vpop.f32.mrf.mxu0
    %8130 = vmatprep.mubr.f32.mxu0 0.0
    %8131 = vmatmul.mubr.f32.gmra.mxu0 %v5834
    %v8132 = vpop.f32.mrf.mxu0
    %v8133 = vadd.f32 0.0, %v8132
    %v8134 = vpop.f32.mrf.mxu0
    %8135 = vmatprep.mubr.f32.mxu0 0.0
    %8136 = vmatmul.mubr.f32.gmra.mxu0 %v5836
    %v8137 = vpop.f32.mrf.mxu0
    %v8138 = vadd.f32 0.0, %v8137
    %v8139 = vpop.f32.mrf.mxu0
    %8140 = vmatprep.mubr.f32.mxu0 0.0
    %8141 = vmatmul.mubr.f32.gmra.mxu0 %v5839
    %v8142 = vpop.f32.mrf.mxu0
    %v8143 = vadd.f32 0.0, %v8142
    %v8144 = vpop.f32.mrf.mxu0
    %8145 = vmatprep.mubr.f32.mxu0 0.0
    %8146 = vmatmul.mubr.f32.gmra.mxu0 %v5841
    %v8147 = vpop.f32.mrf.mxu0
    %v8148 = vadd.f32 0.0, %v8147
    %v8149 = vpop.f32.mrf.mxu0
    %8150 = vmatprep.mubr.f32.mxu0 0.0
    %8151 = vmatmul.mubr.f32.gmra.mxu0 %v5844
    %v8152 = vpop.f32.mrf.mxu0
    %v8153 = vadd.f32 0.0, %v8152
    %v8154 = vpop.f32.mrf.mxu0
    %8155 = vmatprep.mubr.f32.mxu0 0.0
    %8156 = vmatmul.mubr.f32.gmra.mxu0 %v5846
    %v8157 = vpop.f32.mrf.mxu0
    %v8158 = vadd.f32 0.0, %v8157
    %v8159 = vpop.f32.mrf.mxu0
    %8160 = vmatprep.mubr.f32.mxu0 0.0
    %8161 = vmatmul.mubr.f32.gmra.mxu0 %v5849
    %v8162 = vpop.f32.mrf.mxu0
    %v8163 = vadd.f32 0.0, %v8162
    %v8164 = vpop.f32.mrf.mxu0
    %8165 = vmatprep.mubr.f32.mxu0 0.0
    %8166 = vmatmul.mubr.f32.gmra.mxu0 %v5851
    %v8167 = vpop.f32.mrf.mxu0
    %v8168 = vadd.f32 0.0, %v8167
    %v8169 = vpop.f32.mrf.mxu0
    %8170 = vmatprep.mubr.f32.mxu0 0.0
    %8171 = vmatmul.mubr.f32.gmra.mxu0 %v5854
    %v8172 = vpop.f32.mrf.mxu0
    %v8173 = vadd.f32 0.0, %v8172
    %v8174 = vpop.f32.mrf.mxu0
    %8175 = vmatprep.mubr.f32.mxu0 0.0
    %8176 = vmatmul.mubr.f32.gmra.mxu0 %v5856
    %v8177 = vpop.f32.mrf.mxu0
    %v8178 = vadd.f32 0.0, %v8177
    %v8179 = vpop.f32.mrf.mxu0
    %8180 = vmatprep.mubr.f32.mxu0 0.0
    %8181 = vmatmul.mubr.f32.gmra.mxu0 %v5859
    %v8182 = vpop.f32.mrf.mxu0
    %v8183 = vadd.f32 0.0, %v8182
    %v8184 = vpop.f32.mrf.mxu0
    %8185 = vmatprep.mubr.f32.mxu0 0.0
    %8186 = vmatmul.mubr.f32.gmra.mxu0 %v5861
    %v8187 = vpop.f32.mrf.mxu0
    %v8188 = vadd.f32 0.0, %v8187
    %v8189 = vpop.f32.mrf.mxu0
    %8190 = vmatprep.mubr.f32.mxu0 0.0
    %8191 = vmatmul.mubr.f32.gmra.mxu0 %v5864
    %v8192 = vpop.f32.mrf.mxu0
    %v8193 = vadd.f32 0.0, %v8192
    %v8194 = vpop.f32.mrf.mxu0
    %8195 = vmatprep.mubr.f32.mxu0 0.0
    %8196 = vmatmul.mubr.f32.gmra.mxu0 %v5866
    %v8197 = vpop.f32.mrf.mxu0
    %v8198 = vadd.f32 0.0, %v8197
    %v8199 = vpop.f32.mrf.mxu0
    %8200 = vmatprep.mubr.f32.mxu0 0.0
    %8201 = vmatmul.mubr.f32.gmra.mxu0 %v5869
    %v8202 = vpop.f32.mrf.mxu0
    %v8203 = vadd.f32 0.0, %v8202
    %v8204 = vpop.f32.mrf.mxu0
    %8205 = vmatprep.mubr.f32.mxu0 0.0
    %8206 = vmatmul.mubr.f32.gmra.mxu0 %v5871
    %v8207 = vpop.f32.mrf.mxu0
    %v8208 = vadd.f32 0.0, %v8207
    %v8209 = vpop.f32.mrf.mxu0
    %8210 = vmatprep.mubr.f32.mxu0 0.0
    %8211 = vmatmul.mubr.f32.gmra.mxu0 %v7967
    %v8212 = vpop.f32.mrf.mxu0
    %v8213 = vadd.f32 0.0, %v8212
    %v8214 = vpop.f32.mrf.mxu0
    %8215 = vmatprep.mubr.f32.mxu0 0.0
    %8216 = vmatmul.mubr.f32.gmra.mxu0 %v7969
    %v8217 = vpop.f32.mrf.mxu0
    %v8218 = vadd.f32 0.0, %v8217
    %v8219 = vpop.f32.mrf.mxu0
    %8220 = vmatprep.mubr.f32.mxu0 0.0
    %8221 = vmatmul.mubr.f32.gmra.mxu0 %v5879
    %v8222 = vpop.f32.mrf.mxu0
    %v8223 = vadd.f32 0.0, %v8222
    %v8224 = vpop.f32.mrf.mxu0
    %8225 = vmatprep.mubr.f32.mxu0 0.0
    %8226 = vmatmul.mubr.f32.gmra.mxu0 %v5881
    %v8227 = vpop.f32.mrf.mxu0
    %v8228 = vadd.f32 0.0, %v8227
    %v8229 = vpop.f32.mrf.mxu0
    %8230 = vmatprep.mubr.f32.mxu0 0.0
    %8231 = vmatmul.mubr.f32.gmra.mxu0 %v5884
    %v8232 = vpop.f32.mrf.mxu0
    %v8233 = vadd.f32 0.0, %v8232
    %v8234 = vpop.f32.mrf.mxu0
    %8235 = vmatprep.mubr.f32.mxu0 0.0
    %8236 = vmatmul.mubr.f32.gmra.mxu0 %v5886
    %v8237 = vpop.f32.mrf.mxu0
    %v8238 = vadd.f32 0.0, %v8237
    %v8239 = vpop.f32.mrf.mxu0
    %8240 = vmatprep.mubr.f32.mxu0 0.0
    %8241 = vmatmul.mubr.f32.gmra.mxu0 %v5889
    %v8242 = vpop.f32.mrf.mxu0
    %v8243 = vadd.f32 0.0, %v8242
    %v8244 = vpop.f32.mrf.mxu0
    %8245 = vmatprep.mubr.f32.mxu0 0.0
    %8246 = vmatmul.mubr.f32.gmra.mxu0 %v5891
    %v8247 = vpop.f32.mrf.mxu0
    %v8248 = vadd.f32 0.0, %v8247
    %v8249 = vpop.f32.mrf.mxu0
    %8250 = vmatprep.mubr.f32.mxu0 0.0
    %8251 = vmatmul.mubr.f32.gmra.mxu0 %v5894
    %v8252 = vpop.f32.mrf.mxu0
    %v8253 = vadd.f32 0.0, %v8252
    %v8254 = vpop.f32.mrf.mxu0
    %8255 = vmatprep.mubr.f32.mxu0 0.0
    %8256 = vmatmul.mubr.f32.gmra.mxu0 %v5896
    %v8257 = vpop.f32.mrf.mxu0
    %v8258 = vadd.f32 0.0, %v8257
    %v8259 = vpop.f32.mrf.mxu0
    %8260 = vmatprep.mubr.f32.mxu0 0.0
    %8261 = vmatmul.mubr.f32.gmra.mxu0 %v5899
    %v8262 = vpop.f32.mrf.mxu0
    %v8263 = vadd.f32 0.0, %v8262
    %v8264 = vpop.f32.mrf.mxu0
    %8265 = vmatprep.mubr.f32.mxu0 0.0
    %8266 = vmatmul.mubr.f32.gmra.mxu0 %v5901
    %v8267 = vpop.f32.mrf.mxu0
    %v8268 = vadd.f32 0.0, %v8267
    %v8269 = vpop.f32.mrf.mxu0
    %8270 = vmatprep.mubr.f32.mxu0 0.0
    %8271 = vmatmul.mubr.f32.gmra.mxu0 %v5904
    %v8272 = vpop.f32.mrf.mxu0
    %v8273 = vadd.f32 0.0, %v8272
    %v8274 = vpop.f32.mrf.mxu0
    %8275 = vmatprep.mubr.f32.mxu0 0.0
    %8276 = vmatmul.mubr.f32.gmra.mxu0 %v5906
    %v8277 = vpop.f32.mrf.mxu0
    %v8278 = vadd.f32 0.0, %v8277
    %v8279 = vpop.f32.mrf.mxu0
    %8280 = vmatprep.mubr.f32.mxu0 0.0
    %8281 = vmatmul.mubr.f32.gmra.mxu0 %v5909
    %v8282 = vpop.f32.mrf.mxu0
    %v8283 = vadd.f32 0.0, %v8282
    %v8284 = vpop.f32.mrf.mxu0
    %8285 = vmatprep.mubr.f32.mxu0 0.0
    %8286 = vmatmul.mubr.f32.gmra.mxu0 %v5911
    %v8287 = vpop.f32.mrf.mxu0
    %v8288 = vadd.f32 0.0, %v8287
    %v8289 = vpop.f32.mrf.mxu0
    %8290 = vmatprep.mubr.f32.mxu0 0.0
    %8291 = vmatmul.mubr.f32.gmra.mxu0 %v5914
    %v8292 = vpop.f32.mrf.mxu0
    %v8293 = vadd.f32 0.0, %v8292
    %v8294 = vpop.f32.mrf.mxu0
    %8295 = vmatprep.mubr.f32.mxu0 0.0
    %8296 = vmatmul.mubr.f32.gmra.mxu0 %v5916
    %v8297 = vpop.f32.mrf.mxu0
    %v8298 = vadd.f32 0.0, %v8297
    %v8299 = vpop.f32.mrf.mxu0
    %8300 = vmatprep.mubr.f32.mxu0 0.0
    %8301 = vmatmul.mubr.f32.gmra.mxu0 %v5919
    %v8302 = vpop.f32.mrf.mxu0
    %v8303 = vadd.f32 0.0, %v8302
    %v8304 = vpop.f32.mrf.mxu0
    %8305 = vmatprep.mubr.f32.mxu0 0.0
    %8306 = vmatmul.mubr.f32.gmra.mxu0 %v5921
    %v8307 = vpop.f32.mrf.mxu0
    %v8308 = vadd.f32 0.0, %v8307
    %v8309 = vpop.f32.mrf.mxu0
    %8310 = vmatprep.mubr.f32.mxu0 0.0
    %8311 = vmatmul.mubr.f32.gmra.mxu0 %v5924
    %v8312 = vpop.f32.mrf.mxu0
    %v8313 = vadd.f32 0.0, %v8312
    %v8314 = vpop.f32.mrf.mxu0
    %8315 = vmatprep.mubr.f32.mxu0 0.0
    %8316 = vmatmul.mubr.f32.gmra.mxu0 %v5926
    %v8317 = vpop.f32.mrf.mxu0
    %v8318 = vadd.f32 0.0, %v8317
    %v8319 = vpop.f32.mrf.mxu0
    %8320 = vmatprep.mubr.f32.mxu0 0.0
    %8321 = vmatmul.mubr.f32.gmra.mxu0 %v5929
    %v8322 = vpop.f32.mrf.mxu0
    %v8323 = vadd.f32 0.0, %v8322
    %v8324 = vpop.f32.mrf.mxu0
    %8325 = vmatprep.mubr.f32.mxu0 0.0
    %8326 = vmatmul.mubr.f32.gmra.mxu0 %v5931
    %v8327 = vpop.f32.mrf.mxu0
    %v8328 = vadd.f32 0.0, %v8327
    %v8329 = vpop.f32.mrf.mxu0
    %8330 = vmatprep.mubr.f32.mxu0 0.0
    %8331 = vmatmul.mubr.f32.gmra.mxu0 %v5934
    %v8332 = vpop.f32.mrf.mxu0
    %v8333 = vadd.f32 0.0, %v8332
    %v8334 = vpop.f32.mrf.mxu0
    %8335 = vmatprep.mubr.f32.mxu0 0.0
    %8336 = vmatmul.mubr.f32.gmra.mxu0 %v5936
    %v8337 = vpop.f32.mrf.mxu0
    %v8338 = vadd.f32 0.0, %v8337
    %v8339 = vpop.f32.mrf.mxu0
    %8340 = vmatprep.mubr.f32.mxu0 0.0
    %8341 = vmatmul.mubr.f32.gmra.mxu0 %v5939
    %v8342 = vpop.f32.mrf.mxu0
    %v8343 = vadd.f32 0.0, %v8342
    %v8344 = vpop.f32.mrf.mxu0
    %8345 = vmatprep.mubr.f32.mxu0 0.0
    %8346 = vmatmul.mubr.f32.gmra.mxu0 %v5941
    %v8347 = vpop.f32.mrf.mxu0
    %v8348 = vadd.f32 0.0, %v8347
    %v8349 = vpop.f32.mrf.mxu0
    %8350 = vmatprep.mubr.f32.mxu0 0.0
    %8351 = vmatmul.mubr.f32.gmra.mxu0 %v5944
    %v8352 = vpop.f32.mrf.mxu0
    %v8353 = vadd.f32 0.0, %v8352
    %v8354 = vpop.f32.mrf.mxu0
    %8355 = vmatprep.mubr.f32.mxu0 0.0
    %8356 = vmatmul.mubr.f32.gmra.mxu0 %v5946
    %v8357 = vpop.f32.mrf.mxu0
    %v8358 = vadd.f32 0.0, %v8357
    %v8359 = vpop.f32.mrf.mxu0
    %8360 = vmatprep.mubr.f32.mxu0 0.0
    %8361 = vmatmul.mubr.f32.gmra.mxu0 %v5949
    %v8362 = vpop.f32.mrf.mxu0
    %v8363 = vadd.f32 0.0, %v8362
    %v8364 = vpop.f32.mrf.mxu0
    %8365 = vmatprep.mubr.f32.mxu0 0.0
    %8366 = vmatmul.mubr.f32.gmra.mxu0 %v5951
    %v8367 = vpop.f32.mrf.mxu0
    %v8368 = vadd.f32 0.0, %v8367
    %v8369 = vpop.f32.mrf.mxu0
    %8370 = vmatprep.mubr.f32.mxu0 0.0
    %8371 = vmatmul.mubr.f32.gmra.mxu0 %v7972
    %v8372 = vpop.f32.mrf.mxu0
    %v8373 = vadd.f32 0.0, %v8372
    %v8374 = vpop.f32.mrf.mxu0
    %8375 = vmatprep.mubr.f32.mxu0 0.0
    %8376 = vmatmul.mubr.f32.gmra.mxu0 %v7974
    %v8377 = vpop.f32.mrf.mxu0
    %v8378 = vadd.f32 0.0, %v8377
    %v8379 = vpop.f32.mrf.mxu0
    %8380 = vdwg.mxu0
    %v8381 = vadd.f32 %v7895, %v8063
    %v8382 = vadd.f32 %v7896, %v8068
    %v8383 = vadd.f32 %v7897, %v8073
    %v8384 = vadd.f32 %v7898, %v8078
    %v8385 = vadd.f32 %v7899, %v8083
    %v8386 = vadd.f32 %v7900, %v8088
    %v8387 = vadd.f32 %v7901, %v8093
    %v8388 = vadd.f32 %v7902, %v8098
    %v8389 = vadd.f32 %v7903, %v8103
    %v8390 = vadd.f32 %v7904, %v8108
    %v8391 = vadd.f32 %v7905, %v8113
    %v8392 = vadd.f32 %v7906, %v8118
    %v8393 = vadd.f32 %v7907, %v8123
    %v8394 = vadd.f32 %v7908, %v8128
    %v8395 = vadd.f32 %v7909, %v8133
    %v8396 = vadd.f32 %v7910, %v8138
    %v8397 = vadd.f32 %v7911, %v8143
    %v8398 = vadd.f32 %v7912, %v8148
    %v8399 = vadd.f32 %v7913, %v8153
    %v8400 = vadd.f32 %v7914, %v8158
    %v8401 = vadd.f32 %v7915, %v8163
    %v8402 = vadd.f32 %v7916, %v8168
    %v8403 = vadd.f32 %v7917, %v8173
    %v8404 = vadd.f32 %v7918, %v8178
    %v8405 = vadd.f32 %v7919, %v8183
    %v8406 = vadd.f32 %v7920, %v8188
    %v8407 = vadd.f32 %v7921, %v8193
    %v8408 = vadd.f32 %v7922, %v8198
    %v8409 = vadd.f32 %v7923, %v8203
    %v8410 = vadd.f32 %v7924, %v8208
    %v8411 = vadd.f32 %v7925, %v8213
    %v8412 = vadd.f32 %v7926, %v8218
    %v8413 = vadd.f32 %v7927, %v8223
    %v8414 = vadd.f32 %v7928, %v8228
    %v8415 = vadd.f32 %v7929, %v8233
    %v8416 = vadd.f32 %v7930, %v8238
    %v8417 = vadd.f32 %v7931, %v8243
    %v8418 = vadd.f32 %v7932, %v8248
    %v8419 = vadd.f32 %v7933, %v8253
    %v8420 = vadd.f32 %v7934, %v8258
    %v8421 = vadd.f32 %v7935, %v8263
    %v8422 = vadd.f32 %v7936, %v8268
    %v8423 = vadd.f32 %v7937, %v8273
    %v8424 = vadd.f32 %v7938, %v8278
    %v8425 = vadd.f32 %v7939, %v8283
    %v8426 = vadd.f32 %v7940, %v8288
    %v8427 = vadd.f32 %v7941, %v8293
    %v8428 = vadd.f32 %v7942, %v8298
    %v8429 = vadd.f32 %v7943, %v8303
    %v8430 = vadd.f32 %v7944, %v8308
    %v8431 = vadd.f32 %v7945, %v8313
    %v8432 = vadd.f32 %v7946, %v8318
    %v8433 = vadd.f32 %v7947, %v8323
    %v8434 = vadd.f32 %v7948, %v8328
    %v8435 = vadd.f32 %v7949, %v8333
    %v8436 = vadd.f32 %v7950, %v8338
    %v8437 = vadd.f32 %v7951, %v8343
    %v8438 = vadd.f32 %v7952, %v8348
    %v8439 = vadd.f32 %v7953, %v8353
    %v8440 = vadd.f32 %v7954, %v8358
    %v8441 = vadd.f32 %v7955, %v8363
    %v8442 = vadd.f32 %v7956, %v8368
    %v8443 = vadd.f32 %v7957, %v8373
    %v8444 = vadd.f32 %v7958, %v8378
    %v8445 = vrot.slane %v5620, 2
    %v8446 = vrot.slane %v5621, 2
    %v8447 = vsel %vm1446, %v8445, %v8446
    %v8448 = vrot.slane %v5622, 2
    %v8449 = vsel %vm1446, %v8446, %v8448
    %v8450 = vrot.slane %v5674, 2
    %v8451 = vrot.slane %v5675, 2
    %v8452 = vsel %vm1446, %v8450, %v8451
    %v8453 = vrot.slane %v5676, 2
    %v8454 = vsel %vm1446, %v8451, %v8453
    %s8459 = scalar_lea.vmem [#allocation3], 640
    %v8460 = vld [vmem:[%s8459] sm:$0xff]
    %v8461 = vld [vmem:[%s8459 + $0x8] sm:$0xff]
    %v8462 = vld [vmem:[%s8459 + $0x10] sm:$0xff]
    %v8463 = vld [vmem:[%s8459 + $0x18] sm:$0xff]
    %v8464 = vld [vmem:[%s8459 + $0x20] sm:$0xff]
    %v8465 = vld [vmem:[%s8459 + $0x28] sm:$0xff]
    %v8466 = vld [vmem:[%s8459 + $0x30] sm:$0xff]
    %v8467 = vld [vmem:[%s8459 + $0x38] sm:$0xff]
    %v8468 = vld [vmem:[%s8459 + $0x40] sm:$0xff]
    %v8469 = vld [vmem:[%s8459 + $0x48] sm:$0xff]
    %v8470 = vld [vmem:[%s8459 + $0x50] sm:$0xff]
    %v8471 = vld [vmem:[%s8459 + $0x58] sm:$0xff]
    %v8472 = vld [vmem:[%s8459 + $0x60] sm:$0xff]
    %v8473 = vld [vmem:[%s8459 + $0x68] sm:$0xff]
    %v8474 = vld [vmem:[%s8459 + $0x70] sm:$0xff]
    %v8475 = vld [vmem:[%s8459 + $0x78] sm:$0xff]
    %8476 = vmatprep.subr.mxu0 0.0
    %8477 = vmatpush1.msra.mxu0 %v8475
    %8478 = vmatprep.subr.mxu0 0.0
    %8479 = vmatpush1.msra.mxu0 %v8474
    %8480 = vmatprep.subr.mxu0 0.0
    %8481 = vmatpush1.msra.mxu0 %v8473
    %8482 = vmatprep.subr.mxu0 0.0
    %8483 = vmatpush1.msra.mxu0 %v8472
    %8484 = vmatprep.subr.mxu0 0.0
    %8485 = vmatpush1.msra.mxu0 %v8471
    %8486 = vmatprep.subr.mxu0 0.0
    %8487 = vmatpush1.msra.mxu0 %v8470
    %8488 = vmatprep.subr.mxu0 0.0
    %8489 = vmatpush1.msra.mxu0 %v8469
    %8490 = vmatprep.subr.mxu0 0.0
    %8491 = vmatpush1.msra.mxu0 %v8468
    %8492 = vmatprep.subr.mxu0 0.0
    %8493 = vmatpush1.msra.mxu0 %v8467
    %8494 = vmatprep.subr.mxu0 0.0
    %8495 = vmatpush1.msra.mxu0 %v8466
    %8496 = vmatprep.subr.mxu0 0.0
    %8497 = vmatpush1.msra.mxu0 %v8465
    %8498 = vmatprep.subr.mxu0 0.0
    %8499 = vmatpush1.msra.mxu0 %v8464
    %8500 = vmatprep.subr.mxu0 0.0
    %8501 = vmatpush1.msra.mxu0 %v8463
    %8502 = vmatprep.subr.mxu0 0.0
    %8503 = vmatpush1.msra.mxu0 %v8462
    %8504 = vmatprep.subr.mxu0 0.0
    %8505 = vmatpush1.msra.mxu0 %v8461
    %8506 = vmatprep.subr.mxu0 0.0
    %8507 = vmatpush1.msra.mxu0 %v8460
    %8508 = vmatprep.subr.mxu0 0.0
    %8509 = vmatpush2.msra.mxu0 0.0
    %8510 = vmatprep.subr.mxu0 0.0
    %8511 = vmatpush2.msra.mxu0 0.0
    %8512 = vmatprep.subr.mxu0 0.0
    %8513 = vmatpush2.msra.mxu0 0.0
    %8514 = vmatprep.subr.mxu0 0.0
    %8515 = vmatpush2.msra.mxu0 0.0
    %8516 = vmatprep.subr.mxu0 0.0
    %8517 = vmatpush2.msra.mxu0 0.0
    %8518 = vmatprep.subr.mxu0 0.0
    %8519 = vmatpush2.msra.mxu0 0.0
    %8520 = vmatprep.subr.mxu0 0.0
    %8521 = vmatpush2.msra.mxu0 0.0
    %8522 = vmatprep.subr.mxu0 0.0
    %8523 = vmatpush2.msra.mxu0 0.0
    %8524 = vmatprep.subr.mxu0 0.0
    %8525 = vmatpush2.msra.mxu0 0.0
    %8526 = vmatprep.subr.mxu0 0.0
    %8527 = vmatpush2.msra.mxu0 0.0
    %8528 = vmatprep.subr.mxu0 0.0
    %8529 = vmatpush2.msra.mxu0 0.0
    %8530 = vmatprep.subr.mxu0 0.0
    %8531 = vmatpush2.msra.mxu0 0.0
    %8532 = vmatprep.subr.mxu0 0.0
    %8533 = vmatpush2.msra.mxu0 0.0
    %8534 = vmatprep.subr.mxu0 0.0
    %8535 = vmatpush2.msra.mxu0 0.0
    %8536 = vmatprep.subr.mxu0 0.0
    %8537 = vmatpush2.msra.mxu0 0.0
    %8538 = vmatprep.subr.mxu0 0.0
    %8539 = vmatpush2.msra.mxu0 0.0
    %8540 = vmatprep.mubr.f32.mxu0 0.0
    %8541 = vmatmul.mubr.f32.gmra.mxu0 %v6810
    %v8542 = vpop.f32.mrf.mxu0
    %v8543 = vadd.f32 0.0, %v8542
    %v8544 = vpop.f32.mrf.mxu0
    %8545 = vmatprep.mubr.f32.mxu0 0.0
    %8546 = vmatmul.mubr.f32.gmra.mxu0 %v6812
    %v8547 = vpop.f32.mrf.mxu0
    %v8548 = vadd.f32 0.0, %v8547
    %v8549 = vpop.f32.mrf.mxu0
    %8550 = vmatprep.mubr.f32.mxu0 0.0
    %8551 = vmatmul.mubr.f32.gmra.mxu0 %v6815
    %v8552 = vpop.f32.mrf.mxu0
    %v8553 = vadd.f32 0.0, %v8552
    %v8554 = vpop.f32.mrf.mxu0
    %8555 = vmatprep.mubr.f32.mxu0 0.0
    %8556 = vmatmul.mubr.f32.gmra.mxu0 %v6817
    %v8557 = vpop.f32.mrf.mxu0
    %v8558 = vadd.f32 0.0, %v8557
    %v8559 = vpop.f32.mrf.mxu0
    %8560 = vmatprep.mubr.f32.mxu0 0.0
    %8561 = vmatmul.mubr.f32.gmra.mxu0 %v6820
    %v8562 = vpop.f32.mrf.mxu0
    %v8563 = vadd.f32 0.0, %v8562
    %v8564 = vpop.f32.mrf.mxu0
    %8565 = vmatprep.mubr.f32.mxu0 0.0
    %8566 = vmatmul.mubr.f32.gmra.mxu0 %v6822
    %v8567 = vpop.f32.mrf.mxu0
    %v8568 = vadd.f32 0.0, %v8567
    %v8569 = vpop.f32.mrf.mxu0
    %8570 = vmatprep.mubr.f32.mxu0 0.0
    %8571 = vmatmul.mubr.f32.gmra.mxu0 %v6825
    %v8572 = vpop.f32.mrf.mxu0
    %v8573 = vadd.f32 0.0, %v8572
    %v8574 = vpop.f32.mrf.mxu0
    %8575 = vmatprep.mubr.f32.mxu0 0.0
    %8576 = vmatmul.mubr.f32.gmra.mxu0 %v6827
    %v8577 = vpop.f32.mrf.mxu0
    %v8578 = vadd.f32 0.0, %v8577
    %v8579 = vpop.f32.mrf.mxu0
    %8580 = vmatprep.mubr.f32.mxu0 0.0
    %8581 = vmatmul.mubr.f32.gmra.mxu0 %v6830
    %v8582 = vpop.f32.mrf.mxu0
    %v8583 = vadd.f32 0.0, %v8582
    %v8584 = vpop.f32.mrf.mxu0
    %8585 = vmatprep.mubr.f32.mxu0 0.0
    %8586 = vmatmul.mubr.f32.gmra.mxu0 %v6832
    %v8587 = vpop.f32.mrf.mxu0
    %v8588 = vadd.f32 0.0, %v8587
    %v8589 = vpop.f32.mrf.mxu0
    %8590 = vmatprep.mubr.f32.mxu0 0.0
    %8591 = vmatmul.mubr.f32.gmra.mxu0 %v6835
    %v8592 = vpop.f32.mrf.mxu0
    %v8593 = vadd.f32 0.0, %v8592
    %v8594 = vpop.f32.mrf.mxu0
    %8595 = vmatprep.mubr.f32.mxu0 0.0
    %8596 = vmatmul.mubr.f32.gmra.mxu0 %v6837
    %v8597 = vpop.f32.mrf.mxu0
    %v8598 = vadd.f32 0.0, %v8597
    %v8599 = vpop.f32.mrf.mxu0
    %8600 = vmatprep.mubr.f32.mxu0 0.0
    %8601 = vmatmul.mubr.f32.gmra.mxu0 %v6840
    %v8602 = vpop.f32.mrf.mxu0
    %v8603 = vadd.f32 0.0, %v8602
    %v8604 = vpop.f32.mrf.mxu0
    %8605 = vmatprep.mubr.f32.mxu0 0.0
    %8606 = vmatmul.mubr.f32.gmra.mxu0 %v6842
    %v8607 = vpop.f32.mrf.mxu0
    %v8608 = vadd.f32 0.0, %v8607
    %v8609 = vpop.f32.mrf.mxu0
    %8610 = vmatprep.mubr.f32.mxu0 0.0
    %8611 = vmatmul.mubr.f32.gmra.mxu0 %v6845
    %v8612 = vpop.f32.mrf.mxu0
    %v8613 = vadd.f32 0.0, %v8612
    %v8614 = vpop.f32.mrf.mxu0
    %8615 = vmatprep.mubr.f32.mxu0 0.0
    %8616 = vmatmul.mubr.f32.gmra.mxu0 %v6847
    %v8617 = vpop.f32.mrf.mxu0
    %v8618 = vadd.f32 0.0, %v8617
    %v8619 = vpop.f32.mrf.mxu0
    %8620 = vmatprep.mubr.f32.mxu0 0.0
    %8621 = vmatmul.mubr.f32.gmra.mxu0 %v6850
    %v8622 = vpop.f32.mrf.mxu0
    %v8623 = vadd.f32 0.0, %v8622
    %v8624 = vpop.f32.mrf.mxu0
    %8625 = vmatprep.mubr.f32.mxu0 0.0
    %8626 = vmatmul.mubr.f32.gmra.mxu0 %v6852
    %v8627 = vpop.f32.mrf.mxu0
    %v8628 = vadd.f32 0.0, %v8627
    %v8629 = vpop.f32.mrf.mxu0
    %8630 = vmatprep.mubr.f32.mxu0 0.0
    %8631 = vmatmul.mubr.f32.gmra.mxu0 %v6855
    %v8632 = vpop.f32.mrf.mxu0
    %v8633 = vadd.f32 0.0, %v8632
    %v8634 = vpop.f32.mrf.mxu0
    %8635 = vmatprep.mubr.f32.mxu0 0.0
    %8636 = vmatmul.mubr.f32.gmra.mxu0 %v6857
    %v8637 = vpop.f32.mrf.mxu0
    %v8638 = vadd.f32 0.0, %v8637
    %v8639 = vpop.f32.mrf.mxu0
    %8640 = vmatprep.mubr.f32.mxu0 0.0
    %8641 = vmatmul.mubr.f32.gmra.mxu0 %v6860
    %v8642 = vpop.f32.mrf.mxu0
    %v8643 = vadd.f32 0.0, %v8642
    %v8644 = vpop.f32.mrf.mxu0
    %8645 = vmatprep.mubr.f32.mxu0 0.0
    %8646 = vmatmul.mubr.f32.gmra.mxu0 %v6862
    %v8647 = vpop.f32.mrf.mxu0
    %v8648 = vadd.f32 0.0, %v8647
    %v8649 = vpop.f32.mrf.mxu0
    %8650 = vmatprep.mubr.f32.mxu0 0.0
    %8651 = vmatmul.mubr.f32.gmra.mxu0 %v6865
    %v8652 = vpop.f32.mrf.mxu0
    %v8653 = vadd.f32 0.0, %v8652
    %v8654 = vpop.f32.mrf.mxu0
    %8655 = vmatprep.mubr.f32.mxu0 0.0
    %8656 = vmatmul.mubr.f32.gmra.mxu0 %v6867
    %v8657 = vpop.f32.mrf.mxu0
    %v8658 = vadd.f32 0.0, %v8657
    %v8659 = vpop.f32.mrf.mxu0
    %8660 = vmatprep.mubr.f32.mxu0 0.0
    %8661 = vmatmul.mubr.f32.gmra.mxu0 %v6870
    %v8662 = vpop.f32.mrf.mxu0
    %v8663 = vadd.f32 0.0, %v8662
    %v8664 = vpop.f32.mrf.mxu0
    %8665 = vmatprep.mubr.f32.mxu0 0.0
    %8666 = vmatmul.mubr.f32.gmra.mxu0 %v6872
    %v8667 = vpop.f32.mrf.mxu0
    %v8668 = vadd.f32 0.0, %v8667
    %v8669 = vpop.f32.mrf.mxu0
    %8670 = vmatprep.mubr.f32.mxu0 0.0
    %8671 = vmatmul.mubr.f32.gmra.mxu0 %v6875
    %v8672 = vpop.f32.mrf.mxu0
    %v8673 = vadd.f32 0.0, %v8672
    %v8674 = vpop.f32.mrf.mxu0
    %8675 = vmatprep.mubr.f32.mxu0 0.0
    %8676 = vmatmul.mubr.f32.gmra.mxu0 %v6877
    %v8677 = vpop.f32.mrf.mxu0
    %v8678 = vadd.f32 0.0, %v8677
    %v8679 = vpop.f32.mrf.mxu0
    %8680 = vmatprep.mubr.f32.mxu0 0.0
    %8681 = vmatmul.mubr.f32.gmra.mxu0 %v6880
    %v8682 = vpop.f32.mrf.mxu0
    %v8683 = vadd.f32 0.0, %v8682
    %v8684 = vpop.f32.mrf.mxu0
    %8685 = vmatprep.mubr.f32.mxu0 0.0
    %8686 = vmatmul.mubr.f32.gmra.mxu0 %v6882
    %v8687 = vpop.f32.mrf.mxu0
    %v8688 = vadd.f32 0.0, %v8687
    %v8689 = vpop.f32.mrf.mxu0
    %8690 = vmatprep.mubr.f32.mxu0 0.0
    %8691 = vmatmul.mubr.f32.gmra.mxu0 %v8447
    %v8692 = vpop.f32.mrf.mxu0
    %v8693 = vadd.f32 0.0, %v8692
    %v8694 = vpop.f32.mrf.mxu0
    %8695 = vmatprep.mubr.f32.mxu0 0.0
    %8696 = vmatmul.mubr.f32.gmra.mxu0 %v8449
    %v8697 = vpop.f32.mrf.mxu0
    %v8698 = vadd.f32 0.0, %v8697
    %v8699 = vpop.f32.mrf.mxu0
    %8700 = vmatprep.mubr.f32.mxu0 0.0
    %8701 = vmatmul.mubr.f32.gmra.mxu0 %v6890
    %v8702 = vpop.f32.mrf.mxu0
    %v8703 = vadd.f32 0.0, %v8702
    %v8704 = vpop.f32.mrf.mxu0
    %8705 = vmatprep.mubr.f32.mxu0 0.0
    %8706 = vmatmul.mubr.f32.gmra.mxu0 %v6892
    %v8707 = vpop.f32.mrf.mxu0
    %v8708 = vadd.f32 0.0, %v8707
    %v8709 = vpop.f32.mrf.mxu0
    %8710 = vmatprep.mubr.f32.mxu0 0.0
    %8711 = vmatmul.mubr.f32.gmra.mxu0 %v6895
    %v8712 = vpop.f32.mrf.mxu0
    %v8713 = vadd.f32 0.0, %v8712
    %v8714 = vpop.f32.mrf.mxu0
    %8715 = vmatprep.mubr.f32.mxu0 0.0
    %8716 = vmatmul.mubr.f32.gmra.mxu0 %v6897
    %v8717 = vpop.f32.mrf.mxu0
    %v8718 = vadd.f32 0.0, %v8717
    %v8719 = vpop.f32.mrf.mxu0
    %8720 = vmatprep.mubr.f32.mxu0 0.0
    %8721 = vmatmul.mubr.f32.gmra.mxu0 %v6900
    %v8722 = vpop.f32.mrf.mxu0
    %v8723 = vadd.f32 0.0, %v8722
    %v8724 = vpop.f32.mrf.mxu0
    %8725 = vmatprep.mubr.f32.mxu0 0.0
    %8726 = vmatmul.mubr.f32.gmra.mxu0 %v6902
    %v8727 = vpop.f32.mrf.mxu0
    %v8728 = vadd.f32 0.0, %v8727
    %v8729 = vpop.f32.mrf.mxu0
    %8730 = vmatprep.mubr.f32.mxu0 0.0
    %8731 = vmatmul.mubr.f32.gmra.mxu0 %v6905
    %v8732 = vpop.f32.mrf.mxu0
    %v8733 = vadd.f32 0.0, %v8732
    %v8734 = vpop.f32.mrf.mxu0
    %8735 = vmatprep.mubr.f32.mxu0 0.0
    %8736 = vmatmul.mubr.f32.gmra.mxu0 %v6907
    %v8737 = vpop.f32.mrf.mxu0
    %v8738 = vadd.f32 0.0, %v8737
    %v8739 = vpop.f32.mrf.mxu0
    %8740 = vmatprep.mubr.f32.mxu0 0.0
    %8741 = vmatmul.mubr.f32.gmra.mxu0 %v6910
    %v8742 = vpop.f32.mrf.mxu0
    %v8743 = vadd.f32 0.0, %v8742
    %v8744 = vpop.f32.mrf.mxu0
    %8745 = vmatprep.mubr.f32.mxu0 0.0
    %8746 = vmatmul.mubr.f32.gmra.mxu0 %v6912
    %v8747 = vpop.f32.mrf.mxu0
    %v8748 = vadd.f32 0.0, %v8747
    %v8749 = vpop.f32.mrf.mxu0
    %8750 = vmatprep.mubr.f32.mxu0 0.0
    %8751 = vmatmul.mubr.f32.gmra.mxu0 %v6915
    %v8752 = vpop.f32.mrf.mxu0
    %v8753 = vadd.f32 0.0, %v8752
    %v8754 = vpop.f32.mrf.mxu0
    %8755 = vmatprep.mubr.f32.mxu0 0.0
    %8756 = vmatmul.mubr.f32.gmra.mxu0 %v6917
    %v8757 = vpop.f32.mrf.mxu0
    %v8758 = vadd.f32 0.0, %v8757
    %v8759 = vpop.f32.mrf.mxu0
    %8760 = vmatprep.mubr.f32.mxu0 0.0
    %8761 = vmatmul.mubr.f32.gmra.mxu0 %v6920
    %v8762 = vpop.f32.mrf.mxu0
    %v8763 = vadd.f32 0.0, %v8762
    %v8764 = vpop.f32.mrf.mxu0
    %8765 = vmatprep.mubr.f32.mxu0 0.0
    %8766 = vmatmul.mubr.f32.gmra.mxu0 %v6922
    %v8767 = vpop.f32.mrf.mxu0
    %v8768 = vadd.f32 0.0, %v8767
    %v8769 = vpop.f32.mrf.mxu0
    %8770 = vmatprep.mubr.f32.mxu0 0.0
    %8771 = vmatmul.mubr.f32.gmra.mxu0 %v6925
    %v8772 = vpop.f32.mrf.mxu0
    %v8773 = vadd.f32 0.0, %v8772
    %v8774 = vpop.f32.mrf.mxu0
    %8775 = vmatprep.mubr.f32.mxu0 0.0
    %8776 = vmatmul.mubr.f32.gmra.mxu0 %v6927
    %v8777 = vpop.f32.mrf.mxu0
    %v8778 = vadd.f32 0.0, %v8777
    %v8779 = vpop.f32.mrf.mxu0
    %8780 = vmatprep.mubr.f32.mxu0 0.0
    %8781 = vmatmul.mubr.f32.gmra.mxu0 %v6930
    %v8782 = vpop.f32.mrf.mxu0
    %v8783 = vadd.f32 0.0, %v8782
    %v8784 = vpop.f32.mrf.mxu0
    %8785 = vmatprep.mubr.f32.mxu0 0.0
    %8786 = vmatmul.mubr.f32.gmra.mxu0 %v6932
    %v8787 = vpop.f32.mrf.mxu0
    %v8788 = vadd.f32 0.0, %v8787
    %v8789 = vpop.f32.mrf.mxu0
    %8790 = vmatprep.mubr.f32.mxu0 0.0
    %8791 = vmatmul.mubr.f32.gmra.mxu0 %v6935
    %v8792 = vpop.f32.mrf.mxu0
    %v8793 = vadd.f32 0.0, %v8792
    %v8794 = vpop.f32.mrf.mxu0
    %8795 = vmatprep.mubr.f32.mxu0 0.0
    %8796 = vmatmul.mubr.f32.gmra.mxu0 %v6937
    %v8797 = vpop.f32.mrf.mxu0
    %v8798 = vadd.f32 0.0, %v8797
    %v8799 = vpop.f32.mrf.mxu0
    %8800 = vmatprep.mubr.f32.mxu0 0.0
    %8801 = vmatmul.mubr.f32.gmra.mxu0 %v6940
    %v8802 = vpop.f32.mrf.mxu0
    %v8803 = vadd.f32 0.0, %v8802
    %v8804 = vpop.f32.mrf.mxu0
    %8805 = vmatprep.mubr.f32.mxu0 0.0
    %8806 = vmatmul.mubr.f32.gmra.mxu0 %v6942
    %v8807 = vpop.f32.mrf.mxu0
    %v8808 = vadd.f32 0.0, %v8807
    %v8809 = vpop.f32.mrf.mxu0
    %8810 = vmatprep.mubr.f32.mxu0 0.0
    %8811 = vmatmul.mubr.f32.gmra.mxu0 %v6945
    %v8812 = vpop.f32.mrf.mxu0
    %v8813 = vadd.f32 0.0, %v8812
    %v8814 = vpop.f32.mrf.mxu0
    %8815 = vmatprep.mubr.f32.mxu0 0.0
    %8816 = vmatmul.mubr.f32.gmra.mxu0 %v6947
    %v8817 = vpop.f32.mrf.mxu0
    %v8818 = vadd.f32 0.0, %v8817
    %v8819 = vpop.f32.mrf.mxu0
    %8820 = vmatprep.mubr.f32.mxu0 0.0
    %8821 = vmatmul.mubr.f32.gmra.mxu0 %v6950
    %v8822 = vpop.f32.mrf.mxu0
    %v8823 = vadd.f32 0.0, %v8822
    %v8824 = vpop.f32.mrf.mxu0
    %8825 = vmatprep.mubr.f32.mxu0 0.0
    %8826 = vmatmul.mubr.f32.gmra.mxu0 %v6952
    %v8827 = vpop.f32.mrf.mxu0
    %v8828 = vadd.f32 0.0, %v8827
    %v8829 = vpop.f32.mrf.mxu0
    %8830 = vmatprep.mubr.f32.mxu0 0.0
    %8831 = vmatmul.mubr.f32.gmra.mxu0 %v6955
    %v8832 = vpop.f32.mrf.mxu0
    %v8833 = vadd.f32 0.0, %v8832
    %v8834 = vpop.f32.mrf.mxu0
    %8835 = vmatprep.mubr.f32.mxu0 0.0
    %8836 = vmatmul.mubr.f32.gmra.mxu0 %v6957
    %v8837 = vpop.f32.mrf.mxu0
    %v8838 = vadd.f32 0.0, %v8837
    %v8839 = vpop.f32.mrf.mxu0
    %8840 = vmatprep.mubr.f32.mxu0 0.0
    %8841 = vmatmul.mubr.f32.gmra.mxu0 %v6960
    %v8842 = vpop.f32.mrf.mxu0
    %v8843 = vadd.f32 0.0, %v8842
    %v8844 = vpop.f32.mrf.mxu0
    %8845 = vmatprep.mubr.f32.mxu0 0.0
    %8846 = vmatmul.mubr.f32.gmra.mxu0 %v6962
    %v8847 = vpop.f32.mrf.mxu0
    %v8848 = vadd.f32 0.0, %v8847
    %v8849 = vpop.f32.mrf.mxu0
    %8850 = vmatprep.mubr.f32.mxu0 0.0
    %8851 = vmatmul.mubr.f32.gmra.mxu0 %v8452
    %v8852 = vpop.f32.mrf.mxu0
    %v8853 = vadd.f32 0.0, %v8852
    %v8854 = vpop.f32.mrf.mxu0
    %8855 = vmatprep.mubr.f32.mxu0 0.0
    %8856 = vmatmul.mubr.f32.gmra.mxu0 %v8454
    %v8857 = vpop.f32.mrf.mxu0
    %v8858 = vadd.f32 0.0, %v8857
    %v8859 = vpop.f32.mrf.mxu0
    %8860 = vdwg.mxu0
    %v8861 = vadd.f32 %v8381, %v8543
    %v8862 = vadd.f32 %v8382, %v8548
    %v8863 = vadd.f32 %v8383, %v8553
    %v8864 = vadd.f32 %v8384, %v8558
    %v8865 = vadd.f32 %v8385, %v8563
    %v8866 = vadd.f32 %v8386, %v8568
    %v8867 = vadd.f32 %v8387, %v8573
    %v8868 = vadd.f32 %v8388, %v8578
    %v8869 = vadd.f32 %v8389, %v8583
    %v8870 = vadd.f32 %v8390, %v8588
    %v8871 = vadd.f32 %v8391, %v8593
    %v8872 = vadd.f32 %v8392, %v8598
    %v8873 = vadd.f32 %v8393, %v8603
    %v8874 = vadd.f32 %v8394, %v8608
    %v8875 = vadd.f32 %v8395, %v8613
    %v8876 = vadd.f32 %v8396, %v8618
    %v8877 = vadd.f32 %v8397, %v8623
    %v8878 = vadd.f32 %v8398, %v8628
    %v8879 = vadd.f32 %v8399, %v8633
    %v8880 = vadd.f32 %v8400, %v8638
    %v8881 = vadd.f32 %v8401, %v8643
    %v8882 = vadd.f32 %v8402, %v8648
    %v8883 = vadd.f32 %v8403, %v8653
    %v8884 = vadd.f32 %v8404, %v8658
    %v8885 = vadd.f32 %v8405, %v8663
    %v8886 = vadd.f32 %v8406, %v8668
    %v8887 = vadd.f32 %v8407, %v8673
    %v8888 = vadd.f32 %v8408, %v8678
    %v8889 = vadd.f32 %v8409, %v8683
    %v8890 = vadd.f32 %v8410, %v8688
    %v8891 = vadd.f32 %v8411, %v8693
    %v8892 = vadd.f32 %v8412, %v8698
    %v8893 = vadd.f32 %v8413, %v8703
    %v8894 = vadd.f32 %v8414, %v8708
    %v8895 = vadd.f32 %v8415, %v8713
    %v8896 = vadd.f32 %v8416, %v8718
    %v8897 = vadd.f32 %v8417, %v8723
    %v8898 = vadd.f32 %v8418, %v8728
    %v8899 = vadd.f32 %v8419, %v8733
    %v8900 = vadd.f32 %v8420, %v8738
    %v8901 = vadd.f32 %v8421, %v8743
    %v8902 = vadd.f32 %v8422, %v8748
    %v8903 = vadd.f32 %v8423, %v8753
    %v8904 = vadd.f32 %v8424, %v8758
    %v8905 = vadd.f32 %v8425, %v8763
    %v8906 = vadd.f32 %v8426, %v8768
    %v8907 = vadd.f32 %v8427, %v8773
    %v8908 = vadd.f32 %v8428, %v8778
    %v8909 = vadd.f32 %v8429, %v8783
    %v8910 = vadd.f32 %v8430, %v8788
    %v8911 = vadd.f32 %v8431, %v8793
    %v8912 = vadd.f32 %v8432, %v8798
    %v8913 = vadd.f32 %v8433, %v8803
    %v8914 = vadd.f32 %v8434, %v8808
    %v8915 = vadd.f32 %v8435, %v8813
    %v8916 = vadd.f32 %v8436, %v8818
    %v8917 = vadd.f32 %v8437, %v8823
    %v8918 = vadd.f32 %v8438, %v8828
    %v8919 = vadd.f32 %v8439, %v8833
    %v8920 = vadd.f32 %v8440, %v8838
    %v8921 = vadd.f32 %v8441, %v8843
    %v8922 = vadd.f32 %v8442, %v8848
    %v8923 = vadd.f32 %v8443, %v8853
    %v8924 = vadd.f32 %v8444, %v8858
    %s8925 = scalar_lea.vmem [#allocation3], 768
    %v8926 = vld [vmem:[%s8925] sm:$0xff]
    %v8927 = vld [vmem:[%s8925 + $0x8] sm:$0xff]
    %v8928 = vld [vmem:[%s8925 + $0x10] sm:$0xff]
    %v8929 = vld [vmem:[%s8925 + $0x18] sm:$0xff]
    %v8930 = vld [vmem:[%s8925 + $0x20] sm:$0xff]
    %v8931 = vld [vmem:[%s8925 + $0x28] sm:$0xff]
    %v8932 = vld [vmem:[%s8925 + $0x30] sm:$0xff]
    %v8933 = vld [vmem:[%s8925 + $0x38] sm:$0xff]
    %v8934 = vld [vmem:[%s8925 + $0x40] sm:$0xff]
    %v8935 = vld [vmem:[%s8925 + $0x48] sm:$0xff]
    %v8936 = vld [vmem:[%s8925 + $0x50] sm:$0xff]
    %v8937 = vld [vmem:[%s8925 + $0x58] sm:$0xff]
    %v8938 = vld [vmem:[%s8925 + $0x60] sm:$0xff]
    %v8939 = vld [vmem:[%s8925 + $0x68] sm:$0xff]
    %v8940 = vld [vmem:[%s8925 + $0x70] sm:$0xff]
    %v8941 = vld [vmem:[%s8925 + $0x78] sm:$0xff]
    %8942 = vmatprep.subr.mxu0 0.0
    %8943 = vmatpush1.msra.mxu0 %v8941
    %8944 = vmatprep.subr.mxu0 0.0
    %8945 = vmatpush1.msra.mxu0 %v8940
    %8946 = vmatprep.subr.mxu0 0.0
    %8947 = vmatpush1.msra.mxu0 %v8939
    %8948 = vmatprep.subr.mxu0 0.0
    %8949 = vmatpush1.msra.mxu0 %v8938
    %8950 = vmatprep.subr.mxu0 0.0
    %8951 = vmatpush1.msra.mxu0 %v8937
    %8952 = vmatprep.subr.mxu0 0.0
    %8953 = vmatpush1.msra.mxu0 %v8936
    %8954 = vmatprep.subr.mxu0 0.0
    %8955 = vmatpush1.msra.mxu0 %v8935
    %8956 = vmatprep.subr.mxu0 0.0
    %8957 = vmatpush1.msra.mxu0 %v8934
    %8958 = vmatprep.subr.mxu0 0.0
    %8959 = vmatpush1.msra.mxu0 %v8933
    %8960 = vmatprep.subr.mxu0 0.0
    %8961 = vmatpush1.msra.mxu0 %v8932
    %8962 = vmatprep.subr.mxu0 0.0
    %8963 = vmatpush1.msra.mxu0 %v8931
    %8964 = vmatprep.subr.mxu0 0.0
    %8965 = vmatpush1.msra.mxu0 %v8930
    %8966 = vmatprep.subr.mxu0 0.0
    %8967 = vmatpush1.msra.mxu0 %v8929
    %8968 = vmatprep.subr.mxu0 0.0
    %8969 = vmatpush1.msra.mxu0 %v8928
    %8970 = vmatprep.subr.mxu0 0.0
    %8971 = vmatpush1.msra.mxu0 %v8927
    %8972 = vmatprep.subr.mxu0 0.0
    %8973 = vmatpush1.msra.mxu0 %v8926
    %8974 = vmatprep.subr.mxu0 0.0
    %8975 = vmatpush2.msra.mxu0 0.0
    %8976 = vmatprep.subr.mxu0 0.0
    %8977 = vmatpush2.msra.mxu0 0.0
    %8978 = vmatprep.subr.mxu0 0.0
    %8979 = vmatpush2.msra.mxu0 0.0
    %8980 = vmatprep.subr.mxu0 0.0
    %8981 = vmatpush2.msra.mxu0 0.0
    %8982 = vmatprep.subr.mxu0 0.0
    %8983 = vmatpush2.msra.mxu0 0.0
    %8984 = vmatprep.subr.mxu0 0.0
    %8985 = vmatpush2.msra.mxu0 0.0
    %8986 = vmatprep.subr.mxu0 0.0
    %8987 = vmatpush2.msra.mxu0 0.0
    %8988 = vmatprep.subr.mxu0 0.0
    %8989 = vmatpush2.msra.mxu0 0.0
    %8990 = vmatprep.subr.mxu0 0.0
    %8991 = vmatpush2.msra.mxu0 0.0
    %8992 = vmatprep.subr.mxu0 0.0
    %8993 = vmatpush2.msra.mxu0 0.0
    %8994 = vmatprep.subr.mxu0 0.0
    %8995 = vmatpush2.msra.mxu0 0.0
    %8996 = vmatprep.subr.mxu0 0.0
    %8997 = vmatpush2.msra.mxu0 0.0
    %8998 = vmatprep.subr.mxu0 0.0
    %8999 = vmatpush2.msra.mxu0 0.0
    %9000 = vmatprep.subr.mxu0 0.0
    %9001 = vmatpush2.msra.mxu0 0.0
    %9002 = vmatprep.subr.mxu0 0.0
    %9003 = vmatpush2.msra.mxu0 0.0
    %9004 = vmatprep.subr.mxu0 0.0
    %9005 = vmatpush2.msra.mxu0 0.0
    %9006 = vmatprep.mubr.f32.mxu0 0.0
    %9007 = vmatmul.mubr.f32.gmra.mxu0 %v5578
    %v9008 = vpop.f32.mrf.mxu0
    %v9009 = vadd.f32 0.0, %v9008
    %v9010 = vpop.f32.mrf.mxu0
    %9011 = vmatprep.mubr.f32.mxu0 0.0
    %9012 = vmatmul.mubr.f32.gmra.mxu0 %v5579
    %v9013 = vpop.f32.mrf.mxu0
    %v9014 = vadd.f32 0.0, %v9013
    %v9015 = vpop.f32.mrf.mxu0
    %9016 = vmatprep.mubr.f32.mxu0 0.0
    %9017 = vmatmul.mubr.f32.gmra.mxu0 %v5581
    %v9018 = vpop.f32.mrf.mxu0
    %v9019 = vadd.f32 0.0, %v9018
    %v9020 = vpop.f32.mrf.mxu0
    %9021 = vmatprep.mubr.f32.mxu0 0.0
    %9022 = vmatmul.mubr.f32.gmra.mxu0 %v5582
    %v9023 = vpop.f32.mrf.mxu0
    %v9024 = vadd.f32 0.0, %v9023
    %v9025 = vpop.f32.mrf.mxu0
    %9026 = vmatprep.mubr.f32.mxu0 0.0
    %9027 = vmatmul.mubr.f32.gmra.mxu0 %v5584
    %v9028 = vpop.f32.mrf.mxu0
    %v9029 = vadd.f32 0.0, %v9028
    %v9030 = vpop.f32.mrf.mxu0
    %9031 = vmatprep.mubr.f32.mxu0 0.0
    %9032 = vmatmul.mubr.f32.gmra.mxu0 %v5585
    %v9033 = vpop.f32.mrf.mxu0
    %v9034 = vadd.f32 0.0, %v9033
    %v9035 = vpop.f32.mrf.mxu0
    %9036 = vmatprep.mubr.f32.mxu0 0.0
    %9037 = vmatmul.mubr.f32.gmra.mxu0 %v5587
    %v9038 = vpop.f32.mrf.mxu0
    %v9039 = vadd.f32 0.0, %v9038
    %v9040 = vpop.f32.mrf.mxu0
    %9041 = vmatprep.mubr.f32.mxu0 0.0
    %9042 = vmatmul.mubr.f32.gmra.mxu0 %v5588
    %v9043 = vpop.f32.mrf.mxu0
    %v9044 = vadd.f32 0.0, %v9043
    %v9045 = vpop.f32.mrf.mxu0
    %9046 = vmatprep.mubr.f32.mxu0 0.0
    %9047 = vmatmul.mubr.f32.gmra.mxu0 %v5590
    %v9048 = vpop.f32.mrf.mxu0
    %v9049 = vadd.f32 0.0, %v9048
    %v9050 = vpop.f32.mrf.mxu0
    %9051 = vmatprep.mubr.f32.mxu0 0.0
    %9052 = vmatmul.mubr.f32.gmra.mxu0 %v5591
    %v9053 = vpop.f32.mrf.mxu0
    %v9054 = vadd.f32 0.0, %v9053
    %v9055 = vpop.f32.mrf.mxu0
    %9056 = vmatprep.mubr.f32.mxu0 0.0
    %9057 = vmatmul.mubr.f32.gmra.mxu0 %v5593
    %v9058 = vpop.f32.mrf.mxu0
    %v9059 = vadd.f32 0.0, %v9058
    %v9060 = vpop.f32.mrf.mxu0
    %9061 = vmatprep.mubr.f32.mxu0 0.0
    %9062 = vmatmul.mubr.f32.gmra.mxu0 %v5594
    %v9063 = vpop.f32.mrf.mxu0
    %v9064 = vadd.f32 0.0, %v9063
    %v9065 = vpop.f32.mrf.mxu0
    %9066 = vmatprep.mubr.f32.mxu0 0.0
    %9067 = vmatmul.mubr.f32.gmra.mxu0 %v5596
    %v9068 = vpop.f32.mrf.mxu0
    %v9069 = vadd.f32 0.0, %v9068
    %v9070 = vpop.f32.mrf.mxu0
    %9071 = vmatprep.mubr.f32.mxu0 0.0
    %9072 = vmatmul.mubr.f32.gmra.mxu0 %v5597
    %v9073 = vpop.f32.mrf.mxu0
    %v9074 = vadd.f32 0.0, %v9073
    %v9075 = vpop.f32.mrf.mxu0
    %9076 = vmatprep.mubr.f32.mxu0 0.0
    %9077 = vmatmul.mubr.f32.gmra.mxu0 %v5599
    %v9078 = vpop.f32.mrf.mxu0
    %v9079 = vadd.f32 0.0, %v9078
    %v9080 = vpop.f32.mrf.mxu0
    %9081 = vmatprep.mubr.f32.mxu0 0.0
    %9082 = vmatmul.mubr.f32.gmra.mxu0 %v5600
    %v9083 = vpop.f32.mrf.mxu0
    %v9084 = vadd.f32 0.0, %v9083
    %v9085 = vpop.f32.mrf.mxu0
    %9086 = vmatprep.mubr.f32.mxu0 0.0
    %9087 = vmatmul.mubr.f32.gmra.mxu0 %v5602
    %v9088 = vpop.f32.mrf.mxu0
    %v9089 = vadd.f32 0.0, %v9088
    %v9090 = vpop.f32.mrf.mxu0
    %9091 = vmatprep.mubr.f32.mxu0 0.0
    %9092 = vmatmul.mubr.f32.gmra.mxu0 %v5603
    %v9093 = vpop.f32.mrf.mxu0
    %v9094 = vadd.f32 0.0, %v9093
    %v9095 = vpop.f32.mrf.mxu0
    %9096 = vmatprep.mubr.f32.mxu0 0.0
    %9097 = vmatmul.mubr.f32.gmra.mxu0 %v5605
    %v9098 = vpop.f32.mrf.mxu0
    %v9099 = vadd.f32 0.0, %v9098
    %v9100 = vpop.f32.mrf.mxu0
    %9101 = vmatprep.mubr.f32.mxu0 0.0
    %9102 = vmatmul.mubr.f32.gmra.mxu0 %v5606
    %v9103 = vpop.f32.mrf.mxu0
    %v9104 = vadd.f32 0.0, %v9103
    %v9105 = vpop.f32.mrf.mxu0
    %9106 = vmatprep.mubr.f32.mxu0 0.0
    %9107 = vmatmul.mubr.f32.gmra.mxu0 %v5608
    %v9108 = vpop.f32.mrf.mxu0
    %v9109 = vadd.f32 0.0, %v9108
    %v9110 = vpop.f32.mrf.mxu0
    %9111 = vmatprep.mubr.f32.mxu0 0.0
    %9112 = vmatmul.mubr.f32.gmra.mxu0 %v5609
    %v9113 = vpop.f32.mrf.mxu0
    %v9114 = vadd.f32 0.0, %v9113
    %v9115 = vpop.f32.mrf.mxu0
    %9116 = vmatprep.mubr.f32.mxu0 0.0
    %9117 = vmatmul.mubr.f32.gmra.mxu0 %v5611
    %v9118 = vpop.f32.mrf.mxu0
    %v9119 = vadd.f32 0.0, %v9118
    %v9120 = vpop.f32.mrf.mxu0
    %9121 = vmatprep.mubr.f32.mxu0 0.0
    %9122 = vmatmul.mubr.f32.gmra.mxu0 %v5612
    %v9123 = vpop.f32.mrf.mxu0
    %v9124 = vadd.f32 0.0, %v9123
    %v9125 = vpop.f32.mrf.mxu0
    %9126 = vmatprep.mubr.f32.mxu0 0.0
    %9127 = vmatmul.mubr.f32.gmra.mxu0 %v5614
    %v9128 = vpop.f32.mrf.mxu0
    %v9129 = vadd.f32 0.0, %v9128
    %v9130 = vpop.f32.mrf.mxu0
    %9131 = vmatprep.mubr.f32.mxu0 0.0
    %9132 = vmatmul.mubr.f32.gmra.mxu0 %v5615
    %v9133 = vpop.f32.mrf.mxu0
    %v9134 = vadd.f32 0.0, %v9133
    %v9135 = vpop.f32.mrf.mxu0
    %9136 = vmatprep.mubr.f32.mxu0 0.0
    %9137 = vmatmul.mubr.f32.gmra.mxu0 %v5617
    %v9138 = vpop.f32.mrf.mxu0
    %v9139 = vadd.f32 0.0, %v9138
    %v9140 = vpop.f32.mrf.mxu0
    %9141 = vmatprep.mubr.f32.mxu0 0.0
    %9142 = vmatmul.mubr.f32.gmra.mxu0 %v5618
    %v9143 = vpop.f32.mrf.mxu0
    %v9144 = vadd.f32 0.0, %v9143
    %v9145 = vpop.f32.mrf.mxu0
    %9146 = vmatprep.mubr.f32.mxu0 0.0
    %9147 = vmatmul.mubr.f32.gmra.mxu0 %v5620
    %v9148 = vpop.f32.mrf.mxu0
    %v9149 = vadd.f32 0.0, %v9148
    %v9150 = vpop.f32.mrf.mxu0
    %9151 = vmatprep.mubr.f32.mxu0 0.0
    %9152 = vmatmul.mubr.f32.gmra.mxu0 %v5621
    %v9153 = vpop.f32.mrf.mxu0
    %v9154 = vadd.f32 0.0, %v9153
    %v9155 = vpop.f32.mrf.mxu0
    %9156 = vmatprep.mubr.f32.mxu0 0.0
    %9157 = vmatmul.mubr.f32.gmra.mxu0 %v5623
    %v9158 = vpop.f32.mrf.mxu0
    %v9159 = vadd.f32 0.0, %v9158
    %v9160 = vpop.f32.mrf.mxu0
    %9161 = vmatprep.mubr.f32.mxu0 0.0
    %9162 = vmatmul.mubr.f32.gmra.mxu0 %v5624
    %v9163 = vpop.f32.mrf.mxu0
    %v9164 = vadd.f32 0.0, %v9163
    %v9165 = vpop.f32.mrf.mxu0
    %9166 = vmatprep.mubr.f32.mxu0 0.0
    %9167 = vmatmul.mubr.f32.gmra.mxu0 %v5632
    %v9168 = vpop.f32.mrf.mxu0
    %v9169 = vadd.f32 0.0, %v9168
    %v9170 = vpop.f32.mrf.mxu0
    %9171 = vmatprep.mubr.f32.mxu0 0.0
    %9172 = vmatmul.mubr.f32.gmra.mxu0 %v5633
    %v9173 = vpop.f32.mrf.mxu0
    %v9174 = vadd.f32 0.0, %v9173
    %v9175 = vpop.f32.mrf.mxu0
    %9176 = vmatprep.mubr.f32.mxu0 0.0
    %9177 = vmatmul.mubr.f32.gmra.mxu0 %v5635
    %v9178 = vpop.f32.mrf.mxu0
    %v9179 = vadd.f32 0.0, %v9178
    %v9180 = vpop.f32.mrf.mxu0
    %9181 = vmatprep.mubr.f32.mxu0 0.0
    %9182 = vmatmul.mubr.f32.gmra.mxu0 %v5636
    %v9183 = vpop.f32.mrf.mxu0
    %v9184 = vadd.f32 0.0, %v9183
    %v9185 = vpop.f32.mrf.mxu0
    %9186 = vmatprep.mubr.f32.mxu0 0.0
    %9187 = vmatmul.mubr.f32.gmra.mxu0 %v5638
    %v9188 = vpop.f32.mrf.mxu0
    %v9189 = vadd.f32 0.0, %v9188
    %v9190 = vpop.f32.mrf.mxu0
    %9191 = vmatprep.mubr.f32.mxu0 0.0
    %9192 = vmatmul.mubr.f32.gmra.mxu0 %v5639
    %v9193 = vpop.f32.mrf.mxu0
    %v9194 = vadd.f32 0.0, %v9193
    %v9195 = vpop.f32.mrf.mxu0
    %9196 = vmatprep.mubr.f32.mxu0 0.0
    %9197 = vmatmul.mubr.f32.gmra.mxu0 %v5641
    %v9198 = vpop.f32.mrf.mxu0
    %v9199 = vadd.f32 0.0, %v9198
    %v9200 = vpop.f32.mrf.mxu0
    %9201 = vmatprep.mubr.f32.mxu0 0.0
    %9202 = vmatmul.mubr.f32.gmra.mxu0 %v5642
    %v9203 = vpop.f32.mrf.mxu0
    %v9204 = vadd.f32 0.0, %v9203
    %v9205 = vpop.f32.mrf.mxu0
    %9206 = vmatprep.mubr.f32.mxu0 0.0
    %9207 = vmatmul.mubr.f32.gmra.mxu0 %v5644
    %v9208 = vpop.f32.mrf.mxu0
    %v9209 = vadd.f32 0.0, %v9208
    %v9210 = vpop.f32.mrf.mxu0
    %9211 = vmatprep.mubr.f32.mxu0 0.0
    %9212 = vmatmul.mubr.f32.gmra.mxu0 %v5645
    %v9213 = vpop.f32.mrf.mxu0
    %v9214 = vadd.f32 0.0, %v9213
    %v9215 = vpop.f32.mrf.mxu0
    %9216 = vmatprep.mubr.f32.mxu0 0.0
    %9217 = vmatmul.mubr.f32.gmra.mxu0 %v5647
    %v9218 = vpop.f32.mrf.mxu0
    %v9219 = vadd.f32 0.0, %v9218
    %v9220 = vpop.f32.mrf.mxu0
    %9221 = vmatprep.mubr.f32.mxu0 0.0
    %9222 = vmatmul.mubr.f32.gmra.mxu0 %v5648
    %v9223 = vpop.f32.mrf.mxu0
    %v9224 = vadd.f32 0.0, %v9223
    %v9225 = vpop.f32.mrf.mxu0
    %9226 = vmatprep.mubr.f32.mxu0 0.0
    %9227 = vmatmul.mubr.f32.gmra.mxu0 %v5650
    %v9228 = vpop.f32.mrf.mxu0
    %v9229 = vadd.f32 0.0, %v9228
    %v9230 = vpop.f32.mrf.mxu0
    %9231 = vmatprep.mubr.f32.mxu0 0.0
    %9232 = vmatmul.mubr.f32.gmra.mxu0 %v5651
    %v9233 = vpop.f32.mrf.mxu0
    %v9234 = vadd.f32 0.0, %v9233
    %v9235 = vpop.f32.mrf.mxu0
    %9236 = vmatprep.mubr.f32.mxu0 0.0
    %9237 = vmatmul.mubr.f32.gmra.mxu0 %v5653
    %v9238 = vpop.f32.mrf.mxu0
    %v9239 = vadd.f32 0.0, %v9238
    %v9240 = vpop.f32.mrf.mxu0
    %9241 = vmatprep.mubr.f32.mxu0 0.0
    %9242 = vmatmul.mubr.f32.gmra.mxu0 %v5654
    %v9243 = vpop.f32.mrf.mxu0
    %v9244 = vadd.f32 0.0, %v9243
    %v9245 = vpop.f32.mrf.mxu0
    %9246 = vmatprep.mubr.f32.mxu0 0.0
    %9247 = vmatmul.mubr.f32.gmra.mxu0 %v5656
    %v9248 = vpop.f32.mrf.mxu0
    %v9249 = vadd.f32 0.0, %v9248
    %v9250 = vpop.f32.mrf.mxu0
    %9251 = vmatprep.mubr.f32.mxu0 0.0
    %9252 = vmatmul.mubr.f32.gmra.mxu0 %v5657
    %v9253 = vpop.f32.mrf.mxu0
    %v9254 = vadd.f32 0.0, %v9253
    %v9255 = vpop.f32.mrf.mxu0
    %9256 = vmatprep.mubr.f32.mxu0 0.0
    %9257 = vmatmul.mubr.f32.gmra.mxu0 %v5659
    %v9258 = vpop.f32.mrf.mxu0
    %v9259 = vadd.f32 0.0, %v9258
    %v9260 = vpop.f32.mrf.mxu0
    %9261 = vmatprep.mubr.f32.mxu0 0.0
    %9262 = vmatmul.mubr.f32.gmra.mxu0 %v5660
    %v9263 = vpop.f32.mrf.mxu0
    %v9264 = vadd.f32 0.0, %v9263
    %v9265 = vpop.f32.mrf.mxu0
    %9266 = vmatprep.mubr.f32.mxu0 0.0
    %9267 = vmatmul.mubr.f32.gmra.mxu0 %v5662
    %v9268 = vpop.f32.mrf.mxu0
    %v9269 = vadd.f32 0.0, %v9268
    %v9270 = vpop.f32.mrf.mxu0
    %9271 = vmatprep.mubr.f32.mxu0 0.0
    %9272 = vmatmul.mubr.f32.gmra.mxu0 %v5663
    %v9273 = vpop.f32.mrf.mxu0
    %v9274 = vadd.f32 0.0, %v9273
    %v9275 = vpop.f32.mrf.mxu0
    %9276 = vmatprep.mubr.f32.mxu0 0.0
    %9277 = vmatmul.mubr.f32.gmra.mxu0 %v5665
    %v9278 = vpop.f32.mrf.mxu0
    %v9279 = vadd.f32 0.0, %v9278
    %v9280 = vpop.f32.mrf.mxu0
    %9281 = vmatprep.mubr.f32.mxu0 0.0
    %9282 = vmatmul.mubr.f32.gmra.mxu0 %v5666
    %v9283 = vpop.f32.mrf.mxu0
    %v9284 = vadd.f32 0.0, %v9283
    %v9285 = vpop.f32.mrf.mxu0
    %9286 = vmatprep.mubr.f32.mxu0 0.0
    %9287 = vmatmul.mubr.f32.gmra.mxu0 %v5668
    %v9288 = vpop.f32.mrf.mxu0
    %v9289 = vadd.f32 0.0, %v9288
    %v9290 = vpop.f32.mrf.mxu0
    %9291 = vmatprep.mubr.f32.mxu0 0.0
    %9292 = vmatmul.mubr.f32.gmra.mxu0 %v5669
    %v9293 = vpop.f32.mrf.mxu0
    %v9294 = vadd.f32 0.0, %v9293
    %v9295 = vpop.f32.mrf.mxu0
    %9296 = vmatprep.mubr.f32.mxu0 0.0
    %9297 = vmatmul.mubr.f32.gmra.mxu0 %v5671
    %v9298 = vpop.f32.mrf.mxu0
    %v9299 = vadd.f32 0.0, %v9298
    %v9300 = vpop.f32.mrf.mxu0
    %9301 = vmatprep.mubr.f32.mxu0 0.0
    %9302 = vmatmul.mubr.f32.gmra.mxu0 %v5672
    %v9303 = vpop.f32.mrf.mxu0
    %v9304 = vadd.f32 0.0, %v9303
    %v9305 = vpop.f32.mrf.mxu0
    %9306 = vmatprep.mubr.f32.mxu0 0.0
    %9307 = vmatmul.mubr.f32.gmra.mxu0 %v5674
    %v9308 = vpop.f32.mrf.mxu0
    %v9309 = vadd.f32 0.0, %v9308
    %v9310 = vpop.f32.mrf.mxu0
    %9311 = vmatprep.mubr.f32.mxu0 0.0
    %9312 = vmatmul.mubr.f32.gmra.mxu0 %v5675
    %v9313 = vpop.f32.mrf.mxu0
    %v9314 = vadd.f32 0.0, %v9313
    %v9315 = vpop.f32.mrf.mxu0
    %9316 = vmatprep.mubr.f32.mxu0 0.0
    %9317 = vmatmul.mubr.f32.gmra.mxu0 %v5677
    %v9318 = vpop.f32.mrf.mxu0
    %v9319 = vadd.f32 0.0, %v9318
    %v9320 = vpop.f32.mrf.mxu0
    %9321 = vmatprep.mubr.f32.mxu0 0.0
    %9322 = vmatmul.mubr.f32.gmra.mxu0 %v5678
    %v9323 = vpop.f32.mrf.mxu0
    %v9324 = vadd.f32 0.0, %v9323
    %v9325 = vpop.f32.mrf.mxu0
    %9326 = vdwg.mxu0
    %v9327 = vadd.f32 %v8861, %v9009
    %v9328 = vadd.f32 %v8862, %v9014
    %v9329 = vadd.f32 %v8863, %v9019
    %v9330 = vadd.f32 %v8864, %v9024
    %v9331 = vadd.f32 %v8865, %v9029
    %v9332 = vadd.f32 %v8866, %v9034
    %v9333 = vadd.f32 %v8867, %v9039
    %v9334 = vadd.f32 %v8868, %v9044
    %v9335 = vadd.f32 %v8869, %v9049
    %v9336 = vadd.f32 %v8870, %v9054
    %v9337 = vadd.f32 %v8871, %v9059
    %v9338 = vadd.f32 %v8872, %v9064
    %v9339 = vadd.f32 %v8873, %v9069
    %v9340 = vadd.f32 %v8874, %v9074
    %v9341 = vadd.f32 %v8875, %v9079
    %v9342 = vadd.f32 %v8876, %v9084
    %v9343 = vadd.f32 %v8877, %v9089
    %v9344 = vadd.f32 %v8878, %v9094
    %v9345 = vadd.f32 %v8879, %v9099
    %v9346 = vadd.f32 %v8880, %v9104
    %v9347 = vadd.f32 %v8881, %v9109
    %v9348 = vadd.f32 %v8882, %v9114
    %v9349 = vadd.f32 %v8883, %v9119
    %v9350 = vadd.f32 %v8884, %v9124
    %v9351 = vadd.f32 %v8885, %v9129
    %v9352 = vadd.f32 %v8886, %v9134
    %v9353 = vadd.f32 %v8887, %v9139
    %v9354 = vadd.f32 %v8888, %v9144
    %v9355 = vadd.f32 %v8889, %v9149
    %v9356 = vadd.f32 %v8890, %v9154
    %v9357 = vadd.f32 %v8891, %v9159
    %v9358 = vadd.f32 %v8892, %v9164
    %v9359 = vadd.f32 %v8893, %v9169
    %v9360 = vadd.f32 %v8894, %v9174
    %v9361 = vadd.f32 %v8895, %v9179
    %v9362 = vadd.f32 %v8896, %v9184
    %v9363 = vadd.f32 %v8897, %v9189
    %v9364 = vadd.f32 %v8898, %v9194
    %v9365 = vadd.f32 %v8899, %v9199
    %v9366 = vadd.f32 %v8900, %v9204
    %v9367 = vadd.f32 %v8901, %v9209
    %v9368 = vadd.f32 %v8902, %v9214
    %v9369 = vadd.f32 %v8903, %v9219
    %v9370 = vadd.f32 %v8904, %v9224
    %v9371 = vadd.f32 %v8905, %v9229
    %v9372 = vadd.f32 %v8906, %v9234
    %v9373 = vadd.f32 %v8907, %v9239
    %v9374 = vadd.f32 %v8908, %v9244
    %v9375 = vadd.f32 %v8909, %v9249
    %v9376 = vadd.f32 %v8910, %v9254
    %v9377 = vadd.f32 %v8911, %v9259
    %v9378 = vadd.f32 %v8912, %v9264
    %v9379 = vadd.f32 %v8913, %v9269
    %v9380 = vadd.f32 %v8914, %v9274
    %v9381 = vadd.f32 %v8915, %v9279
    %v9382 = vadd.f32 %v8916, %v9284
    %v9383 = vadd.f32 %v8917, %v9289
    %v9384 = vadd.f32 %v8918, %v9294
    %v9385 = vadd.f32 %v8919, %v9299
    %v9386 = vadd.f32 %v8920, %v9304
    %v9387 = vadd.f32 %v8921, %v9309
    %v9388 = vadd.f32 %v8922, %v9314
    %v9389 = vadd.f32 %v8923, %v9319
    %v9390 = vadd.f32 %v8924, %v9324
    %v9397 = vrot.slane %v5623, 1
    %v9398 = vrot.slane %v5624, 1
    %v9399 = vsel %vm249, %v9397, %v9398
    %v9400 = vrot.slane %v5625, 1
    %v9401 = vsel %vm249, %v9398, %v9400
    %v9402 = vrot.slane %v5677, 1
    %v9403 = vrot.slane %v5678, 1
    %v9404 = vsel %vm249, %v9402, %v9403
    %v9405 = vrot.slane %v5679, 1
    %v9406 = vsel %vm249, %v9403, %v9405
    %s9411 = scalar_lea.vmem [#allocation3], 896
    %v9412 = vld [vmem:[%s9411] sm:$0xff]
    %v9413 = vld [vmem:[%s9411 + $0x8] sm:$0xff]
    %v9414 = vld [vmem:[%s9411 + $0x10] sm:$0xff]
    %v9415 = vld [vmem:[%s9411 + $0x18] sm:$0xff]
    %v9416 = vld [vmem:[%s9411 + $0x20] sm:$0xff]
    %v9417 = vld [vmem:[%s9411 + $0x28] sm:$0xff]
    %v9418 = vld [vmem:[%s9411 + $0x30] sm:$0xff]
    %v9419 = vld [vmem:[%s9411 + $0x38] sm:$0xff]
    %v9420 = vld [vmem:[%s9411 + $0x40] sm:$0xff]
    %v9421 = vld [vmem:[%s9411 + $0x48] sm:$0xff]
    %v9422 = vld [vmem:[%s9411 + $0x50] sm:$0xff]
    %v9423 = vld [vmem:[%s9411 + $0x58] sm:$0xff]
    %v9424 = vld [vmem:[%s9411 + $0x60] sm:$0xff]
    %v9425 = vld [vmem:[%s9411 + $0x68] sm:$0xff]
    %v9426 = vld [vmem:[%s9411 + $0x70] sm:$0xff]
    %v9427 = vld [vmem:[%s9411 + $0x78] sm:$0xff]
    %9428 = vmatprep.subr.mxu0 0.0
    %9429 = vmatpush1.msra.mxu0 %v9427
    %9430 = vmatprep.subr.mxu0 0.0
    %9431 = vmatpush1.msra.mxu0 %v9426
    %9432 = vmatprep.subr.mxu0 0.0
    %9433 = vmatpush1.msra.mxu0 %v9425
    %9434 = vmatprep.subr.mxu0 0.0
    %9435 = vmatpush1.msra.mxu0 %v9424
    %9436 = vmatprep.subr.mxu0 0.0
    %9437 = vmatpush1.msra.mxu0 %v9423
    %9438 = vmatprep.subr.mxu0 0.0
    %9439 = vmatpush1.msra.mxu0 %v9422
    %9440 = vmatprep.subr.mxu0 0.0
    %9441 = vmatpush1.msra.mxu0 %v9421
    %9442 = vmatprep.subr.mxu0 0.0
    %9443 = vmatpush1.msra.mxu0 %v9420
    %9444 = vmatprep.subr.mxu0 0.0
    %9445 = vmatpush1.msra.mxu0 %v9419
    %9446 = vmatprep.subr.mxu0 0.0
    %9447 = vmatpush1.msra.mxu0 %v9418
    %9448 = vmatprep.subr.mxu0 0.0
    %9449 = vmatpush1.msra.mxu0 %v9417
    %9450 = vmatprep.subr.mxu0 0.0
    %9451 = vmatpush1.msra.mxu0 %v9416
    %9452 = vmatprep.subr.mxu0 0.0
    %9453 = vmatpush1.msra.mxu0 %v9415
    %9454 = vmatprep.subr.mxu0 0.0
    %9455 = vmatpush1.msra.mxu0 %v9414
    %9456 = vmatprep.subr.mxu0 0.0
    %9457 = vmatpush1.msra.mxu0 %v9413
    %9458 = vmatprep.subr.mxu0 0.0
    %9459 = vmatpush1.msra.mxu0 %v9412
    %9460 = vmatprep.subr.mxu0 0.0
    %9461 = vmatpush2.msra.mxu0 0.0
    %9462 = vmatprep.subr.mxu0 0.0
    %9463 = vmatpush2.msra.mxu0 0.0
    %9464 = vmatprep.subr.mxu0 0.0
    %9465 = vmatpush2.msra.mxu0 0.0
    %9466 = vmatprep.subr.mxu0 0.0
    %9467 = vmatpush2.msra.mxu0 0.0
    %9468 = vmatprep.subr.mxu0 0.0
    %9469 = vmatpush2.msra.mxu0 0.0
    %9470 = vmatprep.subr.mxu0 0.0
    %9471 = vmatpush2.msra.mxu0 0.0
    %9472 = vmatprep.subr.mxu0 0.0
    %9473 = vmatpush2.msra.mxu0 0.0
    %9474 = vmatprep.subr.mxu0 0.0
    %9475 = vmatpush2.msra.mxu0 0.0
    %9476 = vmatprep.subr.mxu0 0.0
    %9477 = vmatpush2.msra.mxu0 0.0
    %9478 = vmatprep.subr.mxu0 0.0
    %9479 = vmatpush2.msra.mxu0 0.0
    %9480 = vmatprep.subr.mxu0 0.0
    %9481 = vmatpush2.msra.mxu0 0.0
    %9482 = vmatprep.subr.mxu0 0.0
    %9483 = vmatpush2.msra.mxu0 0.0
    %9484 = vmatprep.subr.mxu0 0.0
    %9485 = vmatpush2.msra.mxu0 0.0
    %9486 = vmatprep.subr.mxu0 0.0
    %9487 = vmatpush2.msra.mxu0 0.0
    %9488 = vmatprep.subr.mxu0 0.0
    %9489 = vmatpush2.msra.mxu0 0.0
    %9490 = vmatprep.subr.mxu0 0.0
    %9491 = vmatpush2.msra.mxu0 0.0
    %9492 = vmatprep.mubr.f32.mxu0 0.0
    %9493 = vmatmul.mubr.f32.gmra.mxu0 %v5804
    %v9494 = vpop.f32.mrf.mxu0
    %v9495 = vadd.f32 0.0, %v9494
    %v9496 = vpop.f32.mrf.mxu0
    %9497 = vmatprep.mubr.f32.mxu0 0.0
    %9498 = vmatmul.mubr.f32.gmra.mxu0 %v5806
    %v9499 = vpop.f32.mrf.mxu0
    %v9500 = vadd.f32 0.0, %v9499
    %v9501 = vpop.f32.mrf.mxu0
    %9502 = vmatprep.mubr.f32.mxu0 0.0
    %9503 = vmatmul.mubr.f32.gmra.mxu0 %v5809
    %v9504 = vpop.f32.mrf.mxu0
    %v9505 = vadd.f32 0.0, %v9504
    %v9506 = vpop.f32.mrf.mxu0
    %9507 = vmatprep.mubr.f32.mxu0 0.0
    %9508 = vmatmul.mubr.f32.gmra.mxu0 %v5811
    %v9509 = vpop.f32.mrf.mxu0
    %v9510 = vadd.f32 0.0, %v9509
    %v9511 = vpop.f32.mrf.mxu0
    %9512 = vmatprep.mubr.f32.mxu0 0.0
    %9513 = vmatmul.mubr.f32.gmra.mxu0 %v5814
    %v9514 = vpop.f32.mrf.mxu0
    %v9515 = vadd.f32 0.0, %v9514
    %v9516 = vpop.f32.mrf.mxu0
    %9517 = vmatprep.mubr.f32.mxu0 0.0
    %9518 = vmatmul.mubr.f32.gmra.mxu0 %v5816
    %v9519 = vpop.f32.mrf.mxu0
    %v9520 = vadd.f32 0.0, %v9519
    %v9521 = vpop.f32.mrf.mxu0
    %9522 = vmatprep.mubr.f32.mxu0 0.0
    %9523 = vmatmul.mubr.f32.gmra.mxu0 %v5819
    %v9524 = vpop.f32.mrf.mxu0
    %v9525 = vadd.f32 0.0, %v9524
    %v9526 = vpop.f32.mrf.mxu0
    %9527 = vmatprep.mubr.f32.mxu0 0.0
    %9528 = vmatmul.mubr.f32.gmra.mxu0 %v5821
    %v9529 = vpop.f32.mrf.mxu0
    %v9530 = vadd.f32 0.0, %v9529
    %v9531 = vpop.f32.mrf.mxu0
    %9532 = vmatprep.mubr.f32.mxu0 0.0
    %9533 = vmatmul.mubr.f32.gmra.mxu0 %v5824
    %v9534 = vpop.f32.mrf.mxu0
    %v9535 = vadd.f32 0.0, %v9534
    %v9536 = vpop.f32.mrf.mxu0
    %9537 = vmatprep.mubr.f32.mxu0 0.0
    %9538 = vmatmul.mubr.f32.gmra.mxu0 %v5826
    %v9539 = vpop.f32.mrf.mxu0
    %v9540 = vadd.f32 0.0, %v9539
    %v9541 = vpop.f32.mrf.mxu0
    %9542 = vmatprep.mubr.f32.mxu0 0.0
    %9543 = vmatmul.mubr.f32.gmra.mxu0 %v5829
    %v9544 = vpop.f32.mrf.mxu0
    %v9545 = vadd.f32 0.0, %v9544
    %v9546 = vpop.f32.mrf.mxu0
    %9547 = vmatprep.mubr.f32.mxu0 0.0
    %9548 = vmatmul.mubr.f32.gmra.mxu0 %v5831
    %v9549 = vpop.f32.mrf.mxu0
    %v9550 = vadd.f32 0.0, %v9549
    %v9551 = vpop.f32.mrf.mxu0
    %9552 = vmatprep.mubr.f32.mxu0 0.0
    %9553 = vmatmul.mubr.f32.gmra.mxu0 %v5834
    %v9554 = vpop.f32.mrf.mxu0
    %v9555 = vadd.f32 0.0, %v9554
    %v9556 = vpop.f32.mrf.mxu0
    %9557 = vmatprep.mubr.f32.mxu0 0.0
    %9558 = vmatmul.mubr.f32.gmra.mxu0 %v5836
    %v9559 = vpop.f32.mrf.mxu0
    %v9560 = vadd.f32 0.0, %v9559
    %v9561 = vpop.f32.mrf.mxu0
    %9562 = vmatprep.mubr.f32.mxu0 0.0
    %9563 = vmatmul.mubr.f32.gmra.mxu0 %v5839
    %v9564 = vpop.f32.mrf.mxu0
    %v9565 = vadd.f32 0.0, %v9564
    %v9566 = vpop.f32.mrf.mxu0
    %9567 = vmatprep.mubr.f32.mxu0 0.0
    %9568 = vmatmul.mubr.f32.gmra.mxu0 %v5841
    %v9569 = vpop.f32.mrf.mxu0
    %v9570 = vadd.f32 0.0, %v9569
    %v9571 = vpop.f32.mrf.mxu0
    %9572 = vmatprep.mubr.f32.mxu0 0.0
    %9573 = vmatmul.mubr.f32.gmra.mxu0 %v5844
    %v9574 = vpop.f32.mrf.mxu0
    %v9575 = vadd.f32 0.0, %v9574
    %v9576 = vpop.f32.mrf.mxu0
    %9577 = vmatprep.mubr.f32.mxu0 0.0
    %9578 = vmatmul.mubr.f32.gmra.mxu0 %v5846
    %v9579 = vpop.f32.mrf.mxu0
    %v9580 = vadd.f32 0.0, %v9579
    %v9581 = vpop.f32.mrf.mxu0
    %9582 = vmatprep.mubr.f32.mxu0 0.0
    %9583 = vmatmul.mubr.f32.gmra.mxu0 %v5849
    %v9584 = vpop.f32.mrf.mxu0
    %v9585 = vadd.f32 0.0, %v9584
    %v9586 = vpop.f32.mrf.mxu0
    %9587 = vmatprep.mubr.f32.mxu0 0.0
    %9588 = vmatmul.mubr.f32.gmra.mxu0 %v5851
    %v9589 = vpop.f32.mrf.mxu0
    %v9590 = vadd.f32 0.0, %v9589
    %v9591 = vpop.f32.mrf.mxu0
    %9592 = vmatprep.mubr.f32.mxu0 0.0
    %9593 = vmatmul.mubr.f32.gmra.mxu0 %v5854
    %v9594 = vpop.f32.mrf.mxu0
    %v9595 = vadd.f32 0.0, %v9594
    %v9596 = vpop.f32.mrf.mxu0
    %9597 = vmatprep.mubr.f32.mxu0 0.0
    %9598 = vmatmul.mubr.f32.gmra.mxu0 %v5856
    %v9599 = vpop.f32.mrf.mxu0
    %v9600 = vadd.f32 0.0, %v9599
    %v9601 = vpop.f32.mrf.mxu0
    %9602 = vmatprep.mubr.f32.mxu0 0.0
    %9603 = vmatmul.mubr.f32.gmra.mxu0 %v5859
    %v9604 = vpop.f32.mrf.mxu0
    %v9605 = vadd.f32 0.0, %v9604
    %v9606 = vpop.f32.mrf.mxu0
    %9607 = vmatprep.mubr.f32.mxu0 0.0
    %9608 = vmatmul.mubr.f32.gmra.mxu0 %v5861
    %v9609 = vpop.f32.mrf.mxu0
    %v9610 = vadd.f32 0.0, %v9609
    %v9611 = vpop.f32.mrf.mxu0
    %9612 = vmatprep.mubr.f32.mxu0 0.0
    %9613 = vmatmul.mubr.f32.gmra.mxu0 %v5864
    %v9614 = vpop.f32.mrf.mxu0
    %v9615 = vadd.f32 0.0, %v9614
    %v9616 = vpop.f32.mrf.mxu0
    %9617 = vmatprep.mubr.f32.mxu0 0.0
    %9618 = vmatmul.mubr.f32.gmra.mxu0 %v5866
    %v9619 = vpop.f32.mrf.mxu0
    %v9620 = vadd.f32 0.0, %v9619
    %v9621 = vpop.f32.mrf.mxu0
    %9622 = vmatprep.mubr.f32.mxu0 0.0
    %9623 = vmatmul.mubr.f32.gmra.mxu0 %v5869
    %v9624 = vpop.f32.mrf.mxu0
    %v9625 = vadd.f32 0.0, %v9624
    %v9626 = vpop.f32.mrf.mxu0
    %9627 = vmatprep.mubr.f32.mxu0 0.0
    %9628 = vmatmul.mubr.f32.gmra.mxu0 %v5871
    %v9629 = vpop.f32.mrf.mxu0
    %v9630 = vadd.f32 0.0, %v9629
    %v9631 = vpop.f32.mrf.mxu0
    %9632 = vmatprep.mubr.f32.mxu0 0.0
    %9633 = vmatmul.mubr.f32.gmra.mxu0 %v7967
    %v9634 = vpop.f32.mrf.mxu0
    %v9635 = vadd.f32 0.0, %v9634
    %v9636 = vpop.f32.mrf.mxu0
    %9637 = vmatprep.mubr.f32.mxu0 0.0
    %9638 = vmatmul.mubr.f32.gmra.mxu0 %v7969
    %v9639 = vpop.f32.mrf.mxu0
    %v9640 = vadd.f32 0.0, %v9639
    %v9641 = vpop.f32.mrf.mxu0
    %9642 = vmatprep.mubr.f32.mxu0 0.0
    %9643 = vmatmul.mubr.f32.gmra.mxu0 %v9399
    %v9644 = vpop.f32.mrf.mxu0
    %v9645 = vadd.f32 0.0, %v9644
    %v9646 = vpop.f32.mrf.mxu0
    %9647 = vmatprep.mubr.f32.mxu0 0.0
    %9648 = vmatmul.mubr.f32.gmra.mxu0 %v9401
    %v9649 = vpop.f32.mrf.mxu0
    %v9650 = vadd.f32 0.0, %v9649
    %v9651 = vpop.f32.mrf.mxu0
    %9652 = vmatprep.mubr.f32.mxu0 0.0
    %9653 = vmatmul.mubr.f32.gmra.mxu0 %v5884
    %v9654 = vpop.f32.mrf.mxu0
    %v9655 = vadd.f32 0.0, %v9654
    %v9656 = vpop.f32.mrf.mxu0
    %9657 = vmatprep.mubr.f32.mxu0 0.0
    %9658 = vmatmul.mubr.f32.gmra.mxu0 %v5886
    %v9659 = vpop.f32.mrf.mxu0
    %v9660 = vadd.f32 0.0, %v9659
    %v9661 = vpop.f32.mrf.mxu0
    %9662 = vmatprep.mubr.f32.mxu0 0.0
    %9663 = vmatmul.mubr.f32.gmra.mxu0 %v5889
    %v9664 = vpop.f32.mrf.mxu0
    %v9665 = vadd.f32 0.0, %v9664
    %v9666 = vpop.f32.mrf.mxu0
    %9667 = vmatprep.mubr.f32.mxu0 0.0
    %9668 = vmatmul.mubr.f32.gmra.mxu0 %v5891
    %v9669 = vpop.f32.mrf.mxu0
    %v9670 = vadd.f32 0.0, %v9669
    %v9671 = vpop.f32.mrf.mxu0
    %9672 = vmatprep.mubr.f32.mxu0 0.0
    %9673 = vmatmul.mubr.f32.gmra.mxu0 %v5894
    %v9674 = vpop.f32.mrf.mxu0
    %v9675 = vadd.f32 0.0, %v9674
    %v9676 = vpop.f32.mrf.mxu0
    %9677 = vmatprep.mubr.f32.mxu0 0.0
    %9678 = vmatmul.mubr.f32.gmra.mxu0 %v5896
    %v9679 = vpop.f32.mrf.mxu0
    %v9680 = vadd.f32 0.0, %v9679
    %v9681 = vpop.f32.mrf.mxu0
    %9682 = vmatprep.mubr.f32.mxu0 0.0
    %9683 = vmatmul.mubr.f32.gmra.mxu0 %v5899
    %v9684 = vpop.f32.mrf.mxu0
    %v9685 = vadd.f32 0.0, %v9684
    %v9686 = vpop.f32.mrf.mxu0
    %9687 = vmatprep.mubr.f32.mxu0 0.0
    %9688 = vmatmul.mubr.f32.gmra.mxu0 %v5901
    %v9689 = vpop.f32.mrf.mxu0
    %v9690 = vadd.f32 0.0, %v9689
    %v9691 = vpop.f32.mrf.mxu0
    %9692 = vmatprep.mubr.f32.mxu0 0.0
    %9693 = vmatmul.mubr.f32.gmra.mxu0 %v5904
    %v9694 = vpop.f32.mrf.mxu0
    %v9695 = vadd.f32 0.0, %v9694
    %v9696 = vpop.f32.mrf.mxu0
    %9697 = vmatprep.mubr.f32.mxu0 0.0
    %9698 = vmatmul.mubr.f32.gmra.mxu0 %v5906
    %v9699 = vpop.f32.mrf.mxu0
    %v9700 = vadd.f32 0.0, %v9699
    %v9701 = vpop.f32.mrf.mxu0
    %9702 = vmatprep.mubr.f32.mxu0 0.0
    %9703 = vmatmul.mubr.f32.gmra.mxu0 %v5909
    %v9704 = vpop.f32.mrf.mxu0
    %v9705 = vadd.f32 0.0, %v9704
    %v9706 = vpop.f32.mrf.mxu0
    %9707 = vmatprep.mubr.f32.mxu0 0.0
    %9708 = vmatmul.mubr.f32.gmra.mxu0 %v5911
    %v9709 = vpop.f32.mrf.mxu0
    %v9710 = vadd.f32 0.0, %v9709
    %v9711 = vpop.f32.mrf.mxu0
    %9712 = vmatprep.mubr.f32.mxu0 0.0
    %9713 = vmatmul.mubr.f32.gmra.mxu0 %v5914
    %v9714 = vpop.f32.mrf.mxu0
    %v9715 = vadd.f32 0.0, %v9714
    %v9716 = vpop.f32.mrf.mxu0
    %9717 = vmatprep.mubr.f32.mxu0 0.0
    %9718 = vmatmul.mubr.f32.gmra.mxu0 %v5916
    %v9719 = vpop.f32.mrf.mxu0
    %v9720 = vadd.f32 0.0, %v9719
    %v9721 = vpop.f32.mrf.mxu0
    %9722 = vmatprep.mubr.f32.mxu0 0.0
    %9723 = vmatmul.mubr.f32.gmra.mxu0 %v5919
    %v9724 = vpop.f32.mrf.mxu0
    %v9725 = vadd.f32 0.0, %v9724
    %v9726 = vpop.f32.mrf.mxu0
    %9727 = vmatprep.mubr.f32.mxu0 0.0
    %9728 = vmatmul.mubr.f32.gmra.mxu0 %v5921
    %v9729 = vpop.f32.mrf.mxu0
    %v9730 = vadd.f32 0.0, %v9729
    %v9731 = vpop.f32.mrf.mxu0
    %9732 = vmatprep.mubr.f32.mxu0 0.0
    %9733 = vmatmul.mubr.f32.gmra.mxu0 %v5924
    %v9734 = vpop.f32.mrf.mxu0
    %v9735 = vadd.f32 0.0, %v9734
    %v9736 = vpop.f32.mrf.mxu0
    %9737 = vmatprep.mubr.f32.mxu0 0.0
    %9738 = vmatmul.mubr.f32.gmra.mxu0 %v5926
    %v9739 = vpop.f32.mrf.mxu0
    %v9740 = vadd.f32 0.0, %v9739
    %v9741 = vpop.f32.mrf.mxu0
    %9742 = vmatprep.mubr.f32.mxu0 0.0
    %9743 = vmatmul.mubr.f32.gmra.mxu0 %v5929
    %v9744 = vpop.f32.mrf.mxu0
    %v9745 = vadd.f32 0.0, %v9744
    %v9746 = vpop.f32.mrf.mxu0
    %9747 = vmatprep.mubr.f32.mxu0 0.0
    %9748 = vmatmul.mubr.f32.gmra.mxu0 %v5931
    %v9749 = vpop.f32.mrf.mxu0
    %v9750 = vadd.f32 0.0, %v9749
    %v9751 = vpop.f32.mrf.mxu0
    %9752 = vmatprep.mubr.f32.mxu0 0.0
    %9753 = vmatmul.mubr.f32.gmra.mxu0 %v5934
    %v9754 = vpop.f32.mrf.mxu0
    %v9755 = vadd.f32 0.0, %v9754
    %v9756 = vpop.f32.mrf.mxu0
    %9757 = vmatprep.mubr.f32.mxu0 0.0
    %9758 = vmatmul.mubr.f32.gmra.mxu0 %v5936
    %v9759 = vpop.f32.mrf.mxu0
    %v9760 = vadd.f32 0.0, %v9759
    %v9761 = vpop.f32.mrf.mxu0
    %9762 = vmatprep.mubr.f32.mxu0 0.0
    %9763 = vmatmul.mubr.f32.gmra.mxu0 %v5939
    %v9764 = vpop.f32.mrf.mxu0
    %v9765 = vadd.f32 0.0, %v9764
    %v9766 = vpop.f32.mrf.mxu0
    %9767 = vmatprep.mubr.f32.mxu0 0.0
    %9768 = vmatmul.mubr.f32.gmra.mxu0 %v5941
    %v9769 = vpop.f32.mrf.mxu0
    %v9770 = vadd.f32 0.0, %v9769
    %v9771 = vpop.f32.mrf.mxu0
    %9772 = vmatprep.mubr.f32.mxu0 0.0
    %9773 = vmatmul.mubr.f32.gmra.mxu0 %v5944
    %v9774 = vpop.f32.mrf.mxu0
    %v9775 = vadd.f32 0.0, %v9774
    %v9776 = vpop.f32.mrf.mxu0
    %9777 = vmatprep.mubr.f32.mxu0 0.0
    %9778 = vmatmul.mubr.f32.gmra.mxu0 %v5946
    %v9779 = vpop.f32.mrf.mxu0
    %v9780 = vadd.f32 0.0, %v9779
    %v9781 = vpop.f32.mrf.mxu0
    %9782 = vmatprep.mubr.f32.mxu0 0.0
    %9783 = vmatmul.mubr.f32.gmra.mxu0 %v5949
    %v9784 = vpop.f32.mrf.mxu0
    %v9785 = vadd.f32 0.0, %v9784
    %v9786 = vpop.f32.mrf.mxu0
    %9787 = vmatprep.mubr.f32.mxu0 0.0
    %9788 = vmatmul.mubr.f32.gmra.mxu0 %v5951
    %v9789 = vpop.f32.mrf.mxu0
    %v9790 = vadd.f32 0.0, %v9789
    %v9791 = vpop.f32.mrf.mxu0
    %9792 = vmatprep.mubr.f32.mxu0 0.0
    %9793 = vmatmul.mubr.f32.gmra.mxu0 %v7972
    %v9794 = vpop.f32.mrf.mxu0
    %v9795 = vadd.f32 0.0, %v9794
    %v9796 = vpop.f32.mrf.mxu0
    %9797 = vmatprep.mubr.f32.mxu0 0.0
    %9798 = vmatmul.mubr.f32.gmra.mxu0 %v7974
    %v9799 = vpop.f32.mrf.mxu0
    %v9800 = vadd.f32 0.0, %v9799
    %v9801 = vpop.f32.mrf.mxu0
    %9802 = vmatprep.mubr.f32.mxu0 0.0
    %9803 = vmatmul.mubr.f32.gmra.mxu0 %v9404
    %v9804 = vpop.f32.mrf.mxu0
    %v9805 = vadd.f32 0.0, %v9804
    %v9806 = vpop.f32.mrf.mxu0
    %9807 = vmatprep.mubr.f32.mxu0 0.0
    %9808 = vmatmul.mubr.f32.gmra.mxu0 %v9406
    %v9809 = vpop.f32.mrf.mxu0
    %v9810 = vadd.f32 0.0, %v9809
    %v9811 = vpop.f32.mrf.mxu0
    %9812 = vdwg.mxu0
    %v9813 = vadd.f32 %v9327, %v9495
    %v9814 = vadd.f32 %v9328, %v9500
    %v9815 = vadd.f32 %v9329, %v9505
    %v9816 = vadd.f32 %v9330, %v9510
    %v9817 = vadd.f32 %v9331, %v9515
    %v9818 = vadd.f32 %v9332, %v9520
    %v9819 = vadd.f32 %v9333, %v9525
    %v9820 = vadd.f32 %v9334, %v9530
    %v9821 = vadd.f32 %v9335, %v9535
    %v9822 = vadd.f32 %v9336, %v9540
    %v9823 = vadd.f32 %v9337, %v9545
    %v9824 = vadd.f32 %v9338, %v9550
    %v9825 = vadd.f32 %v9339, %v9555
    %v9826 = vadd.f32 %v9340, %v9560
    %v9827 = vadd.f32 %v9341, %v9565
    %v9828 = vadd.f32 %v9342, %v9570
    %v9829 = vadd.f32 %v9343, %v9575
    %v9830 = vadd.f32 %v9344, %v9580
    %v9831 = vadd.f32 %v9345, %v9585
    %v9832 = vadd.f32 %v9346, %v9590
    %v9833 = vadd.f32 %v9347, %v9595
    %v9834 = vadd.f32 %v9348, %v9600
    %v9835 = vadd.f32 %v9349, %v9605
    %v9836 = vadd.f32 %v9350, %v9610
    %v9837 = vadd.f32 %v9351, %v9615
    %v9838 = vadd.f32 %v9352, %v9620
    %v9839 = vadd.f32 %v9353, %v9625
    %v9840 = vadd.f32 %v9354, %v9630
    %v9841 = vadd.f32 %v9355, %v9635
    %v9842 = vadd.f32 %v9356, %v9640
    %v9843 = vadd.f32 %v9357, %v9645
    %v9844 = vadd.f32 %v9358, %v9650
    %v9845 = vadd.f32 %v9359, %v9655
    %v9846 = vadd.f32 %v9360, %v9660
    %v9847 = vadd.f32 %v9361, %v9665
    %v9848 = vadd.f32 %v9362, %v9670
    %v9849 = vadd.f32 %v9363, %v9675
    %v9850 = vadd.f32 %v9364, %v9680
    %v9851 = vadd.f32 %v9365, %v9685
    %v9852 = vadd.f32 %v9366, %v9690
    %v9853 = vadd.f32 %v9367, %v9695
    %v9854 = vadd.f32 %v9368, %v9700
    %v9855 = vadd.f32 %v9369, %v9705
    %v9856 = vadd.f32 %v9370, %v9710
    %v9857 = vadd.f32 %v9371, %v9715
    %v9858 = vadd.f32 %v9372, %v9720
    %v9859 = vadd.f32 %v9373, %v9725
    %v9860 = vadd.f32 %v9374, %v9730
    %v9861 = vadd.f32 %v9375, %v9735
    %v9862 = vadd.f32 %v9376, %v9740
    %v9863 = vadd.f32 %v9377, %v9745
    %v9864 = vadd.f32 %v9378, %v9750
    %v9865 = vadd.f32 %v9379, %v9755
    %v9866 = vadd.f32 %v9380, %v9760
    %v9867 = vadd.f32 %v9381, %v9765
    %v9868 = vadd.f32 %v9382, %v9770
    %v9869 = vadd.f32 %v9383, %v9775
    %v9870 = vadd.f32 %v9384, %v9780
    %v9871 = vadd.f32 %v9385, %v9785
    %v9872 = vadd.f32 %v9386, %v9790
    %v9873 = vadd.f32 %v9387, %v9795
    %v9874 = vadd.f32 %v9388, %v9800
    %v9875 = vadd.f32 %v9389, %v9805
    %v9876 = vadd.f32 %v9390, %v9810
    %v9877 = vrot.slane %v5623, 2
    %v9878 = vrot.slane %v5624, 2
    %v9879 = vsel %vm1446, %v9877, %v9878
    %v9880 = vrot.slane %v5625, 2
    %v9881 = vsel %vm1446, %v9878, %v9880
    %v9882 = vrot.slane %v5677, 2
    %v9883 = vrot.slane %v5678, 2
    %v9884 = vsel %vm1446, %v9882, %v9883
    %v9885 = vrot.slane %v5679, 2
    %v9886 = vsel %vm1446, %v9883, %v9885
    %s9891 = scalar_lea.vmem [#allocation3], 1024
    %v9892 = vld [vmem:[%s9891] sm:$0xff]
    %v9893 = vld [vmem:[%s9891 + $0x8] sm:$0xff]
    %v9894 = vld [vmem:[%s9891 + $0x10] sm:$0xff]
    %v9895 = vld [vmem:[%s9891 + $0x18] sm:$0xff]
    %v9896 = vld [vmem:[%s9891 + $0x20] sm:$0xff]
    %v9897 = vld [vmem:[%s9891 + $0x28] sm:$0xff]
    %v9898 = vld [vmem:[%s9891 + $0x30] sm:$0xff]
    %v9899 = vld [vmem:[%s9891 + $0x38] sm:$0xff]
    %v9900 = vld [vmem:[%s9891 + $0x40] sm:$0xff]
    %v9901 = vld [vmem:[%s9891 + $0x48] sm:$0xff]
    %v9902 = vld [vmem:[%s9891 + $0x50] sm:$0xff]
    %v9903 = vld [vmem:[%s9891 + $0x58] sm:$0xff]
    %v9904 = vld [vmem:[%s9891 + $0x60] sm:$0xff]
    %v9905 = vld [vmem:[%s9891 + $0x68] sm:$0xff]
    %v9906 = vld [vmem:[%s9891 + $0x70] sm:$0xff]
    %v9907 = vld [vmem:[%s9891 + $0x78] sm:$0xff]
    %9908 = vmatprep.subr.mxu0 0.0
    %9909 = vmatpush1.msra.mxu0 %v9907
    %9910 = vmatprep.subr.mxu0 0.0
    %9911 = vmatpush1.msra.mxu0 %v9906
    %9912 = vmatprep.subr.mxu0 0.0
    %9913 = vmatpush1.msra.mxu0 %v9905
    %9914 = vmatprep.subr.mxu0 0.0
    %9915 = vmatpush1.msra.mxu0 %v9904
    %9916 = vmatprep.subr.mxu0 0.0
    %9917 = vmatpush1.msra.mxu0 %v9903
    %9918 = vmatprep.subr.mxu0 0.0
    %9919 = vmatpush1.msra.mxu0 %v9902
    %9920 = vmatprep.subr.mxu0 0.0
    %9921 = vmatpush1.msra.mxu0 %v9901
    %9922 = vmatprep.subr.mxu0 0.0
    %9923 = vmatpush1.msra.mxu0 %v9900
    %9924 = vmatprep.subr.mxu0 0.0
    %9925 = vmatpush1.msra.mxu0 %v9899
    %9926 = vmatprep.subr.mxu0 0.0
    %9927 = vmatpush1.msra.mxu0 %v9898
    %9928 = vmatprep.subr.mxu0 0.0
    %9929 = vmatpush1.msra.mxu0 %v9897
    %9930 = vmatprep.subr.mxu0 0.0
    %9931 = vmatpush1.msra.mxu0 %v9896
    %9932 = vmatprep.subr.mxu0 0.0
    %9933 = vmatpush1.msra.mxu0 %v9895
    %9934 = vmatprep.subr.mxu0 0.0
    %9935 = vmatpush1.msra.mxu0 %v9894
    %9936 = vmatprep.subr.mxu0 0.0
    %9937 = vmatpush1.msra.mxu0 %v9893
    %9938 = vmatprep.subr.mxu0 0.0
    %9939 = vmatpush1.msra.mxu0 %v9892
    %9940 = vmatprep.subr.mxu0 0.0
    %9941 = vmatpush2.msra.mxu0 0.0
    %9942 = vmatprep.subr.mxu0 0.0
    %9943 = vmatpush2.msra.mxu0 0.0
    %9944 = vmatprep.subr.mxu0 0.0
    %9945 = vmatpush2.msra.mxu0 0.0
    %9946 = vmatprep.subr.mxu0 0.0
    %9947 = vmatpush2.msra.mxu0 0.0
    %9948 = vmatprep.subr.mxu0 0.0
    %9949 = vmatpush2.msra.mxu0 0.0
    %9950 = vmatprep.subr.mxu0 0.0
    %9951 = vmatpush2.msra.mxu0 0.0
    %9952 = vmatprep.subr.mxu0 0.0
    %9953 = vmatpush2.msra.mxu0 0.0
    %9954 = vmatprep.subr.mxu0 0.0
    %9955 = vmatpush2.msra.mxu0 0.0
    %9956 = vmatprep.subr.mxu0 0.0
    %9957 = vmatpush2.msra.mxu0 0.0
    %9958 = vmatprep.subr.mxu0 0.0
    %9959 = vmatpush2.msra.mxu0 0.0
    %9960 = vmatprep.subr.mxu0 0.0
    %9961 = vmatpush2.msra.mxu0 0.0
    %9962 = vmatprep.subr.mxu0 0.0
    %9963 = vmatpush2.msra.mxu0 0.0
    %9964 = vmatprep.subr.mxu0 0.0
    %9965 = vmatpush2.msra.mxu0 0.0
    %9966 = vmatprep.subr.mxu0 0.0
    %9967 = vmatpush2.msra.mxu0 0.0
    %9968 = vmatprep.subr.mxu0 0.0
    %9969 = vmatpush2.msra.mxu0 0.0
    %9970 = vmatprep.subr.mxu0 0.0
    %9971 = vmatpush2.msra.mxu0 0.0
    %9972 = vmatprep.mubr.f32.mxu0 0.0
    %9973 = vmatmul.mubr.f32.gmra.mxu0 %v6815
    %v9974 = vpop.f32.mrf.mxu0
    %v9975 = vadd.f32 0.0, %v9974
    %v9976 = vpop.f32.mrf.mxu0
    %9977 = vmatprep.mubr.f32.mxu0 0.0
    %9978 = vmatmul.mubr.f32.gmra.mxu0 %v6817
    %v9979 = vpop.f32.mrf.mxu0
    %v9980 = vadd.f32 0.0, %v9979
    %v9981 = vpop.f32.mrf.mxu0
    %9982 = vmatprep.mubr.f32.mxu0 0.0
    %9983 = vmatmul.mubr.f32.gmra.mxu0 %v6820
    %v9984 = vpop.f32.mrf.mxu0
    %v9985 = vadd.f32 0.0, %v9984
    %v9986 = vpop.f32.mrf.mxu0
    %9987 = vmatprep.mubr.f32.mxu0 0.0
    %9988 = vmatmul.mubr.f32.gmra.mxu0 %v6822
    %v9989 = vpop.f32.mrf.mxu0
    %v9990 = vadd.f32 0.0, %v9989
    %v9991 = vpop.f32.mrf.mxu0
    %9992 = vmatprep.mubr.f32.mxu0 0.0
    %9993 = vmatmul.mubr.f32.gmra.mxu0 %v6825
    %v9994 = vpop.f32.mrf.mxu0
    %v9995 = vadd.f32 0.0, %v9994
    %v9996 = vpop.f32.mrf.mxu0
    %9997 = vmatprep.mubr.f32.mxu0 0.0
    %9998 = vmatmul.mubr.f32.gmra.mxu0 %v6827
    %v9999 = vpop.f32.mrf.mxu0
    %v10000 = vadd.f32 0.0, %v9999
    %v10001 = vpop.f32.mrf.mxu0
    %10002 = vmatprep.mubr.f32.mxu0 0.0
    %10003 = vmatmul.mubr.f32.gmra.mxu0 %v6830
    %v10004 = vpop.f32.mrf.mxu0
    %v10005 = vadd.f32 0.0, %v10004
    %v10006 = vpop.f32.mrf.mxu0
    %10007 = vmatprep.mubr.f32.mxu0 0.0
    %10008 = vmatmul.mubr.f32.gmra.mxu0 %v6832
    %v10009 = vpop.f32.mrf.mxu0
    %v10010 = vadd.f32 0.0, %v10009
    %v10011 = vpop.f32.mrf.mxu0
    %10012 = vmatprep.mubr.f32.mxu0 0.0
    %10013 = vmatmul.mubr.f32.gmra.mxu0 %v6835
    %v10014 = vpop.f32.mrf.mxu0
    %v10015 = vadd.f32 0.0, %v10014
    %v10016 = vpop.f32.mrf.mxu0
    %10017 = vmatprep.mubr.f32.mxu0 0.0
    %10018 = vmatmul.mubr.f32.gmra.mxu0 %v6837
    %v10019 = vpop.f32.mrf.mxu0
    %v10020 = vadd.f32 0.0, %v10019
    %v10021 = vpop.f32.mrf.mxu0
    %10022 = vmatprep.mubr.f32.mxu0 0.0
    %10023 = vmatmul.mubr.f32.gmra.mxu0 %v6840
    %v10024 = vpop.f32.mrf.mxu0
    %v10025 = vadd.f32 0.0, %v10024
    %v10026 = vpop.f32.mrf.mxu0
    %10027 = vmatprep.mubr.f32.mxu0 0.0
    %10028 = vmatmul.mubr.f32.gmra.mxu0 %v6842
    %v10029 = vpop.f32.mrf.mxu0
    %v10030 = vadd.f32 0.0, %v10029
    %v10031 = vpop.f32.mrf.mxu0
    %10032 = vmatprep.mubr.f32.mxu0 0.0
    %10033 = vmatmul.mubr.f32.gmra.mxu0 %v6845
    %v10034 = vpop.f32.mrf.mxu0
    %v10035 = vadd.f32 0.0, %v10034
    %v10036 = vpop.f32.mrf.mxu0
    %10037 = vmatprep.mubr.f32.mxu0 0.0
    %10038 = vmatmul.mubr.f32.gmra.mxu0 %v6847
    %v10039 = vpop.f32.mrf.mxu0
    %v10040 = vadd.f32 0.0, %v10039
    %v10041 = vpop.f32.mrf.mxu0
    %10042 = vmatprep.mubr.f32.mxu0 0.0
    %10043 = vmatmul.mubr.f32.gmra.mxu0 %v6850
    %v10044 = vpop.f32.mrf.mxu0
    %v10045 = vadd.f32 0.0, %v10044
    %v10046 = vpop.f32.mrf.mxu0
    %10047 = vmatprep.mubr.f32.mxu0 0.0
    %10048 = vmatmul.mubr.f32.gmra.mxu0 %v6852
    %v10049 = vpop.f32.mrf.mxu0
    %v10050 = vadd.f32 0.0, %v10049
    %v10051 = vpop.f32.mrf.mxu0
    %10052 = vmatprep.mubr.f32.mxu0 0.0
    %10053 = vmatmul.mubr.f32.gmra.mxu0 %v6855
    %v10054 = vpop.f32.mrf.mxu0
    %v10055 = vadd.f32 0.0, %v10054
    %v10056 = vpop.f32.mrf.mxu0
    %10057 = vmatprep.mubr.f32.mxu0 0.0
    %10058 = vmatmul.mubr.f32.gmra.mxu0 %v6857
    %v10059 = vpop.f32.mrf.mxu0
    %v10060 = vadd.f32 0.0, %v10059
    %v10061 = vpop.f32.mrf.mxu0
    %10062 = vmatprep.mubr.f32.mxu0 0.0
    %10063 = vmatmul.mubr.f32.gmra.mxu0 %v6860
    %v10064 = vpop.f32.mrf.mxu0
    %v10065 = vadd.f32 0.0, %v10064
    %v10066 = vpop.f32.mrf.mxu0
    %10067 = vmatprep.mubr.f32.mxu0 0.0
    %10068 = vmatmul.mubr.f32.gmra.mxu0 %v6862
    %v10069 = vpop.f32.mrf.mxu0
    %v10070 = vadd.f32 0.0, %v10069
    %v10071 = vpop.f32.mrf.mxu0
    %10072 = vmatprep.mubr.f32.mxu0 0.0
    %10073 = vmatmul.mubr.f32.gmra.mxu0 %v6865
    %v10074 = vpop.f32.mrf.mxu0
    %v10075 = vadd.f32 0.0, %v10074
    %v10076 = vpop.f32.mrf.mxu0
    %10077 = vmatprep.mubr.f32.mxu0 0.0
    %10078 = vmatmul.mubr.f32.gmra.mxu0 %v6867
    %v10079 = vpop.f32.mrf.mxu0
    %v10080 = vadd.f32 0.0, %v10079
    %v10081 = vpop.f32.mrf.mxu0
    %10082 = vmatprep.mubr.f32.mxu0 0.0
    %10083 = vmatmul.mubr.f32.gmra.mxu0 %v6870
    %v10084 = vpop.f32.mrf.mxu0
    %v10085 = vadd.f32 0.0, %v10084
    %v10086 = vpop.f32.mrf.mxu0
    %10087 = vmatprep.mubr.f32.mxu0 0.0
    %10088 = vmatmul.mubr.f32.gmra.mxu0 %v6872
    %v10089 = vpop.f32.mrf.mxu0
    %v10090 = vadd.f32 0.0, %v10089
    %v10091 = vpop.f32.mrf.mxu0
    %10092 = vmatprep.mubr.f32.mxu0 0.0
    %10093 = vmatmul.mubr.f32.gmra.mxu0 %v6875
    %v10094 = vpop.f32.mrf.mxu0
    %v10095 = vadd.f32 0.0, %v10094
    %v10096 = vpop.f32.mrf.mxu0
    %10097 = vmatprep.mubr.f32.mxu0 0.0
    %10098 = vmatmul.mubr.f32.gmra.mxu0 %v6877
    %v10099 = vpop.f32.mrf.mxu0
    %v10100 = vadd.f32 0.0, %v10099
    %v10101 = vpop.f32.mrf.mxu0
    %10102 = vmatprep.mubr.f32.mxu0 0.0
    %10103 = vmatmul.mubr.f32.gmra.mxu0 %v6880
    %v10104 = vpop.f32.mrf.mxu0
    %v10105 = vadd.f32 0.0, %v10104
    %v10106 = vpop.f32.mrf.mxu0
    %10107 = vmatprep.mubr.f32.mxu0 0.0
    %10108 = vmatmul.mubr.f32.gmra.mxu0 %v6882
    %v10109 = vpop.f32.mrf.mxu0
    %v10110 = vadd.f32 0.0, %v10109
    %v10111 = vpop.f32.mrf.mxu0
    %10112 = vmatprep.mubr.f32.mxu0 0.0
    %10113 = vmatmul.mubr.f32.gmra.mxu0 %v8447
    %v10114 = vpop.f32.mrf.mxu0
    %v10115 = vadd.f32 0.0, %v10114
    %v10116 = vpop.f32.mrf.mxu0
    %10117 = vmatprep.mubr.f32.mxu0 0.0
    %10118 = vmatmul.mubr.f32.gmra.mxu0 %v8449
    %v10119 = vpop.f32.mrf.mxu0
    %v10120 = vadd.f32 0.0, %v10119
    %v10121 = vpop.f32.mrf.mxu0
    %10122 = vmatprep.mubr.f32.mxu0 0.0
    %10123 = vmatmul.mubr.f32.gmra.mxu0 %v9879
    %v10124 = vpop.f32.mrf.mxu0
    %v10125 = vadd.f32 0.0, %v10124
    %v10126 = vpop.f32.mrf.mxu0
    %10127 = vmatprep.mubr.f32.mxu0 0.0
    %10128 = vmatmul.mubr.f32.gmra.mxu0 %v9881
    %v10129 = vpop.f32.mrf.mxu0
    %v10130 = vadd.f32 0.0, %v10129
    %v10131 = vpop.f32.mrf.mxu0
    %10132 = vmatprep.mubr.f32.mxu0 0.0
    %10133 = vmatmul.mubr.f32.gmra.mxu0 %v6895
    %v10134 = vpop.f32.mrf.mxu0
    %v10135 = vadd.f32 0.0, %v10134
    %v10136 = vpop.f32.mrf.mxu0
    %10137 = vmatprep.mubr.f32.mxu0 0.0
    %10138 = vmatmul.mubr.f32.gmra.mxu0 %v6897
    %v10139 = vpop.f32.mrf.mxu0
    %v10140 = vadd.f32 0.0, %v10139
    %v10141 = vpop.f32.mrf.mxu0
    %10142 = vmatprep.mubr.f32.mxu0 0.0
    %10143 = vmatmul.mubr.f32.gmra.mxu0 %v6900
    %v10144 = vpop.f32.mrf.mxu0
    %v10145 = vadd.f32 0.0, %v10144
    %v10146 = vpop.f32.mrf.mxu0
    %10147 = vmatprep.mubr.f32.mxu0 0.0
    %10148 = vmatmul.mubr.f32.gmra.mxu0 %v6902
    %v10149 = vpop.f32.mrf.mxu0
    %v10150 = vadd.f32 0.0, %v10149
    %v10151 = vpop.f32.mrf.mxu0
    %10152 = vmatprep.mubr.f32.mxu0 0.0
    %10153 = vmatmul.mubr.f32.gmra.mxu0 %v6905
    %v10154 = vpop.f32.mrf.mxu0
    %v10155 = vadd.f32 0.0, %v10154
    %v10156 = vpop.f32.mrf.mxu0
    %10157 = vmatprep.mubr.f32.mxu0 0.0
    %10158 = vmatmul.mubr.f32.gmra.mxu0 %v6907
    %v10159 = vpop.f32.mrf.mxu0
    %v10160 = vadd.f32 0.0, %v10159
    %v10161 = vpop.f32.mrf.mxu0
    %10162 = vmatprep.mubr.f32.mxu0 0.0
    %10163 = vmatmul.mubr.f32.gmra.mxu0 %v6910
    %v10164 = vpop.f32.mrf.mxu0
    %v10165 = vadd.f32 0.0, %v10164
    %v10166 = vpop.f32.mrf.mxu0
    %10167 = vmatprep.mubr.f32.mxu0 0.0
    %10168 = vmatmul.mubr.f32.gmra.mxu0 %v6912
    %v10169 = vpop.f32.mrf.mxu0
    %v10170 = vadd.f32 0.0, %v10169
    %v10171 = vpop.f32.mrf.mxu0
    %10172 = vmatprep.mubr.f32.mxu0 0.0
    %10173 = vmatmul.mubr.f32.gmra.mxu0 %v6915
    %v10174 = vpop.f32.mrf.mxu0
    %v10175 = vadd.f32 0.0, %v10174
    %v10176 = vpop.f32.mrf.mxu0
    %10177 = vmatprep.mubr.f32.mxu0 0.0
    %10178 = vmatmul.mubr.f32.gmra.mxu0 %v6917
    %v10179 = vpop.f32.mrf.mxu0
    %v10180 = vadd.f32 0.0, %v10179
    %v10181 = vpop.f32.mrf.mxu0
    %10182 = vmatprep.mubr.f32.mxu0 0.0
    %10183 = vmatmul.mubr.f32.gmra.mxu0 %v6920
    %v10184 = vpop.f32.mrf.mxu0
    %v10185 = vadd.f32 0.0, %v10184
    %v10186 = vpop.f32.mrf.mxu0
    %10187 = vmatprep.mubr.f32.mxu0 0.0
    %10188 = vmatmul.mubr.f32.gmra.mxu0 %v6922
    %v10189 = vpop.f32.mrf.mxu0
    %v10190 = vadd.f32 0.0, %v10189
    %v10191 = vpop.f32.mrf.mxu0
    %10192 = vmatprep.mubr.f32.mxu0 0.0
    %10193 = vmatmul.mubr.f32.gmra.mxu0 %v6925
    %v10194 = vpop.f32.mrf.mxu0
    %v10195 = vadd.f32 0.0, %v10194
    %v10196 = vpop.f32.mrf.mxu0
    %10197 = vmatprep.mubr.f32.mxu0 0.0
    %10198 = vmatmul.mubr.f32.gmra.mxu0 %v6927
    %v10199 = vpop.f32.mrf.mxu0
    %v10200 = vadd.f32 0.0, %v10199
    %v10201 = vpop.f32.mrf.mxu0
    %10202 = vmatprep.mubr.f32.mxu0 0.0
    %10203 = vmatmul.mubr.f32.gmra.mxu0 %v6930
    %v10204 = vpop.f32.mrf.mxu0
    %v10205 = vadd.f32 0.0, %v10204
    %v10206 = vpop.f32.mrf.mxu0
    %10207 = vmatprep.mubr.f32.mxu0 0.0
    %10208 = vmatmul.mubr.f32.gmra.mxu0 %v6932
    %v10209 = vpop.f32.mrf.mxu0
    %v10210 = vadd.f32 0.0, %v10209
    %v10211 = vpop.f32.mrf.mxu0
    %10212 = vmatprep.mubr.f32.mxu0 0.0
    %10213 = vmatmul.mubr.f32.gmra.mxu0 %v6935
    %v10214 = vpop.f32.mrf.mxu0
    %v10215 = vadd.f32 0.0, %v10214
    %v10216 = vpop.f32.mrf.mxu0
    %10217 = vmatprep.mubr.f32.mxu0 0.0
    %10218 = vmatmul.mubr.f32.gmra.mxu0 %v6937
    %v10219 = vpop.f32.mrf.mxu0
    %v10220 = vadd.f32 0.0, %v10219
    %v10221 = vpop.f32.mrf.mxu0
    %10222 = vmatprep.mubr.f32.mxu0 0.0
    %10223 = vmatmul.mubr.f32.gmra.mxu0 %v6940
    %v10224 = vpop.f32.mrf.mxu0
    %v10225 = vadd.f32 0.0, %v10224
    %v10226 = vpop.f32.mrf.mxu0
    %10227 = vmatprep.mubr.f32.mxu0 0.0
    %10228 = vmatmul.mubr.f32.gmra.mxu0 %v6942
    %v10229 = vpop.f32.mrf.mxu0
    %v10230 = vadd.f32 0.0, %v10229
    %v10231 = vpop.f32.mrf.mxu0
    %10232 = vmatprep.mubr.f32.mxu0 0.0
    %10233 = vmatmul.mubr.f32.gmra.mxu0 %v6945
    %v10234 = vpop.f32.mrf.mxu0
    %v10235 = vadd.f32 0.0, %v10234
    %v10236 = vpop.f32.mrf.mxu0
    %10237 = vmatprep.mubr.f32.mxu0 0.0
    %10238 = vmatmul.mubr.f32.gmra.mxu0 %v6947
    %v10239 = vpop.f32.mrf.mxu0
    %v10240 = vadd.f32 0.0, %v10239
    %v10241 = vpop.f32.mrf.mxu0
    %10242 = vmatprep.mubr.f32.mxu0 0.0
    %10243 = vmatmul.mubr.f32.gmra.mxu0 %v6950
    %v10244 = vpop.f32.mrf.mxu0
    %v10245 = vadd.f32 0.0, %v10244
    %v10246 = vpop.f32.mrf.mxu0
    %10247 = vmatprep.mubr.f32.mxu0 0.0
    %10248 = vmatmul.mubr.f32.gmra.mxu0 %v6952
    %v10249 = vpop.f32.mrf.mxu0
    %v10250 = vadd.f32 0.0, %v10249
    %v10251 = vpop.f32.mrf.mxu0
    %10252 = vmatprep.mubr.f32.mxu0 0.0
    %10253 = vmatmul.mubr.f32.gmra.mxu0 %v6955
    %v10254 = vpop.f32.mrf.mxu0
    %v10255 = vadd.f32 0.0, %v10254
    %v10256 = vpop.f32.mrf.mxu0
    %10257 = vmatprep.mubr.f32.mxu0 0.0
    %10258 = vmatmul.mubr.f32.gmra.mxu0 %v6957
    %v10259 = vpop.f32.mrf.mxu0
    %v10260 = vadd.f32 0.0, %v10259
    %v10261 = vpop.f32.mrf.mxu0
    %10262 = vmatprep.mubr.f32.mxu0 0.0
    %10263 = vmatmul.mubr.f32.gmra.mxu0 %v6960
    %v10264 = vpop.f32.mrf.mxu0
    %v10265 = vadd.f32 0.0, %v10264
    %v10266 = vpop.f32.mrf.mxu0
    %10267 = vmatprep.mubr.f32.mxu0 0.0
    %10268 = vmatmul.mubr.f32.gmra.mxu0 %v6962
    %v10269 = vpop.f32.mrf.mxu0
    %v10270 = vadd.f32 0.0, %v10269
    %v10271 = vpop.f32.mrf.mxu0
    %10272 = vmatprep.mubr.f32.mxu0 0.0
    %10273 = vmatmul.mubr.f32.gmra.mxu0 %v8452
    %v10274 = vpop.f32.mrf.mxu0
    %v10275 = vadd.f32 0.0, %v10274
    %v10276 = vpop.f32.mrf.mxu0
    %10277 = vmatprep.mubr.f32.mxu0 0.0
    %10278 = vmatmul.mubr.f32.gmra.mxu0 %v8454
    %v10279 = vpop.f32.mrf.mxu0
    %v10280 = vadd.f32 0.0, %v10279
    %v10281 = vpop.f32.mrf.mxu0
    %10282 = vmatprep.mubr.f32.mxu0 0.0
    %10283 = vmatmul.mubr.f32.gmra.mxu0 %v9884
    %v10284 = vpop.f32.mrf.mxu0
    %v10285 = vadd.f32 0.0, %v10284
    %v10286 = vpop.f32.mrf.mxu0
    %10287 = vmatprep.mubr.f32.mxu0 0.0
    %10288 = vmatmul.mubr.f32.gmra.mxu0 %v9886
    %v10289 = vpop.f32.mrf.mxu0
    %v10290 = vadd.f32 0.0, %v10289
    %v10291 = vpop.f32.mrf.mxu0
    %10292 = vdwg.mxu0
    %v10293 = vadd.f32 %v9813, %v9975
    %v10294 = vadd.f32 %v9814, %v9980
    %v10295 = vadd.f32 %v9815, %v9985
    %v10296 = vadd.f32 %v9816, %v9990
    %v10297 = vadd.f32 %v9817, %v9995
    %v10298 = vadd.f32 %v9818, %v10000
    %v10299 = vadd.f32 %v9819, %v10005
    %v10300 = vadd.f32 %v9820, %v10010
    %v10301 = vadd.f32 %v9821, %v10015
    %v10302 = vadd.f32 %v9822, %v10020
    %v10303 = vadd.f32 %v9823, %v10025
    %v10304 = vadd.f32 %v9824, %v10030
    %v10305 = vadd.f32 %v9825, %v10035
    %v10306 = vadd.f32 %v9826, %v10040
    %v10307 = vadd.f32 %v9827, %v10045
    %v10308 = vadd.f32 %v9828, %v10050
    %v10309 = vadd.f32 %v9829, %v10055
    %v10310 = vadd.f32 %v9830, %v10060
    %v10311 = vadd.f32 %v9831, %v10065
    %v10312 = vadd.f32 %v9832, %v10070
    %v10313 = vadd.f32 %v9833, %v10075
    %v10314 = vadd.f32 %v9834, %v10080
    %v10315 = vadd.f32 %v9835, %v10085
    %v10316 = vadd.f32 %v9836, %v10090
    %v10317 = vadd.f32 %v9837, %v10095
    %v10318 = vadd.f32 %v9838, %v10100
    %v10319 = vadd.f32 %v9839, %v10105
    %v10320 = vadd.f32 %v9840, %v10110
    %v10321 = vadd.f32 %v9841, %v10115
    %v10322 = vadd.f32 %v9842, %v10120
    %v10323 = vadd.f32 %v9843, %v10125
    %v10324 = vadd.f32 %v9844, %v10130
    %v10325 = vadd.f32 %v9845, %v10135
    %v10326 = vadd.f32 %v9846, %v10140
    %v10327 = vadd.f32 %v9847, %v10145
    %v10328 = vadd.f32 %v9848, %v10150
    %v10329 = vadd.f32 %v9849, %v10155
    %v10330 = vadd.f32 %v9850, %v10160
    %v10331 = vadd.f32 %v9851, %v10165
    %v10332 = vadd.f32 %v9852, %v10170
    %v10333 = vadd.f32 %v9853, %v10175
    %v10334 = vadd.f32 %v9854, %v10180
    %v10335 = vadd.f32 %v9855, %v10185
    %v10336 = vadd.f32 %v9856, %v10190
    %v10337 = vadd.f32 %v9857, %v10195
    %v10338 = vadd.f32 %v9858, %v10200
    %v10339 = vadd.f32 %v9859, %v10205
    %v10340 = vadd.f32 %v9860, %v10210
    %v10341 = vadd.f32 %v9861, %v10215
    %v10342 = vadd.f32 %v9862, %v10220
    %v10343 = vadd.f32 %v9863, %v10225
    %v10344 = vadd.f32 %v9864, %v10230
    %v10345 = vadd.f32 %v9865, %v10235
    %v10346 = vadd.f32 %v9866, %v10240
    %v10347 = vadd.f32 %v9867, %v10245
    %v10348 = vadd.f32 %v9868, %v10250
    %v10349 = vadd.f32 %v9869, %v10255
    %v10350 = vadd.f32 %v9870, %v10260
    %v10351 = vadd.f32 %v9871, %v10265
    %v10352 = vadd.f32 %v9872, %v10270
    %v10353 = vadd.f32 %v9873, %v10275
    %v10354 = vadd.f32 %v9874, %v10280
    %v10355 = vadd.f32 %v9875, %v10285
    %v10356 = vadd.f32 %v9876, %v10290
    %v10357 = vadd.f32 %v10293, %v10294
    %v10358 = vadd.f32 %v10357, %v10295
    %v10359 = vadd.f32 %v10358, %v10296
    %v10360 = vadd.f32 %v10359, %v10297
    %v10361 = vadd.f32 %v10360, %v10298
    %v10362 = vadd.f32 %v10361, %v10299
    %v10363 = vadd.f32 %v10362, %v10300
    %v10364 = vadd.f32 %v10363, %v10301
    %v10365 = vadd.f32 %v10364, %v10302
    %v10366 = vadd.f32 %v10365, %v10303
    %v10367 = vadd.f32 %v10366, %v10304
    %v10368 = vadd.f32 %v10367, %v10305
    %v10369 = vadd.f32 %v10368, %v10306
    %v10370 = vadd.f32 %v10369, %v10307
    %v10371 = vadd.f32 %v10370, %v10308
    %v10372 = vadd.f32 %v10371, %v10309
    %v10373 = vadd.f32 %v10372, %v10310
    %v10374 = vadd.f32 %v10373, %v10311
    %v10375 = vadd.f32 %v10374, %v10312
    %v10376 = vadd.f32 %v10375, %v10313
    %v10377 = vadd.f32 %v10376, %v10314
    %v10378 = vadd.f32 %v10377, %v10315
    %v10379 = vadd.f32 %v10378, %v10316
    %v10380 = vadd.f32 %v10379, %v10317
    %v10381 = vadd.f32 %v10380, %v10318
    %v10382 = vadd.f32 %v10381, %v10319
    %v10383 = vadd.f32 %v10382, %v10320
    %v10384 = vadd.f32 %v10383, %v10321
    %v10385 = vadd.f32 %v10384, %v10322
    %v10386 = vadd.f32 %v10385, %v10323
    %v10387 = vadd.f32 %v10386, %v10324
    %v10388 = vadd.f32 %v10387, %v10325
    %v10389 = vadd.f32 %v10388, %v10326
    %v10390 = vadd.f32 %v10389, %v10327
    %v10391 = vadd.f32 %v10390, %v10328
    %v10392 = vadd.f32 %v10391, %v10329
    %v10393 = vadd.f32 %v10392, %v10330
    %v10394 = vadd.f32 %v10393, %v10331
    %v10395 = vadd.f32 %v10394, %v10332
    %v10396 = vadd.f32 %v10395, %v10333
    %v10397 = vadd.f32 %v10396, %v10334
    %v10398 = vadd.f32 %v10397, %v10335
    %v10399 = vadd.f32 %v10398, %v10336
    %v10400 = vadd.f32 %v10399, %v10337
    %v10401 = vadd.f32 %v10400, %v10338
    %v10402 = vadd.f32 %v10401, %v10339
    %v10403 = vadd.f32 %v10402, %v10340
    %v10404 = vadd.f32 %v10403, %v10341
    %v10405 = vadd.f32 %v10404, %v10342
    %v10406 = vadd.f32 %v10405, %v10343
    %v10407 = vadd.f32 %v10406, %v10344
    %v10408 = vadd.f32 %v10407, %v10345
    %v10409 = vadd.f32 %v10408, %v10346
    %v10410 = vadd.f32 %v10409, %v10347
    %v10411 = vadd.f32 %v10410, %v10348
    %v10412 = vadd.f32 %v10411, %v10349
    %v10413 = vadd.f32 %v10412, %v10350
    %v10414 = vadd.f32 %v10413, %v10351
    %v10415 = vadd.f32 %v10414, %v10352
    %v10416 = vadd.f32 %v10415, %v10353
    %v10417 = vadd.f32 %v10416, %v10354
    %v10418 = vadd.f32 %v10417, %v10355
    %v10419 = vadd.f32 %v10418, %v10356
    %v10420 = vrot.slane %v10419, 4
    %v10421 = vadd.f32 %v10419, %v10420
    %v10422 = vrot.slane %v10421, 2
    %v10423 = vadd.f32 %v10421, %v10422
    %v10424 = vrot.slane %v10423, 1
    %v10425 = vadd.f32 %v10423, %v10424
    %v10426 = vmul.f32 %v10425, 0.001953125
    %v10427 = vmul.f32 %v10293, %v10293
    %v10428 = vmul.f32 %v10294, %v10294
    %v10429 = vmul.f32 %v10295, %v10295
    %v10430 = vmul.f32 %v10296, %v10296
    %v10431 = vmul.f32 %v10297, %v10297
    %v10432 = vmul.f32 %v10298, %v10298
    %v10433 = vmul.f32 %v10299, %v10299
    %v10434 = vmul.f32 %v10300, %v10300
    %v10435 = vmul.f32 %v10301, %v10301
    %v10436 = vmul.f32 %v10302, %v10302
    %v10437 = vmul.f32 %v10303, %v10303
    %v10438 = vmul.f32 %v10304, %v10304
    %v10439 = vmul.f32 %v10305, %v10305
    %v10440 = vmul.f32 %v10306, %v10306
    %v10441 = vmul.f32 %v10307, %v10307
    %v10442 = vmul.f32 %v10308, %v10308
    %v10443 = vmul.f32 %v10309, %v10309
    %v10444 = vmul.f32 %v10310, %v10310
    %v10445 = vmul.f32 %v10311, %v10311
    %v10446 = vmul.f32 %v10312, %v10312
    %v10447 = vmul.f32 %v10313, %v10313
    %v10448 = vmul.f32 %v10314, %v10314
    %v10449 = vmul.f32 %v10315, %v10315
    %v10450 = vmul.f32 %v10316, %v10316
    %v10451 = vmul.f32 %v10317, %v10317
    %v10452 = vmul.f32 %v10318, %v10318
    %v10453 = vmul.f32 %v10319, %v10319
    %v10454 = vmul.f32 %v10320, %v10320
    %v10455 = vmul.f32 %v10321, %v10321
    %v10456 = vmul.f32 %v10322, %v10322
    %v10457 = vmul.f32 %v10323, %v10323
    %v10458 = vmul.f32 %v10324, %v10324
    %v10459 = vmul.f32 %v10325, %v10325
    %v10460 = vmul.f32 %v10326, %v10326
    %v10461 = vmul.f32 %v10327, %v10327
    %v10462 = vmul.f32 %v10328, %v10328
    %v10463 = vmul.f32 %v10329, %v10329
    %v10464 = vmul.f32 %v10330, %v10330
    %v10465 = vmul.f32 %v10331, %v10331
    %v10466 = vmul.f32 %v10332, %v10332
    %v10467 = vmul.f32 %v10333, %v10333
    %v10468 = vmul.f32 %v10334, %v10334
    %v10469 = vmul.f32 %v10335, %v10335
    %v10470 = vmul.f32 %v10336, %v10336
    %v10471 = vmul.f32 %v10337, %v10337
    %v10472 = vmul.f32 %v10338, %v10338
    %v10473 = vmul.f32 %v10339, %v10339
    %v10474 = vmul.f32 %v10340, %v10340
    %v10475 = vmul.f32 %v10341, %v10341
    %v10476 = vmul.f32 %v10342, %v10342
    %v10477 = vmul.f32 %v10343, %v10343
    %v10478 = vmul.f32 %v10344, %v10344
    %v10479 = vmul.f32 %v10345, %v10345
    %v10480 = vmul.f32 %v10346, %v10346
    %v10481 = vmul.f32 %v10347, %v10347
    %v10482 = vmul.f32 %v10348, %v10348
    %v10483 = vmul.f32 %v10349, %v10349
    %v10484 = vmul.f32 %v10350, %v10350
    %v10485 = vmul.f32 %v10351, %v10351
    %v10486 = vmul.f32 %v10352, %v10352
    %v10487 = vmul.f32 %v10353, %v10353
    %v10488 = vmul.f32 %v10354, %v10354
    %v10489 = vmul.f32 %v10355, %v10355
    %v10490 = vmul.f32 %v10356, %v10356
    %v10491 = vadd.f32 %v10427, %v10428
    %v10492 = vadd.f32 %v10491, %v10429
    %v10493 = vadd.f32 %v10492, %v10430
    %v10494 = vadd.f32 %v10493, %v10431
    %v10495 = vadd.f32 %v10494, %v10432
    %v10496 = vadd.f32 %v10495, %v10433
    %v10497 = vadd.f32 %v10496, %v10434
    %v10498 = vadd.f32 %v10497, %v10435
    %v10499 = vadd.f32 %v10498, %v10436
    %v10500 = vadd.f32 %v10499, %v10437
    %v10501 = vadd.f32 %v10500, %v10438
    %v10502 = vadd.f32 %v10501, %v10439
    %v10503 = vadd.f32 %v10502, %v10440
    %v10504 = vadd.f32 %v10503, %v10441
    %v10505 = vadd.f32 %v10504, %v10442
    %v10506 = vadd.f32 %v10505, %v10443
    %v10507 = vadd.f32 %v10506, %v10444
    %v10508 = vadd.f32 %v10507, %v10445
    %v10509 = vadd.f32 %v10508, %v10446
    %v10510 = vadd.f32 %v10509, %v10447
    %v10511 = vadd.f32 %v10510, %v10448
    %v10512 = vadd.f32 %v10511, %v10449
    %v10513 = vadd.f32 %v10512, %v10450
    %v10514 = vadd.f32 %v10513, %v10451
    %v10515 = vadd.f32 %v10514, %v10452
    %v10516 = vadd.f32 %v10515, %v10453
    %v10517 = vadd.f32 %v10516, %v10454
    %v10518 = vadd.f32 %v10517, %v10455
    %v10519 = vadd.f32 %v10518, %v10456
    %v10520 = vadd.f32 %v10519, %v10457
    %v10521 = vadd.f32 %v10520, %v10458
    %v10522 = vadd.f32 %v10521, %v10459
    %v10523 = vadd.f32 %v10522, %v10460
    %v10524 = vadd.f32 %v10523, %v10461
    %v10525 = vadd.f32 %v10524, %v10462
    %v10526 = vadd.f32 %v10525, %v10463
    %v10527 = vadd.f32 %v10526, %v10464
    %v10528 = vadd.f32 %v10527, %v10465
    %v10529 = vadd.f32 %v10528, %v10466
    %v10530 = vadd.f32 %v10529, %v10467
    %v10531 = vadd.f32 %v10530, %v10468
    %v10532 = vadd.f32 %v10531, %v10469
    %v10533 = vadd.f32 %v10532, %v10470
    %v10534 = vadd.f32 %v10533, %v10471
    %v10535 = vadd.f32 %v10534, %v10472
    %v10536 = vadd.f32 %v10535, %v10473
    %v10537 = vadd.f32 %v10536, %v10474
    %v10538 = vadd.f32 %v10537, %v10475
    %v10539 = vadd.f32 %v10538, %v10476
    %v10540 = vadd.f32 %v10539, %v10477
    %v10541 = vadd.f32 %v10540, %v10478
    %v10542 = vadd.f32 %v10541, %v10479
    %v10543 = vadd.f32 %v10542, %v10480
    %v10544 = vadd.f32 %v10543, %v10481
    %v10545 = vadd.f32 %v10544, %v10482
    %v10546 = vadd.f32 %v10545, %v10483
    %v10547 = vadd.f32 %v10546, %v10484
    %v10548 = vadd.f32 %v10547, %v10485
    %v10549 = vadd.f32 %v10548, %v10486
    %v10550 = vadd.f32 %v10549, %v10487
    %v10551 = vadd.f32 %v10550, %v10488
    %v10552 = vadd.f32 %v10551, %v10489
    %v10553 = vadd.f32 %v10552, %v10490
    %v10554 = vrot.slane %v10553, 4
    %v10555 = vadd.f32 %v10553, %v10554
    %v10556 = vrot.slane %v10555, 2
    %v10557 = vadd.f32 %v10555, %v10556
    %v10558 = vrot.slane %v10557, 1
    %v10559 = vadd.f32 %v10557, %v10558
    %v10560 = vmul.f32 %v10559, 0.001953125
    %v10561 = vmul.f32 %v10426, %v10426
    %v10562 = vsub.f32 %v10560, %v10561
    %v10563 = vld [vmem:[%s6] sm:$0x1]
    %v10564 = vadd.f32 %v10562, 1e-05
    %v10565 = vrsqrt.pop %v10564
    %v10566 = vmul.f32 %v10563, %v10565
    %v10567 = vld [vmem:[%s7] sm:$0x1]
    %v10568 = vmul.f32 %v10426, %v10566
    %v10569 = vsub.f32 %v10567, %v10568
    %v10570 = vld [vmem:[%s3] sm:$0xf]
    %v10572 = vsel %vm541, %v10570, 0
    %10574 = vmatprep.subr.mxu0 0.0
    %10575 = vmatpush1.msra.mxu0 0.0
    %10576 = vmatprep.subr.mxu0 0.0
    %10577 = vmatpush1.msra.mxu0 0.0
    %10578 = vmatprep.subr.mxu0 0.0
    %10579 = vmatpush1.msra.mxu0 0.0
    %10580 = vmatprep.subr.mxu0 0.0
    %10581 = vmatpush1.msra.mxu0 0.0
    %10582 = vmatprep.subr.mxu0 0.0
    %10583 = vmatpush1.msra.mxu0 0.0
    %10584 = vmatprep.subr.mxu0 0.0
    %10585 = vmatpush1.msra.mxu0 0.0
    %10586 = vmatprep.subr.mxu0 0.0
    %10587 = vmatpush1.msra.mxu0 0.0
    %10588 = vmatprep.subr.mxu0 0.0
    %10589 = vmatpush1.msra.mxu0 0.0
    %10590 = vmatprep.subr.mxu0 0.0
    %10591 = vmatpush1.msra.mxu0 0.0
    %10592 = vmatprep.subr.mxu0 0.0
    %10593 = vmatpush1.msra.mxu0 0.0
    %10594 = vmatprep.subr.mxu0 0.0
    %10595 = vmatpush1.msra.mxu0 0.0
    %10596 = vmatprep.subr.mxu0 0.0
    %10597 = vmatpush1.msra.mxu0 0.0
    %10598 = vmatprep.subr.mxu0 0.0
    %10599 = vmatpush1.msra.mxu0 0.0
    %10600 = vmatprep.subr.mxu0 0.0
    %10601 = vmatpush1.msra.mxu0 0.0
    %10602 = vmatprep.subr.mxu0 0.0
    %10603 = vmatpush1.msra.mxu0 0.0
    %10604 = vmatprep.subr.mxu0 0.0
    %10605 = vmatpush1.msra.mxu0 %v10572
    %10606 = vmatprep.subr.mxu0 0.0
    %10607 = vmatpush2.msra.mxu0 0.0
    %10608 = vmatprep.subr.mxu0 0.0
    %10609 = vmatpush2.msra.mxu0 0.0
    %10610 = vmatprep.subr.mxu0 0.0
    %10611 = vmatpush2.msra.mxu0 0.0
    %10612 = vmatprep.subr.mxu0 0.0
    %10613 = vmatpush2.msra.mxu0 0.0
    %10614 = vmatprep.subr.mxu0 0.0
    %10615 = vmatpush2.msra.mxu0 0.0
    %10616 = vmatprep.subr.mxu0 0.0
    %10617 = vmatpush2.msra.mxu0 0.0
    %10618 = vmatprep.subr.mxu0 0.0
    %10619 = vmatpush2.msra.mxu0 0.0
    %10620 = vmatprep.subr.mxu0 0.0
    %10621 = vmatpush2.msra.mxu0 0.0
    %10622 = vmatprep.subr.mxu0 0.0
    %10623 = vmatpush2.msra.mxu0 0.0
    %10624 = vmatprep.subr.mxu0 0.0
    %10625 = vmatpush2.msra.mxu0 0.0
    %10626 = vmatprep.subr.mxu0 0.0
    %10627 = vmatpush2.msra.mxu0 0.0
    %10628 = vmatprep.subr.mxu0 0.0
    %10629 = vmatpush2.msra.mxu0 0.0
    %10630 = vmatprep.subr.mxu0 0.0
    %10631 = vmatpush2.msra.mxu0 0.0
    %10632 = vmatprep.subr.mxu0 0.0
    %10633 = vmatpush2.msra.mxu0 0.0
    %10634 = vmatprep.subr.mxu0 0.0
    %10635 = vmatpush2.msra.mxu0 0.0
    %10636 = vmatprep.subr.mxu0 0.0
    %10637 = vmatpush2.msra.mxu0 0.0
    %10638 = vmatprep.mubr.f32.mxu0 0.0
    %10639 = vmatmul.mubr.f32.gmra.mxu0 %v417
    %v10640 = vpop.f32.mrf.mxu0
    %v10641 = vadd.f32 0.0, %v10640
    %v10642 = vpop.f32.mrf.mxu0
    %10643 = vmatprep.mubr.f32.mxu0 0.0
    %10644 = vmatmul.mubr.f32.gmra.mxu0 %v419
    %v10645 = vpop.f32.mrf.mxu0
    %v10646 = vadd.f32 0.0, %v10645
    %v10647 = vpop.f32.mrf.mxu0
    %10648 = vmatprep.mubr.f32.mxu0 0.0
    %10649 = vmatmul.mubr.f32.gmra.mxu0 %v421
    %v10650 = vpop.f32.mrf.mxu0
    %v10651 = vadd.f32 0.0, %v10650
    %v10652 = vpop.f32.mrf.mxu0
    %10653 = vmatprep.mubr.f32.mxu0 0.0
    %10654 = vmatmul.mubr.f32.gmra.mxu0 %v423
    %v10655 = vpop.f32.mrf.mxu0
    %v10656 = vadd.f32 0.0, %v10655
    %v10657 = vpop.f32.mrf.mxu0
    %10658 = vmatprep.mubr.f32.mxu0 0.0
    %10659 = vmatmul.mubr.f32.gmra.mxu0 %v425
    %v10660 = vpop.f32.mrf.mxu0
    %v10661 = vadd.f32 0.0, %v10660
    %v10662 = vpop.f32.mrf.mxu0
    %10663 = vmatprep.mubr.f32.mxu0 0.0
    %10664 = vmatmul.mubr.f32.gmra.mxu0 %v427
    %v10665 = vpop.f32.mrf.mxu0
    %v10666 = vadd.f32 0.0, %v10665
    %v10667 = vpop.f32.mrf.mxu0
    %10668 = vmatprep.mubr.f32.mxu0 0.0
    %10669 = vmatmul.mubr.f32.gmra.mxu0 %v429
    %v10670 = vpop.f32.mrf.mxu0
    %v10671 = vadd.f32 0.0, %v10670
    %v10672 = vpop.f32.mrf.mxu0
    %10673 = vmatprep.mubr.f32.mxu0 0.0
    %10674 = vmatmul.mubr.f32.gmra.mxu0 %v431
    %v10675 = vpop.f32.mrf.mxu0
    %v10676 = vadd.f32 0.0, %v10675
    %v10677 = vpop.f32.mrf.mxu0
    %10678 = vmatprep.mubr.f32.mxu0 0.0
    %10679 = vmatmul.mubr.f32.gmra.mxu0 %v433
    %v10680 = vpop.f32.mrf.mxu0
    %v10681 = vadd.f32 0.0, %v10680
    %v10682 = vpop.f32.mrf.mxu0
    %10683 = vmatprep.mubr.f32.mxu0 0.0
    %10684 = vmatmul.mubr.f32.gmra.mxu0 %v435
    %v10685 = vpop.f32.mrf.mxu0
    %v10686 = vadd.f32 0.0, %v10685
    %v10687 = vpop.f32.mrf.mxu0
    %10688 = vmatprep.mubr.f32.mxu0 0.0
    %10689 = vmatmul.mubr.f32.gmra.mxu0 %v437
    %v10690 = vpop.f32.mrf.mxu0
    %v10691 = vadd.f32 0.0, %v10690
    %v10692 = vpop.f32.mrf.mxu0
    %10693 = vmatprep.mubr.f32.mxu0 0.0
    %10694 = vmatmul.mubr.f32.gmra.mxu0 %v439
    %v10695 = vpop.f32.mrf.mxu0
    %v10696 = vadd.f32 0.0, %v10695
    %v10697 = vpop.f32.mrf.mxu0
    %10698 = vmatprep.mubr.f32.mxu0 0.0
    %10699 = vmatmul.mubr.f32.gmra.mxu0 %v441
    %v10700 = vpop.f32.mrf.mxu0
    %v10701 = vadd.f32 0.0, %v10700
    %v10702 = vpop.f32.mrf.mxu0
    %10703 = vmatprep.mubr.f32.mxu0 0.0
    %10704 = vmatmul.mubr.f32.gmra.mxu0 %v443
    %v10705 = vpop.f32.mrf.mxu0
    %v10706 = vadd.f32 0.0, %v10705
    %v10707 = vpop.f32.mrf.mxu0
    %10708 = vmatprep.mubr.f32.mxu0 0.0
    %10709 = vmatmul.mubr.f32.gmra.mxu0 %v445
    %v10710 = vpop.f32.mrf.mxu0
    %v10711 = vadd.f32 0.0, %v10710
    %v10712 = vpop.f32.mrf.mxu0
    %10713 = vmatprep.mubr.f32.mxu0 0.0
    %10714 = vmatmul.mubr.f32.gmra.mxu0 %v447
    %v10715 = vpop.f32.mrf.mxu0
    %v10716 = vadd.f32 0.0, %v10715
    %v10717 = vpop.f32.mrf.mxu0
    %10718 = vmatprep.mubr.f32.mxu0 0.0
    %10719 = vmatmul.mubr.f32.gmra.mxu0 %v449
    %v10720 = vpop.f32.mrf.mxu0
    %v10721 = vadd.f32 0.0, %v10720
    %v10722 = vpop.f32.mrf.mxu0
    %10723 = vmatprep.mubr.f32.mxu0 0.0
    %10724 = vmatmul.mubr.f32.gmra.mxu0 %v451
    %v10725 = vpop.f32.mrf.mxu0
    %v10726 = vadd.f32 0.0, %v10725
    %v10727 = vpop.f32.mrf.mxu0
    %10728 = vmatprep.mubr.f32.mxu0 0.0
    %10729 = vmatmul.mubr.f32.gmra.mxu0 %v453
    %v10730 = vpop.f32.mrf.mxu0
    %v10731 = vadd.f32 0.0, %v10730
    %v10732 = vpop.f32.mrf.mxu0
    %10733 = vmatprep.mubr.f32.mxu0 0.0
    %10734 = vmatmul.mubr.f32.gmra.mxu0 %v455
    %v10735 = vpop.f32.mrf.mxu0
    %v10736 = vadd.f32 0.0, %v10735
    %v10737 = vpop.f32.mrf.mxu0
    %10738 = vmatprep.mubr.f32.mxu0 0.0
    %10739 = vmatmul.mubr.f32.gmra.mxu0 %v457
    %v10740 = vpop.f32.mrf.mxu0
    %v10741 = vadd.f32 0.0, %v10740
    %v10742 = vpop.f32.mrf.mxu0
    %10743 = vmatprep.mubr.f32.mxu0 0.0
    %10744 = vmatmul.mubr.f32.gmra.mxu0 %v459
    %v10745 = vpop.f32.mrf.mxu0
    %v10746 = vadd.f32 0.0, %v10745
    %v10747 = vpop.f32.mrf.mxu0
    %10748 = vmatprep.mubr.f32.mxu0 0.0
    %10749 = vmatmul.mubr.f32.gmra.mxu0 %v461
    %v10750 = vpop.f32.mrf.mxu0
    %v10751 = vadd.f32 0.0, %v10750
    %v10752 = vpop.f32.mrf.mxu0
    %10753 = vmatprep.mubr.f32.mxu0 0.0
    %10754 = vmatmul.mubr.f32.gmra.mxu0 %v463
    %v10755 = vpop.f32.mrf.mxu0
    %v10756 = vadd.f32 0.0, %v10755
    %v10757 = vpop.f32.mrf.mxu0
    %10758 = vmatprep.mubr.f32.mxu0 0.0
    %10759 = vmatmul.mubr.f32.gmra.mxu0 %v465
    %v10760 = vpop.f32.mrf.mxu0
    %v10761 = vadd.f32 0.0, %v10760
    %v10762 = vpop.f32.mrf.mxu0
    %10763 = vmatprep.mubr.f32.mxu0 0.0
    %10764 = vmatmul.mubr.f32.gmra.mxu0 %v467
    %v10765 = vpop.f32.mrf.mxu0
    %v10766 = vadd.f32 0.0, %v10765
    %v10767 = vpop.f32.mrf.mxu0
    %10768 = vmatprep.mubr.f32.mxu0 0.0
    %10769 = vmatmul.mubr.f32.gmra.mxu0 %v469
    %v10770 = vpop.f32.mrf.mxu0
    %v10771 = vadd.f32 0.0, %v10770
    %v10772 = vpop.f32.mrf.mxu0
    %10773 = vmatprep.mubr.f32.mxu0 0.0
    %10774 = vmatmul.mubr.f32.gmra.mxu0 %v471
    %v10775 = vpop.f32.mrf.mxu0
    %v10776 = vadd.f32 0.0, %v10775
    %v10777 = vpop.f32.mrf.mxu0
    %10778 = vmatprep.mubr.f32.mxu0 0.0
    %10779 = vmatmul.mubr.f32.gmra.mxu0 %v473
    %v10780 = vpop.f32.mrf.mxu0
    %v10781 = vadd.f32 0.0, %v10780
    %v10782 = vpop.f32.mrf.mxu0
    %10783 = vmatprep.mubr.f32.mxu0 0.0
    %10784 = vmatmul.mubr.f32.gmra.mxu0 %v475
    %v10785 = vpop.f32.mrf.mxu0
    %v10786 = vadd.f32 0.0, %v10785
    %v10787 = vpop.f32.mrf.mxu0
    %10788 = vmatprep.mubr.f32.mxu0 0.0
    %10789 = vmatmul.mubr.f32.gmra.mxu0 %v2669
    %v10790 = vpop.f32.mrf.mxu0
    %v10791 = vadd.f32 0.0, %v10790
    %v10792 = vpop.f32.mrf.mxu0
    %10793 = vmatprep.mubr.f32.mxu0 0.0
    %10794 = vmatmul.mubr.f32.gmra.mxu0 %v2671
    %v10795 = vpop.f32.mrf.mxu0
    %v10796 = vadd.f32 0.0, %v10795
    %v10797 = vpop.f32.mrf.mxu0
    %10798 = vmatprep.mubr.f32.mxu0 0.0
    %10799 = vmatmul.mubr.f32.gmra.mxu0 %v481
    %v10800 = vpop.f32.mrf.mxu0
    %v10801 = vadd.f32 0.0, %v10800
    %v10802 = vpop.f32.mrf.mxu0
    %10803 = vmatprep.mubr.f32.mxu0 0.0
    %10804 = vmatmul.mubr.f32.gmra.mxu0 %v483
    %v10805 = vpop.f32.mrf.mxu0
    %v10806 = vadd.f32 0.0, %v10805
    %v10807 = vpop.f32.mrf.mxu0
    %10808 = vmatprep.mubr.f32.mxu0 0.0
    %10809 = vmatmul.mubr.f32.gmra.mxu0 %v485
    %v10810 = vpop.f32.mrf.mxu0
    %v10811 = vadd.f32 0.0, %v10810
    %v10812 = vpop.f32.mrf.mxu0
    %10813 = vmatprep.mubr.f32.mxu0 0.0
    %10814 = vmatmul.mubr.f32.gmra.mxu0 %v487
    %v10815 = vpop.f32.mrf.mxu0
    %v10816 = vadd.f32 0.0, %v10815
    %v10817 = vpop.f32.mrf.mxu0
    %10818 = vmatprep.mubr.f32.mxu0 0.0
    %10819 = vmatmul.mubr.f32.gmra.mxu0 %v489
    %v10820 = vpop.f32.mrf.mxu0
    %v10821 = vadd.f32 0.0, %v10820
    %v10822 = vpop.f32.mrf.mxu0
    %10823 = vmatprep.mubr.f32.mxu0 0.0
    %10824 = vmatmul.mubr.f32.gmra.mxu0 %v491
    %v10825 = vpop.f32.mrf.mxu0
    %v10826 = vadd.f32 0.0, %v10825
    %v10827 = vpop.f32.mrf.mxu0
    %10828 = vmatprep.mubr.f32.mxu0 0.0
    %10829 = vmatmul.mubr.f32.gmra.mxu0 %v493
    %v10830 = vpop.f32.mrf.mxu0
    %v10831 = vadd.f32 0.0, %v10830
    %v10832 = vpop.f32.mrf.mxu0
    %10833 = vmatprep.mubr.f32.mxu0 0.0
    %10834 = vmatmul.mubr.f32.gmra.mxu0 %v495
    %v10835 = vpop.f32.mrf.mxu0
    %v10836 = vadd.f32 0.0, %v10835
    %v10837 = vpop.f32.mrf.mxu0
    %10838 = vmatprep.mubr.f32.mxu0 0.0
    %10839 = vmatmul.mubr.f32.gmra.mxu0 %v497
    %v10840 = vpop.f32.mrf.mxu0
    %v10841 = vadd.f32 0.0, %v10840
    %v10842 = vpop.f32.mrf.mxu0
    %10843 = vmatprep.mubr.f32.mxu0 0.0
    %10844 = vmatmul.mubr.f32.gmra.mxu0 %v499
    %v10845 = vpop.f32.mrf.mxu0
    %v10846 = vadd.f32 0.0, %v10845
    %v10847 = vpop.f32.mrf.mxu0
    %10848 = vmatprep.mubr.f32.mxu0 0.0
    %10849 = vmatmul.mubr.f32.gmra.mxu0 %v501
    %v10850 = vpop.f32.mrf.mxu0
    %v10851 = vadd.f32 0.0, %v10850
    %v10852 = vpop.f32.mrf.mxu0
    %10853 = vmatprep.mubr.f32.mxu0 0.0
    %10854 = vmatmul.mubr.f32.gmra.mxu0 %v503
    %v10855 = vpop.f32.mrf.mxu0
    %v10856 = vadd.f32 0.0, %v10855
    %v10857 = vpop.f32.mrf.mxu0
    %10858 = vmatprep.mubr.f32.mxu0 0.0
    %10859 = vmatmul.mubr.f32.gmra.mxu0 %v505
    %v10860 = vpop.f32.mrf.mxu0
    %v10861 = vadd.f32 0.0, %v10860
    %v10862 = vpop.f32.mrf.mxu0
    %10863 = vmatprep.mubr.f32.mxu0 0.0
    %10864 = vmatmul.mubr.f32.gmra.mxu0 %v507
    %v10865 = vpop.f32.mrf.mxu0
    %v10866 = vadd.f32 0.0, %v10865
    %v10867 = vpop.f32.mrf.mxu0
    %10868 = vmatprep.mubr.f32.mxu0 0.0
    %10869 = vmatmul.mubr.f32.gmra.mxu0 %v509
    %v10870 = vpop.f32.mrf.mxu0
    %v10871 = vadd.f32 0.0, %v10870
    %v10872 = vpop.f32.mrf.mxu0
    %10873 = vmatprep.mubr.f32.mxu0 0.0
    %10874 = vmatmul.mubr.f32.gmra.mxu0 %v511
    %v10875 = vpop.f32.mrf.mxu0
    %v10876 = vadd.f32 0.0, %v10875
    %v10877 = vpop.f32.mrf.mxu0
    %10878 = vmatprep.mubr.f32.mxu0 0.0
    %10879 = vmatmul.mubr.f32.gmra.mxu0 %v513
    %v10880 = vpop.f32.mrf.mxu0
    %v10881 = vadd.f32 0.0, %v10880
    %v10882 = vpop.f32.mrf.mxu0
    %10883 = vmatprep.mubr.f32.mxu0 0.0
    %10884 = vmatmul.mubr.f32.gmra.mxu0 %v515
    %v10885 = vpop.f32.mrf.mxu0
    %v10886 = vadd.f32 0.0, %v10885
    %v10887 = vpop.f32.mrf.mxu0
    %10888 = vmatprep.mubr.f32.mxu0 0.0
    %10889 = vmatmul.mubr.f32.gmra.mxu0 %v517
    %v10890 = vpop.f32.mrf.mxu0
    %v10891 = vadd.f32 0.0, %v10890
    %v10892 = vpop.f32.mrf.mxu0
    %10893 = vmatprep.mubr.f32.mxu0 0.0
    %10894 = vmatmul.mubr.f32.gmra.mxu0 %v519
    %v10895 = vpop.f32.mrf.mxu0
    %v10896 = vadd.f32 0.0, %v10895
    %v10897 = vpop.f32.mrf.mxu0
    %10898 = vmatprep.mubr.f32.mxu0 0.0
    %10899 = vmatmul.mubr.f32.gmra.mxu0 %v521
    %v10900 = vpop.f32.mrf.mxu0
    %v10901 = vadd.f32 0.0, %v10900
    %v10902 = vpop.f32.mrf.mxu0
    %10903 = vmatprep.mubr.f32.mxu0 0.0
    %10904 = vmatmul.mubr.f32.gmra.mxu0 %v523
    %v10905 = vpop.f32.mrf.mxu0
    %v10906 = vadd.f32 0.0, %v10905
    %v10907 = vpop.f32.mrf.mxu0
    %10908 = vmatprep.mubr.f32.mxu0 0.0
    %10909 = vmatmul.mubr.f32.gmra.mxu0 %v525
    %v10910 = vpop.f32.mrf.mxu0
    %v10911 = vadd.f32 0.0, %v10910
    %v10912 = vpop.f32.mrf.mxu0
    %10913 = vmatprep.mubr.f32.mxu0 0.0
    %10914 = vmatmul.mubr.f32.gmra.mxu0 %v527
    %v10915 = vpop.f32.mrf.mxu0
    %v10916 = vadd.f32 0.0, %v10915
    %v10917 = vpop.f32.mrf.mxu0
    %10918 = vmatprep.mubr.f32.mxu0 0.0
    %10919 = vmatmul.mubr.f32.gmra.mxu0 %v529
    %v10920 = vpop.f32.mrf.mxu0
    %v10921 = vadd.f32 0.0, %v10920
    %v10922 = vpop.f32.mrf.mxu0
    %10923 = vmatprep.mubr.f32.mxu0 0.0
    %10924 = vmatmul.mubr.f32.gmra.mxu0 %v531
    %v10925 = vpop.f32.mrf.mxu0
    %v10926 = vadd.f32 0.0, %v10925
    %v10927 = vpop.f32.mrf.mxu0
    %10928 = vmatprep.mubr.f32.mxu0 0.0
    %10929 = vmatmul.mubr.f32.gmra.mxu0 %v533
    %v10930 = vpop.f32.mrf.mxu0
    %v10931 = vadd.f32 0.0, %v10930
    %v10932 = vpop.f32.mrf.mxu0
    %10933 = vmatprep.mubr.f32.mxu0 0.0
    %10934 = vmatmul.mubr.f32.gmra.mxu0 %v535
    %v10935 = vpop.f32.mrf.mxu0
    %v10936 = vadd.f32 0.0, %v10935
    %v10937 = vpop.f32.mrf.mxu0
    %10938 = vmatprep.mubr.f32.mxu0 0.0
    %10939 = vmatmul.mubr.f32.gmra.mxu0 %v537
    %v10940 = vpop.f32.mrf.mxu0
    %v10941 = vadd.f32 0.0, %v10940
    %v10942 = vpop.f32.mrf.mxu0
    %10943 = vmatprep.mubr.f32.mxu0 0.0
    %10944 = vmatmul.mubr.f32.gmra.mxu0 %v539
    %v10945 = vpop.f32.mrf.mxu0
    %v10946 = vadd.f32 0.0, %v10945
    %v10947 = vpop.f32.mrf.mxu0
    %10948 = vmatprep.mubr.f32.mxu0 0.0
    %10949 = vmatmul.mubr.f32.gmra.mxu0 %v2673
    %v10950 = vpop.f32.mrf.mxu0
    %v10951 = vadd.f32 0.0, %v10950
    %v10952 = vpop.f32.mrf.mxu0
    %10953 = vmatprep.mubr.f32.mxu0 0.0
    %10954 = vmatmul.mubr.f32.gmra.mxu0 %v2675
    %v10955 = vpop.f32.mrf.mxu0
    %v10956 = vadd.f32 0.0, %v10955
    %v10957 = vpop.f32.mrf.mxu0
    %10958 = vdwg.mxu0
    %v10960 = vlaneseq
    %v10961 = vshrl.u32 %v10960, 7
    %v10962 = vsub.s32 0, %v10961
    %v10963 = vrot.slane %v10566, %v10962
    %v10965 = vmul.f32 %v10293, %v10963
    %v10966 = vmul.f32 %v10294, %v10963
    %v10967 = vmul.f32 %v10295, %v10963
    %v10968 = vmul.f32 %v10296, %v10963
    %v10969 = vmul.f32 %v10297, %v10963
    %v10970 = vmul.f32 %v10298, %v10963
    %v10971 = vmul.f32 %v10299, %v10963
    %v10972 = vmul.f32 %v10300, %v10963
    %v10973 = vmul.f32 %v10301, %v10963
    %v10974 = vmul.f32 %v10302, %v10963
    %v10975 = vmul.f32 %v10303, %v10963
    %v10976 = vmul.f32 %v10304, %v10963
    %v10977 = vmul.f32 %v10305, %v10963
    %v10978 = vmul.f32 %v10306, %v10963
    %v10979 = vmul.f32 %v10307, %v10963
    %v10980 = vmul.f32 %v10308, %v10963
    %v10981 = vmul.f32 %v10309, %v10963
    %v10982 = vmul.f32 %v10310, %v10963
    %v10983 = vmul.f32 %v10311, %v10963
    %v10984 = vmul.f32 %v10312, %v10963
    %v10985 = vmul.f32 %v10313, %v10963
    %v10986 = vmul.f32 %v10314, %v10963
    %v10987 = vmul.f32 %v10315, %v10963
    %v10988 = vmul.f32 %v10316, %v10963
    %v10989 = vmul.f32 %v10317, %v10963
    %v10990 = vmul.f32 %v10318, %v10963
    %v10991 = vmul.f32 %v10319, %v10963
    %v10992 = vmul.f32 %v10320, %v10963
    %v10993 = vmul.f32 %v10321, %v10963
    %v10994 = vmul.f32 %v10322, %v10963
    %v10995 = vmul.f32 %v10323, %v10963
    %v10996 = vmul.f32 %v10324, %v10963
    %v10997 = vmul.f32 %v10325, %v10963
    %v10998 = vmul.f32 %v10326, %v10963
    %v10999 = vmul.f32 %v10327, %v10963
    %v11000 = vmul.f32 %v10328, %v10963
    %v11001 = vmul.f32 %v10329, %v10963
    %v11002 = vmul.f32 %v10330, %v10963
    %v11003 = vmul.f32 %v10331, %v10963
    %v11004 = vmul.f32 %v10332, %v10963
    %v11005 = vmul.f32 %v10333, %v10963
    %v11006 = vmul.f32 %v10334, %v10963
    %v11007 = vmul.f32 %v10335, %v10963
    %v11008 = vmul.f32 %v10336, %v10963
    %v11009 = vmul.f32 %v10337, %v10963
    %v11010 = vmul.f32 %v10338, %v10963
    %v11011 = vmul.f32 %v10339, %v10963
    %v11012 = vmul.f32 %v10340, %v10963
    %v11013 = vmul.f32 %v10341, %v10963
    %v11014 = vmul.f32 %v10342, %v10963
    %v11015 = vmul.f32 %v10343, %v10963
    %v11016 = vmul.f32 %v10344, %v10963
    %v11017 = vmul.f32 %v10345, %v10963
    %v11018 = vmul.f32 %v10346, %v10963
    %v11019 = vmul.f32 %v10347, %v10963
    %v11020 = vmul.f32 %v10348, %v10963
    %v11021 = vmul.f32 %v10349, %v10963
    %v11022 = vmul.f32 %v10350, %v10963
    %v11023 = vmul.f32 %v10351, %v10963
    %v11024 = vmul.f32 %v10352, %v10963
    %v11025 = vmul.f32 %v10353, %v10963
    %v11026 = vmul.f32 %v10354, %v10963
    %v11027 = vmul.f32 %v10355, %v10963
    %v11028 = vmul.f32 %v10356, %v10963
    %v11030 = vlaneseq
    %v11031 = vshrl.u32 %v11030, 7
    %v11032 = vsub.s32 0, %v11031
    %v11033 = vrot.slane %v10569, %v11032
    %v11035 = vadd.f32 %v11033, %v10641
    %v11036 = vadd.f32 %v11033, %v10646
    %v11037 = vadd.f32 %v11033, %v10651
    %v11038 = vadd.f32 %v11033, %v10656
    %v11039 = vadd.f32 %v11033, %v10661
    %v11040 = vadd.f32 %v11033, %v10666
    %v11041 = vadd.f32 %v11033, %v10671
    %v11042 = vadd.f32 %v11033, %v10676
    %v11043 = vadd.f32 %v11033, %v10681
    %v11044 = vadd.f32 %v11033, %v10686
    %v11045 = vadd.f32 %v11033, %v10691
    %v11046 = vadd.f32 %v11033, %v10696
    %v11047 = vadd.f32 %v11033, %v10701
    %v11048 = vadd.f32 %v11033, %v10706
    %v11049 = vadd.f32 %v11033, %v10711
    %v11050 = vadd.f32 %v11033, %v10716
    %v11051 = vadd.f32 %v11033, %v10721
    %v11052 = vadd.f32 %v11033, %v10726
    %v11053 = vadd.f32 %v11033, %v10731
    %v11054 = vadd.f32 %v11033, %v10736
    %v11055 = vadd.f32 %v11033, %v10741
    %v11056 = vadd.f32 %v11033, %v10746
    %v11057 = vadd.f32 %v11033, %v10751
    %v11058 = vadd.f32 %v11033, %v10756
    %v11059 = vadd.f32 %v11033, %v10761
    %v11060 = vadd.f32 %v11033, %v10766
    %v11061 = vadd.f32 %v11033, %v10771
    %v11062 = vadd.f32 %v11033, %v10776
    %v11063 = vadd.f32 %v11033, %v10781
    %v11064 = vadd.f32 %v11033, %v10786
    %v11065 = vadd.f32 %v11033, %v10791
    %v11066 = vadd.f32 %v11033, %v10796
    %v11067 = vadd.f32 %v11033, %v10801
    %v11068 = vadd.f32 %v11033, %v10806
    %v11069 = vadd.f32 %v11033, %v10811
    %v11070 = vadd.f32 %v11033, %v10816
    %v11071 = vadd.f32 %v11033, %v10821
    %v11072 = vadd.f32 %v11033, %v10826
    %v11073 = vadd.f32 %v11033, %v10831
    %v11074 = vadd.f32 %v11033, %v10836
    %v11075 = vadd.f32 %v11033, %v10841
    %v11076 = vadd.f32 %v11033, %v10846
    %v11077 = vadd.f32 %v11033, %v10851
    %v11078 = vadd.f32 %v11033, %v10856
    %v11079 = vadd.f32 %v11033, %v10861
    %v11080 = vadd.f32 %v11033, %v10866
    %v11081 = vadd.f32 %v11033, %v10871
    %v11082 = vadd.f32 %v11033, %v10876
    %v11083 = vadd.f32 %v11033, %v10881
    %v11084 = vadd.f32 %v11033, %v10886
    %v11085 = vadd.f32 %v11033, %v10891
    %v11086 = vadd.f32 %v11033, %v10896
    %v11087 = vadd.f32 %v11033, %v10901
    %v11088 = vadd.f32 %v11033, %v10906
    %v11089 = vadd.f32 %v11033, %v10911
    %v11090 = vadd.f32 %v11033, %v10916
    %v11091 = vadd.f32 %v11033, %v10921
    %v11092 = vadd.f32 %v11033, %v10926
    %v11093 = vadd.f32 %v11033, %v10931
    %v11094 = vadd.f32 %v11033, %v10936
    %v11095 = vadd.f32 %v11033, %v10941
    %v11096 = vadd.f32 %v11033, %v10946
    %v11097 = vadd.f32 %v11033, %v10951
    %v11098 = vadd.f32 %v11033, %v10956
    %v11099 = vadd.f32 %v10965, %v11035
    %v11100 = vadd.f32 %v10966, %v11036
    %v11101 = vadd.f32 %v10967, %v11037
    %v11102 = vadd.f32 %v10968, %v11038
    %v11103 = vadd.f32 %v10969, %v11039
    %v11104 = vadd.f32 %v10970, %v11040
    %v11105 = vadd.f32 %v10971, %v11041
    %v11106 = vadd.f32 %v10972, %v11042
    %v11107 = vadd.f32 %v10973, %v11043
    %v11108 = vadd.f32 %v10974, %v11044
    %v11109 = vadd.f32 %v10975, %v11045
    %v11110 = vadd.f32 %v10976, %v11046
    %v11111 = vadd.f32 %v10977, %v11047
    %v11112 = vadd.f32 %v10978, %v11048
    %v11113 = vadd.f32 %v10979, %v11049
    %v11114 = vadd.f32 %v10980, %v11050
    %v11115 = vadd.f32 %v10981, %v11051
    %v11116 = vadd.f32 %v10982, %v11052
    %v11117 = vadd.f32 %v10983, %v11053
    %v11118 = vadd.f32 %v10984, %v11054
    %v11119 = vadd.f32 %v10985, %v11055
    %v11120 = vadd.f32 %v10986, %v11056
    %v11121 = vadd.f32 %v10987, %v11057
    %v11122 = vadd.f32 %v10988, %v11058
    %v11123 = vadd.f32 %v10989, %v11059
    %v11124 = vadd.f32 %v10990, %v11060
    %v11125 = vadd.f32 %v10991, %v11061
    %v11126 = vadd.f32 %v10992, %v11062
    %v11127 = vadd.f32 %v10993, %v11063
    %v11128 = vadd.f32 %v10994, %v11064
    %v11129 = vadd.f32 %v10995, %v11065
    %v11130 = vadd.f32 %v10996, %v11066
    %v11131 = vadd.f32 %v10997, %v11067
    %v11132 = vadd.f32 %v10998, %v11068
    %v11133 = vadd.f32 %v10999, %v11069
    %v11134 = vadd.f32 %v11000, %v11070
    %v11135 = vadd.f32 %v11001, %v11071
    %v11136 = vadd.f32 %v11002, %v11072
    %v11137 = vadd.f32 %v11003, %v11073
    %v11138 = vadd.f32 %v11004, %v11074
    %v11139 = vadd.f32 %v11005, %v11075
    %v11140 = vadd.f32 %v11006, %v11076
    %v11141 = vadd.f32 %v11007, %v11077
    %v11142 = vadd.f32 %v11008, %v11078
    %v11143 = vadd.f32 %v11009, %v11079
    %v11144 = vadd.f32 %v11010, %v11080
    %v11145 = vadd.f32 %v11011, %v11081
    %v11146 = vadd.f32 %v11012, %v11082
    %v11147 = vadd.f32 %v11013, %v11083
    %v11148 = vadd.f32 %v11014, %v11084
    %v11149 = vadd.f32 %v11015, %v11085
    %v11150 = vadd.f32 %v11016, %v11086
    %v11151 = vadd.f32 %v11017, %v11087
    %v11152 = vadd.f32 %v11018, %v11088
    %v11153 = vadd.f32 %v11019, %v11089
    %v11154 = vadd.f32 %v11020, %v11090
    %v11155 = vadd.f32 %v11021, %v11091
    %v11156 = vadd.f32 %v11022, %v11092
    %v11157 = vadd.f32 %v11023, %v11093
    %v11158 = vadd.f32 %v11024, %v11094
    %v11159 = vadd.f32 %v11025, %v11095
    %v11160 = vadd.f32 %v11026, %v11096
    %v11161 = vadd.f32 %v11027, %v11097
    %v11162 = vadd.f32 %v11028, %v11098
    %v11163 = vmax.f32 %v11099, 0.0
    %v11164 = vmax.f32 %v11100, 0.0
    %v11165 = vmax.f32 %v11101, 0.0
    %v11166 = vmax.f32 %v11102, 0.0
    %v11167 = vmax.f32 %v11103, 0.0
    %v11168 = vmax.f32 %v11104, 0.0
    %v11169 = vmax.f32 %v11105, 0.0
    %v11170 = vmax.f32 %v11106, 0.0
    %v11171 = vmax.f32 %v11107, 0.0
    %v11172 = vmax.f32 %v11108, 0.0
    %v11173 = vmax.f32 %v11109, 0.0
    %v11174 = vmax.f32 %v11110, 0.0
    %v11175 = vmax.f32 %v11111, 0.0
    %v11176 = vmax.f32 %v11112, 0.0
    %v11177 = vmax.f32 %v11113, 0.0
    %v11178 = vmax.f32 %v11114, 0.0
    %v11179 = vmax.f32 %v11115, 0.0
    %v11180 = vmax.f32 %v11116, 0.0
    %v11181 = vmax.f32 %v11117, 0.0
    %v11182 = vmax.f32 %v11118, 0.0
    %v11183 = vmax.f32 %v11119, 0.0
    %v11184 = vmax.f32 %v11120, 0.0
    %v11185 = vmax.f32 %v11121, 0.0
    %v11186 = vmax.f32 %v11122, 0.0
    %v11187 = vmax.f32 %v11123, 0.0
    %v11188 = vmax.f32 %v11124, 0.0
    %v11189 = vmax.f32 %v11125, 0.0
    %v11190 = vmax.f32 %v11126, 0.0
    %v11191 = vmax.f32 %v11127, 0.0
    %v11192 = vmax.f32 %v11128, 0.0
    %v11193 = vmax.f32 %v11129, 0.0
    %v11194 = vmax.f32 %v11130, 0.0
    %v11195 = vmax.f32 %v11131, 0.0
    %v11196 = vmax.f32 %v11132, 0.0
    %v11197 = vmax.f32 %v11133, 0.0
    %v11198 = vmax.f32 %v11134, 0.0
    %v11199 = vmax.f32 %v11135, 0.0
    %v11200 = vmax.f32 %v11136, 0.0
    %v11201 = vmax.f32 %v11137, 0.0
    %v11202 = vmax.f32 %v11138, 0.0
    %v11203 = vmax.f32 %v11139, 0.0
    %v11204 = vmax.f32 %v11140, 0.0
    %v11205 = vmax.f32 %v11141, 0.0
    %v11206 = vmax.f32 %v11142, 0.0
    %v11207 = vmax.f32 %v11143, 0.0
    %v11208 = vmax.f32 %v11144, 0.0
    %v11209 = vmax.f32 %v11145, 0.0
    %v11210 = vmax.f32 %v11146, 0.0
    %v11211 = vmax.f32 %v11147, 0.0
    %v11212 = vmax.f32 %v11148, 0.0
    %v11213 = vmax.f32 %v11149, 0.0
    %v11214 = vmax.f32 %v11150, 0.0
    %v11215 = vmax.f32 %v11151, 0.0
    %v11216 = vmax.f32 %v11152, 0.0
    %v11217 = vmax.f32 %v11153, 0.0
    %v11218 = vmax.f32 %v11154, 0.0
    %v11219 = vmax.f32 %v11155, 0.0
    %v11220 = vmax.f32 %v11156, 0.0
    %v11221 = vmax.f32 %v11157, 0.0
    %v11222 = vmax.f32 %v11158, 0.0
    %v11223 = vmax.f32 %v11159, 0.0
    %v11224 = vmax.f32 %v11160, 0.0
    %v11225 = vmax.f32 %v11161, 0.0
    %v11226 = vmax.f32 %v11162, 0.0
    %11227 = vst [vmem:[#allocation6] sm:$0xff] %v11163
    %11228 = vst [vmem:[#allocation6 + $0x8] sm:$0xff] %v11164
    %11229 = vst [vmem:[#allocation6 + $0x10] sm:$0xff] %v11165
    %11230 = vst [vmem:[#allocation6 + $0x18] sm:$0xff] %v11166
    %11231 = vst [vmem:[#allocation6 + $0x20] sm:$0xff] %v11167
    %11232 = vst [vmem:[#allocation6 + $0x28] sm:$0xff] %v11168
    %11233 = vst [vmem:[#allocation6 + $0x30] sm:$0xff] %v11169
    %11234 = vst [vmem:[#allocation6 + $0x38] sm:$0xff] %v11170
    %11235 = vst [vmem:[#allocation6 + $0x40] sm:$0xff] %v11171
    %11236 = vst [vmem:[#allocation6 + $0x48] sm:$0xff] %v11172
    %11237 = vst [vmem:[#allocation6 + $0x50] sm:$0xff] %v11173
    %11238 = vst [vmem:[#allocation6 + $0x58] sm:$0xff] %v11174
    %11239 = vst [vmem:[#allocation6 + $0x60] sm:$0xff] %v11175
    %11240 = vst [vmem:[#allocation6 + $0x68] sm:$0xff] %v11176
    %11241 = vst [vmem:[#allocation6 + $0x70] sm:$0xff] %v11177
    %11242 = vst [vmem:[#allocation6 + $0x78] sm:$0xff] %v11178
    %11243 = vst [vmem:[#allocation6 + $0x80] sm:$0xff] %v11179
    %11244 = vst [vmem:[#allocation6 + $0x88] sm:$0xff] %v11180
    %11245 = vst [vmem:[#allocation6 + $0x90] sm:$0xff] %v11181
    %11246 = vst [vmem:[#allocation6 + $0x98] sm:$0xff] %v11182
    %11247 = vst [vmem:[#allocation6 + $0xa0] sm:$0xff] %v11183
    %11248 = vst [vmem:[#allocation6 + $0xa8] sm:$0xff] %v11184
    %11249 = vst [vmem:[#allocation6 + $0xb0] sm:$0xff] %v11185
    %11250 = vst [vmem:[#allocation6 + $0xb8] sm:$0xff] %v11186
    %11251 = vst [vmem:[#allocation6 + $0xc0] sm:$0xff] %v11187
    %11252 = vst [vmem:[#allocation6 + $0xc8] sm:$0xff] %v11188
    %11253 = vst [vmem:[#allocation6 + $0xd0] sm:$0xff] %v11189
    %11254 = vst [vmem:[#allocation6 + $0xd8] sm:$0xff] %v11190
    %11255 = vst [vmem:[#allocation6 + $0xe0] sm:$0xff] %v11191
    %11256 = vst [vmem:[#allocation6 + $0xe8] sm:$0xff] %v11192
    %11257 = vst [vmem:[#allocation6 + $0xf0] sm:$0xff] %v11193
    %11258 = vst [vmem:[#allocation6 + $0xf8] sm:$0xff] %v11194
    %11259 = vst [vmem:[#allocation6 + $0x100] sm:$0xff] %v11195
    %11260 = vst [vmem:[#allocation6 + $0x108] sm:$0xff] %v11196
    %11261 = vst [vmem:[#allocation6 + $0x110] sm:$0xff] %v11197
    %11262 = vst [vmem:[#allocation6 + $0x118] sm:$0xff] %v11198
    %11263 = vst [vmem:[#allocation6 + $0x120] sm:$0xff] %v11199
    %11264 = vst [vmem:[#allocation6 + $0x128] sm:$0xff] %v11200
    %11265 = vst [vmem:[#allocation6 + $0x130] sm:$0xff] %v11201
    %11266 = vst [vmem:[#allocation6 + $0x138] sm:$0xff] %v11202
    %11267 = vst [vmem:[#allocation6 + $0x140] sm:$0xff] %v11203
    %11268 = vst [vmem:[#allocation6 + $0x148] sm:$0xff] %v11204
    %11269 = vst [vmem:[#allocation6 + $0x150] sm:$0xff] %v11205
    %11270 = vst [vmem:[#allocation6 + $0x158] sm:$0xff] %v11206
    %11271 = vst [vmem:[#allocation6 + $0x160] sm:$0xff] %v11207
    %11272 = vst [vmem:[#allocation6 + $0x168] sm:$0xff] %v11208
    %11273 = vst [vmem:[#allocation6 + $0x170] sm:$0xff] %v11209
    %11274 = vst [vmem:[#allocation6 + $0x178] sm:$0xff] %v11210
    %11275 = vst [vmem:[#allocation6 + $0x180] sm:$0xff] %v11211
    %11276 = vst [vmem:[#allocation6 + $0x188] sm:$0xff] %v11212
    %11277 = vst [vmem:[#allocation6 + $0x190] sm:$0xff] %v11213
    %11278 = vst [vmem:[#allocation6 + $0x198] sm:$0xff] %v11214
    %11279 = vst [vmem:[#allocation6 + $0x1a0] sm:$0xff] %v11215
    %11280 = vst [vmem:[#allocation6 + $0x1a8] sm:$0xff] %v11216
    %11281 = vst [vmem:[#allocation6 + $0x1b0] sm:$0xff] %v11217
    %11282 = vst [vmem:[#allocation6 + $0x1b8] sm:$0xff] %v11218
    %11283 = vst [vmem:[#allocation6 + $0x1c0] sm:$0xff] %v11219
    %11284 = vst [vmem:[#allocation6 + $0x1c8] sm:$0xff] %v11220
    %11285 = vst [vmem:[#allocation6 + $0x1d0] sm:$0xff] %v11221
    %11286 = vst [vmem:[#allocation6 + $0x1d8] sm:$0xff] %v11222
    %11287 = vst [vmem:[#allocation6 + $0x1e0] sm:$0xff] %v11223
    %11288 = vst [vmem:[#allocation6 + $0x1e8] sm:$0xff] %v11224
    %11289 = vst [vmem:[#allocation6 + $0x1f0] sm:$0xff] %v11225
    %11290 = vst [vmem:[#allocation6 + $0x1f8] sm:$0xff] %v11226
    // Predicated region
    $region38: #{tpu_custom_call.1} parent=1 // pred_check
      _
    $region39: #{tpu_custom_call.1} parent=1 // pred_check_branch
      %11292 = sbr.rel (0) target = $region41
    $region40: #{tpu_custom_call.1} parent=1 // pred_region
      %s11294 = ssub.s32 8192, 8192
      %11295 = vsyncadd [#allocation5], %s11294
      %s11296 = sshll.u32 [#allocation6], 4
      %s11297 = int_to_ptr.vmem [resolvable:$true] %s11296
      %11302 = dma.vmem_to_hbm [thread:$0]  %s11297, 8192, %s8, [#allocation5], 128, 128, 8
    $region41: #{tpu_custom_call.1} parent=1 // pred_fallthru
      _
    // Predicated region
    $region42: #{tpu_custom_call.1} parent=1 // pred_check
      _
    $region43: #{tpu_custom_call.1} parent=1 // pred_check_branch
      %11304 = sbr.rel (0) target = $region45
    $region44: #{tpu_custom_call.1} parent=1 // pred_region
      %11305 = dma.done [#allocation5], 8192
    $region45: #{tpu_custom_call.1} parent=1 // pred_fallthru
      _
    %11306 = vsyncpa [#allocation4], 1
    %11307 = vsyncpa [#allocation5], 1

</llo_original>
